<compile_context>
chip_gen: v7x
topology: tpu7x:2x2x1
jax: 0.10.0
libtpu: 0.0.40
codegen_flags: <defaults>
</compile_context>

<pallas_src>
import jax
import jax.numpy as jnp
from jax.experimental import pallas as pl
from jax.experimental.pallas import tpu as pltpu


def _fusion_kernel(f1_ref, f2_ref, w1_ref, w2_ref, w3a_ref, w3b_ref, w4_ref,
                   out_ref, pad_a, pad_b, col_a, col_b):
    # f1_ref : (1, H, W, C)    feature1 tile (f32)
    # f2_ref : (1, H, W, C)    feature2 tile (f32)
    # w1_ref : (9*C, Cq)       feature2_transform conv3x3, taps flattened (bf16)
    # w2_ref : (Cq, C)         feature2_transform conv1x1 (bf16)
    # w3a_ref: (9*C, Cq)       calculate_weight conv3x3, feature1 half (bf16)
    # w3b_ref: (9*C, Cq)       calculate_weight conv3x3, ft2 half (bf16)
    # w4_ref : (Cq, C)         calculate_weight conv1x1 (bf16)
    # pad_a/b: (H+2, W+2, C)   zero-halo padded image scratches (bf16)
    # col_a/b: (H*W, 9*C)      im2col scratches (bf16)
    _, H, W, C = f1_ref.shape
    HW = H * W

    # Zero the padded scratches once per grid step (halo ring must be zero;
    # the interior is fully overwritten before every use below).
    zeros_pad = jnp.zeros(pad_a.shape, pad_a.dtype)
    pad_a[...] = zeros_pad
    pad_b[...] = zeros_pad

    def im2col(pad_ref, col_ref):
        # Gather the 9 shifted taps of the padded image into (HW, 9*C) so the
        # 3x3 conv becomes a single wide-K MXU matmul.
        for ky in range(3):
            for kx in range(3):
                k = ky * 3 + kx
                tap = pad_ref[ky:ky + H, kx:kx + W, :]
                col_ref[:, k * C:(k + 1) * C] = tap.reshape(HW, C)

    # Stage both input images up-front; the two im2col passes and the first
    # two matmuls below are independent chains (separate buffers).
    pad_a[1:H + 1, 1:W + 1, :] = f2_ref[0].astype(pad_a.dtype)
    pad_b[1:H + 1, 1:W + 1, :] = f1_ref[0].astype(pad_b.dtype)
    im2col(pad_a, col_a)
    im2col(pad_b, col_b)

    # ---- feature2_transform: conv3x3 -> ReLU -> conv1x1 -------------------
    hid = jnp.dot(col_a[...], w1_ref[...],
                  preferred_element_type=jnp.float32)            # (HW, Cq) f32
    hid = jnp.maximum(hid, 0.0)
    ft2 = jnp.dot(hid.astype(jnp.bfloat16), w2_ref[...],
                  preferred_element_type=jnp.float32)            # (HW, C) f32

    # ---- calculate_weight: conv3x3(cat[f1, ft2]) -> ReLU -> conv1x1 -> sigmoid
    # Concat eliminated: w3 was split host-side; sum the two im2col matmuls.
    acc = jnp.dot(col_b[...], w3a_ref[...],
                  preferred_element_type=jnp.float32)            # f1 half

    pad_a[1:H + 1, 1:W + 1, :] = ft2.reshape(H, W, C).astype(pad_a.dtype)
    im2col(pad_a, col_a)                                         # reuse pair A
    acc = acc + jnp.dot(col_a[...], w3b_ref[...],
                        preferred_element_type=jnp.float32)      # ft2 half

    hid2 = jnp.maximum(acc, 0.0)
    logit = jnp.dot(hid2.astype(jnp.bfloat16), w4_ref[...],
                    preferred_element_type=jnp.float32)          # (HW, C) f32

    # sigmoid = 1 / (1 + exp(-x)): exp on the EUP, divide via approx
    # reciprocal (also EUP) -> VALU slot stays free.
    gate = pl.reciprocal(1.0 + jnp.exp(-logit), approx=True)

    # ---- fused_out = weight * feature2_transformed + feature1 (f32) -------
    f1 = f1_ref[0].astype(jnp.float32).reshape(HW, C)
    out_ref[0] = (gate * ft2 + f1).reshape(H, W, C).astype(out_ref.dtype)


def fusion_branch_forward(feature1, feature2, params):
    """feature1, feature2: (N, H, W, C) float32 (NHWC)."""
    N, H, W, C = feature1.shape
    Cq = params["w1"].shape[-1]
    assert Cq == C // 4

    # Host-side weight prep (tiny, one-off): flatten 3x3 taps to im2col form,
    # split the gating conv weight into its concat halves, cast to bf16 for
    # the MXU (accumulation stays f32 inside the kernel).
    wdt = jnp.bfloat16
    w1m = params["w1"].reshape(9 * C, Cq).astype(wdt)                 # f2 taps
    w2m = params["w2"].astype(wdt)
    w3a = params["w3"][:, :, :C, :].reshape(9 * C, Cq).astype(wdt)    # f1 half
    w3b = params["w3"][:, :, C:, :].reshape(9 * C, Cq).astype(wdt)    # ft2 half
    w4m = params["w4"].astype(wdt)

    grid_spec = pltpu.PrefetchScalarGridSpec(
        num_scalar_prefetch=0,
        grid=(N,),
        in_specs=[
            pl.BlockSpec((1, H, W, C), lambda b: (b, 0, 0, 0)),   # feature1
            pl.BlockSpec((1, H, W, C), lambda b: (b, 0, 0, 0)),   # feature2
            pl.BlockSpec((9 * C, Cq), lambda b: (0, 0)),          # w1m
            pl.BlockSpec((Cq, C), lambda b: (0, 0)),              # w2m
            pl.BlockSpec((9 * C, Cq), lambda b: (0, 0)),          # w3a
            pl.BlockSpec((9 * C, Cq), lambda b: (0, 0)),          # w3b
            pl.BlockSpec((Cq, C), lambda b: (0, 0)),              # w4m
        ],
        out_specs=pl.BlockSpec((1, H, W, C), lambda b: (b, 0, 0, 0)),
        scratch_shapes=[
            pltpu.VMEM((H + 2, W + 2, C), jnp.bfloat16),   # pad_a (f2 / ft2)
            pltpu.VMEM((H + 2, W + 2, C), jnp.bfloat16),   # pad_b (f1)
            pltpu.VMEM((H * W, 9 * C), jnp.bfloat16),      # col_a
            pltpu.VMEM((H * W, 9 * C), jnp.bfloat16),      # col_b
        ],
    )

    return pl.pallas_call(
        _fusion_kernel,
        out_shape=jax.ShapeDtypeStruct((N, H, W, C), feature1.dtype),
        grid_spec=grid_spec,
        compiler_params=pltpu.CompilerParams(
            # Batch images are independent -> shard across TCs on v7x.
            dimension_semantics=("parallel",),
            # Explicit scoped-VMEM budget (v5e default is only 16 MiB).
            vmem_limit_bytes=32 * 1024 * 1024,
        ),
    )(feature1, feature2, w1m, w2m, w3a, w3b, w4m)


def _ref_forward(feature1, feature2, params):
    """Pure-JAX f32 reference (NHWC convs), mirrors the PyTorch forward."""
    dn = ("NHWC", "HWIO", "NHWC")

    def conv3x3(x, w):
        return jax.lax.conv_general_dilated(x, w, (1, 1), ((1, 1), (1, 1)),
                                            dimension_numbers=dn)

    def conv1x1(x, w):
        return jax.lax.conv_general_dilated(x, w, (1, 1), "VALID",
                                            dimension_numbers=dn)

    w2 = params["w2"][None, None]  # (1,1,Cq,C)
    w4 = params["w4"][None, None]
    ft2 = conv1x1(jax.nn.relu(conv3x3(feature2, params["w1"])), w2)
    cat = jnp.concatenate([feature1, ft2], axis=-1)
    weight = jax.nn.sigmoid(conv1x1(jax.nn.relu(conv3x3(cat, params["w3"])), w4))
    return weight * ft2 + feature1


def _init_params(key, in_dim):
    """Deterministic synthetic weights matching the module's shapes (no bias)."""
    out_dim = in_dim // 4
    k1, k2, k3, k4 = jax.random.split(key, 4)
    s = 0.2
    return {
        # feature2_transform: conv3x3(in_, out_), conv1x1(out_, in_)
        "w1": s * jax.random.normal(k1, (3, 3, in_dim, out_dim), jnp.float32),
        "w2": s * jax.random.normal(k2, (out_dim, in_dim), jnp.float32),
        # calculate_weight: conv3x3(2*in_, out_), conv1x1(out_, in_)
        "w3": s * jax.random.normal(k3, (3, 3, 2 * in_dim, out_dim), jnp.float32),
        "w4": s * jax.random.normal(k4, (out_dim, in_dim), jnp.float32),
    }


if __name__ == "__main__":
    # Small shapes: batch=2, in_dim=8 (-> hidden out_=2), spatial 16x16.
    N, H, W, C = 2, 16, 16, 8
    key = jax.random.PRNGKey(0)
    kf1, kf2, kp = jax.random.split(key, 3)
    feature1 = jax.random.normal(kf1, (N, H, W, C), jnp.float32)
    feature2 = jax.random.normal(kf2, (N, H, W, C), jnp.float32)
    params = _init_params(kp, C)

    out = fusion_branch_forward(feature1, feature2, params)
    out = jax.block_until_ready(out)

    ref = jax.block_until_ready(_ref_forward(feature1, feature2, params))
    assert out.shape == (N, H, W, C)
    # Tolerance accounts for bf16 MXU operands (f32 accumulation).
    assert jnp.allclose(out, ref, atol=5e-2, rtol=5e-2), (
        float(jnp.max(jnp.abs(out - ref))))

    print("KERNEL_OK")
</pallas_src>

<mosaic_0001>
module attributes {stable_mosaic.version = 11 : i64} {
  func.func @_fusion_kernel(%arg0: i32, %arg1: memref<1x16x16x8xf32, #tpu.memory_space<vmem>>, %arg2: memref<1x16x16x8xf32, #tpu.memory_space<vmem>>, %arg3: memref<72x2xbf16, #tpu.memory_space<vmem>>, %arg4: memref<2x8xbf16, #tpu.memory_space<vmem>>, %arg5: memref<72x2xbf16, #tpu.memory_space<vmem>>, %arg6: memref<72x2xbf16, #tpu.memory_space<vmem>>, %arg7: memref<2x8xbf16, #tpu.memory_space<vmem>>, %arg8: memref<1x16x16x8xf32, #tpu.memory_space<vmem>>, %arg9: memref<18x18x8xbf16, #tpu.memory_space<vmem>>, %arg10: memref<18x18x8xbf16, #tpu.memory_space<vmem>>, %arg11: memref<256x72xbf16, #tpu.memory_space<vmem>>, %arg12: memref<256x72xbf16, #tpu.memory_space<vmem>>) attributes {dimension_semantics = [#tpu.dimension_semantics<parallel>], iteration_bounds = array<i64: 2>, scalar_prefetch = 0 : i64, scratch_operands = 4 : i64, tpu.core_type = #tpu.core_type<tc>, window_params = [{transform_indices = @transform_0, window_bounds = array<i64: 1, 16, 16, 8>}, {transform_indices = @transform_1, window_bounds = array<i64: 1, 16, 16, 8>}, {pipeline_mode = #tpu.pipeline_mode<synchronous>, transform_indices = @transform_2, window_bounds = array<i64: 72, 2>}, {pipeline_mode = #tpu.pipeline_mode<synchronous>, transform_indices = @transform_3, window_bounds = array<i64: 2, 8>}, {pipeline_mode = #tpu.pipeline_mode<synchronous>, transform_indices = @transform_4, window_bounds = array<i64: 72, 2>}, {pipeline_mode = #tpu.pipeline_mode<synchronous>, transform_indices = @transform_5, window_bounds = array<i64: 72, 2>}, {pipeline_mode = #tpu.pipeline_mode<synchronous>, transform_indices = @transform_6, window_bounds = array<i64: 2, 8>}, {transform_indices = @transform_7, window_bounds = array<i64: 1, 16, 16, 8>}]} {
    %cst = arith.constant 0.000000e+00 : bf16
    %0 = vector.broadcast %cst : bf16 to vector<18x18x8xbf16>
    %c0 = arith.constant 0 : index
    %c0_0 = arith.constant 0 : index
    %c0_1 = arith.constant 0 : index
    %1 = vector.load %arg9[%c0, %c0_0, %c0_1] : memref<18x18x8xbf16, #tpu.memory_space<vmem>>, vector<18x18x8xbf16>
    tpu.vector_store %arg9[%c0, %c0_0, %c0_1], %0 {strides = array<i32>} : memref<18x18x8xbf16, #tpu.memory_space<vmem>>, vector<18x18x8xbf16>,
    %c0_2 = arith.constant 0 : index
    %c0_3 = arith.constant 0 : index
    %c0_4 = arith.constant 0 : index
    %2 = vector.load %arg10[%c0_2, %c0_3, %c0_4] : memref<18x18x8xbf16, #tpu.memory_space<vmem>>, vector<18x18x8xbf16>
    tpu.vector_store %arg10[%c0_2, %c0_3, %c0_4], %0 {strides = array<i32>} : memref<18x18x8xbf16, #tpu.memory_space<vmem>>, vector<18x18x8xbf16>,
    %c0_5 = arith.constant 0 : index
    %c0_6 = arith.constant 0 : index
    %c0_7 = arith.constant 0 : index
    %c0_8 = arith.constant 0 : index
    %3 = vector.load %arg2[%c0_5, %c0_6, %c0_7, %c0_8] : memref<1x16x16x8xf32, #tpu.memory_space<vmem>>, vector<1x16x16x8xf32>
    %4 = vector.shape_cast %3 : vector<1x16x16x8xf32> to vector<16x16x8xf32>
    %5 = arith.truncf %4 : vector<16x16x8xf32> to vector<16x16x8xbf16>
    %c1 = arith.constant 1 : index
    %c1_9 = arith.constant 1 : index
    %c0_10 = arith.constant 0 : index
    %6 = vector.load %arg9[%c1, %c1_9, %c0_10] : memref<18x18x8xbf16, #tpu.memory_space<vmem>>, vector<16x16x8xbf16>
    tpu.vector_store %arg9[%c1, %c1_9, %c0_10], %5 {strides = array<i32>} : memref<18x18x8xbf16, #tpu.memory_space<vmem>>, vector<16x16x8xbf16>,
    %c0_11 = arith.constant 0 : index
    %c0_12 = arith.constant 0 : index
    %c0_13 = arith.constant 0 : index
    %c0_14 = arith.constant 0 : index
    %7 = vector.load %arg1[%c0_11, %c0_12, %c0_13, %c0_14] : memref<1x16x16x8xf32, #tpu.memory_space<vmem>>, vector<1x16x16x8xf32>
    %8 = vector.shape_cast %7 : vector<1x16x16x8xf32> to vector<16x16x8xf32>
    %9 = arith.truncf %8 : vector<16x16x8xf32> to vector<16x16x8xbf16>
    %c1_15 = arith.constant 1 : index
    %c1_16 = arith.constant 1 : index
    %c0_17 = arith.constant 0 : index
    %10 = vector.load %arg10[%c1_15, %c1_16, %c0_17] : memref<18x18x8xbf16, #tpu.memory_space<vmem>>, vector<16x16x8xbf16>
    tpu.vector_store %arg10[%c1_15, %c1_16, %c0_17], %9 {strides = array<i32>} : memref<18x18x8xbf16, #tpu.memory_space<vmem>>, vector<16x16x8xbf16>,
    %c0_18 = arith.constant 0 : index
    %c0_19 = arith.constant 0 : index
    %c0_20 = arith.constant 0 : index
    %11 = vector.load %arg9[%c0_18, %c0_19, %c0_20] : memref<18x18x8xbf16, #tpu.memory_space<vmem>>, vector<16x16x8xbf16>
    %12 = vector.shape_cast %11 : vector<16x16x8xbf16> to vector<256x8xbf16>
    %c0_21 = arith.constant 0 : index
    %c0_22 = arith.constant 0 : index
    %13 = vector.load %arg11[%c0_21, %c0_22] : memref<256x72xbf16, #tpu.memory_space<vmem>>, vector<256x8xbf16>
    tpu.vector_store %arg11[%c0_21, %c0_22], %12 {strides = array<i32>} : memref<256x72xbf16, #tpu.memory_space<vmem>>, vector<256x8xbf16>,
    %c0_23 = arith.constant 0 : index
    %c1_24 = arith.constant 1 : index
    %c0_25 = arith.constant 0 : index
    %14 = vector.load %arg9[%c0_23, %c1_24, %c0_25] : memref<18x18x8xbf16, #tpu.memory_space<vmem>>, vector<16x16x8xbf16>
    %15 = vector.shape_cast %14 : vector<16x16x8xbf16> to vector<256x8xbf16>
    %c0_26 = arith.constant 0 : index
    %c8 = arith.constant 8 : index
    %16 = vector.load %arg11[%c0_26, %c8] : memref<256x72xbf16, #tpu.memory_space<vmem>>, vector<256x8xbf16>
    tpu.vector_store %arg11[%c0_26, %c8], %15 {strides = array<i32>} : memref<256x72xbf16, #tpu.memory_space<vmem>>, vector<256x8xbf16>,
    %c0_27 = arith.constant 0 : index
    %c2 = arith.constant 2 : index
    %c0_28 = arith.constant 0 : index
    %17 = vector.load %arg9[%c0_27, %c2, %c0_28] : memref<18x18x8xbf16, #tpu.memory_space<vmem>>, vector<16x16x8xbf16>
    %18 = vector.shape_cast %17 : vector<16x16x8xbf16> to vector<256x8xbf16>
    %c0_29 = arith.constant 0 : index
    %c16 = arith.constant 16 : index
    %19 = vector.load %arg11[%c0_29, %c16] : memref<256x72xbf16, #tpu.memory_space<vmem>>, vector<256x8xbf16>
    tpu.vector_store %arg11[%c0_29, %c16], %18 {strides = array<i32>} : memref<256x72xbf16, #tpu.memory_space<vmem>>, vector<256x8xbf16>,
    %c1_30 = arith.constant 1 : index
    %c0_31 = arith.constant 0 : index
    %c0_32 = arith.constant 0 : index
    %20 = vector.load %arg9[%c1_30, %c0_31, %c0_32] : memref<18x18x8xbf16, #tpu.memory_space<vmem>>, vector<16x16x8xbf16>
    %21 = vector.shape_cast %20 : vector<16x16x8xbf16> to vector<256x8xbf16>
    %c0_33 = arith.constant 0 : index
    %c24 = arith.constant 24 : index
    %22 = vector.load %arg11[%c0_33, %c24] : memref<256x72xbf16, #tpu.memory_space<vmem>>, vector<256x8xbf16>
    tpu.vector_store %arg11[%c0_33, %c24], %21 {strides = array<i32>} : memref<256x72xbf16, #tpu.memory_space<vmem>>, vector<256x8xbf16>,
    %c1_34 = arith.constant 1 : index
    %c1_35 = arith.constant 1 : index
    %c0_36 = arith.constant 0 : index
    %23 = vector.load %arg9[%c1_34, %c1_35, %c0_36] : memref<18x18x8xbf16, #tpu.memory_space<vmem>>, vector<16x16x8xbf16>
    %24 = vector.shape_cast %23 : vector<16x16x8xbf16> to vector<256x8xbf16>
    %c0_37 = arith.constant 0 : index
    %c32 = arith.constant 32 : index
    %25 = vector.load %arg11[%c0_37, %c32] : memref<256x72xbf16, #tpu.memory_space<vmem>>, vector<256x8xbf16>
    tpu.vector_store %arg11[%c0_37, %c32], %24 {strides = array<i32>} : memref<256x72xbf16, #tpu.memory_space<vmem>>, vector<256x8xbf16>,
    %c1_38 = arith.constant 1 : index
    %c2_39 = arith.constant 2 : index
    %c0_40 = arith.constant 0 : index
    %26 = vector.load %arg9[%c1_38, %c2_39, %c0_40] : memref<18x18x8xbf16, #tpu.memory_space<vmem>>, vector<16x16x8xbf16>
    %27 = vector.shape_cast %26 : vector<16x16x8xbf16> to vector<256x8xbf16>
    %c0_41 = arith.constant 0 : index
    %c40 = arith.constant 40 : index
    %28 = vector.load %arg11[%c0_41, %c40] : memref<256x72xbf16, #tpu.memory_space<vmem>>, vector<256x8xbf16>
    tpu.vector_store %arg11[%c0_41, %c40], %27 {strides = array<i32>} : memref<256x72xbf16, #tpu.memory_space<vmem>>, vector<256x8xbf16>,
    %c2_42 = arith.constant 2 : index
    %c0_43 = arith.constant 0 : index
    %c0_44 = arith.constant 0 : index
    %29 = vector.load %arg9[%c2_42, %c0_43, %c0_44] : memref<18x18x8xbf16, #tpu.memory_space<vmem>>, vector<16x16x8xbf16>
    %30 = vector.shape_cast %29 : vector<16x16x8xbf16> to vector<256x8xbf16>
    %c0_45 = arith.constant 0 : index
    %c48 = arith.constant 48 : index
    %31 = vector.load %arg11[%c0_45, %c48] : memref<256x72xbf16, #tpu.memory_space<vmem>>, vector<256x8xbf16>
    tpu.vector_store %arg11[%c0_45, %c48], %30 {strides = array<i32>} : memref<256x72xbf16, #tpu.memory_space<vmem>>, vector<256x8xbf16>,
    %c2_46 = arith.constant 2 : index
    %c1_47 = arith.constant 1 : index
    %c0_48 = arith.constant 0 : index
    %32 = vector.load %arg9[%c2_46, %c1_47, %c0_48] : memref<18x18x8xbf16, #tpu.memory_space<vmem>>, vector<16x16x8xbf16>
    %33 = vector.shape_cast %32 : vector<16x16x8xbf16> to vector<256x8xbf16>
    %c0_49 = arith.constant 0 : index
    %c56 = arith.constant 56 : index
    %34 = vector.load %arg11[%c0_49, %c56] : memref<256x72xbf16, #tpu.memory_space<vmem>>, vector<256x8xbf16>
    tpu.vector_store %arg11[%c0_49, %c56], %33 {strides = array<i32>} : memref<256x72xbf16, #tpu.memory_space<vmem>>, vector<256x8xbf16>,
    %c2_50 = arith.constant 2 : index
    %c2_51 = arith.constant 2 : index
    %c0_52 = arith.constant 0 : index
    %35 = vector.load %arg9[%c2_50, %c2_51, %c0_52] : memref<18x18x8xbf16, #tpu.memory_space<vmem>>, vector<16x16x8xbf16>
    %36 = vector.shape_cast %35 : vector<16x16x8xbf16> to vector<256x8xbf16>
    %c0_53 = arith.constant 0 : index
    %c64 = arith.constant 64 : index
    %37 = vector.load %arg11[%c0_53, %c64] : memref<256x72xbf16, #tpu.memory_space<vmem>>, vector<256x8xbf16>
    tpu.vector_store %arg11[%c0_53, %c64], %36 {strides = array<i32>} : memref<256x72xbf16, #tpu.memory_space<vmem>>, vector<256x8xbf16>,
    %c0_54 = arith.constant 0 : index
    %c0_55 = arith.constant 0 : index
    %c0_56 = arith.constant 0 : index
    %38 = vector.load %arg10[%c0_54, %c0_55, %c0_56] : memref<18x18x8xbf16, #tpu.memory_space<vmem>>, vector<16x16x8xbf16>
    %39 = vector.shape_cast %38 : vector<16x16x8xbf16> to vector<256x8xbf16>
    %c0_57 = arith.constant 0 : index
    %c0_58 = arith.constant 0 : index
    %40 = vector.load %arg12[%c0_57, %c0_58] : memref<256x72xbf16, #tpu.memory_space<vmem>>, vector<256x8xbf16>
    tpu.vector_store %arg12[%c0_57, %c0_58], %39 {strides = array<i32>} : memref<256x72xbf16, #tpu.memory_space<vmem>>, vector<256x8xbf16>,
    %c0_59 = arith.constant 0 : index
    %c1_60 = arith.constant 1 : index
    %c0_61 = arith.constant 0 : index
    %41 = vector.load %arg10[%c0_59, %c1_60, %c0_61] : memref<18x18x8xbf16, #tpu.memory_space<vmem>>, vector<16x16x8xbf16>
    %42 = vector.shape_cast %41 : vector<16x16x8xbf16> to vector<256x8xbf16>
    %c0_62 = arith.constant 0 : index
    %c8_63 = arith.constant 8 : index
    %43 = vector.load %arg12[%c0_62, %c8_63] : memref<256x72xbf16, #tpu.memory_space<vmem>>, vector<256x8xbf16>
    tpu.vector_store %arg12[%c0_62, %c8_63], %42 {strides = array<i32>} : memref<256x72xbf16, #tpu.memory_space<vmem>>, vector<256x8xbf16>,
    %c0_64 = arith.constant 0 : index
    %c2_65 = arith.constant 2 : index
    %c0_66 = arith.constant 0 : index
    %44 = vector.load %arg10[%c0_64, %c2_65, %c0_66] : memref<18x18x8xbf16, #tpu.memory_space<vmem>>, vector<16x16x8xbf16>
    %45 = vector.shape_cast %44 : vector<16x16x8xbf16> to vector<256x8xbf16>
    %c0_67 = arith.constant 0 : index
    %c16_68 = arith.constant 16 : index
    %46 = vector.load %arg12[%c0_67, %c16_68] : memref<256x72xbf16, #tpu.memory_space<vmem>>, vector<256x8xbf16>
    tpu.vector_store %arg12[%c0_67, %c16_68], %45 {strides = array<i32>} : memref<256x72xbf16, #tpu.memory_space<vmem>>, vector<256x8xbf16>,
    %c1_69 = arith.constant 1 : index
    %c0_70 = arith.constant 0 : index
    %c0_71 = arith.constant 0 : index
    %47 = vector.load %arg10[%c1_69, %c0_70, %c0_71] : memref<18x18x8xbf16, #tpu.memory_space<vmem>>, vector<16x16x8xbf16>
    %48 = vector.shape_cast %47 : vector<16x16x8xbf16> to vector<256x8xbf16>
    %c0_72 = arith.constant 0 : index
    %c24_73 = arith.constant 24 : index
    %49 = vector.load %arg12[%c0_72, %c24_73] : memref<256x72xbf16, #tpu.memory_space<vmem>>, vector<256x8xbf16>
    tpu.vector_store %arg12[%c0_72, %c24_73], %48 {strides = array<i32>} : memref<256x72xbf16, #tpu.memory_space<vmem>>, vector<256x8xbf16>,
    %c1_74 = arith.constant 1 : index
    %c1_75 = arith.constant 1 : index
    %c0_76 = arith.constant 0 : index
    %50 = vector.load %arg10[%c1_74, %c1_75, %c0_76] : memref<18x18x8xbf16, #tpu.memory_space<vmem>>, vector<16x16x8xbf16>
    %51 = vector.shape_cast %50 : vector<16x16x8xbf16> to vector<256x8xbf16>
    %c0_77 = arith.constant 0 : index
    %c32_78 = arith.constant 32 : index
    %52 = vector.load %arg12[%c0_77, %c32_78] : memref<256x72xbf16, #tpu.memory_space<vmem>>, vector<256x8xbf16>
    tpu.vector_store %arg12[%c0_77, %c32_78], %51 {strides = array<i32>} : memref<256x72xbf16, #tpu.memory_space<vmem>>, vector<256x8xbf16>,
    %c1_79 = arith.constant 1 : index
    %c2_80 = arith.constant 2 : index
    %c0_81 = arith.constant 0 : index
    %53 = vector.load %arg10[%c1_79, %c2_80, %c0_81] : memref<18x18x8xbf16, #tpu.memory_space<vmem>>, vector<16x16x8xbf16>
    %54 = vector.shape_cast %53 : vector<16x16x8xbf16> to vector<256x8xbf16>
    %c0_82 = arith.constant 0 : index
    %c40_83 = arith.constant 40 : index
    %55 = vector.load %arg12[%c0_82, %c40_83] : memref<256x72xbf16, #tpu.memory_space<vmem>>, vector<256x8xbf16>
    tpu.vector_store %arg12[%c0_82, %c40_83], %54 {strides = array<i32>} : memref<256x72xbf16, #tpu.memory_space<vmem>>, vector<256x8xbf16>,
    %c2_84 = arith.constant 2 : index
    %c0_85 = arith.constant 0 : index
    %c0_86 = arith.constant 0 : index
    %56 = vector.load %arg10[%c2_84, %c0_85, %c0_86] : memref<18x18x8xbf16, #tpu.memory_space<vmem>>, vector<16x16x8xbf16>
    %57 = vector.shape_cast %56 : vector<16x16x8xbf16> to vector<256x8xbf16>
    %c0_87 = arith.constant 0 : index
    %c48_88 = arith.constant 48 : index
    %58 = vector.load %arg12[%c0_87, %c48_88] : memref<256x72xbf16, #tpu.memory_space<vmem>>, vector<256x8xbf16>
    tpu.vector_store %arg12[%c0_87, %c48_88], %57 {strides = array<i32>} : memref<256x72xbf16, #tpu.memory_space<vmem>>, vector<256x8xbf16>,
    %c2_89 = arith.constant 2 : index
    %c1_90 = arith.constant 1 : index
    %c0_91 = arith.constant 0 : index
    %59 = vector.load %arg10[%c2_89, %c1_90, %c0_91] : memref<18x18x8xbf16, #tpu.memory_space<vmem>>, vector<16x16x8xbf16>
    %60 = vector.shape_cast %59 : vector<16x16x8xbf16> to vector<256x8xbf16>
    %c0_92 = arith.constant 0 : index
    %c56_93 = arith.constant 56 : index
    %61 = vector.load %arg12[%c0_92, %c56_93] : memref<256x72xbf16, #tpu.memory_space<vmem>>, vector<256x8xbf16>
    tpu.vector_store %arg12[%c0_92, %c56_93], %60 {strides = array<i32>} : memref<256x72xbf16, #tpu.memory_space<vmem>>, vector<256x8xbf16>,
    %c2_94 = arith.constant 2 : index
    %c2_95 = arith.constant 2 : index
    %c0_96 = arith.constant 0 : index
    %62 = vector.load %arg10[%c2_94, %c2_95, %c0_96] : memref<18x18x8xbf16, #tpu.memory_space<vmem>>, vector<16x16x8xbf16>
    %63 = vector.shape_cast %62 : vector<16x16x8xbf16> to vector<256x8xbf16>
    %c0_97 = arith.constant 0 : index
    %c64_98 = arith.constant 64 : index
    %64 = vector.load %arg12[%c0_97, %c64_98] : memref<256x72xbf16, #tpu.memory_space<vmem>>, vector<256x8xbf16>
    tpu.vector_store %arg12[%c0_97, %c64_98], %63 {strides = array<i32>} : memref<256x72xbf16, #tpu.memory_space<vmem>>, vector<256x8xbf16>,
    %c0_99 = arith.constant 0 : index
    %c0_100 = arith.constant 0 : index
    %65 = vector.load %arg11[%c0_99, %c0_100] : memref<256x72xbf16, #tpu.memory_space<vmem>>, vector<256x72xbf16>
    %c0_101 = arith.constant 0 : index
    %c0_102 = arith.constant 0 : index
    %66 = vector.load %arg3[%c0_101, %c0_102] : memref<72x2xbf16, #tpu.memory_space<vmem>>, vector<72x2xbf16>
    %cst_103 = arith.constant dense<0.000000e+00> : vector<256x2xf32>
    %67 = tpu.matmul %65, %66, %cst_103 {dimension_numbers = #tpu.dot_dimension_numbers<[1], [0], [0], [1], [0, 0, 1, 1], [], []>} : vector<256x72xbf16>, vector<72x2xbf16>, vector<256x2xf32> -> vector<256x2xf32>
    %cst_104 = arith.constant 0.000000e+00 : f32
    %68 = vector.broadcast %cst_104 : f32 to vector<256x2xf32>
    %69 = arith.maximumf %67, %68 : vector<256x2xf32>
    %70 = arith.truncf %69 : vector<256x2xf32> to vector<256x2xbf16>
    %c0_105 = arith.constant 0 : index
    %c0_106 = arith.constant 0 : index
    %71 = vector.load %arg4[%c0_105, %c0_106] : memref<2x8xbf16, #tpu.memory_space<vmem>>, vector<2x8xbf16>
    %cst_107 = arith.constant dense<0.000000e+00> : vector<256x8xf32>
    %72 = tpu.matmul %70, %71, %cst_107 {dimension_numbers = #tpu.dot_dimension_numbers<[1], [0], [0], [1], [0, 0, 1, 1], [], []>} : vector<256x2xbf16>, vector<2x8xbf16>, vector<256x8xf32> -> vector<256x8xf32>
    %c0_108 = arith.constant 0 : index
    %c0_109 = arith.constant 0 : index
    %73 = vector.load %arg12[%c0_108, %c0_109] : memref<256x72xbf16, #tpu.memory_space<vmem>>, vector<256x72xbf16>
    %c0_110 = arith.constant 0 : index
    %c0_111 = arith.constant 0 : index
    %74 = vector.load %arg5[%c0_110, %c0_111] : memref<72x2xbf16, #tpu.memory_space<vmem>>, vector<72x2xbf16>
    %cst_112 = arith.constant dense<0.000000e+00> : vector<256x2xf32>
    %75 = tpu.matmul %73, %74, %cst_112 {dimension_numbers = #tpu.dot_dimension_numbers<[1], [0], [0], [1], [0, 0, 1, 1], [], []>} : vector<256x72xbf16>, vector<72x2xbf16>, vector<256x2xf32> -> vector<256x2xf32>
    %76 = vector.shape_cast %72 : vector<256x8xf32> to vector<16x16x8xf32>
    %77 = arith.truncf %76 : vector<16x16x8xf32> to vector<16x16x8xbf16>
    %c1_113 = arith.constant 1 : index
    %c1_114 = arith.constant 1 : index
    %c0_115 = arith.constant 0 : index
    %78 = vector.load %arg9[%c1_113, %c1_114, %c0_115] : memref<18x18x8xbf16, #tpu.memory_space<vmem>>, vector<16x16x8xbf16>
    tpu.vector_store %arg9[%c1_113, %c1_114, %c0_115], %77 {strides = array<i32>} : memref<18x18x8xbf16, #tpu.memory_space<vmem>>, vector<16x16x8xbf16>,
    %c0_116 = arith.constant 0 : index
    %c0_117 = arith.constant 0 : index
    %c0_118 = arith.constant 0 : index
    %79 = vector.load %arg9[%c0_116, %c0_117, %c0_118] : memref<18x18x8xbf16, #tpu.memory_space<vmem>>, vector<16x16x8xbf16>
    %80 = vector.shape_cast %79 : vector<16x16x8xbf16> to vector<256x8xbf16>
    %c0_119 = arith.constant 0 : index
    %c0_120 = arith.constant 0 : index
    %81 = vector.load %arg11[%c0_119, %c0_120] : memref<256x72xbf16, #tpu.memory_space<vmem>>, vector<256x8xbf16>
    tpu.vector_store %arg11[%c0_119, %c0_120], %80 {strides = array<i32>} : memref<256x72xbf16, #tpu.memory_space<vmem>>, vector<256x8xbf16>,
    %c0_121 = arith.constant 0 : index
    %c1_122 = arith.constant 1 : index
    %c0_123 = arith.constant 0 : index
    %82 = vector.load %arg9[%c0_121, %c1_122, %c0_123] : memref<18x18x8xbf16, #tpu.memory_space<vmem>>, vector<16x16x8xbf16>
    %83 = vector.shape_cast %82 : vector<16x16x8xbf16> to vector<256x8xbf16>
    %c0_124 = arith.constant 0 : index
    %c8_125 = arith.constant 8 : index
    %84 = vector.load %arg11[%c0_124, %c8_125] : memref<256x72xbf16, #tpu.memory_space<vmem>>, vector<256x8xbf16>
    tpu.vector_store %arg11[%c0_124, %c8_125], %83 {strides = array<i32>} : memref<256x72xbf16, #tpu.memory_space<vmem>>, vector<256x8xbf16>,
    %c0_126 = arith.constant 0 : index
    %c2_127 = arith.constant 2 : index
    %c0_128 = arith.constant 0 : index
    %85 = vector.load %arg9[%c0_126, %c2_127, %c0_128] : memref<18x18x8xbf16, #tpu.memory_space<vmem>>, vector<16x16x8xbf16>
    %86 = vector.shape_cast %85 : vector<16x16x8xbf16> to vector<256x8xbf16>
    %c0_129 = arith.constant 0 : index
    %c16_130 = arith.constant 16 : index
    %87 = vector.load %arg11[%c0_129, %c16_130] : memref<256x72xbf16, #tpu.memory_space<vmem>>, vector<256x8xbf16>
    tpu.vector_store %arg11[%c0_129, %c16_130], %86 {strides = array<i32>} : memref<256x72xbf16, #tpu.memory_space<vmem>>, vector<256x8xbf16>,
    %c1_131 = arith.constant 1 : index
    %c0_132 = arith.constant 0 : index
    %c0_133 = arith.constant 0 : index
    %88 = vector.load %arg9[%c1_131, %c0_132, %c0_133] : memref<18x18x8xbf16, #tpu.memory_space<vmem>>, vector<16x16x8xbf16>
    %89 = vector.shape_cast %88 : vector<16x16x8xbf16> to vector<256x8xbf16>
    %c0_134 = arith.constant 0 : index
    %c24_135 = arith.constant 24 : index
    %90 = vector.load %arg11[%c0_134, %c24_135] : memref<256x72xbf16, #tpu.memory_space<vmem>>, vector<256x8xbf16>
    tpu.vector_store %arg11[%c0_134, %c24_135], %89 {strides = array<i32>} : memref<256x72xbf16, #tpu.memory_space<vmem>>, vector<256x8xbf16>,
    %c1_136 = arith.constant 1 : index
    %c1_137 = arith.constant 1 : index
    %c0_138 = arith.constant 0 : index
    %91 = vector.load %arg9[%c1_136, %c1_137, %c0_138] : memref<18x18x8xbf16, #tpu.memory_space<vmem>>, vector<16x16x8xbf16>
    %92 = vector.shape_cast %91 : vector<16x16x8xbf16> to vector<256x8xbf16>
    %c0_139 = arith.constant 0 : index
    %c32_140 = arith.constant 32 : index
    %93 = vector.load %arg11[%c0_139, %c32_140] : memref<256x72xbf16, #tpu.memory_space<vmem>>, vector<256x8xbf16>
    tpu.vector_store %arg11[%c0_139, %c32_140], %92 {strides = array<i32>} : memref<256x72xbf16, #tpu.memory_space<vmem>>, vector<256x8xbf16>,
    %c1_141 = arith.constant 1 : index
    %c2_142 = arith.constant 2 : index
    %c0_143 = arith.constant 0 : index
    %94 = vector.load %arg9[%c1_141, %c2_142, %c0_143] : memref<18x18x8xbf16, #tpu.memory_space<vmem>>, vector<16x16x8xbf16>
    %95 = vector.shape_cast %94 : vector<16x16x8xbf16> to vector<256x8xbf16>
    %c0_144 = arith.constant 0 : index
    %c40_145 = arith.constant 40 : index
    %96 = vector.load %arg11[%c0_144, %c40_145] : memref<256x72xbf16, #tpu.memory_space<vmem>>, vector<256x8xbf16>
    tpu.vector_store %arg11[%c0_144, %c40_145], %95 {strides = array<i32>} : memref<256x72xbf16, #tpu.memory_space<vmem>>, vector<256x8xbf16>,
    %c2_146 = arith.constant 2 : index
    %c0_147 = arith.constant 0 : index
    %c0_148 = arith.constant 0 : index
    %97 = vector.load %arg9[%c2_146, %c0_147, %c0_148] : memref<18x18x8xbf16, #tpu.memory_space<vmem>>, vector<16x16x8xbf16>
    %98 = vector.shape_cast %97 : vector<16x16x8xbf16> to vector<256x8xbf16>
    %c0_149 = arith.constant 0 : index
    %c48_150 = arith.constant 48 : index
    %99 = vector.load %arg11[%c0_149, %c48_150] : memref<256x72xbf16, #tpu.memory_space<vmem>>, vector<256x8xbf16>
    tpu.vector_store %arg11[%c0_149, %c48_150], %98 {strides = array<i32>} : memref<256x72xbf16, #tpu.memory_space<vmem>>, vector<256x8xbf16>,
    %c2_151 = arith.constant 2 : index
    %c1_152 = arith.constant 1 : index
    %c0_153 = arith.constant 0 : index
    %100 = vector.load %arg9[%c2_151, %c1_152, %c0_153] : memref<18x18x8xbf16, #tpu.memory_space<vmem>>, vector<16x16x8xbf16>
    %101 = vector.shape_cast %100 : vector<16x16x8xbf16> to vector<256x8xbf16>
    %c0_154 = arith.constant 0 : index
    %c56_155 = arith.constant 56 : index
    %102 = vector.load %arg11[%c0_154, %c56_155] : memref<256x72xbf16, #tpu.memory_space<vmem>>, vector<256x8xbf16>
    tpu.vector_store %arg11[%c0_154, %c56_155], %101 {strides = array<i32>} : memref<256x72xbf16, #tpu.memory_space<vmem>>, vector<256x8xbf16>,
    %c2_156 = arith.constant 2 : index
    %c2_157 = arith.constant 2 : index
    %c0_158 = arith.constant 0 : index
    %103 = vector.load %arg9[%c2_156, %c2_157, %c0_158] : memref<18x18x8xbf16, #tpu.memory_space<vmem>>, vector<16x16x8xbf16>
    %104 = vector.shape_cast %103 : vector<16x16x8xbf16> to vector<256x8xbf16>
    %c0_159 = arith.constant 0 : index
    %c64_160 = arith.constant 64 : index
    %105 = vector.load %arg11[%c0_159, %c64_160] : memref<256x72xbf16, #tpu.memory_space<vmem>>, vector<256x8xbf16>
    tpu.vector_store %arg11[%c0_159, %c64_160], %104 {strides = array<i32>} : memref<256x72xbf16, #tpu.memory_space<vmem>>, vector<256x8xbf16>,
    %c0_161 = arith.constant 0 : index
    %c0_162 = arith.constant 0 : index
    %106 = vector.load %arg11[%c0_161, %c0_162] : memref<256x72xbf16, #tpu.memory_space<vmem>>, vector<256x72xbf16>
    %c0_163 = arith.constant 0 : index
    %c0_164 = arith.constant 0 : index
    %107 = vector.load %arg6[%c0_163, %c0_164] : memref<72x2xbf16, #tpu.memory_space<vmem>>, vector<72x2xbf16>
    %cst_165 = arith.constant dense<0.000000e+00> : vector<256x2xf32>
    %108 = tpu.matmul %106, %107, %cst_165 {dimension_numbers = #tpu.dot_dimension_numbers<[1], [0], [0], [1], [0, 0, 1, 1], [], []>} : vector<256x72xbf16>, vector<72x2xbf16>, vector<256x2xf32> -> vector<256x2xf32>
    %109 = arith.addf %75, %108 : vector<256x2xf32>
    %cst_166 = arith.constant 0.000000e+00 : f32
    %110 = vector.broadcast %cst_166 : f32 to vector<256x2xf32>
    %111 = arith.maximumf %109, %110 : vector<256x2xf32>
    %112 = arith.truncf %111 : vector<256x2xf32> to vector<256x2xbf16>
    %c0_167 = arith.constant 0 : index
    %c0_168 = arith.constant 0 : index
    %113 = vector.load %arg7[%c0_167, %c0_168] : memref<2x8xbf16, #tpu.memory_space<vmem>>, vector<2x8xbf16>
    %cst_169 = arith.constant dense<0.000000e+00> : vector<256x8xf32>
    %114 = tpu.matmul %112, %113, %cst_169 {dimension_numbers = #tpu.dot_dimension_numbers<[1], [0], [0], [1], [0, 0, 1, 1], [], []>} : vector<256x2xbf16>, vector<2x8xbf16>, vector<256x8xf32> -> vector<256x8xf32>
    %cst_170 = arith.constant 0.000000e+00 : f32
    %115 = vector.broadcast %cst_170 : f32 to vector<256x8xf32>
    %116 = arith.subf %115, %114 : vector<256x8xf32>
    %117 = math.exp %116 : vector<256x8xf32>
    %cst_171 = arith.constant 1.000000e+00 : f32
    %118 = vector.broadcast %cst_171 : f32 to vector<256x8xf32>
    %119 = arith.addf %118, %117 : vector<256x8xf32>
    %120 = tpu.reciprocal %119 {approx = true} : vector<256x8xf32> -> vector<256x8xf32>
    %c0_172 = arith.constant 0 : index
    %c0_173 = arith.constant 0 : index
    %c0_174 = arith.constant 0 : index
    %c0_175 = arith.constant 0 : index
    %121 = vector.load %arg1[%c0_172, %c0_173, %c0_174, %c0_175] : memref<1x16x16x8xf32, #tpu.memory_space<vmem>>, vector<1x16x16x8xf32>
    %122 = vector.shape_cast %121 : vector<1x16x16x8xf32> to vector<16x16x8xf32>
    %123 = vector.shape_cast %122 : vector<16x16x8xf32> to vector<256x8xf32>
    %124 = arith.mulf %120, %72 : vector<256x8xf32>
    %125 = arith.addf %124, %123 : vector<256x8xf32>
    %126 = vector.shape_cast %125 : vector<256x8xf32> to vector<16x16x8xf32>
    %c0_176 = arith.constant 0 : index
    %c0_177 = arith.constant 0 : index
    %c0_178 = arith.constant 0 : index
    %c0_179 = arith.constant 0 : index
    %127 = vector.load %arg8[%c0_176, %c0_177, %c0_178, %c0_179] : memref<1x16x16x8xf32, #tpu.memory_space<vmem>>, vector<1x16x16x8xf32>
    %128 = vector.shape_cast %127 : vector<1x16x16x8xf32> to vector<16x16x8xf32>
    %129 = vector.shape_cast %126 : vector<16x16x8xf32> to vector<1x16x16x8xf32>
    tpu.vector_store %arg8[%c0_176, %c0_177, %c0_178, %c0_179], %129 {strides = array<i32>} : memref<1x16x16x8xf32, #tpu.memory_space<vmem>>, vector<1x16x16x8xf32>,
    return
  }
  func.func @transform_0(%arg0: i32) -> (i32, i32, i32, i32) {
    %c0_i32 = arith.constant 0 : i32
    %c0_i32_0 = arith.constant 0 : i32
    %c0_i32_1 = arith.constant 0 : i32
    %c0_i32_2 = arith.constant 0 : i32
    return %arg0, %c0_i32, %c0_i32_0, %c0_i32_1 : i32, i32, i32, i32
  }
  func.func @transform_1(%arg0: i32) -> (i32, i32, i32, i32) {
    %c0_i32 = arith.constant 0 : i32
    %c0_i32_0 = arith.constant 0 : i32
    %c0_i32_1 = arith.constant 0 : i32
    %c0_i32_2 = arith.constant 0 : i32
    return %arg0, %c0_i32, %c0_i32_0, %c0_i32_1 : i32, i32, i32, i32
  }
  func.func @transform_2(%arg0: i32) -> (i32, i32) {
    %c0_i32 = arith.constant 0 : i32
    %c0_i32_0 = arith.constant 0 : i32
    %c0_i32_1 = arith.constant 0 : i32
    return %c0_i32, %c0_i32_0 : i32, i32
  }
  func.func @transform_3(%arg0: i32) -> (i32, i32) {
    %c0_i32 = arith.constant 0 : i32
    %c0_i32_0 = arith.constant 0 : i32
    %c0_i32_1 = arith.constant 0 : i32
    return %c0_i32, %c0_i32_0 : i32, i32
  }
  func.func @transform_4(%arg0: i32) -> (i32, i32) {
    %c0_i32 = arith.constant 0 : i32
    %c0_i32_0 = arith.constant 0 : i32
    %c0_i32_1 = arith.constant 0 : i32
    return %c0_i32, %c0_i32_0 : i32, i32
  }
  func.func @transform_5(%arg0: i32) -> (i32, i32) {
    %c0_i32 = arith.constant 0 : i32
    %c0_i32_0 = arith.constant 0 : i32
    %c0_i32_1 = arith.constant 0 : i32
    return %c0_i32, %c0_i32_0 : i32, i32
  }
  func.func @transform_6(%arg0: i32) -> (i32, i32) {
    %c0_i32 = arith.constant 0 : i32
    %c0_i32_0 = arith.constant 0 : i32
    %c0_i32_1 = arith.constant 0 : i32
    return %c0_i32, %c0_i32_0 : i32, i32
  }
  func.func @transform_7(%arg0: i32) -> (i32, i32, i32, i32) {
    %c0_i32 = arith.constant 0 : i32
    %c0_i32_0 = arith.constant 0 : i32
    %c0_i32_1 = arith.constant 0 : i32
    %c0_i32_2 = arith.constant 0 : i32
    return %arg0, %c0_i32, %c0_i32_0, %c0_i32_1 : i32, i32, i32, i32
  }
}

</mosaic_0001>

<llo_original>
// kernel: tpu_custom_call.1
$region0: #{tpu_custom_call.1}
  #allocation0 [shape = 'u32[]', space=smem, size = 0x4, offset = 0x4, fixed_abs, tag = 'smem constant byte address 0x4 - core index']
  #allocation1 [shape = 'u32[144,128]{1,0:T(1,128)}', space=vmem, size = 0x12000, scoped, tag = 'internal scratch']
  #allocation2 [shape = 'bf16[18,18,8]{2,1,0:T(8,128)(2,1)}', space=vmem, size = 0x1b000, scoped, tag = 'scratch operand']
  #allocation3 [shape = 'bf16[18,18,8]{2,1,0:T(8,128)(2,1)}', space=vmem, size = 0x1b000, scoped, tag = 'scratch operand']
  #allocation4 [shape = 'bf16[256,72]{1,0:T(16,128)(2,1)}', space=vmem, size = 0x10000, scoped, tag = 'scratch operand']
  #allocation5 [shape = 'bf16[256,72]{1,0:T(16,128)(2,1)}', space=vmem, size = 0x10000, scoped, tag = 'scratch operand']
  %s0 = inlined_call_operand.vmem [shape: f32[2,16,16,8], index: 0, kind: input, shape index: {}]
  %s1 = inlined_call_operand.vmem [shape: f32[2,16,16,8], index: 1, kind: input, shape index: {}]
  %s2 = inlined_call_operand.vmem [shape: bf16[72,2], index: 2, kind: input, shape index: {}]
  %s3 = inlined_call_operand.vmem [shape: bf16[2,8], index: 3, kind: input, shape index: {}]
  %s4 = inlined_call_operand.vmem [shape: bf16[72,2], index: 4, kind: input, shape index: {}]
  %s5 = inlined_call_operand.vmem [shape: bf16[72,2], index: 5, kind: input, shape index: {}]
  %s6 = inlined_call_operand.vmem [shape: bf16[2,8], index: 6, kind: input, shape index: {}]
  %s7 = inlined_call_operand.vmem [shape: f32[2,16,16,8], index: 7, kind: output, shape index: {}]
  %s8 = sld [smem:[#allocation0]]
  $region61: #{tpu_custom_call.1} parent=0
    _
  %s10 = ssub.s32 1, %s8
  %s11 = scalar_select 0, %s10, %s8
  loop: start=0, step=1, limit=4
  $region2: #{tpu_custom_call.1} parent=0 // loop_pre_header
    _
  $region3: #{tpu_custom_call.1} parent=0 // loop_header
    %s13 = sphi 0, %s17
    %p14 = scmp.ge.s32.totalorder %s13, 4
    %s23 = sphi 0, %s25
    %s26 = sphi 0, %s23
    %s27 = sphi 0, %s26
    %s43 = sphi 0, %s27
    %s49 = sphi 0, %s51
    %s52 = sphi 0, %s49
    %s53 = sphi 0, %s52
    %s69 = sphi 0, %s53
    %s73 = sphi 0, %s73
    %s75 = sphi 0, %s73
    %s76 = sphi 0, %s75
    %s90 = sphi 0, %s76
    %s94 = sphi 0, %s94
    %s96 = sphi 0, %s94
    %s97 = sphi 0, %s96
    %s111 = sphi 0, %s97
    %s115 = sphi 0, %s115
    %s117 = sphi 0, %s115
    %s118 = sphi 0, %s117
    %s132 = sphi 0, %s118
    %s136 = sphi 0, %s136
    %s138 = sphi 0, %s136
    %s139 = sphi 0, %s138
    %s153 = sphi 0, %s139
    %s157 = sphi 0, %s157
    %s159 = sphi 0, %s157
    %s160 = sphi 0, %s159
    %s174 = sphi 0, %s160
    %s180 = sphi 0, %s182
    %s183 = sphi 0, %s180
    %s184 = sphi 0, %s183
    %s200 = sphi 0, %s184
  $region4: #{tpu_custom_call.1} parent=0 // loop_header_branch
    %16 = sbr.rel (%p14) target = $region8
  $region5: #{tpu_custom_call.1} parent=0 // loop_body
    %s18 = ssub.s32 %s13, 1
    %s19 = ssub.s32 %s13, 2
    %s20 = sadd.s32 %s13, 1
    %s21 = ssub.s32 %s13, %s20
    %p22 = scmp.eq.s32.totalorder %s21, 0
    %s24 = sadd.s32 %s23, 1
    %s25 = scalar_select %p22, %s23, %s24
    %p28 = pneg %p22
    %p29 = scmp.eq.s32.totalorder %s13, 1
    %p30 = por %p28, %p29
    %p31 = scmp.ne.s32.totalorder %s23, %s26
    %p32 = scmp.eq.s32.totalorder %s13, 0
    %p33 = por %p31, %p32
    %p34 = scmp.ne.s32.totalorder %s23, %s26
    %p35 = scmp.eq.s32.totalorder %s18, 1
    %p36 = por %p34, %p35
    %p37 = scmp.ne.s32.totalorder %s26, %s27
    %p38 = scmp.eq.s32.totalorder %s18, 0
    %p39 = por %p37, %p38
    %p40 = scmp.ne.s32.totalorder %s26, %s27
    %p41 = scmp.eq.s32.totalorder %s19, 1
    %p42 = por %p40, %p41
    %p44 = scmp.ne.s32.totalorder %s27, %s43
    %p45 = scmp.eq.s32.totalorder %s19, 0
    %p46 = por %p44, %p45
    %s47 = ssub.s32 %s13, %s20
    %p48 = scmp.eq.s32.totalorder %s47, 0
    %s50 = sadd.s32 %s49, 1
    %s51 = scalar_select %p48, %s49, %s50
    %p54 = pneg %p48
    %p55 = scmp.eq.s32.totalorder %s13, 1
    %p56 = por %p54, %p55
    %p57 = scmp.ne.s32.totalorder %s49, %s52
    %p58 = scmp.eq.s32.totalorder %s13, 0
    %p59 = por %p57, %p58
    %p60 = scmp.ne.s32.totalorder %s49, %s52
    %p61 = scmp.eq.s32.totalorder %s18, 1
    %p62 = por %p60, %p61
    %p63 = scmp.ne.s32.totalorder %s52, %s53
    %p64 = scmp.eq.s32.totalorder %s18, 0
    %p65 = por %p63, %p64
    %p66 = scmp.ne.s32.totalorder %s52, %s53
    %p67 = scmp.eq.s32.totalorder %s19, 1
    %p68 = por %p66, %p67
    %p70 = scmp.ne.s32.totalorder %s53, %s69
    %p71 = scmp.eq.s32.totalorder %s19, 0
    %p72 = por %p70, %p71
    %s74 = sadd.s32 %s73, 1
    %p77 = scmp.eq.s32.totalorder %s13, 1
    %p78 = scmp.ne.s32.totalorder %s73, %s75
    %p79 = scmp.eq.s32.totalorder %s13, 0
    %p80 = por %p78, %p79
    %p81 = scmp.ne.s32.totalorder %s73, %s75
    %p82 = scmp.eq.s32.totalorder %s18, 1
    %p83 = por %p81, %p82
    %p84 = scmp.ne.s32.totalorder %s75, %s76
    %p85 = scmp.eq.s32.totalorder %s18, 0
    %p86 = por %p84, %p85
    %p87 = scmp.ne.s32.totalorder %s75, %s76
    %p88 = scmp.eq.s32.totalorder %s19, 1
    %p89 = por %p87, %p88
    %p91 = scmp.ne.s32.totalorder %s76, %s90
    %p92 = scmp.eq.s32.totalorder %s19, 0
    %p93 = por %p91, %p92
    %s95 = sadd.s32 %s94, 1
    %p98 = scmp.eq.s32.totalorder %s13, 1
    %p99 = scmp.ne.s32.totalorder %s94, %s96
    %p100 = scmp.eq.s32.totalorder %s13, 0
    %p101 = por %p99, %p100
    %p102 = scmp.ne.s32.totalorder %s94, %s96
    %p103 = scmp.eq.s32.totalorder %s18, 1
    %p104 = por %p102, %p103
    %p105 = scmp.ne.s32.totalorder %s96, %s97
    %p106 = scmp.eq.s32.totalorder %s18, 0
    %p107 = por %p105, %p106
    %p108 = scmp.ne.s32.totalorder %s96, %s97
    %p109 = scmp.eq.s32.totalorder %s19, 1
    %p110 = por %p108, %p109
    %p112 = scmp.ne.s32.totalorder %s97, %s111
    %p113 = scmp.eq.s32.totalorder %s19, 0
    %p114 = por %p112, %p113
    %s116 = sadd.s32 %s115, 1
    %p119 = scmp.eq.s32.totalorder %s13, 1
    %p120 = scmp.ne.s32.totalorder %s115, %s117
    %p121 = scmp.eq.s32.totalorder %s13, 0
    %p122 = por %p120, %p121
    %p123 = scmp.ne.s32.totalorder %s115, %s117
    %p124 = scmp.eq.s32.totalorder %s18, 1
    %p125 = por %p123, %p124
    %p126 = scmp.ne.s32.totalorder %s117, %s118
    %p127 = scmp.eq.s32.totalorder %s18, 0
    %p128 = por %p126, %p127
    %p129 = scmp.ne.s32.totalorder %s117, %s118
    %p130 = scmp.eq.s32.totalorder %s19, 1
    %p131 = por %p129, %p130
    %p133 = scmp.ne.s32.totalorder %s118, %s132
    %p134 = scmp.eq.s32.totalorder %s19, 0
    %p135 = por %p133, %p134
    %s137 = sadd.s32 %s136, 1
    %p140 = scmp.eq.s32.totalorder %s13, 1
    %p141 = scmp.ne.s32.totalorder %s136, %s138
    %p142 = scmp.eq.s32.totalorder %s13, 0
    %p143 = por %p141, %p142
    %p144 = scmp.ne.s32.totalorder %s136, %s138
    %p145 = scmp.eq.s32.totalorder %s18, 1
    %p146 = por %p144, %p145
    %p147 = scmp.ne.s32.totalorder %s138, %s139
    %p148 = scmp.eq.s32.totalorder %s18, 0
    %p149 = por %p147, %p148
    %p150 = scmp.ne.s32.totalorder %s138, %s139
    %p151 = scmp.eq.s32.totalorder %s19, 1
    %p152 = por %p150, %p151
    %p154 = scmp.ne.s32.totalorder %s139, %s153
    %p155 = scmp.eq.s32.totalorder %s19, 0
    %p156 = por %p154, %p155
    %s158 = sadd.s32 %s157, 1
    %p161 = scmp.eq.s32.totalorder %s13, 1
    %p162 = scmp.ne.s32.totalorder %s157, %s159
    %p163 = scmp.eq.s32.totalorder %s13, 0
    %p164 = por %p162, %p163
    %p165 = scmp.ne.s32.totalorder %s157, %s159
    %p166 = scmp.eq.s32.totalorder %s18, 1
    %p167 = por %p165, %p166
    %p168 = scmp.ne.s32.totalorder %s159, %s160
    %p169 = scmp.eq.s32.totalorder %s18, 0
    %p170 = por %p168, %p169
    %p171 = scmp.ne.s32.totalorder %s159, %s160
    %p172 = scmp.eq.s32.totalorder %s19, 1
    %p173 = por %p171, %p172
    %p175 = scmp.ne.s32.totalorder %s160, %s174
    %p176 = scmp.eq.s32.totalorder %s19, 0
    %p177 = por %p175, %p176
    %s178 = ssub.s32 %s13, %s20
    %p179 = scmp.eq.s32.totalorder %s178, 0
    %s181 = sadd.s32 %s180, 1
    %s182 = scalar_select %p179, %s180, %s181
    %p185 = pneg %p179
    %p186 = scmp.eq.s32.totalorder %s13, 1
    %p187 = por %p185, %p186
    %p188 = scmp.ne.s32.totalorder %s180, %s183
    %p189 = scmp.eq.s32.totalorder %s13, 0
    %p190 = por %p188, %p189
    %p191 = scmp.ne.s32.totalorder %s180, %s183
    %p192 = scmp.eq.s32.totalorder %s18, 1
    %p193 = por %p191, %p192
    %p194 = scmp.ne.s32.totalorder %s183, %s184
    %p195 = scmp.eq.s32.totalorder %s18, 0
    %p196 = por %p194, %p195
    %p197 = scmp.ne.s32.totalorder %s183, %s184
    %p198 = scmp.eq.s32.totalorder %s19, 1
    %p199 = por %p197, %p198
    %p201 = scmp.ne.s32.totalorder %s184, %s200
    %p202 = scmp.eq.s32.totalorder %s19, 0
    %p203 = por %p201, %p202
    %p204 = scmp.le.s32.totalorder 1, %s13
    %p205 = scmp.lt.s32.totalorder %s13, 3
    %p206 = pnand %p204, %p205
    %p207 = pneg %p206
    // Predicated region
    $region9: #{tpu_custom_call.1} parent=5 // pred_check
      _
    $region10: #{tpu_custom_call.1} parent=5 // pred_check_branch
      %209 = sbr.rel (%p206) target = $region12
    $region11: #{tpu_custom_call.1} parent=5 // pred_region
      %s210 = ssub.s32 %s13, 1
      // Predicated region
      $region13: #{tpu_custom_call.1} parent=11 // pred_check
        %p211 = pneg %p86
      $region14: #{tpu_custom_call.1} parent=11 // pred_check_branch
        %213 = sbr.rel (%p211) target = $region16
      $region15: #{tpu_custom_call.1} parent=11 // pred_region
        _
      $region16: #{tpu_custom_call.1} parent=11 // pred_fallthru
        _
      // Predicated region
      $region17: #{tpu_custom_call.1} parent=11 // pred_check
        %p214 = pneg %p107
      $region18: #{tpu_custom_call.1} parent=11 // pred_check_branch
        %216 = sbr.rel (%p214) target = $region20
      $region19: #{tpu_custom_call.1} parent=11 // pred_region
        _
      $region20: #{tpu_custom_call.1} parent=11 // pred_fallthru
        _
      // Predicated region
      $region21: #{tpu_custom_call.1} parent=11 // pred_check
        %p217 = pneg %p128
      $region22: #{tpu_custom_call.1} parent=11 // pred_check_branch
        %219 = sbr.rel (%p217) target = $region24
      $region23: #{tpu_custom_call.1} parent=11 // pred_region
        _
      $region24: #{tpu_custom_call.1} parent=11 // pred_fallthru
        _
      // Predicated region
      $region25: #{tpu_custom_call.1} parent=11 // pred_check
        %p220 = pneg %p149
      $region26: #{tpu_custom_call.1} parent=11 // pred_check_branch
        %222 = sbr.rel (%p220) target = $region28
      $region27: #{tpu_custom_call.1} parent=11 // pred_region
        _
      $region28: #{tpu_custom_call.1} parent=11 // pred_fallthru
        _
      // Predicated region
      $region29: #{tpu_custom_call.1} parent=11 // pred_check
        %p223 = pneg %p170
      $region30: #{tpu_custom_call.1} parent=11 // pred_check_branch
        %225 = sbr.rel (%p223) target = $region32
      $region31: #{tpu_custom_call.1} parent=11 // pred_region
        _
      $region32: #{tpu_custom_call.1} parent=11 // pred_fallthru
        _
    $region12: #{tpu_custom_call.1} parent=5 // pred_fallthru
      _
    %p226 = scmp.lt.s32.totalorder %s13, 2
    // Predicated region
    $region33: #{tpu_custom_call.1} parent=5 // pred_check
      %p227 = pneg %p226
    $region34: #{tpu_custom_call.1} parent=5 // pred_check_branch
      %229 = sbr.rel (%p227) target = $region36
    $region35: #{tpu_custom_call.1} parent=5 // pred_region
      // Predicated region
      $region37: #{tpu_custom_call.1} parent=35 // pred_check
        %p230 = pneg %p33
      $region38: #{tpu_custom_call.1} parent=35 // pred_check_branch
        %232 = sbr.rel (%p230) target = $region40
      $region39: #{tpu_custom_call.1} parent=35 // pred_region
        %p233 = scmp.lt.s32.totalorder %s13, 1
        %s234 = scalar_select %p233, %s13, 1
        %s235 = smul.addr %s234, 32
        %s236 = smul.addr %s235, 8
        %s237 = scalar_lea.vmem %s0, %s236
      $region40: #{tpu_custom_call.1} parent=35 // pred_fallthru
        _
      // Predicated region
      $region41: #{tpu_custom_call.1} parent=35 // pred_check
        %p238 = pneg %p59
      $region42: #{tpu_custom_call.1} parent=35 // pred_check_branch
        %240 = sbr.rel (%p238) target = $region44
      $region43: #{tpu_custom_call.1} parent=35 // pred_region
        %p241 = scmp.lt.s32.totalorder %s13, 1
        %s242 = scalar_select %p241, %s13, 1
        %s243 = smul.addr %s242, 32
        %s244 = smul.addr %s243, 8
        %s245 = scalar_lea.vmem %s1, %s244
      $region44: #{tpu_custom_call.1} parent=35 // pred_fallthru
        _
    $region36: #{tpu_custom_call.1} parent=5 // pred_fallthru
      _
    %p246 = scmp.le.s32.totalorder 1, %s13
    %p247 = scmp.lt.s32.totalorder %s13, 3
    %p248 = pnand %p246, %p247
    %p249 = pneg %p248
    // Predicated region
    $region45: #{tpu_custom_call.1} parent=5 // pred_check
      _
    $region46: #{tpu_custom_call.1} parent=5 // pred_check_branch
      %251 = sbr.rel (%p248) target = $region48
    $region47: #{tpu_custom_call.1} parent=5 // pred_region
      %s252 = ssub.s32 %s13, 1
      %p253 = scmp.lt.s32.totalorder %s18, 1
      %s254 = scalar_select %p253, %s18, 1
      %s255 = smul.addr %s254, 32
      %s256 = smul.addr %s255, 8
      %s257 = scalar_lea.vmem %s0, %s256
      %p258 = pneg %p39
      %p259 = pneg %p36
      %p260 = scmp.lt.s32.totalorder %s18, 1
      %s261 = scalar_select %p260, %s18, 1
      %s262 = smul.addr %s261, 32
      %s263 = smul.addr %s262, 8
      %s264 = scalar_lea.vmem %s1, %s263
      %p265 = pneg %p65
      %p266 = pneg %p62
      %p267 = pneg %p86
      %p268 = pneg %p83
      %p269 = pneg %p107
      %p270 = pneg %p104
      %p271 = pneg %p128
      %p272 = pneg %p125
      %p273 = pneg %p149
      %p274 = pneg %p146
      %p275 = pneg %p170
      %p276 = pneg %p167
      %p277 = pneg %p196
      %p278 = pneg %p193
      %p279 = scmp.lt.s32.totalorder %s18, 1
      %s280 = scalar_select %p279, %s18, 1
      %s281 = smul.addr %s280, 32
      %s282 = smul.addr %s281, 8
      %s283 = scalar_lea.vmem %s7, %s282
      %p284 = scmp.lt.s32.totalorder %s18, 1
      %s285 = scalar_select %p284, %s18, 1
      %s286 = smul.addr %s285, 32
      %s287 = smul.addr %s286, 8
      %s288 = scalar_lea.vmem %s0, %s287
      %p289 = scmp.lt.s32.totalorder %s18, 1
      %s290 = scalar_select %p289, %s18, 1
      %s291 = smul.addr %s290, 32
      %s292 = smul.addr %s291, 8
      %s293 = scalar_lea.vmem %s1, %s292
      %p294 = scmp.lt.s32.totalorder %s18, 1
      %s295 = scalar_select %p294, %s18, 1
      %s296 = smul.addr %s295, 32
      %s297 = smul.addr %s296, 8
      %s298 = scalar_lea.vmem %s7, %s297
      %vm300 = vcmask 60416
      %301 = vst.msk [vmem:[#allocation2] sm:$0xf] %vm300, 0
      %302 = vst.msk [vmem:[#allocation2 + $0x4] sm:$0xf] %vm300, 0
      %vm303 = vcmask 57344
      %304 = vst.msk [vmem:[#allocation2 + $0x8] sm:$0x1] %vm303, 0
      %305 = vst.msk [vmem:[#allocation2 + $0xc] sm:$0xf] %vm300, 0
      %306 = vst.msk [vmem:[#allocation2 + $0x10] sm:$0xf] %vm300, 0
      %307 = vst.msk [vmem:[#allocation2 + $0x14] sm:$0x1] %vm303, 0
      %308 = vst.msk [vmem:[#allocation2 + $0x18] sm:$0xf] %vm300, 0
      %309 = vst.msk [vmem:[#allocation2 + $0x1c] sm:$0xf] %vm300, 0
      %310 = vst.msk [vmem:[#allocation2 + $0x20] sm:$0x1] %vm303, 0
      %311 = vst.msk [vmem:[#allocation2 + $0x24] sm:$0xf] %vm300, 0
      %312 = vst.msk [vmem:[#allocation2 + $0x28] sm:$0xf] %vm300, 0
      %313 = vst.msk [vmem:[#allocation2 + $0x2c] sm:$0x1] %vm303, 0
      %314 = vst.msk [vmem:[#allocation2 + $0x30] sm:$0xf] %vm300, 0
      %315 = vst.msk [vmem:[#allocation2 + $0x34] sm:$0xf] %vm300, 0
      %316 = vst.msk [vmem:[#allocation2 + $0x38] sm:$0x1] %vm303, 0
      %317 = vst.msk [vmem:[#allocation2 + $0x3c] sm:$0xf] %vm300, 0
      %318 = vst.msk [vmem:[#allocation2 + $0x40] sm:$0xf] %vm300, 0
      %319 = vst.msk [vmem:[#allocation2 + $0x44] sm:$0x1] %vm303, 0
      %320 = vst.msk [vmem:[#allocation2 + $0x48] sm:$0xf] %vm300, 0
      %321 = vst.msk [vmem:[#allocation2 + $0x4c] sm:$0xf] %vm300, 0
      %322 = vst.msk [vmem:[#allocation2 + $0x50] sm:$0x1] %vm303, 0
      %323 = vst.msk [vmem:[#allocation2 + $0x54] sm:$0xf] %vm300, 0
      %324 = vst.msk [vmem:[#allocation2 + $0x58] sm:$0xf] %vm300, 0
      %325 = vst.msk [vmem:[#allocation2 + $0x5c] sm:$0x1] %vm303, 0
      %326 = vst.msk [vmem:[#allocation2 + $0x60] sm:$0xf] %vm300, 0
      %327 = vst.msk [vmem:[#allocation2 + $0x64] sm:$0xf] %vm300, 0
      %328 = vst.msk [vmem:[#allocation2 + $0x68] sm:$0x1] %vm303, 0
      %329 = vst.msk [vmem:[#allocation2 + $0x6c] sm:$0xf] %vm300, 0
      %330 = vst.msk [vmem:[#allocation2 + $0x70] sm:$0xf] %vm300, 0
      %331 = vst.msk [vmem:[#allocation2 + $0x74] sm:$0x1] %vm303, 0
      %332 = vst.msk [vmem:[#allocation2 + $0x78] sm:$0xf] %vm300, 0
      %333 = vst.msk [vmem:[#allocation2 + $0x7c] sm:$0xf] %vm300, 0
      %334 = vst.msk [vmem:[#allocation2 + $0x80] sm:$0x1] %vm303, 0
      %335 = vst.msk [vmem:[#allocation2 + $0x84] sm:$0xf] %vm300, 0
      %336 = vst.msk [vmem:[#allocation2 + $0x88] sm:$0xf] %vm300, 0
      %337 = vst.msk [vmem:[#allocation2 + $0x8c] sm:$0x1] %vm303, 0
      %338 = vst.msk [vmem:[#allocation2 + $0x90] sm:$0xf] %vm300, 0
      %339 = vst.msk [vmem:[#allocation2 + $0x94] sm:$0xf] %vm300, 0
      %340 = vst.msk [vmem:[#allocation2 + $0x98] sm:$0x1] %vm303, 0
      %341 = vst.msk [vmem:[#allocation2 + $0x9c] sm:$0xf] %vm300, 0
      %342 = vst.msk [vmem:[#allocation2 + $0xa0] sm:$0xf] %vm300, 0
      %343 = vst.msk [vmem:[#allocation2 + $0xa4] sm:$0x1] %vm303, 0
      %344 = vst.msk [vmem:[#allocation2 + $0xa8] sm:$0xf] %vm300, 0
      %345 = vst.msk [vmem:[#allocation2 + $0xac] sm:$0xf] %vm300, 0
      %346 = vst.msk [vmem:[#allocation2 + $0xb0] sm:$0x1] %vm303, 0
      %347 = vst.msk [vmem:[#allocation2 + $0xb4] sm:$0xf] %vm300, 0
      %348 = vst.msk [vmem:[#allocation2 + $0xb8] sm:$0xf] %vm300, 0
      %349 = vst.msk [vmem:[#allocation2 + $0xbc] sm:$0x1] %vm303, 0
      %350 = vst.msk [vmem:[#allocation2 + $0xc0] sm:$0xf] %vm300, 0
      %351 = vst.msk [vmem:[#allocation2 + $0xc4] sm:$0xf] %vm300, 0
      %352 = vst.msk [vmem:[#allocation2 + $0xc8] sm:$0x1] %vm303, 0
      %353 = vst.msk [vmem:[#allocation2 + $0xcc] sm:$0xf] %vm300, 0
      %354 = vst.msk [vmem:[#allocation2 + $0xd0] sm:$0xf] %vm300, 0
      %355 = vst.msk [vmem:[#allocation2 + $0xd4] sm:$0x1] %vm303, 0
      %356 = vst.msk [vmem:[#allocation3] sm:$0xf] %vm300, 0
      %357 = vst.msk [vmem:[#allocation3 + $0x4] sm:$0xf] %vm300, 0
      %358 = vst.msk [vmem:[#allocation3 + $0x8] sm:$0x1] %vm303, 0
      %359 = vst.msk [vmem:[#allocation3 + $0xc] sm:$0xf] %vm300, 0
      %360 = vst.msk [vmem:[#allocation3 + $0x10] sm:$0xf] %vm300, 0
      %361 = vst.msk [vmem:[#allocation3 + $0x14] sm:$0x1] %vm303, 0
      %362 = vst.msk [vmem:[#allocation3 + $0x18] sm:$0xf] %vm300, 0
      %363 = vst.msk [vmem:[#allocation3 + $0x1c] sm:$0xf] %vm300, 0
      %364 = vst.msk [vmem:[#allocation3 + $0x20] sm:$0x1] %vm303, 0
      %365 = vst.msk [vmem:[#allocation3 + $0x24] sm:$0xf] %vm300, 0
      %366 = vst.msk [vmem:[#allocation3 + $0x28] sm:$0xf] %vm300, 0
      %367 = vst.msk [vmem:[#allocation3 + $0x2c] sm:$0x1] %vm303, 0
      %368 = vst.msk [vmem:[#allocation3 + $0x30] sm:$0xf] %vm300, 0
      %369 = vst.msk [vmem:[#allocation3 + $0x34] sm:$0xf] %vm300, 0
      %370 = vst.msk [vmem:[#allocation3 + $0x38] sm:$0x1] %vm303, 0
      %371 = vst.msk [vmem:[#allocation3 + $0x3c] sm:$0xf] %vm300, 0
      %372 = vst.msk [vmem:[#allocation3 + $0x40] sm:$0xf] %vm300, 0
      %373 = vst.msk [vmem:[#allocation3 + $0x44] sm:$0x1] %vm303, 0
      %374 = vst.msk [vmem:[#allocation3 + $0x48] sm:$0xf] %vm300, 0
      %375 = vst.msk [vmem:[#allocation3 + $0x4c] sm:$0xf] %vm300, 0
      %376 = vst.msk [vmem:[#allocation3 + $0x50] sm:$0x1] %vm303, 0
      %377 = vst.msk [vmem:[#allocation3 + $0x54] sm:$0xf] %vm300, 0
      %378 = vst.msk [vmem:[#allocation3 + $0x58] sm:$0xf] %vm300, 0
      %379 = vst.msk [vmem:[#allocation3 + $0x5c] sm:$0x1] %vm303, 0
      %380 = vst.msk [vmem:[#allocation3 + $0x60] sm:$0xf] %vm300, 0
      %381 = vst.msk [vmem:[#allocation3 + $0x64] sm:$0xf] %vm300, 0
      %382 = vst.msk [vmem:[#allocation3 + $0x68] sm:$0x1] %vm303, 0
      %383 = vst.msk [vmem:[#allocation3 + $0x6c] sm:$0xf] %vm300, 0
      %384 = vst.msk [vmem:[#allocation3 + $0x70] sm:$0xf] %vm300, 0
      %385 = vst.msk [vmem:[#allocation3 + $0x74] sm:$0x1] %vm303, 0
      %386 = vst.msk [vmem:[#allocation3 + $0x78] sm:$0xf] %vm300, 0
      %387 = vst.msk [vmem:[#allocation3 + $0x7c] sm:$0xf] %vm300, 0
      %388 = vst.msk [vmem:[#allocation3 + $0x80] sm:$0x1] %vm303, 0
      %389 = vst.msk [vmem:[#allocation3 + $0x84] sm:$0xf] %vm300, 0
      %390 = vst.msk [vmem:[#allocation3 + $0x88] sm:$0xf] %vm300, 0
      %391 = vst.msk [vmem:[#allocation3 + $0x8c] sm:$0x1] %vm303, 0
      %392 = vst.msk [vmem:[#allocation3 + $0x90] sm:$0xf] %vm300, 0
      %393 = vst.msk [vmem:[#allocation3 + $0x94] sm:$0xf] %vm300, 0
      %394 = vst.msk [vmem:[#allocation3 + $0x98] sm:$0x1] %vm303, 0
      %395 = vst.msk [vmem:[#allocation3 + $0x9c] sm:$0xf] %vm300, 0
      %396 = vst.msk [vmem:[#allocation3 + $0xa0] sm:$0xf] %vm300, 0
      %397 = vst.msk [vmem:[#allocation3 + $0xa4] sm:$0x1] %vm303, 0
      %398 = vst.msk [vmem:[#allocation3 + $0xa8] sm:$0xf] %vm300, 0
      %399 = vst.msk [vmem:[#allocation3 + $0xac] sm:$0xf] %vm300, 0
      %400 = vst.msk [vmem:[#allocation3 + $0xb0] sm:$0x1] %vm303, 0
      %401 = vst.msk [vmem:[#allocation3 + $0xb4] sm:$0xf] %vm300, 0
      %402 = vst.msk [vmem:[#allocation3 + $0xb8] sm:$0xf] %vm300, 0
      %403 = vst.msk [vmem:[#allocation3 + $0xbc] sm:$0x1] %vm303, 0
      %404 = vst.msk [vmem:[#allocation3 + $0xc0] sm:$0xf] %vm300, 0
      %405 = vst.msk [vmem:[#allocation3 + $0xc4] sm:$0xf] %vm300, 0
      %406 = vst.msk [vmem:[#allocation3 + $0xc8] sm:$0x1] %vm303, 0
      %407 = vst.msk [vmem:[#allocation3 + $0xcc] sm:$0xf] %vm300, 0
      %408 = vst.msk [vmem:[#allocation3 + $0xd0] sm:$0xf] %vm300, 0
      %409 = vst.msk [vmem:[#allocation3 + $0xd4] sm:$0x1] %vm303, 0
      %v410 = vld [vmem:[%s293] sm:$0xff]
      %v411 = vld [vmem:[%s293 + $0x8] sm:$0xff]
      %v412 = vld [vmem:[%s293 + $0x10] sm:$0xff]
      %v413 = vld [vmem:[%s293 + $0x18] sm:$0xff]
      %v414 = vld [vmem:[%s293 + $0x20] sm:$0xff]
      %v415 = vld [vmem:[%s293 + $0x28] sm:$0xff]
      %v416 = vld [vmem:[%s293 + $0x30] sm:$0xff]
      %v417 = vld [vmem:[%s293 + $0x38] sm:$0xff]
      %v418 = vld [vmem:[%s293 + $0x40] sm:$0xff]
      %v419 = vld [vmem:[%s293 + $0x48] sm:$0xff]
      %v420 = vld [vmem:[%s293 + $0x50] sm:$0xff]
      %v421 = vld [vmem:[%s293 + $0x58] sm:$0xff]
      %v422 = vld [vmem:[%s293 + $0x60] sm:$0xff]
      %v423 = vld [vmem:[%s293 + $0x68] sm:$0xff]
      %v424 = vld [vmem:[%s293 + $0x70] sm:$0xff]
      %v425 = vld [vmem:[%s293 + $0x78] sm:$0xff]
      %v426 = vld [vmem:[%s293 + $0x80] sm:$0xff]
      %v427 = vld [vmem:[%s293 + $0x88] sm:$0xff]
      %v428 = vld [vmem:[%s293 + $0x90] sm:$0xff]
      %v429 = vld [vmem:[%s293 + $0x98] sm:$0xff]
      %v430 = vld [vmem:[%s293 + $0xa0] sm:$0xff]
      %v431 = vld [vmem:[%s293 + $0xa8] sm:$0xff]
      %v432 = vld [vmem:[%s293 + $0xb0] sm:$0xff]
      %v433 = vld [vmem:[%s293 + $0xb8] sm:$0xff]
      %v434 = vld [vmem:[%s293 + $0xc0] sm:$0xff]
      %v435 = vld [vmem:[%s293 + $0xc8] sm:$0xff]
      %v436 = vld [vmem:[%s293 + $0xd0] sm:$0xff]
      %v437 = vld [vmem:[%s293 + $0xd8] sm:$0xff]
      %v438 = vld [vmem:[%s293 + $0xe0] sm:$0xff]
      %v439 = vld [vmem:[%s293 + $0xe8] sm:$0xff]
      %v440 = vld [vmem:[%s293 + $0xf0] sm:$0xff]
      %v441 = vld [vmem:[%s293 + $0xf8] sm:$0xff]
      %v442 = vpack.c.bf16 %v411, %v410
      %v443 = vpack.c.bf16 %v413, %v412
      %v444 = vpack.c.bf16 %v415, %v414
      %v445 = vpack.c.bf16 %v417, %v416
      %v446 = vpack.c.bf16 %v419, %v418
      %v447 = vpack.c.bf16 %v421, %v420
      %v448 = vpack.c.bf16 %v423, %v422
      %v449 = vpack.c.bf16 %v425, %v424
      %v450 = vpack.c.bf16 %v427, %v426
      %v451 = vpack.c.bf16 %v429, %v428
      %v452 = vpack.c.bf16 %v431, %v430
      %v453 = vpack.c.bf16 %v433, %v432
      %v454 = vpack.c.bf16 %v435, %v434
      %v455 = vpack.c.bf16 %v437, %v436
      %v456 = vpack.c.bf16 %v439, %v438
      %v457 = vpack.c.bf16 %v441, %v440
      %v474 = vunpack.c.l.b16 %v442
      %v475 = vunpack.c.h.b16 %v442
      %v476 = vunpack.c.l.b16 %v443
      %v477 = vunpack.c.h.b16 %v443
      %v478 = vunpack.c.l.b16 %v444
      %v479 = vunpack.c.h.b16 %v444
      %v480 = vunpack.c.l.b16 %v445
      %v481 = vunpack.c.h.b16 %v445
      %v482 = vunpack.c.l.b16 %v446
      %v483 = vunpack.c.h.b16 %v446
      %v484 = vunpack.c.l.b16 %v447
      %v485 = vunpack.c.h.b16 %v447
      %v486 = vunpack.c.l.b16 %v448
      %v487 = vunpack.c.h.b16 %v448
      %v488 = vunpack.c.l.b16 %v449
      %v489 = vunpack.c.h.b16 %v449
      %v490 = vunpack.c.l.b16 %v450
      %v491 = vunpack.c.h.b16 %v450
      %v492 = vunpack.c.l.b16 %v451
      %v493 = vunpack.c.h.b16 %v451
      %v494 = vunpack.c.l.b16 %v452
      %v495 = vunpack.c.h.b16 %v452
      %v496 = vunpack.c.l.b16 %v453
      %v497 = vunpack.c.h.b16 %v453
      %v498 = vunpack.c.l.b16 %v454
      %v499 = vunpack.c.h.b16 %v454
      %v500 = vunpack.c.l.b16 %v455
      %v501 = vunpack.c.h.b16 %v455
      %v502 = vunpack.c.l.b16 %v456
      %v503 = vunpack.c.h.b16 %v456
      %v504 = vunpack.c.l.b16 %v457
      %v505 = vunpack.c.h.b16 %v457
      %v506 = vpack.c.b16 %v474, %v474
      %v507 = vpack.c.b16 %v475, %v475
      %v508 = vpack.c.b16 %v476, %v476
      %v509 = vpack.c.b16 %v477, %v477
      %v510 = vpack.c.b16 %v478, %v478
      %v511 = vpack.c.b16 %v479, %v479
      %v512 = vpack.c.b16 %v480, %v480
      %v513 = vpack.c.b16 %v481, %v481
      %v514 = vpack.c.b16 %v482, %v482
      %v515 = vpack.c.b16 %v483, %v483
      %v516 = vpack.c.b16 %v484, %v484
      %v517 = vpack.c.b16 %v485, %v485
      %v518 = vpack.c.b16 %v486, %v486
      %v519 = vpack.c.b16 %v487, %v487
      %v520 = vpack.c.b16 %v488, %v488
      %v521 = vpack.c.b16 %v489, %v489
      %v522 = vpack.c.b16 %v490, %v490
      %v523 = vpack.c.b16 %v491, %v491
      %v524 = vpack.c.b16 %v492, %v492
      %v525 = vpack.c.b16 %v493, %v493
      %v526 = vpack.c.b16 %v494, %v494
      %v527 = vpack.c.b16 %v495, %v495
      %v528 = vpack.c.b16 %v496, %v496
      %v529 = vpack.c.b16 %v497, %v497
      %v530 = vpack.c.b16 %v498, %v498
      %v531 = vpack.c.b16 %v499, %v499
      %v532 = vpack.c.b16 %v500, %v500
      %v533 = vpack.c.b16 %v501, %v501
      %v534 = vpack.c.b16 %v502, %v502
      %v535 = vpack.c.b16 %v503, %v503
      %v536 = vpack.c.b16 %v504, %v504
      %v537 = vpack.c.b16 %v505, %v505
      %vm538 = vsmask.f32 256
      %vm539 = vsmask.f32 4368
      %vm540 = vmor %vm538, %vm539
      %v542 = vshrl.u32 %v506, 16
      %v544 = vrot.slane %v542, 7
      %v545 = vshll.u32 %v506, 16
      %v547 = vor.u32 %v544, %v545
      %v548 = vrot.slane %v544, 4
      %v550 = vshrl.u32 %v507, 16
      %v552 = vrot.slane %v550, 7
      %v553 = vshll.u32 %v507, 16
      %v555 = vor.u32 %v552, %v553
      %v556 = vsel %vm540, %v548, %v555
      %v557 = vrot.slane %v552, 4
      %v559 = vshrl.u32 %v508, 16
      %v561 = vrot.slane %v559, 7
      %v562 = vshll.u32 %v508, 16
      %v564 = vor.u32 %v561, %v562
      %v565 = vrot.slane %v561, 4
      %v567 = vshrl.u32 %v509, 16
      %v569 = vrot.slane %v567, 7
      %v570 = vshll.u32 %v509, 16
      %v572 = vor.u32 %v569, %v570
      %v573 = vsel %vm540, %v565, %v572
      %v574 = vrot.slane %v569, 4
      %v576 = vshrl.u32 %v510, 16
      %v578 = vrot.slane %v576, 7
      %v579 = vshll.u32 %v510, 16
      %v581 = vor.u32 %v578, %v579
      %v582 = vrot.slane %v578, 4
      %v584 = vshrl.u32 %v511, 16
      %v586 = vrot.slane %v584, 7
      %v587 = vshll.u32 %v511, 16
      %v589 = vor.u32 %v586, %v587
      %v590 = vsel %vm540, %v582, %v589
      %v591 = vrot.slane %v586, 4
      %v593 = vshrl.u32 %v512, 16
      %v595 = vrot.slane %v593, 7
      %v596 = vshll.u32 %v512, 16
      %v598 = vor.u32 %v595, %v596
      %v599 = vrot.slane %v595, 4
      %v601 = vshrl.u32 %v513, 16
      %v603 = vrot.slane %v601, 7
      %v604 = vshll.u32 %v513, 16
      %v606 = vor.u32 %v603, %v604
      %v607 = vsel %vm540, %v599, %v606
      %v608 = vrot.slane %v603, 4
      %v610 = vshrl.u32 %v514, 16
      %v612 = vrot.slane %v610, 7
      %v613 = vshll.u32 %v514, 16
      %v615 = vor.u32 %v612, %v613
      %v616 = vrot.slane %v612, 4
      %v618 = vshrl.u32 %v515, 16
      %v620 = vrot.slane %v618, 7
      %v621 = vshll.u32 %v515, 16
      %v623 = vor.u32 %v620, %v621
      %v624 = vsel %vm540, %v616, %v623
      %v625 = vrot.slane %v620, 4
      %v627 = vshrl.u32 %v516, 16
      %v629 = vrot.slane %v627, 7
      %v630 = vshll.u32 %v516, 16
      %v632 = vor.u32 %v629, %v630
      %v633 = vrot.slane %v629, 4
      %v635 = vshrl.u32 %v517, 16
      %v637 = vrot.slane %v635, 7
      %v638 = vshll.u32 %v517, 16
      %v640 = vor.u32 %v637, %v638
      %v641 = vsel %vm540, %v633, %v640
      %v642 = vrot.slane %v637, 4
      %v644 = vshrl.u32 %v518, 16
      %v646 = vrot.slane %v644, 7
      %v647 = vshll.u32 %v518, 16
      %v649 = vor.u32 %v646, %v647
      %v650 = vrot.slane %v646, 4
      %v652 = vshrl.u32 %v519, 16
      %v654 = vrot.slane %v652, 7
      %v655 = vshll.u32 %v519, 16
      %v657 = vor.u32 %v654, %v655
      %v658 = vsel %vm540, %v650, %v657
      %v659 = vrot.slane %v654, 4
      %v661 = vshrl.u32 %v520, 16
      %v663 = vrot.slane %v661, 7
      %v664 = vshll.u32 %v520, 16
      %v666 = vor.u32 %v663, %v664
      %v667 = vrot.slane %v663, 4
      %v669 = vshrl.u32 %v521, 16
      %v671 = vrot.slane %v669, 7
      %v672 = vshll.u32 %v521, 16
      %v674 = vor.u32 %v671, %v672
      %v675 = vsel %vm540, %v667, %v674
      %v676 = vrot.slane %v671, 4
      %v678 = vshrl.u32 %v522, 16
      %v680 = vrot.slane %v678, 7
      %v681 = vshll.u32 %v522, 16
      %v683 = vor.u32 %v680, %v681
      %v684 = vrot.slane %v680, 4
      %v686 = vshrl.u32 %v523, 16
      %v688 = vrot.slane %v686, 7
      %v689 = vshll.u32 %v523, 16
      %v691 = vor.u32 %v688, %v689
      %v692 = vsel %vm540, %v684, %v691
      %v693 = vrot.slane %v688, 4
      %v695 = vshrl.u32 %v524, 16
      %v697 = vrot.slane %v695, 7
      %v698 = vshll.u32 %v524, 16
      %v700 = vor.u32 %v697, %v698
      %v701 = vrot.slane %v697, 4
      %v703 = vshrl.u32 %v525, 16
      %v705 = vrot.slane %v703, 7
      %v706 = vshll.u32 %v525, 16
      %v708 = vor.u32 %v705, %v706
      %v709 = vsel %vm540, %v701, %v708
      %v710 = vrot.slane %v705, 4
      %v712 = vshrl.u32 %v526, 16
      %v714 = vrot.slane %v712, 7
      %v715 = vshll.u32 %v526, 16
      %v717 = vor.u32 %v714, %v715
      %v718 = vrot.slane %v714, 4
      %v720 = vshrl.u32 %v527, 16
      %v722 = vrot.slane %v720, 7
      %v723 = vshll.u32 %v527, 16
      %v725 = vor.u32 %v722, %v723
      %v726 = vsel %vm540, %v718, %v725
      %v727 = vrot.slane %v722, 4
      %v729 = vshrl.u32 %v528, 16
      %v731 = vrot.slane %v729, 7
      %v732 = vshll.u32 %v528, 16
      %v734 = vor.u32 %v731, %v732
      %v735 = vrot.slane %v731, 4
      %v737 = vshrl.u32 %v529, 16
      %v739 = vrot.slane %v737, 7
      %v740 = vshll.u32 %v529, 16
      %v742 = vor.u32 %v739, %v740
      %v743 = vsel %vm540, %v735, %v742
      %v744 = vrot.slane %v739, 4
      %v746 = vshrl.u32 %v530, 16
      %v748 = vrot.slane %v746, 7
      %v749 = vshll.u32 %v530, 16
      %v751 = vor.u32 %v748, %v749
      %v752 = vrot.slane %v748, 4
      %v754 = vshrl.u32 %v531, 16
      %v756 = vrot.slane %v754, 7
      %v757 = vshll.u32 %v531, 16
      %v759 = vor.u32 %v756, %v757
      %v760 = vsel %vm540, %v752, %v759
      %v761 = vrot.slane %v756, 4
      %v763 = vshrl.u32 %v532, 16
      %v765 = vrot.slane %v763, 7
      %v766 = vshll.u32 %v532, 16
      %v768 = vor.u32 %v765, %v766
      %v769 = vrot.slane %v765, 4
      %v771 = vshrl.u32 %v533, 16
      %v773 = vrot.slane %v771, 7
      %v774 = vshll.u32 %v533, 16
      %v776 = vor.u32 %v773, %v774
      %v777 = vsel %vm540, %v769, %v776
      %v778 = vrot.slane %v773, 4
      %v780 = vshrl.u32 %v534, 16
      %v782 = vrot.slane %v780, 7
      %v783 = vshll.u32 %v534, 16
      %v785 = vor.u32 %v782, %v783
      %v786 = vrot.slane %v782, 4
      %v788 = vshrl.u32 %v535, 16
      %v790 = vrot.slane %v788, 7
      %v791 = vshll.u32 %v535, 16
      %v793 = vor.u32 %v790, %v791
      %v794 = vsel %vm540, %v786, %v793
      %v795 = vrot.slane %v790, 4
      %v797 = vshrl.u32 %v536, 16
      %v799 = vrot.slane %v797, 7
      %v800 = vshll.u32 %v536, 16
      %v802 = vor.u32 %v799, %v800
      %v803 = vrot.slane %v799, 4
      %v805 = vshrl.u32 %v537, 16
      %v807 = vrot.slane %v805, 7
      %v808 = vshll.u32 %v537, 16
      %v810 = vor.u32 %v807, %v808
      %v811 = vsel %vm540, %v803, %v810
      %v812 = vrot.slane %v807, 4
      %s861 = scalar_lea.vmem [#allocation2], 12
      %vm862 = vcmask 60416
      %vm863 = vsmask.f32 7938
      %vm864 = vmand %vm862, %vm863
      %v865 = vld [vmem:[%s861] sm:$0xf]
      %v866 = vsel %vm864, %v547, %v865
      %867 = vst [vmem:[%s861] sm:$0xf] %v866
      %868 = vst.msk [vmem:[%s861 + $0x4] sm:$0xf] %vm300, %v556
      %vm869 = vcmask 57344
      %vm870 = vmand %vm869, %vm538
      %v871 = vld [vmem:[%s861 + $0x8] sm:$0x1]
      %v872 = vsel %vm870, %v557, %v871
      %873 = vst [vmem:[%s861 + $0x8] sm:$0x1] %v872
      %v874 = vld [vmem:[%s861 + $0xc] sm:$0xf]
      %v875 = vsel %vm864, %v564, %v874
      %876 = vst [vmem:[%s861 + $0xc] sm:$0xf] %v875
      %877 = vst.msk [vmem:[%s861 + $0x10] sm:$0xf] %vm300, %v573
      %v878 = vld [vmem:[%s861 + $0x14] sm:$0x1]
      %v879 = vsel %vm870, %v574, %v878
      %880 = vst [vmem:[%s861 + $0x14] sm:$0x1] %v879
      %v881 = vld [vmem:[%s861 + $0x18] sm:$0xf]
      %v882 = vsel %vm864, %v581, %v881
      %883 = vst [vmem:[%s861 + $0x18] sm:$0xf] %v882
      %884 = vst.msk [vmem:[%s861 + $0x1c] sm:$0xf] %vm300, %v590
      %v885 = vld [vmem:[%s861 + $0x20] sm:$0x1]
      %v886 = vsel %vm870, %v591, %v885
      %887 = vst [vmem:[%s861 + $0x20] sm:$0x1] %v886
      %v888 = vld [vmem:[%s861 + $0x24] sm:$0xf]
      %v889 = vsel %vm864, %v598, %v888
      %890 = vst [vmem:[%s861 + $0x24] sm:$0xf] %v889
      %891 = vst.msk [vmem:[%s861 + $0x28] sm:$0xf] %vm300, %v607
      %v892 = vld [vmem:[%s861 + $0x2c] sm:$0x1]
      %v893 = vsel %vm870, %v608, %v892
      %894 = vst [vmem:[%s861 + $0x2c] sm:$0x1] %v893
      %v895 = vld [vmem:[%s861 + $0x30] sm:$0xf]
      %v896 = vsel %vm864, %v615, %v895
      %897 = vst [vmem:[%s861 + $0x30] sm:$0xf] %v896
      %898 = vst.msk [vmem:[%s861 + $0x34] sm:$0xf] %vm300, %v624
      %v899 = vld [vmem:[%s861 + $0x38] sm:$0x1]
      %v900 = vsel %vm870, %v625, %v899
      %901 = vst [vmem:[%s861 + $0x38] sm:$0x1] %v900
      %v902 = vld [vmem:[%s861 + $0x3c] sm:$0xf]
      %v903 = vsel %vm864, %v632, %v902
      %904 = vst [vmem:[%s861 + $0x3c] sm:$0xf] %v903
      %905 = vst.msk [vmem:[%s861 + $0x40] sm:$0xf] %vm300, %v641
      %v906 = vld [vmem:[%s861 + $0x44] sm:$0x1]
      %v907 = vsel %vm870, %v642, %v906
      %908 = vst [vmem:[%s861 + $0x44] sm:$0x1] %v907
      %v909 = vld [vmem:[%s861 + $0x48] sm:$0xf]
      %v910 = vsel %vm864, %v649, %v909
      %911 = vst [vmem:[%s861 + $0x48] sm:$0xf] %v910
      %912 = vst.msk [vmem:[%s861 + $0x4c] sm:$0xf] %vm300, %v658
      %v913 = vld [vmem:[%s861 + $0x50] sm:$0x1]
      %v914 = vsel %vm870, %v659, %v913
      %915 = vst [vmem:[%s861 + $0x50] sm:$0x1] %v914
      %v916 = vld [vmem:[%s861 + $0x54] sm:$0xf]
      %v917 = vsel %vm864, %v666, %v916
      %918 = vst [vmem:[%s861 + $0x54] sm:$0xf] %v917
      %919 = vst.msk [vmem:[%s861 + $0x58] sm:$0xf] %vm300, %v675
      %v920 = vld [vmem:[%s861 + $0x5c] sm:$0x1]
      %v921 = vsel %vm870, %v676, %v920
      %922 = vst [vmem:[%s861 + $0x5c] sm:$0x1] %v921
      %v923 = vld [vmem:[%s861 + $0x60] sm:$0xf]
      %v924 = vsel %vm864, %v683, %v923
      %925 = vst [vmem:[%s861 + $0x60] sm:$0xf] %v924
      %926 = vst.msk [vmem:[%s861 + $0x64] sm:$0xf] %vm300, %v692
      %v927 = vld [vmem:[%s861 + $0x68] sm:$0x1]
      %v928 = vsel %vm870, %v693, %v927
      %929 = vst [vmem:[%s861 + $0x68] sm:$0x1] %v928
      %v930 = vld [vmem:[%s861 + $0x6c] sm:$0xf]
      %v931 = vsel %vm864, %v700, %v930
      %932 = vst [vmem:[%s861 + $0x6c] sm:$0xf] %v931
      %933 = vst.msk [vmem:[%s861 + $0x70] sm:$0xf] %vm300, %v709
      %v934 = vld [vmem:[%s861 + $0x74] sm:$0x1]
      %v935 = vsel %vm870, %v710, %v934
      %936 = vst [vmem:[%s861 + $0x74] sm:$0x1] %v935
      %v937 = vld [vmem:[%s861 + $0x78] sm:$0xf]
      %v938 = vsel %vm864, %v717, %v937
      %939 = vst [vmem:[%s861 + $0x78] sm:$0xf] %v938
      %940 = vst.msk [vmem:[%s861 + $0x7c] sm:$0xf] %vm300, %v726
      %v941 = vld [vmem:[%s861 + $0x80] sm:$0x1]
      %v942 = vsel %vm870, %v727, %v941
      %943 = vst [vmem:[%s861 + $0x80] sm:$0x1] %v942
      %v944 = vld [vmem:[%s861 + $0x84] sm:$0xf]
      %v945 = vsel %vm864, %v734, %v944
      %946 = vst [vmem:[%s861 + $0x84] sm:$0xf] %v945
      %947 = vst.msk [vmem:[%s861 + $0x88] sm:$0xf] %vm300, %v743
      %v948 = vld [vmem:[%s861 + $0x8c] sm:$0x1]
      %v949 = vsel %vm870, %v744, %v948
      %950 = vst [vmem:[%s861 + $0x8c] sm:$0x1] %v949
      %v951 = vld [vmem:[%s861 + $0x90] sm:$0xf]
      %v952 = vsel %vm864, %v751, %v951
      %953 = vst [vmem:[%s861 + $0x90] sm:$0xf] %v952
      %954 = vst.msk [vmem:[%s861 + $0x94] sm:$0xf] %vm300, %v760
      %v955 = vld [vmem:[%s861 + $0x98] sm:$0x1]
      %v956 = vsel %vm870, %v761, %v955
      %957 = vst [vmem:[%s861 + $0x98] sm:$0x1] %v956
      %v958 = vld [vmem:[%s861 + $0x9c] sm:$0xf]
      %v959 = vsel %vm864, %v768, %v958
      %960 = vst [vmem:[%s861 + $0x9c] sm:$0xf] %v959
      %961 = vst.msk [vmem:[%s861 + $0xa0] sm:$0xf] %vm300, %v777
      %v962 = vld [vmem:[%s861 + $0xa4] sm:$0x1]
      %v963 = vsel %vm870, %v778, %v962
      %964 = vst [vmem:[%s861 + $0xa4] sm:$0x1] %v963
      %v965 = vld [vmem:[%s861 + $0xa8] sm:$0xf]
      %v966 = vsel %vm864, %v785, %v965
      %967 = vst [vmem:[%s861 + $0xa8] sm:$0xf] %v966
      %968 = vst.msk [vmem:[%s861 + $0xac] sm:$0xf] %vm300, %v794
      %v969 = vld [vmem:[%s861 + $0xb0] sm:$0x1]
      %v970 = vsel %vm870, %v795, %v969
      %971 = vst [vmem:[%s861 + $0xb0] sm:$0x1] %v970
      %v972 = vld [vmem:[%s861 + $0xb4] sm:$0xf]
      %v973 = vsel %vm864, %v802, %v972
      %974 = vst [vmem:[%s861 + $0xb4] sm:$0xf] %v973
      %975 = vst.msk [vmem:[%s861 + $0xb8] sm:$0xf] %vm300, %v811
      %v976 = vld [vmem:[%s861 + $0xbc] sm:$0x1]
      %v977 = vsel %vm870, %v812, %v976
      %978 = vst [vmem:[%s861 + $0xbc] sm:$0x1] %v977
      %v979 = vld [vmem:[%s288] sm:$0xff]
      %v980 = vld [vmem:[%s288 + $0x8] sm:$0xff]
      %v981 = vld [vmem:[%s288 + $0x10] sm:$0xff]
      %v982 = vld [vmem:[%s288 + $0x18] sm:$0xff]
      %v983 = vld [vmem:[%s288 + $0x20] sm:$0xff]
      %v984 = vld [vmem:[%s288 + $0x28] sm:$0xff]
      %v985 = vld [vmem:[%s288 + $0x30] sm:$0xff]
      %v986 = vld [vmem:[%s288 + $0x38] sm:$0xff]
      %v987 = vld [vmem:[%s288 + $0x40] sm:$0xff]
      %v988 = vld [vmem:[%s288 + $0x48] sm:$0xff]
      %v989 = vld [vmem:[%s288 + $0x50] sm:$0xff]
      %v990 = vld [vmem:[%s288 + $0x58] sm:$0xff]
      %v991 = vld [vmem:[%s288 + $0x60] sm:$0xff]
      %v992 = vld [vmem:[%s288 + $0x68] sm:$0xff]
      %v993 = vld [vmem:[%s288 + $0x70] sm:$0xff]
      %v994 = vld [vmem:[%s288 + $0x78] sm:$0xff]
      %v995 = vld [vmem:[%s288 + $0x80] sm:$0xff]
      %v996 = vld [vmem:[%s288 + $0x88] sm:$0xff]
      %v997 = vld [vmem:[%s288 + $0x90] sm:$0xff]
      %v998 = vld [vmem:[%s288 + $0x98] sm:$0xff]
      %v999 = vld [vmem:[%s288 + $0xa0] sm:$0xff]
      %v1000 = vld [vmem:[%s288 + $0xa8] sm:$0xff]
      %v1001 = vld [vmem:[%s288 + $0xb0] sm:$0xff]
      %v1002 = vld [vmem:[%s288 + $0xb8] sm:$0xff]
      %v1003 = vld [vmem:[%s288 + $0xc0] sm:$0xff]
      %v1004 = vld [vmem:[%s288 + $0xc8] sm:$0xff]
      %v1005 = vld [vmem:[%s288 + $0xd0] sm:$0xff]
      %v1006 = vld [vmem:[%s288 + $0xd8] sm:$0xff]
      %v1007 = vld [vmem:[%s288 + $0xe0] sm:$0xff]
      %v1008 = vld [vmem:[%s288 + $0xe8] sm:$0xff]
      %v1009 = vld [vmem:[%s288 + $0xf0] sm:$0xff]
      %v1010 = vld [vmem:[%s288 + $0xf8] sm:$0xff]
      %v1011 = vpack.c.bf16 %v980, %v979
      %v1012 = vpack.c.bf16 %v982, %v981
      %v1013 = vpack.c.bf16 %v984, %v983
      %v1014 = vpack.c.bf16 %v986, %v985
      %v1015 = vpack.c.bf16 %v988, %v987
      %v1016 = vpack.c.bf16 %v990, %v989
      %v1017 = vpack.c.bf16 %v992, %v991
      %v1018 = vpack.c.bf16 %v994, %v993
      %v1019 = vpack.c.bf16 %v996, %v995
      %v1020 = vpack.c.bf16 %v998, %v997
      %v1021 = vpack.c.bf16 %v1000, %v999
      %v1022 = vpack.c.bf16 %v1002, %v1001
      %v1023 = vpack.c.bf16 %v1004, %v1003
      %v1024 = vpack.c.bf16 %v1006, %v1005
      %v1025 = vpack.c.bf16 %v1008, %v1007
      %v1026 = vpack.c.bf16 %v1010, %v1009
      %v1043 = vunpack.c.l.b16 %v1011
      %v1044 = vunpack.c.h.b16 %v1011
      %v1045 = vunpack.c.l.b16 %v1012
      %v1046 = vunpack.c.h.b16 %v1012
      %v1047 = vunpack.c.l.b16 %v1013
      %v1048 = vunpack.c.h.b16 %v1013
      %v1049 = vunpack.c.l.b16 %v1014
      %v1050 = vunpack.c.h.b16 %v1014
      %v1051 = vunpack.c.l.b16 %v1015
      %v1052 = vunpack.c.h.b16 %v1015
      %v1053 = vunpack.c.l.b16 %v1016
      %v1054 = vunpack.c.h.b16 %v1016
      %v1055 = vunpack.c.l.b16 %v1017
      %v1056 = vunpack.c.h.b16 %v1017
      %v1057 = vunpack.c.l.b16 %v1018
      %v1058 = vunpack.c.h.b16 %v1018
      %v1059 = vunpack.c.l.b16 %v1019
      %v1060 = vunpack.c.h.b16 %v1019
      %v1061 = vunpack.c.l.b16 %v1020
      %v1062 = vunpack.c.h.b16 %v1020
      %v1063 = vunpack.c.l.b16 %v1021
      %v1064 = vunpack.c.h.b16 %v1021
      %v1065 = vunpack.c.l.b16 %v1022
      %v1066 = vunpack.c.h.b16 %v1022
      %v1067 = vunpack.c.l.b16 %v1023
      %v1068 = vunpack.c.h.b16 %v1023
      %v1069 = vunpack.c.l.b16 %v1024
      %v1070 = vunpack.c.h.b16 %v1024
      %v1071 = vunpack.c.l.b16 %v1025
      %v1072 = vunpack.c.h.b16 %v1025
      %v1073 = vunpack.c.l.b16 %v1026
      %v1074 = vunpack.c.h.b16 %v1026
      %v1075 = vpack.c.b16 %v1043, %v1043
      %v1076 = vpack.c.b16 %v1044, %v1044
      %v1077 = vpack.c.b16 %v1045, %v1045
      %v1078 = vpack.c.b16 %v1046, %v1046
      %v1079 = vpack.c.b16 %v1047, %v1047
      %v1080 = vpack.c.b16 %v1048, %v1048
      %v1081 = vpack.c.b16 %v1049, %v1049
      %v1082 = vpack.c.b16 %v1050, %v1050
      %v1083 = vpack.c.b16 %v1051, %v1051
      %v1084 = vpack.c.b16 %v1052, %v1052
      %v1085 = vpack.c.b16 %v1053, %v1053
      %v1086 = vpack.c.b16 %v1054, %v1054
      %v1087 = vpack.c.b16 %v1055, %v1055
      %v1088 = vpack.c.b16 %v1056, %v1056
      %v1089 = vpack.c.b16 %v1057, %v1057
      %v1090 = vpack.c.b16 %v1058, %v1058
      %v1091 = vpack.c.b16 %v1059, %v1059
      %v1092 = vpack.c.b16 %v1060, %v1060
      %v1093 = vpack.c.b16 %v1061, %v1061
      %v1094 = vpack.c.b16 %v1062, %v1062
      %v1095 = vpack.c.b16 %v1063, %v1063
      %v1096 = vpack.c.b16 %v1064, %v1064
      %v1097 = vpack.c.b16 %v1065, %v1065
      %v1098 = vpack.c.b16 %v1066, %v1066
      %v1099 = vpack.c.b16 %v1067, %v1067
      %v1100 = vpack.c.b16 %v1068, %v1068
      %v1101 = vpack.c.b16 %v1069, %v1069
      %v1102 = vpack.c.b16 %v1070, %v1070
      %v1103 = vpack.c.b16 %v1071, %v1071
      %v1104 = vpack.c.b16 %v1072, %v1072
      %v1105 = vpack.c.b16 %v1073, %v1073
      %v1106 = vpack.c.b16 %v1074, %v1074
      %v1108 = vshrl.u32 %v1075, 16
      %v1110 = vrot.slane %v1108, 7
      %v1111 = vshll.u32 %v1075, 16
      %v1113 = vor.u32 %v1110, %v1111
      %v1114 = vrot.slane %v1110, 4
      %v1116 = vshrl.u32 %v1076, 16
      %v1118 = vrot.slane %v1116, 7
      %v1119 = vshll.u32 %v1076, 16
      %v1121 = vor.u32 %v1118, %v1119
      %v1122 = vsel %vm540, %v1114, %v1121
      %v1123 = vrot.slane %v1118, 4
      %v1125 = vshrl.u32 %v1077, 16
      %v1127 = vrot.slane %v1125, 7
      %v1128 = vshll.u32 %v1077, 16
      %v1130 = vor.u32 %v1127, %v1128
      %v1131 = vrot.slane %v1127, 4
      %v1133 = vshrl.u32 %v1078, 16
      %v1135 = vrot.slane %v1133, 7
      %v1136 = vshll.u32 %v1078, 16
      %v1138 = vor.u32 %v1135, %v1136
      %v1139 = vsel %vm540, %v1131, %v1138
      %v1140 = vrot.slane %v1135, 4
      %v1142 = vshrl.u32 %v1079, 16
      %v1144 = vrot.slane %v1142, 7
      %v1145 = vshll.u32 %v1079, 16
      %v1147 = vor.u32 %v1144, %v1145
      %v1148 = vrot.slane %v1144, 4
      %v1150 = vshrl.u32 %v1080, 16
      %v1152 = vrot.slane %v1150, 7
      %v1153 = vshll.u32 %v1080, 16
      %v1155 = vor.u32 %v1152, %v1153
      %v1156 = vsel %vm540, %v1148, %v1155
      %v1157 = vrot.slane %v1152, 4
      %v1159 = vshrl.u32 %v1081, 16
      %v1161 = vrot.slane %v1159, 7
      %v1162 = vshll.u32 %v1081, 16
      %v1164 = vor.u32 %v1161, %v1162
      %v1165 = vrot.slane %v1161, 4
      %v1167 = vshrl.u32 %v1082, 16
      %v1169 = vrot.slane %v1167, 7
      %v1170 = vshll.u32 %v1082, 16
      %v1172 = vor.u32 %v1169, %v1170
      %v1173 = vsel %vm540, %v1165, %v1172
      %v1174 = vrot.slane %v1169, 4
      %v1176 = vshrl.u32 %v1083, 16
      %v1178 = vrot.slane %v1176, 7
      %v1179 = vshll.u32 %v1083, 16
      %v1181 = vor.u32 %v1178, %v1179
      %v1182 = vrot.slane %v1178, 4
      %v1184 = vshrl.u32 %v1084, 16
      %v1186 = vrot.slane %v1184, 7
      %v1187 = vshll.u32 %v1084, 16
      %v1189 = vor.u32 %v1186, %v1187
      %v1190 = vsel %vm540, %v1182, %v1189
      %v1191 = vrot.slane %v1186, 4
      %v1193 = vshrl.u32 %v1085, 16
      %v1195 = vrot.slane %v1193, 7
      %v1196 = vshll.u32 %v1085, 16
      %v1198 = vor.u32 %v1195, %v1196
      %v1199 = vrot.slane %v1195, 4
      %v1201 = vshrl.u32 %v1086, 16
      %v1203 = vrot.slane %v1201, 7
      %v1204 = vshll.u32 %v1086, 16
      %v1206 = vor.u32 %v1203, %v1204
      %v1207 = vsel %vm540, %v1199, %v1206
      %v1208 = vrot.slane %v1203, 4
      %v1210 = vshrl.u32 %v1087, 16
      %v1212 = vrot.slane %v1210, 7
      %v1213 = vshll.u32 %v1087, 16
      %v1215 = vor.u32 %v1212, %v1213
      %v1216 = vrot.slane %v1212, 4
      %v1218 = vshrl.u32 %v1088, 16
      %v1220 = vrot.slane %v1218, 7
      %v1221 = vshll.u32 %v1088, 16
      %v1223 = vor.u32 %v1220, %v1221
      %v1224 = vsel %vm540, %v1216, %v1223
      %v1225 = vrot.slane %v1220, 4
      %v1227 = vshrl.u32 %v1089, 16
      %v1229 = vrot.slane %v1227, 7
      %v1230 = vshll.u32 %v1089, 16
      %v1232 = vor.u32 %v1229, %v1230
      %v1233 = vrot.slane %v1229, 4
      %v1235 = vshrl.u32 %v1090, 16
      %v1237 = vrot.slane %v1235, 7
      %v1238 = vshll.u32 %v1090, 16
      %v1240 = vor.u32 %v1237, %v1238
      %v1241 = vsel %vm540, %v1233, %v1240
      %v1242 = vrot.slane %v1237, 4
      %v1244 = vshrl.u32 %v1091, 16
      %v1246 = vrot.slane %v1244, 7
      %v1247 = vshll.u32 %v1091, 16
      %v1249 = vor.u32 %v1246, %v1247
      %v1250 = vrot.slane %v1246, 4
      %v1252 = vshrl.u32 %v1092, 16
      %v1254 = vrot.slane %v1252, 7
      %v1255 = vshll.u32 %v1092, 16
      %v1257 = vor.u32 %v1254, %v1255
      %v1258 = vsel %vm540, %v1250, %v1257
      %v1259 = vrot.slane %v1254, 4
      %v1261 = vshrl.u32 %v1093, 16
      %v1263 = vrot.slane %v1261, 7
      %v1264 = vshll.u32 %v1093, 16
      %v1266 = vor.u32 %v1263, %v1264
      %v1267 = vrot.slane %v1263, 4
      %v1269 = vshrl.u32 %v1094, 16
      %v1271 = vrot.slane %v1269, 7
      %v1272 = vshll.u32 %v1094, 16
      %v1274 = vor.u32 %v1271, %v1272
      %v1275 = vsel %vm540, %v1267, %v1274
      %v1276 = vrot.slane %v1271, 4
      %v1278 = vshrl.u32 %v1095, 16
      %v1280 = vrot.slane %v1278, 7
      %v1281 = vshll.u32 %v1095, 16
      %v1283 = vor.u32 %v1280, %v1281
      %v1284 = vrot.slane %v1280, 4
      %v1286 = vshrl.u32 %v1096, 16
      %v1288 = vrot.slane %v1286, 7
      %v1289 = vshll.u32 %v1096, 16
      %v1291 = vor.u32 %v1288, %v1289
      %v1292 = vsel %vm540, %v1284, %v1291
      %v1293 = vrot.slane %v1288, 4
      %v1295 = vshrl.u32 %v1097, 16
      %v1297 = vrot.slane %v1295, 7
      %v1298 = vshll.u32 %v1097, 16
      %v1300 = vor.u32 %v1297, %v1298
      %v1301 = vrot.slane %v1297, 4
      %v1303 = vshrl.u32 %v1098, 16
      %v1305 = vrot.slane %v1303, 7
      %v1306 = vshll.u32 %v1098, 16
      %v1308 = vor.u32 %v1305, %v1306
      %v1309 = vsel %vm540, %v1301, %v1308
      %v1310 = vrot.slane %v1305, 4
      %v1312 = vshrl.u32 %v1099, 16
      %v1314 = vrot.slane %v1312, 7
      %v1315 = vshll.u32 %v1099, 16
      %v1317 = vor.u32 %v1314, %v1315
      %v1318 = vrot.slane %v1314, 4
      %v1320 = vshrl.u32 %v1100, 16
      %v1322 = vrot.slane %v1320, 7
      %v1323 = vshll.u32 %v1100, 16
      %v1325 = vor.u32 %v1322, %v1323
      %v1326 = vsel %vm540, %v1318, %v1325
      %v1327 = vrot.slane %v1322, 4
      %v1329 = vshrl.u32 %v1101, 16
      %v1331 = vrot.slane %v1329, 7
      %v1332 = vshll.u32 %v1101, 16
      %v1334 = vor.u32 %v1331, %v1332
      %v1335 = vrot.slane %v1331, 4
      %v1337 = vshrl.u32 %v1102, 16
      %v1339 = vrot.slane %v1337, 7
      %v1340 = vshll.u32 %v1102, 16
      %v1342 = vor.u32 %v1339, %v1340
      %v1343 = vsel %vm540, %v1335, %v1342
      %v1344 = vrot.slane %v1339, 4
      %v1346 = vshrl.u32 %v1103, 16
      %v1348 = vrot.slane %v1346, 7
      %v1349 = vshll.u32 %v1103, 16
      %v1351 = vor.u32 %v1348, %v1349
      %v1352 = vrot.slane %v1348, 4
      %v1354 = vshrl.u32 %v1104, 16
      %v1356 = vrot.slane %v1354, 7
      %v1357 = vshll.u32 %v1104, 16
      %v1359 = vor.u32 %v1356, %v1357
      %v1360 = vsel %vm540, %v1352, %v1359
      %v1361 = vrot.slane %v1356, 4
      %v1363 = vshrl.u32 %v1105, 16
      %v1365 = vrot.slane %v1363, 7
      %v1366 = vshll.u32 %v1105, 16
      %v1368 = vor.u32 %v1365, %v1366
      %v1369 = vrot.slane %v1365, 4
      %v1371 = vshrl.u32 %v1106, 16
      %v1373 = vrot.slane %v1371, 7
      %v1374 = vshll.u32 %v1106, 16
      %v1376 = vor.u32 %v1373, %v1374
      %v1377 = vsel %vm540, %v1369, %v1376
      %v1378 = vrot.slane %v1373, 4
      %s1427 = scalar_lea.vmem [#allocation3], 12
      %v1428 = vld [vmem:[%s1427] sm:$0xf]
      %v1429 = vsel %vm864, %v1113, %v1428
      %1430 = vst [vmem:[%s1427] sm:$0xf] %v1429
      %1431 = vst.msk [vmem:[%s1427 + $0x4] sm:$0xf] %vm300, %v1122
      %v1432 = vld [vmem:[%s1427 + $0x8] sm:$0x1]
      %v1433 = vsel %vm870, %v1123, %v1432
      %1434 = vst [vmem:[%s1427 + $0x8] sm:$0x1] %v1433
      %v1435 = vld [vmem:[%s1427 + $0xc] sm:$0xf]
      %v1436 = vsel %vm864, %v1130, %v1435
      %1437 = vst [vmem:[%s1427 + $0xc] sm:$0xf] %v1436
      %1438 = vst.msk [vmem:[%s1427 + $0x10] sm:$0xf] %vm300, %v1139
      %v1439 = vld [vmem:[%s1427 + $0x14] sm:$0x1]
      %v1440 = vsel %vm870, %v1140, %v1439
      %1441 = vst [vmem:[%s1427 + $0x14] sm:$0x1] %v1440
      %v1442 = vld [vmem:[%s1427 + $0x18] sm:$0xf]
      %v1443 = vsel %vm864, %v1147, %v1442
      %1444 = vst [vmem:[%s1427 + $0x18] sm:$0xf] %v1443
      %1445 = vst.msk [vmem:[%s1427 + $0x1c] sm:$0xf] %vm300, %v1156
      %v1446 = vld [vmem:[%s1427 + $0x20] sm:$0x1]
      %v1447 = vsel %vm870, %v1157, %v1446
      %1448 = vst [vmem:[%s1427 + $0x20] sm:$0x1] %v1447
      %v1449 = vld [vmem:[%s1427 + $0x24] sm:$0xf]
      %v1450 = vsel %vm864, %v1164, %v1449
      %1451 = vst [vmem:[%s1427 + $0x24] sm:$0xf] %v1450
      %1452 = vst.msk [vmem:[%s1427 + $0x28] sm:$0xf] %vm300, %v1173
      %v1453 = vld [vmem:[%s1427 + $0x2c] sm:$0x1]
      %v1454 = vsel %vm870, %v1174, %v1453
      %1455 = vst [vmem:[%s1427 + $0x2c] sm:$0x1] %v1454
      %v1456 = vld [vmem:[%s1427 + $0x30] sm:$0xf]
      %v1457 = vsel %vm864, %v1181, %v1456
      %1458 = vst [vmem:[%s1427 + $0x30] sm:$0xf] %v1457
      %1459 = vst.msk [vmem:[%s1427 + $0x34] sm:$0xf] %vm300, %v1190
      %v1460 = vld [vmem:[%s1427 + $0x38] sm:$0x1]
      %v1461 = vsel %vm870, %v1191, %v1460
      %1462 = vst [vmem:[%s1427 + $0x38] sm:$0x1] %v1461
      %v1463 = vld [vmem:[%s1427 + $0x3c] sm:$0xf]
      %v1464 = vsel %vm864, %v1198, %v1463
      %1465 = vst [vmem:[%s1427 + $0x3c] sm:$0xf] %v1464
      %1466 = vst.msk [vmem:[%s1427 + $0x40] sm:$0xf] %vm300, %v1207
      %v1467 = vld [vmem:[%s1427 + $0x44] sm:$0x1]
      %v1468 = vsel %vm870, %v1208, %v1467
      %1469 = vst [vmem:[%s1427 + $0x44] sm:$0x1] %v1468
      %v1470 = vld [vmem:[%s1427 + $0x48] sm:$0xf]
      %v1471 = vsel %vm864, %v1215, %v1470
      %1472 = vst [vmem:[%s1427 + $0x48] sm:$0xf] %v1471
      %1473 = vst.msk [vmem:[%s1427 + $0x4c] sm:$0xf] %vm300, %v1224
      %v1474 = vld [vmem:[%s1427 + $0x50] sm:$0x1]
      %v1475 = vsel %vm870, %v1225, %v1474
      %1476 = vst [vmem:[%s1427 + $0x50] sm:$0x1] %v1475
      %v1477 = vld [vmem:[%s1427 + $0x54] sm:$0xf]
      %v1478 = vsel %vm864, %v1232, %v1477
      %1479 = vst [vmem:[%s1427 + $0x54] sm:$0xf] %v1478
      %1480 = vst.msk [vmem:[%s1427 + $0x58] sm:$0xf] %vm300, %v1241
      %v1481 = vld [vmem:[%s1427 + $0x5c] sm:$0x1]
      %v1482 = vsel %vm870, %v1242, %v1481
      %1483 = vst [vmem:[%s1427 + $0x5c] sm:$0x1] %v1482
      %v1484 = vld [vmem:[%s1427 + $0x60] sm:$0xf]
      %v1485 = vsel %vm864, %v1249, %v1484
      %1486 = vst [vmem:[%s1427 + $0x60] sm:$0xf] %v1485
      %1487 = vst.msk [vmem:[%s1427 + $0x64] sm:$0xf] %vm300, %v1258
      %v1488 = vld [vmem:[%s1427 + $0x68] sm:$0x1]
      %v1489 = vsel %vm870, %v1259, %v1488
      %1490 = vst [vmem:[%s1427 + $0x68] sm:$0x1] %v1489
      %v1491 = vld [vmem:[%s1427 + $0x6c] sm:$0xf]
      %v1492 = vsel %vm864, %v1266, %v1491
      %1493 = vst [vmem:[%s1427 + $0x6c] sm:$0xf] %v1492
      %1494 = vst.msk [vmem:[%s1427 + $0x70] sm:$0xf] %vm300, %v1275
      %v1495 = vld [vmem:[%s1427 + $0x74] sm:$0x1]
      %v1496 = vsel %vm870, %v1276, %v1495
      %1497 = vst [vmem:[%s1427 + $0x74] sm:$0x1] %v1496
      %v1498 = vld [vmem:[%s1427 + $0x78] sm:$0xf]
      %v1499 = vsel %vm864, %v1283, %v1498
      %1500 = vst [vmem:[%s1427 + $0x78] sm:$0xf] %v1499
      %1501 = vst.msk [vmem:[%s1427 + $0x7c] sm:$0xf] %vm300, %v1292
      %v1502 = vld [vmem:[%s1427 + $0x80] sm:$0x1]
      %v1503 = vsel %vm870, %v1293, %v1502
      %1504 = vst [vmem:[%s1427 + $0x80] sm:$0x1] %v1503
      %v1505 = vld [vmem:[%s1427 + $0x84] sm:$0xf]
      %v1506 = vsel %vm864, %v1300, %v1505
      %1507 = vst [vmem:[%s1427 + $0x84] sm:$0xf] %v1506
      %1508 = vst.msk [vmem:[%s1427 + $0x88] sm:$0xf] %vm300, %v1309
      %v1509 = vld [vmem:[%s1427 + $0x8c] sm:$0x1]
      %v1510 = vsel %vm870, %v1310, %v1509
      %1511 = vst [vmem:[%s1427 + $0x8c] sm:$0x1] %v1510
      %v1512 = vld [vmem:[%s1427 + $0x90] sm:$0xf]
      %v1513 = vsel %vm864, %v1317, %v1512
      %1514 = vst [vmem:[%s1427 + $0x90] sm:$0xf] %v1513
      %1515 = vst.msk [vmem:[%s1427 + $0x94] sm:$0xf] %vm300, %v1326
      %v1516 = vld [vmem:[%s1427 + $0x98] sm:$0x1]
      %v1517 = vsel %vm870, %v1327, %v1516
      %1518 = vst [vmem:[%s1427 + $0x98] sm:$0x1] %v1517
      %v1519 = vld [vmem:[%s1427 + $0x9c] sm:$0xf]
      %v1520 = vsel %vm864, %v1334, %v1519
      %1521 = vst [vmem:[%s1427 + $0x9c] sm:$0xf] %v1520
      %1522 = vst.msk [vmem:[%s1427 + $0xa0] sm:$0xf] %vm300, %v1343
      %v1523 = vld [vmem:[%s1427 + $0xa4] sm:$0x1]
      %v1524 = vsel %vm870, %v1344, %v1523
      %1525 = vst [vmem:[%s1427 + $0xa4] sm:$0x1] %v1524
      %v1526 = vld [vmem:[%s1427 + $0xa8] sm:$0xf]
      %v1527 = vsel %vm864, %v1351, %v1526
      %1528 = vst [vmem:[%s1427 + $0xa8] sm:$0xf] %v1527
      %1529 = vst.msk [vmem:[%s1427 + $0xac] sm:$0xf] %vm300, %v1360
      %v1530 = vld [vmem:[%s1427 + $0xb0] sm:$0x1]
      %v1531 = vsel %vm870, %v1361, %v1530
      %1532 = vst [vmem:[%s1427 + $0xb0] sm:$0x1] %v1531
      %v1533 = vld [vmem:[%s1427 + $0xb4] sm:$0xf]
      %v1534 = vsel %vm864, %v1368, %v1533
      %1535 = vst [vmem:[%s1427 + $0xb4] sm:$0xf] %v1534
      %1536 = vst.msk [vmem:[%s1427 + $0xb8] sm:$0xf] %vm300, %v1377
      %v1537 = vld [vmem:[%s1427 + $0xbc] sm:$0x1]
      %v1538 = vsel %vm870, %v1378, %v1537
      %1539 = vst [vmem:[%s1427 + $0xbc] sm:$0x1] %v1538
      %v1540 = vld [vmem:[#allocation2] sm:$0xf]
      %v1541 = vld [vmem:[#allocation2 + $0x4] sm:$0xf]
      %v1542 = vld [vmem:[#allocation2 + $0xc] sm:$0xf]
      %v1543 = vld [vmem:[#allocation2 + $0x10] sm:$0xf]
      %v1544 = vld [vmem:[#allocation2 + $0x18] sm:$0xf]
      %v1545 = vld [vmem:[#allocation2 + $0x1c] sm:$0xf]
      %v1546 = vld [vmem:[#allocation2 + $0x24] sm:$0xf]
      %v1547 = vld [vmem:[#allocation2 + $0x28] sm:$0xf]
      %v1548 = vld [vmem:[#allocation2 + $0x30] sm:$0xf]
      %v1549 = vld [vmem:[#allocation2 + $0x34] sm:$0xf]
      %v1550 = vld [vmem:[#allocation2 + $0x3c] sm:$0xf]
      %v1551 = vld [vmem:[#allocation2 + $0x40] sm:$0xf]
      %v1552 = vld [vmem:[#allocation2 + $0x48] sm:$0xf]
      %v1553 = vld [vmem:[#allocation2 + $0x4c] sm:$0xf]
      %v1554 = vld [vmem:[#allocation2 + $0x54] sm:$0xf]
      %v1555 = vld [vmem:[#allocation2 + $0x58] sm:$0xf]
      %v1556 = vld [vmem:[#allocation2 + $0x60] sm:$0xf]
      %v1557 = vld [vmem:[#allocation2 + $0x64] sm:$0xf]
      %v1558 = vld [vmem:[#allocation2 + $0x6c] sm:$0xf]
      %v1559 = vld [vmem:[#allocation2 + $0x70] sm:$0xf]
      %v1560 = vld [vmem:[#allocation2 + $0x78] sm:$0xf]
      %v1561 = vld [vmem:[#allocation2 + $0x7c] sm:$0xf]
      %v1562 = vld [vmem:[#allocation2 + $0x84] sm:$0xf]
      %v1563 = vld [vmem:[#allocation2 + $0x88] sm:$0xf]
      %v1564 = vld [vmem:[#allocation2 + $0x90] sm:$0xf]
      %v1565 = vld [vmem:[#allocation2 + $0x94] sm:$0xf]
      %v1566 = vld [vmem:[#allocation2 + $0x9c] sm:$0xf]
      %v1567 = vld [vmem:[#allocation2 + $0xa0] sm:$0xf]
      %v1568 = vld [vmem:[#allocation2 + $0xa8] sm:$0xf]
      %v1569 = vld [vmem:[#allocation2 + $0xac] sm:$0xf]
      %v1570 = vld [vmem:[#allocation2 + $0xb4] sm:$0xf]
      %v1571 = vld [vmem:[#allocation2 + $0xb8] sm:$0xf]
      %v1604 = vunpack.c.l.b16 %v1540
      %v1605 = vunpack.c.l.b16 %v1541
      %v1606 = vunpack.c.l.b16 %v1542
      %v1607 = vunpack.c.l.b16 %v1543
      %v1608 = vunpack.c.l.b16 %v1544
      %v1609 = vunpack.c.l.b16 %v1545
      %v1610 = vunpack.c.l.b16 %v1546
      %v1611 = vunpack.c.l.b16 %v1547
      %v1612 = vunpack.c.l.b16 %v1548
      %v1613 = vunpack.c.l.b16 %v1549
      %v1614 = vunpack.c.l.b16 %v1550
      %v1615 = vunpack.c.l.b16 %v1551
      %v1616 = vunpack.c.l.b16 %v1552
      %v1617 = vunpack.c.l.b16 %v1553
      %v1618 = vunpack.c.l.b16 %v1554
      %v1619 = vunpack.c.l.b16 %v1555
      %v1620 = vunpack.c.l.b16 %v1556
      %v1621 = vunpack.c.l.b16 %v1557
      %v1622 = vunpack.c.l.b16 %v1558
      %v1623 = vunpack.c.l.b16 %v1559
      %v1624 = vunpack.c.l.b16 %v1560
      %v1625 = vunpack.c.l.b16 %v1561
      %v1626 = vunpack.c.l.b16 %v1562
      %v1627 = vunpack.c.l.b16 %v1563
      %v1628 = vunpack.c.l.b16 %v1564
      %v1629 = vunpack.c.l.b16 %v1565
      %v1630 = vunpack.c.l.b16 %v1566
      %v1631 = vunpack.c.l.b16 %v1567
      %v1632 = vunpack.c.l.b16 %v1568
      %v1633 = vunpack.c.l.b16 %v1569
      %v1634 = vunpack.c.l.b16 %v1570
      %v1635 = vunpack.c.l.b16 %v1571
      %v1636 = vpack.c.b16 %v1605, %v1604
      %v1637 = vpack.c.b16 %v1607, %v1606
      %v1638 = vpack.c.b16 %v1609, %v1608
      %v1639 = vpack.c.b16 %v1611, %v1610
      %v1640 = vpack.c.b16 %v1613, %v1612
      %v1641 = vpack.c.b16 %v1615, %v1614
      %v1642 = vpack.c.b16 %v1617, %v1616
      %v1643 = vpack.c.b16 %v1619, %v1618
      %v1644 = vpack.c.b16 %v1621, %v1620
      %v1645 = vpack.c.b16 %v1623, %v1622
      %v1646 = vpack.c.b16 %v1625, %v1624
      %v1647 = vpack.c.b16 %v1627, %v1626
      %v1648 = vpack.c.b16 %v1629, %v1628
      %v1649 = vpack.c.b16 %v1631, %v1630
      %v1650 = vpack.c.b16 %v1633, %v1632
      %v1651 = vpack.c.b16 %v1635, %v1634
      %vm1668 = vcmask 64512
      %1669 = vst.msk [vmem:[#allocation4] sm:$0xff] %vm1668, %v1636
      %1670 = vst.msk [vmem:[#allocation4 + $0x8] sm:$0xff] %vm1668, %v1637
      %1671 = vst.msk [vmem:[#allocation4 + $0x10] sm:$0xff] %vm1668, %v1638
      %1672 = vst.msk [vmem:[#allocation4 + $0x18] sm:$0xff] %vm1668, %v1639
      %1673 = vst.msk [vmem:[#allocation4 + $0x20] sm:$0xff] %vm1668, %v1640
      %1674 = vst.msk [vmem:[#allocation4 + $0x28] sm:$0xff] %vm1668, %v1641
      %1675 = vst.msk [vmem:[#allocation4 + $0x30] sm:$0xff] %vm1668, %v1642
      %1676 = vst.msk [vmem:[#allocation4 + $0x38] sm:$0xff] %vm1668, %v1643
      %1677 = vst.msk [vmem:[#allocation4 + $0x40] sm:$0xff] %vm1668, %v1644
      %1678 = vst.msk [vmem:[#allocation4 + $0x48] sm:$0xff] %vm1668, %v1645
      %1679 = vst.msk [vmem:[#allocation4 + $0x50] sm:$0xff] %vm1668, %v1646
      %1680 = vst.msk [vmem:[#allocation4 + $0x58] sm:$0xff] %vm1668, %v1647
      %1681 = vst.msk [vmem:[#allocation4 + $0x60] sm:$0xff] %vm1668, %v1648
      %1682 = vst.msk [vmem:[#allocation4 + $0x68] sm:$0xff] %vm1668, %v1649
      %1683 = vst.msk [vmem:[#allocation4 + $0x70] sm:$0xff] %vm1668, %v1650
      %1684 = vst.msk [vmem:[#allocation4 + $0x78] sm:$0xff] %vm1668, %v1651
      %v1685 = vld [vmem:[#allocation2] sm:$0xf]
      %v1686 = vld [vmem:[#allocation2 + $0x4] sm:$0xf]
      %v1687 = vld [vmem:[#allocation2 + $0x8] sm:$0x1]
      %v1688 = vld [vmem:[#allocation2 + $0xc] sm:$0xf]
      %v1689 = vld [vmem:[#allocation2 + $0x10] sm:$0xf]
      %v1690 = vld [vmem:[#allocation2 + $0x14] sm:$0x1]
      %v1691 = vld [vmem:[#allocation2 + $0x18] sm:$0xf]
      %v1692 = vld [vmem:[#allocation2 + $0x1c] sm:$0xf]
      %v1693 = vld [vmem:[#allocation2 + $0x20] sm:$0x1]
      %v1694 = vld [vmem:[#allocation2 + $0x24] sm:$0xf]
      %v1695 = vld [vmem:[#allocation2 + $0x28] sm:$0xf]
      %v1696 = vld [vmem:[#allocation2 + $0x2c] sm:$0x1]
      %v1697 = vld [vmem:[#allocation2 + $0x30] sm:$0xf]
      %v1698 = vld [vmem:[#allocation2 + $0x34] sm:$0xf]
      %v1699 = vld [vmem:[#allocation2 + $0x38] sm:$0x1]
      %v1700 = vld [vmem:[#allocation2 + $0x3c] sm:$0xf]
      %v1701 = vld [vmem:[#allocation2 + $0x40] sm:$0xf]
      %v1702 = vld [vmem:[#allocation2 + $0x44] sm:$0x1]
      %v1703 = vld [vmem:[#allocation2 + $0x48] sm:$0xf]
      %v1704 = vld [vmem:[#allocation2 + $0x4c] sm:$0xf]
      %v1705 = vld [vmem:[#allocation2 + $0x50] sm:$0x1]
      %v1706 = vld [vmem:[#allocation2 + $0x54] sm:$0xf]
      %v1707 = vld [vmem:[#allocation2 + $0x58] sm:$0xf]
      %v1708 = vld [vmem:[#allocation2 + $0x5c] sm:$0x1]
      %v1709 = vld [vmem:[#allocation2 + $0x60] sm:$0xf]
      %v1710 = vld [vmem:[#allocation2 + $0x64] sm:$0xf]
      %v1711 = vld [vmem:[#allocation2 + $0x68] sm:$0x1]
      %v1712 = vld [vmem:[#allocation2 + $0x6c] sm:$0xf]
      %v1713 = vld [vmem:[#allocation2 + $0x70] sm:$0xf]
      %v1714 = vld [vmem:[#allocation2 + $0x74] sm:$0x1]
      %v1715 = vld [vmem:[#allocation2 + $0x78] sm:$0xf]
      %v1716 = vld [vmem:[#allocation2 + $0x7c] sm:$0xf]
      %v1717 = vld [vmem:[#allocation2 + $0x80] sm:$0x1]
      %v1718 = vld [vmem:[#allocation2 + $0x84] sm:$0xf]
      %v1719 = vld [vmem:[#allocation2 + $0x88] sm:$0xf]
      %v1720 = vld [vmem:[#allocation2 + $0x8c] sm:$0x1]
      %v1721 = vld [vmem:[#allocation2 + $0x90] sm:$0xf]
      %v1722 = vld [vmem:[#allocation2 + $0x94] sm:$0xf]
      %v1723 = vld [vmem:[#allocation2 + $0x98] sm:$0x1]
      %v1724 = vld [vmem:[#allocation2 + $0x9c] sm:$0xf]
      %v1725 = vld [vmem:[#allocation2 + $0xa0] sm:$0xf]
      %v1726 = vld [vmem:[#allocation2 + $0xa4] sm:$0x1]
      %v1727 = vld [vmem:[#allocation2 + $0xa8] sm:$0xf]
      %v1728 = vld [vmem:[#allocation2 + $0xac] sm:$0xf]
      %v1729 = vld [vmem:[#allocation2 + $0xb0] sm:$0x1]
      %v1730 = vld [vmem:[#allocation2 + $0xb4] sm:$0xf]
      %v1731 = vld [vmem:[#allocation2 + $0xb8] sm:$0xf]
      %v1732 = vld [vmem:[#allocation2 + $0xbc] sm:$0x1]
      %vm1733 = vsmask.f32 3328
      %vm1734 = vsmask.f32 7440
      %vm1735 = vmor %vm1733, %vm1734
      %v1737 = vshrl.u32 %v1685, 16
      %v1739 = vrot.slane %v1737, 4
      %v1740 = vshll.u32 %v1685, 16
      %v1742 = vrot.slane %v1740, 5
      %v1743 = vor.u32 %v1739, %v1742
      %v1744 = vrot.slane %v1743, 4
      %v1746 = vshll.u32 %v1686, 16
      %v1748 = vrot.slane %v1746, 5
      %v1749 = vsel %vm1735, %v1744, %v1748
      %v1750 = vshrl.u32 %v1686, 16
      %v1752 = vrot.slane %v1750, 4
      %v1753 = vor.u32 %v1752, %v1748
      %v1754 = vrot.slane %v1753, 4
      %v1756 = vshll.u32 %v1687, 16
      %v1758 = vrot.slane %v1756, 5
      %v1759 = vsel %vm1735, %v1754, %v1758
      %v1761 = vshrl.u32 %v1688, 16
      %v1763 = vrot.slane %v1761, 4
      %v1764 = vshll.u32 %v1688, 16
      %v1766 = vrot.slane %v1764, 5
      %v1767 = vor.u32 %v1763, %v1766
      %v1768 = vrot.slane %v1767, 4
      %v1770 = vshll.u32 %v1689, 16
      %v1772 = vrot.slane %v1770, 5
      %v1773 = vsel %vm1735, %v1768, %v1772
      %v1774 = vshrl.u32 %v1689, 16
      %v1776 = vrot.slane %v1774, 4
      %v1777 = vor.u32 %v1776, %v1772
      %v1778 = vrot.slane %v1777, 4
      %v1780 = vshll.u32 %v1690, 16
      %v1782 = vrot.slane %v1780, 5
      %v1783 = vsel %vm1735, %v1778, %v1782
      %v1785 = vshrl.u32 %v1691, 16
      %v1787 = vrot.slane %v1785, 4
      %v1788 = vshll.u32 %v1691, 16
      %v1790 = vrot.slane %v1788, 5
      %v1791 = vor.u32 %v1787, %v1790
      %v1792 = vrot.slane %v1791, 4
      %v1794 = vshll.u32 %v1692, 16
      %v1796 = vrot.slane %v1794, 5
      %v1797 = vsel %vm1735, %v1792, %v1796
      %v1798 = vshrl.u32 %v1692, 16
      %v1800 = vrot.slane %v1798, 4
      %v1801 = vor.u32 %v1800, %v1796
      %v1802 = vrot.slane %v1801, 4
      %v1804 = vshll.u32 %v1693, 16
      %v1806 = vrot.slane %v1804, 5
      %v1807 = vsel %vm1735, %v1802, %v1806
      %v1809 = vshrl.u32 %v1694, 16
      %v1811 = vrot.slane %v1809, 4
      %v1812 = vshll.u32 %v1694, 16
      %v1814 = vrot.slane %v1812, 5
      %v1815 = vor.u32 %v1811, %v1814
      %v1816 = vrot.slane %v1815, 4
      %v1818 = vshll.u32 %v1695, 16
      %v1820 = vrot.slane %v1818, 5
      %v1821 = vsel %vm1735, %v1816, %v1820
      %v1822 = vshrl.u32 %v1695, 16
      %v1824 = vrot.slane %v1822, 4
      %v1825 = vor.u32 %v1824, %v1820
      %v1826 = vrot.slane %v1825, 4
      %v1828 = vshll.u32 %v1696, 16
      %v1830 = vrot.slane %v1828, 5
      %v1831 = vsel %vm1735, %v1826, %v1830
      %v1833 = vshrl.u32 %v1697, 16
      %v1835 = vrot.slane %v1833, 4
      %v1836 = vshll.u32 %v1697, 16
      %v1838 = vrot.slane %v1836, 5
      %v1839 = vor.u32 %v1835, %v1838
      %v1840 = vrot.slane %v1839, 4
      %v1842 = vshll.u32 %v1698, 16
      %v1844 = vrot.slane %v1842, 5
      %v1845 = vsel %vm1735, %v1840, %v1844
      %v1846 = vshrl.u32 %v1698, 16
      %v1848 = vrot.slane %v1846, 4
      %v1849 = vor.u32 %v1848, %v1844
      %v1850 = vrot.slane %v1849, 4
      %v1852 = vshll.u32 %v1699, 16
      %v1854 = vrot.slane %v1852, 5
      %v1855 = vsel %vm1735, %v1850, %v1854
      %v1857 = vshrl.u32 %v1700, 16
      %v1859 = vrot.slane %v1857, 4
      %v1860 = vshll.u32 %v1700, 16
      %v1862 = vrot.slane %v1860, 5
      %v1863 = vor.u32 %v1859, %v1862
      %v1864 = vrot.slane %v1863, 4
      %v1866 = vshll.u32 %v1701, 16
      %v1868 = vrot.slane %v1866, 5
      %v1869 = vsel %vm1735, %v1864, %v1868
      %v1870 = vshrl.u32 %v1701, 16
      %v1872 = vrot.slane %v1870, 4
      %v1873 = vor.u32 %v1872, %v1868
      %v1874 = vrot.slane %v1873, 4
      %v1876 = vshll.u32 %v1702, 16
      %v1878 = vrot.slane %v1876, 5
      %v1879 = vsel %vm1735, %v1874, %v1878
      %v1881 = vshrl.u32 %v1703, 16
      %v1883 = vrot.slane %v1881, 4
      %v1884 = vshll.u32 %v1703, 16
      %v1886 = vrot.slane %v1884, 5
      %v1887 = vor.u32 %v1883, %v1886
      %v1888 = vrot.slane %v1887, 4
      %v1890 = vshll.u32 %v1704, 16
      %v1892 = vrot.slane %v1890, 5
      %v1893 = vsel %vm1735, %v1888, %v1892
      %v1894 = vshrl.u32 %v1704, 16
      %v1896 = vrot.slane %v1894, 4
      %v1897 = vor.u32 %v1896, %v1892
      %v1898 = vrot.slane %v1897, 4
      %v1900 = vshll.u32 %v1705, 16
      %v1902 = vrot.slane %v1900, 5
      %v1903 = vsel %vm1735, %v1898, %v1902
      %v1905 = vshrl.u32 %v1706, 16
      %v1907 = vrot.slane %v1905, 4
      %v1908 = vshll.u32 %v1706, 16
      %v1910 = vrot.slane %v1908, 5
      %v1911 = vor.u32 %v1907, %v1910
      %v1912 = vrot.slane %v1911, 4
      %v1914 = vshll.u32 %v1707, 16
      %v1916 = vrot.slane %v1914, 5
      %v1917 = vsel %vm1735, %v1912, %v1916
      %v1918 = vshrl.u32 %v1707, 16
      %v1920 = vrot.slane %v1918, 4
      %v1921 = vor.u32 %v1920, %v1916
      %v1922 = vrot.slane %v1921, 4
      %v1924 = vshll.u32 %v1708, 16
      %v1926 = vrot.slane %v1924, 5
      %v1927 = vsel %vm1735, %v1922, %v1926
      %v1929 = vshrl.u32 %v1709, 16
      %v1931 = vrot.slane %v1929, 4
      %v1932 = vshll.u32 %v1709, 16
      %v1934 = vrot.slane %v1932, 5
      %v1935 = vor.u32 %v1931, %v1934
      %v1936 = vrot.slane %v1935, 4
      %v1938 = vshll.u32 %v1710, 16
      %v1940 = vrot.slane %v1938, 5
      %v1941 = vsel %vm1735, %v1936, %v1940
      %v1942 = vshrl.u32 %v1710, 16
      %v1944 = vrot.slane %v1942, 4
      %v1945 = vor.u32 %v1944, %v1940
      %v1946 = vrot.slane %v1945, 4
      %v1948 = vshll.u32 %v1711, 16
      %v1950 = vrot.slane %v1948, 5
      %v1951 = vsel %vm1735, %v1946, %v1950
      %v1953 = vshrl.u32 %v1712, 16
      %v1955 = vrot.slane %v1953, 4
      %v1956 = vshll.u32 %v1712, 16
      %v1958 = vrot.slane %v1956, 5
      %v1959 = vor.u32 %v1955, %v1958
      %v1960 = vrot.slane %v1959, 4
      %v1962 = vshll.u32 %v1713, 16
      %v1964 = vrot.slane %v1962, 5
      %v1965 = vsel %vm1735, %v1960, %v1964
      %v1966 = vshrl.u32 %v1713, 16
      %v1968 = vrot.slane %v1966, 4
      %v1969 = vor.u32 %v1968, %v1964
      %v1970 = vrot.slane %v1969, 4
      %v1972 = vshll.u32 %v1714, 16
      %v1974 = vrot.slane %v1972, 5
      %v1975 = vsel %vm1735, %v1970, %v1974
      %v1977 = vshrl.u32 %v1715, 16
      %v1979 = vrot.slane %v1977, 4
      %v1980 = vshll.u32 %v1715, 16
      %v1982 = vrot.slane %v1980, 5
      %v1983 = vor.u32 %v1979, %v1982
      %v1984 = vrot.slane %v1983, 4
      %v1986 = vshll.u32 %v1716, 16
      %v1988 = vrot.slane %v1986, 5
      %v1989 = vsel %vm1735, %v1984, %v1988
      %v1990 = vshrl.u32 %v1716, 16
      %v1992 = vrot.slane %v1990, 4
      %v1993 = vor.u32 %v1992, %v1988
      %v1994 = vrot.slane %v1993, 4
      %v1996 = vshll.u32 %v1717, 16
      %v1998 = vrot.slane %v1996, 5
      %v1999 = vsel %vm1735, %v1994, %v1998
      %v2001 = vshrl.u32 %v1718, 16
      %v2003 = vrot.slane %v2001, 4
      %v2004 = vshll.u32 %v1718, 16
      %v2006 = vrot.slane %v2004, 5
      %v2007 = vor.u32 %v2003, %v2006
      %v2008 = vrot.slane %v2007, 4
      %v2010 = vshll.u32 %v1719, 16
      %v2012 = vrot.slane %v2010, 5
      %v2013 = vsel %vm1735, %v2008, %v2012
      %v2014 = vshrl.u32 %v1719, 16
      %v2016 = vrot.slane %v2014, 4
      %v2017 = vor.u32 %v2016, %v2012
      %v2018 = vrot.slane %v2017, 4
      %v2020 = vshll.u32 %v1720, 16
      %v2022 = vrot.slane %v2020, 5
      %v2023 = vsel %vm1735, %v2018, %v2022
      %v2025 = vshrl.u32 %v1721, 16
      %v2027 = vrot.slane %v2025, 4
      %v2028 = vshll.u32 %v1721, 16
      %v2030 = vrot.slane %v2028, 5
      %v2031 = vor.u32 %v2027, %v2030
      %v2032 = vrot.slane %v2031, 4
      %v2034 = vshll.u32 %v1722, 16
      %v2036 = vrot.slane %v2034, 5
      %v2037 = vsel %vm1735, %v2032, %v2036
      %v2038 = vshrl.u32 %v1722, 16
      %v2040 = vrot.slane %v2038, 4
      %v2041 = vor.u32 %v2040, %v2036
      %v2042 = vrot.slane %v2041, 4
      %v2044 = vshll.u32 %v1723, 16
      %v2046 = vrot.slane %v2044, 5
      %v2047 = vsel %vm1735, %v2042, %v2046
      %v2049 = vshrl.u32 %v1724, 16
      %v2051 = vrot.slane %v2049, 4
      %v2052 = vshll.u32 %v1724, 16
      %v2054 = vrot.slane %v2052, 5
      %v2055 = vor.u32 %v2051, %v2054
      %v2056 = vrot.slane %v2055, 4
      %v2058 = vshll.u32 %v1725, 16
      %v2060 = vrot.slane %v2058, 5
      %v2061 = vsel %vm1735, %v2056, %v2060
      %v2062 = vshrl.u32 %v1725, 16
      %v2064 = vrot.slane %v2062, 4
      %v2065 = vor.u32 %v2064, %v2060
      %v2066 = vrot.slane %v2065, 4
      %v2068 = vshll.u32 %v1726, 16
      %v2070 = vrot.slane %v2068, 5
      %v2071 = vsel %vm1735, %v2066, %v2070
      %v2073 = vshrl.u32 %v1727, 16
      %v2075 = vrot.slane %v2073, 4
      %v2076 = vshll.u32 %v1727, 16
      %v2078 = vrot.slane %v2076, 5
      %v2079 = vor.u32 %v2075, %v2078
      %v2080 = vrot.slane %v2079, 4
      %v2082 = vshll.u32 %v1728, 16
      %v2084 = vrot.slane %v2082, 5
      %v2085 = vsel %vm1735, %v2080, %v2084
      %v2086 = vshrl.u32 %v1728, 16
      %v2088 = vrot.slane %v2086, 4
      %v2089 = vor.u32 %v2088, %v2084
      %v2090 = vrot.slane %v2089, 4
      %v2092 = vshll.u32 %v1729, 16
      %v2094 = vrot.slane %v2092, 5
      %v2095 = vsel %vm1735, %v2090, %v2094
      %v2097 = vshrl.u32 %v1730, 16
      %v2099 = vrot.slane %v2097, 4
      %v2100 = vshll.u32 %v1730, 16
      %v2102 = vrot.slane %v2100, 5
      %v2103 = vor.u32 %v2099, %v2102
      %v2104 = vrot.slane %v2103, 4
      %v2106 = vshll.u32 %v1731, 16
      %v2108 = vrot.slane %v2106, 5
      %v2109 = vsel %vm1735, %v2104, %v2108
      %v2110 = vshrl.u32 %v1731, 16
      %v2112 = vrot.slane %v2110, 4
      %v2113 = vor.u32 %v2112, %v2108
      %v2114 = vrot.slane %v2113, 4
      %v2116 = vshll.u32 %v1732, 16
      %v2118 = vrot.slane %v2116, 5
      %v2119 = vsel %vm1735, %v2114, %v2118
      %v2120 = vunpack.c.l.b16 %v1749
      %v2121 = vunpack.c.l.b16 %v1759
      %v2122 = vunpack.c.l.b16 %v1773
      %v2123 = vunpack.c.l.b16 %v1783
      %v2124 = vunpack.c.l.b16 %v1797
      %v2125 = vunpack.c.l.b16 %v1807
      %v2126 = vunpack.c.l.b16 %v1821
      %v2127 = vunpack.c.l.b16 %v1831
      %v2128 = vunpack.c.l.b16 %v1845
      %v2129 = vunpack.c.l.b16 %v1855
      %v2130 = vunpack.c.l.b16 %v1869
      %v2131 = vunpack.c.l.b16 %v1879
      %v2132 = vunpack.c.l.b16 %v1893
      %v2133 = vunpack.c.l.b16 %v1903
      %v2134 = vunpack.c.l.b16 %v1917
      %v2135 = vunpack.c.l.b16 %v1927
      %v2136 = vunpack.c.l.b16 %v1941
      %v2137 = vunpack.c.l.b16 %v1951
      %v2138 = vunpack.c.l.b16 %v1965
      %v2139 = vunpack.c.l.b16 %v1975
      %v2140 = vunpack.c.l.b16 %v1989
      %v2141 = vunpack.c.l.b16 %v1999
      %v2142 = vunpack.c.l.b16 %v2013
      %v2143 = vunpack.c.l.b16 %v2023
      %v2144 = vunpack.c.l.b16 %v2037
      %v2145 = vunpack.c.l.b16 %v2047
      %v2146 = vunpack.c.l.b16 %v2061
      %v2147 = vunpack.c.l.b16 %v2071
      %v2148 = vunpack.c.l.b16 %v2085
      %v2149 = vunpack.c.l.b16 %v2095
      %v2150 = vunpack.c.l.b16 %v2109
      %v2151 = vunpack.c.l.b16 %v2119
      %v2152 = vpack.c.b16 %v2121, %v2120
      %v2153 = vpack.c.b16 %v2123, %v2122
      %v2154 = vpack.c.b16 %v2125, %v2124
      %v2155 = vpack.c.b16 %v2127, %v2126
      %v2156 = vpack.c.b16 %v2129, %v2128
      %v2157 = vpack.c.b16 %v2131, %v2130
      %v2158 = vpack.c.b16 %v2133, %v2132
      %v2159 = vpack.c.b16 %v2135, %v2134
      %v2160 = vpack.c.b16 %v2137, %v2136
      %v2161 = vpack.c.b16 %v2139, %v2138
      %v2162 = vpack.c.b16 %v2141, %v2140
      %v2163 = vpack.c.b16 %v2143, %v2142
      %v2164 = vpack.c.b16 %v2145, %v2144
      %v2165 = vpack.c.b16 %v2147, %v2146
      %v2166 = vpack.c.b16 %v2149, %v2148
      %v2167 = vpack.c.b16 %v2151, %v2150
      %2168 = vrot.lane.b32.xlu0 %v2152, 8
      %v2169 = vpop.permute.xlu0 %2168
      %2170 = vrot.lane.b32.xlu0 %v2153, 8
      %v2171 = vpop.permute.xlu0 %2170
      %2172 = vrot.lane.b32.xlu0 %v2154, 8
      %v2173 = vpop.permute.xlu0 %2172
      %2174 = vrot.lane.b32.xlu0 %v2155, 8
      %v2175 = vpop.permute.xlu0 %2174
      %2176 = vrot.lane.b32.xlu0 %v2156, 8
      %v2177 = vpop.permute.xlu0 %2176
      %2178 = vrot.lane.b32.xlu0 %v2157, 8
      %v2179 = vpop.permute.xlu0 %2178
      %2180 = vrot.lane.b32.xlu0 %v2158, 8
      %v2181 = vpop.permute.xlu0 %2180
      %2182 = vrot.lane.b32.xlu0 %v2159, 8
      %v2183 = vpop.permute.xlu0 %2182
      %2184 = vrot.lane.b32.xlu0 %v2160, 8
      %v2185 = vpop.permute.xlu0 %2184
      %2186 = vrot.lane.b32.xlu0 %v2161, 8
      %v2187 = vpop.permute.xlu0 %2186
      %2188 = vrot.lane.b32.xlu0 %v2162, 8
      %v2189 = vpop.permute.xlu0 %2188
      %2190 = vrot.lane.b32.xlu0 %v2163, 8
      %v2191 = vpop.permute.xlu0 %2190
      %2192 = vrot.lane.b32.xlu0 %v2164, 8
      %v2193 = vpop.permute.xlu0 %2192
      %2194 = vrot.lane.b32.xlu0 %v2165, 8
      %v2195 = vpop.permute.xlu0 %2194
      %2196 = vrot.lane.b32.xlu0 %v2166, 8
      %v2197 = vpop.permute.xlu0 %2196
      %2198 = vrot.lane.b32.xlu0 %v2167, 8
      %v2199 = vpop.permute.xlu0 %2198
      %vm2216 = vcmask 130112
      %2217 = vst.msk [vmem:[#allocation4] sm:$0xff] %vm2216, %v2169
      %2218 = vst.msk [vmem:[#allocation4 + $0x8] sm:$0xff] %vm2216, %v2171
      %2219 = vst.msk [vmem:[#allocation4 + $0x10] sm:$0xff] %vm2216, %v2173
      %2220 = vst.msk [vmem:[#allocation4 + $0x18] sm:$0xff] %vm2216, %v2175
      %2221 = vst.msk [vmem:[#allocation4 + $0x20] sm:$0xff] %vm2216, %v2177
      %2222 = vst.msk [vmem:[#allocation4 + $0x28] sm:$0xff] %vm2216, %v2179
      %2223 = vst.msk [vmem:[#allocation4 + $0x30] sm:$0xff] %vm2216, %v2181
      %2224 = vst.msk [vmem:[#allocation4 + $0x38] sm:$0xff] %vm2216, %v2183
      %2225 = vst.msk [vmem:[#allocation4 + $0x40] sm:$0xff] %vm2216, %v2185
      %2226 = vst.msk [vmem:[#allocation4 + $0x48] sm:$0xff] %vm2216, %v2187
      %2227 = vst.msk [vmem:[#allocation4 + $0x50] sm:$0xff] %vm2216, %v2189
      %2228 = vst.msk [vmem:[#allocation4 + $0x58] sm:$0xff] %vm2216, %v2191
      %2229 = vst.msk [vmem:[#allocation4 + $0x60] sm:$0xff] %vm2216, %v2193
      %2230 = vst.msk [vmem:[#allocation4 + $0x68] sm:$0xff] %vm2216, %v2195
      %2231 = vst.msk [vmem:[#allocation4 + $0x70] sm:$0xff] %vm2216, %v2197
      %2232 = vst.msk [vmem:[#allocation4 + $0x78] sm:$0xff] %vm2216, %v2199
      %v2233 = vld [vmem:[#allocation2] sm:$0xe]
      %v2234 = vld [vmem:[#allocation2 + $0x4] sm:$0xf]
      %v2235 = vld [vmem:[#allocation2 + $0x8] sm:$0x1]
      %v2236 = vld [vmem:[#allocation2 + $0xc] sm:$0xe]
      %v2237 = vld [vmem:[#allocation2 + $0x10] sm:$0xf]
      %v2238 = vld [vmem:[#allocation2 + $0x14] sm:$0x1]
      %v2239 = vld [vmem:[#allocation2 + $0x18] sm:$0xe]
      %v2240 = vld [vmem:[#allocation2 + $0x1c] sm:$0xf]
      %v2241 = vld [vmem:[#allocation2 + $0x20] sm:$0x1]
      %v2242 = vld [vmem:[#allocation2 + $0x24] sm:$0xe]
      %v2243 = vld [vmem:[#allocation2 + $0x28] sm:$0xf]
      %v2244 = vld [vmem:[#allocation2 + $0x2c] sm:$0x1]
      %v2245 = vld [vmem:[#allocation2 + $0x30] sm:$0xe]
      %v2246 = vld [vmem:[#allocation2 + $0x34] sm:$0xf]
      %v2247 = vld [vmem:[#allocation2 + $0x38] sm:$0x1]
      %v2248 = vld [vmem:[#allocation2 + $0x3c] sm:$0xe]
      %v2249 = vld [vmem:[#allocation2 + $0x40] sm:$0xf]
      %v2250 = vld [vmem:[#allocation2 + $0x44] sm:$0x1]
      %v2251 = vld [vmem:[#allocation2 + $0x48] sm:$0xe]
      %v2252 = vld [vmem:[#allocation2 + $0x4c] sm:$0xf]
      %v2253 = vld [vmem:[#allocation2 + $0x50] sm:$0x1]
      %v2254 = vld [vmem:[#allocation2 + $0x54] sm:$0xe]
      %v2255 = vld [vmem:[#allocation2 + $0x58] sm:$0xf]
      %v2256 = vld [vmem:[#allocation2 + $0x5c] sm:$0x1]
      %v2257 = vld [vmem:[#allocation2 + $0x60] sm:$0xe]
      %v2258 = vld [vmem:[#allocation2 + $0x64] sm:$0xf]
      %v2259 = vld [vmem:[#allocation2 + $0x68] sm:$0x1]
      %v2260 = vld [vmem:[#allocation2 + $0x6c] sm:$0xe]
      %v2261 = vld [vmem:[#allocation2 + $0x70] sm:$0xf]
      %v2262 = vld [vmem:[#allocation2 + $0x74] sm:$0x1]
      %v2263 = vld [vmem:[#allocation2 + $0x78] sm:$0xe]
      %v2264 = vld [vmem:[#allocation2 + $0x7c] sm:$0xf]
      %v2265 = vld [vmem:[#allocation2 + $0x80] sm:$0x1]
      %v2266 = vld [vmem:[#allocation2 + $0x84] sm:$0xe]
      %v2267 = vld [vmem:[#allocation2 + $0x88] sm:$0xf]
      %v2268 = vld [vmem:[#allocation2 + $0x8c] sm:$0x1]
      %v2269 = vld [vmem:[#allocation2 + $0x90] sm:$0xe]
      %v2270 = vld [vmem:[#allocation2 + $0x94] sm:$0xf]
      %v2271 = vld [vmem:[#allocation2 + $0x98] sm:$0x1]
      %v2272 = vld [vmem:[#allocation2 + $0x9c] sm:$0xe]
      %v2273 = vld [vmem:[#allocation2 + $0xa0] sm:$0xf]
      %v2274 = vld [vmem:[#allocation2 + $0xa4] sm:$0x1]
      %v2275 = vld [vmem:[#allocation2 + $0xa8] sm:$0xe]
      %v2276 = vld [vmem:[#allocation2 + $0xac] sm:$0xf]
      %v2277 = vld [vmem:[#allocation2 + $0xb0] sm:$0x1]
      %v2278 = vld [vmem:[#allocation2 + $0xb4] sm:$0xe]
      %v2279 = vld [vmem:[#allocation2 + $0xb8] sm:$0xf]
      %v2280 = vld [vmem:[#allocation2 + $0xbc] sm:$0x1]
      %vm2329 = vcmask 1042432
      %vm2330 = vcmask 1046532
      %vm2331 = vmor %vm2329, %vm2330
      %v2332 = vrot.slane %v2233, 5
      %v2333 = vrot.slane %v2332, 4
      %v2334 = vrot.slane %v2234, 5
      %v2335 = vsel %vm2331, %v2333, %v2334
      %v2336 = vrot.slane %v2334, 4
      %v2337 = vrot.slane %v2235, 5
      %v2338 = vsel %vm2331, %v2336, %v2337
      %v2339 = vrot.slane %v2236, 5
      %v2340 = vrot.slane %v2339, 4
      %v2341 = vrot.slane %v2237, 5
      %v2342 = vsel %vm2331, %v2340, %v2341
      %v2343 = vrot.slane %v2341, 4
      %v2344 = vrot.slane %v2238, 5
      %v2345 = vsel %vm2331, %v2343, %v2344
      %v2346 = vrot.slane %v2239, 5
      %v2347 = vrot.slane %v2346, 4
      %v2348 = vrot.slane %v2240, 5
      %v2349 = vsel %vm2331, %v2347, %v2348
      %v2350 = vrot.slane %v2348, 4
      %v2351 = vrot.slane %v2241, 5
      %v2352 = vsel %vm2331, %v2350, %v2351
      %v2353 = vrot.slane %v2242, 5
      %v2354 = vrot.slane %v2353, 4
      %v2355 = vrot.slane %v2243, 5
      %v2356 = vsel %vm2331, %v2354, %v2355
      %v2357 = vrot.slane %v2355, 4
      %v2358 = vrot.slane %v2244, 5
      %v2359 = vsel %vm2331, %v2357, %v2358
      %v2360 = vrot.slane %v2245, 5
      %v2361 = vrot.slane %v2360, 4
      %v2362 = vrot.slane %v2246, 5
      %v2363 = vsel %vm2331, %v2361, %v2362
      %v2364 = vrot.slane %v2362, 4
      %v2365 = vrot.slane %v2247, 5
      %v2366 = vsel %vm2331, %v2364, %v2365
      %v2367 = vrot.slane %v2248, 5
      %v2368 = vrot.slane %v2367, 4
      %v2369 = vrot.slane %v2249, 5
      %v2370 = vsel %vm2331, %v2368, %v2369
      %v2371 = vrot.slane %v2369, 4
      %v2372 = vrot.slane %v2250, 5
      %v2373 = vsel %vm2331, %v2371, %v2372
      %v2374 = vrot.slane %v2251, 5
      %v2375 = vrot.slane %v2374, 4
      %v2376 = vrot.slane %v2252, 5
      %v2377 = vsel %vm2331, %v2375, %v2376
      %v2378 = vrot.slane %v2376, 4
      %v2379 = vrot.slane %v2253, 5
      %v2380 = vsel %vm2331, %v2378, %v2379
      %v2381 = vrot.slane %v2254, 5
      %v2382 = vrot.slane %v2381, 4
      %v2383 = vrot.slane %v2255, 5
      %v2384 = vsel %vm2331, %v2382, %v2383
      %v2385 = vrot.slane %v2383, 4
      %v2386 = vrot.slane %v2256, 5
      %v2387 = vsel %vm2331, %v2385, %v2386
      %v2388 = vrot.slane %v2257, 5
      %v2389 = vrot.slane %v2388, 4
      %v2390 = vrot.slane %v2258, 5
      %v2391 = vsel %vm2331, %v2389, %v2390
      %v2392 = vrot.slane %v2390, 4
      %v2393 = vrot.slane %v2259, 5
      %v2394 = vsel %vm2331, %v2392, %v2393
      %v2395 = vrot.slane %v2260, 5
      %v2396 = vrot.slane %v2395, 4
      %v2397 = vrot.slane %v2261, 5
      %v2398 = vsel %vm2331, %v2396, %v2397
      %v2399 = vrot.slane %v2397, 4
      %v2400 = vrot.slane %v2262, 5
      %v2401 = vsel %vm2331, %v2399, %v2400
      %v2402 = vrot.slane %v2263, 5
      %v2403 = vrot.slane %v2402, 4
      %v2404 = vrot.slane %v2264, 5
      %v2405 = vsel %vm2331, %v2403, %v2404
      %v2406 = vrot.slane %v2404, 4
      %v2407 = vrot.slane %v2265, 5
      %v2408 = vsel %vm2331, %v2406, %v2407
      %v2409 = vrot.slane %v2266, 5
      %v2410 = vrot.slane %v2409, 4
      %v2411 = vrot.slane %v2267, 5
      %v2412 = vsel %vm2331, %v2410, %v2411
      %v2413 = vrot.slane %v2411, 4
      %v2414 = vrot.slane %v2268, 5
      %v2415 = vsel %vm2331, %v2413, %v2414
      %v2416 = vrot.slane %v2269, 5
      %v2417 = vrot.slane %v2416, 4
      %v2418 = vrot.slane %v2270, 5
      %v2419 = vsel %vm2331, %v2417, %v2418
      %v2420 = vrot.slane %v2418, 4
      %v2421 = vrot.slane %v2271, 5
      %v2422 = vsel %vm2331, %v2420, %v2421
      %v2423 = vrot.slane %v2272, 5
      %v2424 = vrot.slane %v2423, 4
      %v2425 = vrot.slane %v2273, 5
      %v2426 = vsel %vm2331, %v2424, %v2425
      %v2427 = vrot.slane %v2425, 4
      %v2428 = vrot.slane %v2274, 5
      %v2429 = vsel %vm2331, %v2427, %v2428
      %v2430 = vrot.slane %v2275, 5
      %v2431 = vrot.slane %v2430, 4
      %v2432 = vrot.slane %v2276, 5
      %v2433 = vsel %vm2331, %v2431, %v2432
      %v2434 = vrot.slane %v2432, 4
      %v2435 = vrot.slane %v2277, 5
      %v2436 = vsel %vm2331, %v2434, %v2435
      %v2437 = vrot.slane %v2278, 5
      %v2438 = vrot.slane %v2437, 4
      %v2439 = vrot.slane %v2279, 5
      %v2440 = vsel %vm2331, %v2438, %v2439
      %v2441 = vrot.slane %v2439, 4
      %v2442 = vrot.slane %v2280, 5
      %v2443 = vsel %vm2331, %v2441, %v2442
      %v2444 = vunpack.c.l.b16 %v2335
      %v2445 = vunpack.c.l.b16 %v2338
      %v2446 = vunpack.c.l.b16 %v2342
      %v2447 = vunpack.c.l.b16 %v2345
      %v2448 = vunpack.c.l.b16 %v2349
      %v2449 = vunpack.c.l.b16 %v2352
      %v2450 = vunpack.c.l.b16 %v2356
      %v2451 = vunpack.c.l.b16 %v2359
      %v2452 = vunpack.c.l.b16 %v2363
      %v2453 = vunpack.c.l.b16 %v2366
      %v2454 = vunpack.c.l.b16 %v2370
      %v2455 = vunpack.c.l.b16 %v2373
      %v2456 = vunpack.c.l.b16 %v2377
      %v2457 = vunpack.c.l.b16 %v2380
      %v2458 = vunpack.c.l.b16 %v2384
      %v2459 = vunpack.c.l.b16 %v2387
      %v2460 = vunpack.c.l.b16 %v2391
      %v2461 = vunpack.c.l.b16 %v2394
      %v2462 = vunpack.c.l.b16 %v2398
      %v2463 = vunpack.c.l.b16 %v2401
      %v2464 = vunpack.c.l.b16 %v2405
      %v2465 = vunpack.c.l.b16 %v2408
      %v2466 = vunpack.c.l.b16 %v2412
      %v2467 = vunpack.c.l.b16 %v2415
      %v2468 = vunpack.c.l.b16 %v2419
      %v2469 = vunpack.c.l.b16 %v2422
      %v2470 = vunpack.c.l.b16 %v2426
      %v2471 = vunpack.c.l.b16 %v2429
      %v2472 = vunpack.c.l.b16 %v2433
      %v2473 = vunpack.c.l.b16 %v2436
      %v2474 = vunpack.c.l.b16 %v2440
      %v2475 = vunpack.c.l.b16 %v2443
      %v2476 = vpack.c.b16 %v2445, %v2444
      %v2477 = vpack.c.b16 %v2447, %v2446
      %v2478 = vpack.c.b16 %v2449, %v2448
      %v2479 = vpack.c.b16 %v2451, %v2450
      %v2480 = vpack.c.b16 %v2453, %v2452
      %v2481 = vpack.c.b16 %v2455, %v2454
      %v2482 = vpack.c.b16 %v2457, %v2456
      %v2483 = vpack.c.b16 %v2459, %v2458
      %v2484 = vpack.c.b16 %v2461, %v2460
      %v2485 = vpack.c.b16 %v2463, %v2462
      %v2486 = vpack.c.b16 %v2465, %v2464
      %v2487 = vpack.c.b16 %v2467, %v2466
      %v2488 = vpack.c.b16 %v2469, %v2468
      %v2489 = vpack.c.b16 %v2471, %v2470
      %v2490 = vpack.c.b16 %v2473, %v2472
      %v2491 = vpack.c.b16 %v2475, %v2474
      %2492 = vrot.lane.b32.xlu0 %v2476, 16
      %v2493 = vpop.permute.xlu0 %2492
      %2494 = vrot.lane.b32.xlu0 %v2477, 16
      %v2495 = vpop.permute.xlu0 %2494
      %2496 = vrot.lane.b32.xlu0 %v2478, 16
      %v2497 = vpop.permute.xlu0 %2496
      %2498 = vrot.lane.b32.xlu0 %v2479, 16
      %v2499 = vpop.permute.xlu0 %2498
      %2500 = vrot.lane.b32.xlu0 %v2480, 16
      %v2501 = vpop.permute.xlu0 %2500
      %2502 = vrot.lane.b32.xlu0 %v2481, 16
      %v2503 = vpop.permute.xlu0 %2502
      %2504 = vrot.lane.b32.xlu0 %v2482, 16
      %v2505 = vpop.permute.xlu0 %2504
      %2506 = vrot.lane.b32.xlu0 %v2483, 16
      %v2507 = vpop.permute.xlu0 %2506
      %2508 = vrot.lane.b32.xlu0 %v2484, 16
      %v2509 = vpop.permute.xlu0 %2508
      %2510 = vrot.lane.b32.xlu0 %v2485, 16
      %v2511 = vpop.permute.xlu0 %2510
      %2512 = vrot.lane.b32.xlu0 %v2486, 16
      %v2513 = vpop.permute.xlu0 %2512
      %2514 = vrot.lane.b32.xlu0 %v2487, 16
      %v2515 = vpop.permute.xlu0 %2514
      %2516 = vrot.lane.b32.xlu0 %v2488, 16
      %v2517 = vpop.permute.xlu0 %2516
      %2518 = vrot.lane.b32.xlu0 %v2489, 16
      %v2519 = vpop.permute.xlu0 %2518
      %2520 = vrot.lane.b32.xlu0 %v2490, 16
      %v2521 = vpop.permute.xlu0 %2520
      %2522 = vrot.lane.b32.xlu0 %v2491, 16
      %v2523 = vpop.permute.xlu0 %2522
      %vm2540 = vcmask 195712
      %2541 = vst.msk [vmem:[#allocation4] sm:$0xff] %vm2540, %v2493
      %2542 = vst.msk [vmem:[#allocation4 + $0x8] sm:$0xff] %vm2540, %v2495
      %2543 = vst.msk [vmem:[#allocation4 + $0x10] sm:$0xff] %vm2540, %v2497
      %2544 = vst.msk [vmem:[#allocation4 + $0x18] sm:$0xff] %vm2540, %v2499
      %2545 = vst.msk [vmem:[#allocation4 + $0x20] sm:$0xff] %vm2540, %v2501
      %2546 = vst.msk [vmem:[#allocation4 + $0x28] sm:$0xff] %vm2540, %v2503
      %2547 = vst.msk [vmem:[#allocation4 + $0x30] sm:$0xff] %vm2540, %v2505
      %2548 = vst.msk [vmem:[#allocation4 + $0x38] sm:$0xff] %vm2540, %v2507
      %2549 = vst.msk [vmem:[#allocation4 + $0x40] sm:$0xff] %vm2540, %v2509
      %2550 = vst.msk [vmem:[#allocation4 + $0x48] sm:$0xff] %vm2540, %v2511
      %2551 = vst.msk [vmem:[#allocation4 + $0x50] sm:$0xff] %vm2540, %v2513
      %2552 = vst.msk [vmem:[#allocation4 + $0x58] sm:$0xff] %vm2540, %v2515
      %2553 = vst.msk [vmem:[#allocation4 + $0x60] sm:$0xff] %vm2540, %v2517
      %2554 = vst.msk [vmem:[#allocation4 + $0x68] sm:$0xff] %vm2540, %v2519
      %2555 = vst.msk [vmem:[#allocation4 + $0x70] sm:$0xff] %vm2540, %v2521
      %2556 = vst.msk [vmem:[#allocation4 + $0x78] sm:$0xff] %vm2540, %v2523
      %v2557 = vld [vmem:[%s861] sm:$0xf]
      %v2558 = vld [vmem:[%s861 + $0x4] sm:$0xf]
      %v2559 = vld [vmem:[%s861 + $0xc] sm:$0xf]
      %v2560 = vld [vmem:[%s861 + $0x10] sm:$0xf]
      %v2561 = vld [vmem:[%s861 + $0x18] sm:$0xf]
      %v2562 = vld [vmem:[%s861 + $0x1c] sm:$0xf]
      %v2563 = vld [vmem:[%s861 + $0x24] sm:$0xf]
      %v2564 = vld [vmem:[%s861 + $0x28] sm:$0xf]
      %v2565 = vld [vmem:[%s861 + $0x30] sm:$0xf]
      %v2566 = vld [vmem:[%s861 + $0x34] sm:$0xf]
      %v2567 = vld [vmem:[%s861 + $0x3c] sm:$0xf]
      %v2568 = vld [vmem:[%s861 + $0x40] sm:$0xf]
      %v2569 = vld [vmem:[%s861 + $0x48] sm:$0xf]
      %v2570 = vld [vmem:[%s861 + $0x4c] sm:$0xf]
      %v2571 = vld [vmem:[%s861 + $0x54] sm:$0xf]
      %v2572 = vld [vmem:[%s861 + $0x58] sm:$0xf]
      %v2573 = vld [vmem:[%s861 + $0x60] sm:$0xf]
      %v2574 = vld [vmem:[%s861 + $0x64] sm:$0xf]
      %v2575 = vld [vmem:[%s861 + $0x6c] sm:$0xf]
      %v2576 = vld [vmem:[%s861 + $0x70] sm:$0xf]
      %v2577 = vld [vmem:[%s861 + $0x78] sm:$0xf]
      %v2578 = vld [vmem:[%s861 + $0x7c] sm:$0xf]
      %v2579 = vld [vmem:[%s861 + $0x84] sm:$0xf]
      %v2580 = vld [vmem:[%s861 + $0x88] sm:$0xf]
      %v2581 = vld [vmem:[%s861 + $0x90] sm:$0xf]
      %v2582 = vld [vmem:[%s861 + $0x94] sm:$0xf]
      %v2583 = vld [vmem:[%s861 + $0x9c] sm:$0xf]
      %v2584 = vld [vmem:[%s861 + $0xa0] sm:$0xf]
      %v2585 = vld [vmem:[%s861 + $0xa8] sm:$0xf]
      %v2586 = vld [vmem:[%s861 + $0xac] sm:$0xf]
      %v2587 = vld [vmem:[%s861 + $0xb4] sm:$0xf]
      %v2588 = vld [vmem:[%s861 + $0xb8] sm:$0xf]
      %v2621 = vunpack.c.l.b16 %v2557
      %v2622 = vunpack.c.l.b16 %v2558
      %v2623 = vunpack.c.l.b16 %v2559
      %v2624 = vunpack.c.l.b16 %v2560
      %v2625 = vunpack.c.l.b16 %v2561
      %v2626 = vunpack.c.l.b16 %v2562
      %v2627 = vunpack.c.l.b16 %v2563
      %v2628 = vunpack.c.l.b16 %v2564
      %v2629 = vunpack.c.l.b16 %v2565
      %v2630 = vunpack.c.l.b16 %v2566
      %v2631 = vunpack.c.l.b16 %v2567
      %v2632 = vunpack.c.l.b16 %v2568
      %v2633 = vunpack.c.l.b16 %v2569
      %v2634 = vunpack.c.l.b16 %v2570
      %v2635 = vunpack.c.l.b16 %v2571
      %v2636 = vunpack.c.l.b16 %v2572
      %v2637 = vunpack.c.l.b16 %v2573
      %v2638 = vunpack.c.l.b16 %v2574
      %v2639 = vunpack.c.l.b16 %v2575
      %v2640 = vunpack.c.l.b16 %v2576
      %v2641 = vunpack.c.l.b16 %v2577
      %v2642 = vunpack.c.l.b16 %v2578
      %v2643 = vunpack.c.l.b16 %v2579
      %v2644 = vunpack.c.l.b16 %v2580
      %v2645 = vunpack.c.l.b16 %v2581
      %v2646 = vunpack.c.l.b16 %v2582
      %v2647 = vunpack.c.l.b16 %v2583
      %v2648 = vunpack.c.l.b16 %v2584
      %v2649 = vunpack.c.l.b16 %v2585
      %v2650 = vunpack.c.l.b16 %v2586
      %v2651 = vunpack.c.l.b16 %v2587
      %v2652 = vunpack.c.l.b16 %v2588
      %v2653 = vpack.c.b16 %v2622, %v2621
      %v2654 = vpack.c.b16 %v2624, %v2623
      %v2655 = vpack.c.b16 %v2626, %v2625
      %v2656 = vpack.c.b16 %v2628, %v2627
      %v2657 = vpack.c.b16 %v2630, %v2629
      %v2658 = vpack.c.b16 %v2632, %v2631
      %v2659 = vpack.c.b16 %v2634, %v2633
      %v2660 = vpack.c.b16 %v2636, %v2635
      %v2661 = vpack.c.b16 %v2638, %v2637
      %v2662 = vpack.c.b16 %v2640, %v2639
      %v2663 = vpack.c.b16 %v2642, %v2641
      %v2664 = vpack.c.b16 %v2644, %v2643
      %v2665 = vpack.c.b16 %v2646, %v2645
      %v2666 = vpack.c.b16 %v2648, %v2647
      %v2667 = vpack.c.b16 %v2650, %v2649
      %v2668 = vpack.c.b16 %v2652, %v2651
      %2669 = vrot.lane.b32.xlu0 %v2653, 24
      %v2670 = vpop.permute.xlu0 %2669
      %2671 = vrot.lane.b32.xlu0 %v2654, 24
      %v2672 = vpop.permute.xlu0 %2671
      %2673 = vrot.lane.b32.xlu0 %v2655, 24
      %v2674 = vpop.permute.xlu0 %2673
      %2675 = vrot.lane.b32.xlu0 %v2656, 24
      %v2676 = vpop.permute.xlu0 %2675
      %2677 = vrot.lane.b32.xlu0 %v2657, 24
      %v2678 = vpop.permute.xlu0 %2677
      %2679 = vrot.lane.b32.xlu0 %v2658, 24
      %v2680 = vpop.permute.xlu0 %2679
      %2681 = vrot.lane.b32.xlu0 %v2659, 24
      %v2682 = vpop.permute.xlu0 %2681
      %2683 = vrot.lane.b32.xlu0 %v2660, 24
      %v2684 = vpop.permute.xlu0 %2683
      %2685 = vrot.lane.b32.xlu0 %v2661, 24
      %v2686 = vpop.permute.xlu0 %2685
      %2687 = vrot.lane.b32.xlu0 %v2662, 24
      %v2688 = vpop.permute.xlu0 %2687
      %2689 = vrot.lane.b32.xlu0 %v2663, 24
      %v2690 = vpop.permute.xlu0 %2689
      %2691 = vrot.lane.b32.xlu0 %v2664, 24
      %v2692 = vpop.permute.xlu0 %2691
      %2693 = vrot.lane.b32.xlu0 %v2665, 24
      %v2694 = vpop.permute.xlu0 %2693
      %2695 = vrot.lane.b32.xlu0 %v2666, 24
      %v2696 = vpop.permute.xlu0 %2695
      %2697 = vrot.lane.b32.xlu0 %v2667, 24
      %v2698 = vpop.permute.xlu0 %2697
      %2699 = vrot.lane.b32.xlu0 %v2668, 24
      %v2700 = vpop.permute.xlu0 %2699
      %vm2717 = vcmask 261312
      %2718 = vst.msk [vmem:[#allocation4] sm:$0xff] %vm2717, %v2670
      %2719 = vst.msk [vmem:[#allocation4 + $0x8] sm:$0xff] %vm2717, %v2672
      %2720 = vst.msk [vmem:[#allocation4 + $0x10] sm:$0xff] %vm2717, %v2674
      %2721 = vst.msk [vmem:[#allocation4 + $0x18] sm:$0xff] %vm2717, %v2676
      %2722 = vst.msk [vmem:[#allocation4 + $0x20] sm:$0xff] %vm2717, %v2678
      %2723 = vst.msk [vmem:[#allocation4 + $0x28] sm:$0xff] %vm2717, %v2680
      %2724 = vst.msk [vmem:[#allocation4 + $0x30] sm:$0xff] %vm2717, %v2682
      %2725 = vst.msk [vmem:[#allocation4 + $0x38] sm:$0xff] %vm2717, %v2684
      %2726 = vst.msk [vmem:[#allocation4 + $0x40] sm:$0xff] %vm2717, %v2686
      %2727 = vst.msk [vmem:[#allocation4 + $0x48] sm:$0xff] %vm2717, %v2688
      %2728 = vst.msk [vmem:[#allocation4 + $0x50] sm:$0xff] %vm2717, %v2690
      %2729 = vst.msk [vmem:[#allocation4 + $0x58] sm:$0xff] %vm2717, %v2692
      %2730 = vst.msk [vmem:[#allocation4 + $0x60] sm:$0xff] %vm2717, %v2694
      %2731 = vst.msk [vmem:[#allocation4 + $0x68] sm:$0xff] %vm2717, %v2696
      %2732 = vst.msk [vmem:[#allocation4 + $0x70] sm:$0xff] %vm2717, %v2698
      %2733 = vst.msk [vmem:[#allocation4 + $0x78] sm:$0xff] %vm2717, %v2700
      %v2734 = vld [vmem:[%s861] sm:$0xf]
      %v2735 = vld [vmem:[%s861 + $0x4] sm:$0xf]
      %v2736 = vld [vmem:[%s861 + $0x8] sm:$0x1]
      %v2737 = vld [vmem:[%s861 + $0xc] sm:$0xf]
      %v2738 = vld [vmem:[%s861 + $0x10] sm:$0xf]
      %v2739 = vld [vmem:[%s861 + $0x14] sm:$0x1]
      %v2740 = vld [vmem:[%s861 + $0x18] sm:$0xf]
      %v2741 = vld [vmem:[%s861 + $0x1c] sm:$0xf]
      %v2742 = vld [vmem:[%s861 + $0x20] sm:$0x1]
      %v2743 = vld [vmem:[%s861 + $0x24] sm:$0xf]
      %v2744 = vld [vmem:[%s861 + $0x28] sm:$0xf]
      %v2745 = vld [vmem:[%s861 + $0x2c] sm:$0x1]
      %v2746 = vld [vmem:[%s861 + $0x30] sm:$0xf]
      %v2747 = vld [vmem:[%s861 + $0x34] sm:$0xf]
      %v2748 = vld [vmem:[%s861 + $0x38] sm:$0x1]
      %v2749 = vld [vmem:[%s861 + $0x3c] sm:$0xf]
      %v2750 = vld [vmem:[%s861 + $0x40] sm:$0xf]
      %v2751 = vld [vmem:[%s861 + $0x44] sm:$0x1]
      %v2752 = vld [vmem:[%s861 + $0x48] sm:$0xf]
      %v2753 = vld [vmem:[%s861 + $0x4c] sm:$0xf]
      %v2754 = vld [vmem:[%s861 + $0x50] sm:$0x1]
      %v2755 = vld [vmem:[%s861 + $0x54] sm:$0xf]
      %v2756 = vld [vmem:[%s861 + $0x58] sm:$0xf]
      %v2757 = vld [vmem:[%s861 + $0x5c] sm:$0x1]
      %v2758 = vld [vmem:[%s861 + $0x60] sm:$0xf]
      %v2759 = vld [vmem:[%s861 + $0x64] sm:$0xf]
      %v2760 = vld [vmem:[%s861 + $0x68] sm:$0x1]
      %v2761 = vld [vmem:[%s861 + $0x6c] sm:$0xf]
      %v2762 = vld [vmem:[%s861 + $0x70] sm:$0xf]
      %v2763 = vld [vmem:[%s861 + $0x74] sm:$0x1]
      %v2764 = vld [vmem:[%s861 + $0x78] sm:$0xf]
      %v2765 = vld [vmem:[%s861 + $0x7c] sm:$0xf]
      %v2766 = vld [vmem:[%s861 + $0x80] sm:$0x1]
      %v2767 = vld [vmem:[%s861 + $0x84] sm:$0xf]
      %v2768 = vld [vmem:[%s861 + $0x88] sm:$0xf]
      %v2769 = vld [vmem:[%s861 + $0x8c] sm:$0x1]
      %v2770 = vld [vmem:[%s861 + $0x90] sm:$0xf]
      %v2771 = vld [vmem:[%s861 + $0x94] sm:$0xf]
      %v2772 = vld [vmem:[%s861 + $0x98] sm:$0x1]
      %v2773 = vld [vmem:[%s861 + $0x9c] sm:$0xf]
      %v2774 = vld [vmem:[%s861 + $0xa0] sm:$0xf]
      %v2775 = vld [vmem:[%s861 + $0xa4] sm:$0x1]
      %v2776 = vld [vmem:[%s861 + $0xa8] sm:$0xf]
      %v2777 = vld [vmem:[%s861 + $0xac] sm:$0xf]
      %v2778 = vld [vmem:[%s861 + $0xb0] sm:$0x1]
      %v2779 = vld [vmem:[%s861 + $0xb4] sm:$0xf]
      %v2780 = vld [vmem:[%s861 + $0xb8] sm:$0xf]
      %v2781 = vld [vmem:[%s861 + $0xbc] sm:$0x1]
      %v2783 = vshrl.u32 %v2734, 16
      %v2785 = vrot.slane %v2783, 4
      %v2786 = vshll.u32 %v2734, 16
      %v2788 = vrot.slane %v2786, 5
      %v2789 = vor.u32 %v2785, %v2788
      %v2790 = vrot.slane %v2789, 4
      %v2792 = vshll.u32 %v2735, 16
      %v2794 = vrot.slane %v2792, 5
      %v2795 = vsel %vm1735, %v2790, %v2794
      %v2796 = vshrl.u32 %v2735, 16
      %v2798 = vrot.slane %v2796, 4
      %v2799 = vor.u32 %v2798, %v2794
      %v2800 = vrot.slane %v2799, 4
      %v2802 = vshll.u32 %v2736, 16
      %v2804 = vrot.slane %v2802, 5
      %v2805 = vsel %vm1735, %v2800, %v2804
      %v2807 = vshrl.u32 %v2737, 16
      %v2809 = vrot.slane %v2807, 4
      %v2810 = vshll.u32 %v2737, 16
      %v2812 = vrot.slane %v2810, 5
      %v2813 = vor.u32 %v2809, %v2812
      %v2814 = vrot.slane %v2813, 4
      %v2816 = vshll.u32 %v2738, 16
      %v2818 = vrot.slane %v2816, 5
      %v2819 = vsel %vm1735, %v2814, %v2818
      %v2820 = vshrl.u32 %v2738, 16
      %v2822 = vrot.slane %v2820, 4
      %v2823 = vor.u32 %v2822, %v2818
      %v2824 = vrot.slane %v2823, 4
      %v2826 = vshll.u32 %v2739, 16
      %v2828 = vrot.slane %v2826, 5
      %v2829 = vsel %vm1735, %v2824, %v2828
      %v2831 = vshrl.u32 %v2740, 16
      %v2833 = vrot.slane %v2831, 4
      %v2834 = vshll.u32 %v2740, 16
      %v2836 = vrot.slane %v2834, 5
      %v2837 = vor.u32 %v2833, %v2836
      %v2838 = vrot.slane %v2837, 4
      %v2840 = vshll.u32 %v2741, 16
      %v2842 = vrot.slane %v2840, 5
      %v2843 = vsel %vm1735, %v2838, %v2842
      %v2844 = vshrl.u32 %v2741, 16
      %v2846 = vrot.slane %v2844, 4
      %v2847 = vor.u32 %v2846, %v2842
      %v2848 = vrot.slane %v2847, 4
      %v2850 = vshll.u32 %v2742, 16
      %v2852 = vrot.slane %v2850, 5
      %v2853 = vsel %vm1735, %v2848, %v2852
      %v2855 = vshrl.u32 %v2743, 16
      %v2857 = vrot.slane %v2855, 4
      %v2858 = vshll.u32 %v2743, 16
      %v2860 = vrot.slane %v2858, 5
      %v2861 = vor.u32 %v2857, %v2860
      %v2862 = vrot.slane %v2861, 4
      %v2864 = vshll.u32 %v2744, 16
      %v2866 = vrot.slane %v2864, 5
      %v2867 = vsel %vm1735, %v2862, %v2866
      %v2868 = vshrl.u32 %v2744, 16
      %v2870 = vrot.slane %v2868, 4
      %v2871 = vor.u32 %v2870, %v2866
      %v2872 = vrot.slane %v2871, 4
      %v2874 = vshll.u32 %v2745, 16
      %v2876 = vrot.slane %v2874, 5
      %v2877 = vsel %vm1735, %v2872, %v2876
      %v2879 = vshrl.u32 %v2746, 16
      %v2881 = vrot.slane %v2879, 4
      %v2882 = vshll.u32 %v2746, 16
      %v2884 = vrot.slane %v2882, 5
      %v2885 = vor.u32 %v2881, %v2884
      %v2886 = vrot.slane %v2885, 4
      %v2888 = vshll.u32 %v2747, 16
      %v2890 = vrot.slane %v2888, 5
      %v2891 = vsel %vm1735, %v2886, %v2890
      %v2892 = vshrl.u32 %v2747, 16
      %v2894 = vrot.slane %v2892, 4
      %v2895 = vor.u32 %v2894, %v2890
      %v2896 = vrot.slane %v2895, 4
      %v2898 = vshll.u32 %v2748, 16
      %v2900 = vrot.slane %v2898, 5
      %v2901 = vsel %vm1735, %v2896, %v2900
      %v2903 = vshrl.u32 %v2749, 16
      %v2905 = vrot.slane %v2903, 4
      %v2906 = vshll.u32 %v2749, 16
      %v2908 = vrot.slane %v2906, 5
      %v2909 = vor.u32 %v2905, %v2908
      %v2910 = vrot.slane %v2909, 4
      %v2912 = vshll.u32 %v2750, 16
      %v2914 = vrot.slane %v2912, 5
      %v2915 = vsel %vm1735, %v2910, %v2914
      %v2916 = vshrl.u32 %v2750, 16
      %v2918 = vrot.slane %v2916, 4
      %v2919 = vor.u32 %v2918, %v2914
      %v2920 = vrot.slane %v2919, 4
      %v2922 = vshll.u32 %v2751, 16
      %v2924 = vrot.slane %v2922, 5
      %v2925 = vsel %vm1735, %v2920, %v2924
      %v2927 = vshrl.u32 %v2752, 16
      %v2929 = vrot.slane %v2927, 4
      %v2930 = vshll.u32 %v2752, 16
      %v2932 = vrot.slane %v2930, 5
      %v2933 = vor.u32 %v2929, %v2932
      %v2934 = vrot.slane %v2933, 4
      %v2936 = vshll.u32 %v2753, 16
      %v2938 = vrot.slane %v2936, 5
      %v2939 = vsel %vm1735, %v2934, %v2938
      %v2940 = vshrl.u32 %v2753, 16
      %v2942 = vrot.slane %v2940, 4
      %v2943 = vor.u32 %v2942, %v2938
      %v2944 = vrot.slane %v2943, 4
      %v2946 = vshll.u32 %v2754, 16
      %v2948 = vrot.slane %v2946, 5
      %v2949 = vsel %vm1735, %v2944, %v2948
      %v2951 = vshrl.u32 %v2755, 16
      %v2953 = vrot.slane %v2951, 4
      %v2954 = vshll.u32 %v2755, 16
      %v2956 = vrot.slane %v2954, 5
      %v2957 = vor.u32 %v2953, %v2956
      %v2958 = vrot.slane %v2957, 4
      %v2960 = vshll.u32 %v2756, 16
      %v2962 = vrot.slane %v2960, 5
      %v2963 = vsel %vm1735, %v2958, %v2962
      %v2964 = vshrl.u32 %v2756, 16
      %v2966 = vrot.slane %v2964, 4
      %v2967 = vor.u32 %v2966, %v2962
      %v2968 = vrot.slane %v2967, 4
      %v2970 = vshll.u32 %v2757, 16
      %v2972 = vrot.slane %v2970, 5
      %v2973 = vsel %vm1735, %v2968, %v2972
      %v2975 = vshrl.u32 %v2758, 16
      %v2977 = vrot.slane %v2975, 4
      %v2978 = vshll.u32 %v2758, 16
      %v2980 = vrot.slane %v2978, 5
      %v2981 = vor.u32 %v2977, %v2980
      %v2982 = vrot.slane %v2981, 4
      %v2984 = vshll.u32 %v2759, 16
      %v2986 = vrot.slane %v2984, 5
      %v2987 = vsel %vm1735, %v2982, %v2986
      %v2988 = vshrl.u32 %v2759, 16
      %v2990 = vrot.slane %v2988, 4
      %v2991 = vor.u32 %v2990, %v2986
      %v2992 = vrot.slane %v2991, 4
      %v2994 = vshll.u32 %v2760, 16
      %v2996 = vrot.slane %v2994, 5
      %v2997 = vsel %vm1735, %v2992, %v2996
      %v2999 = vshrl.u32 %v2761, 16
      %v3001 = vrot.slane %v2999, 4
      %v3002 = vshll.u32 %v2761, 16
      %v3004 = vrot.slane %v3002, 5
      %v3005 = vor.u32 %v3001, %v3004
      %v3006 = vrot.slane %v3005, 4
      %v3008 = vshll.u32 %v2762, 16
      %v3010 = vrot.slane %v3008, 5
      %v3011 = vsel %vm1735, %v3006, %v3010
      %v3012 = vshrl.u32 %v2762, 16
      %v3014 = vrot.slane %v3012, 4
      %v3015 = vor.u32 %v3014, %v3010
      %v3016 = vrot.slane %v3015, 4
      %v3018 = vshll.u32 %v2763, 16
      %v3020 = vrot.slane %v3018, 5
      %v3021 = vsel %vm1735, %v3016, %v3020
      %v3023 = vshrl.u32 %v2764, 16
      %v3025 = vrot.slane %v3023, 4
      %v3026 = vshll.u32 %v2764, 16
      %v3028 = vrot.slane %v3026, 5
      %v3029 = vor.u32 %v3025, %v3028
      %v3030 = vrot.slane %v3029, 4
      %v3032 = vshll.u32 %v2765, 16
      %v3034 = vrot.slane %v3032, 5
      %v3035 = vsel %vm1735, %v3030, %v3034
      %v3036 = vshrl.u32 %v2765, 16
      %v3038 = vrot.slane %v3036, 4
      %v3039 = vor.u32 %v3038, %v3034
      %v3040 = vrot.slane %v3039, 4
      %v3042 = vshll.u32 %v2766, 16
      %v3044 = vrot.slane %v3042, 5
      %v3045 = vsel %vm1735, %v3040, %v3044
      %v3047 = vshrl.u32 %v2767, 16
      %v3049 = vrot.slane %v3047, 4
      %v3050 = vshll.u32 %v2767, 16
      %v3052 = vrot.slane %v3050, 5
      %v3053 = vor.u32 %v3049, %v3052
      %v3054 = vrot.slane %v3053, 4
      %v3056 = vshll.u32 %v2768, 16
      %v3058 = vrot.slane %v3056, 5
      %v3059 = vsel %vm1735, %v3054, %v3058
      %v3060 = vshrl.u32 %v2768, 16
      %v3062 = vrot.slane %v3060, 4
      %v3063 = vor.u32 %v3062, %v3058
      %v3064 = vrot.slane %v3063, 4
      %v3066 = vshll.u32 %v2769, 16
      %v3068 = vrot.slane %v3066, 5
      %v3069 = vsel %vm1735, %v3064, %v3068
      %v3071 = vshrl.u32 %v2770, 16
      %v3073 = vrot.slane %v3071, 4
      %v3074 = vshll.u32 %v2770, 16
      %v3076 = vrot.slane %v3074, 5
      %v3077 = vor.u32 %v3073, %v3076
      %v3078 = vrot.slane %v3077, 4
      %v3080 = vshll.u32 %v2771, 16
      %v3082 = vrot.slane %v3080, 5
      %v3083 = vsel %vm1735, %v3078, %v3082
      %v3084 = vshrl.u32 %v2771, 16
      %v3086 = vrot.slane %v3084, 4
      %v3087 = vor.u32 %v3086, %v3082
      %v3088 = vrot.slane %v3087, 4
      %v3090 = vshll.u32 %v2772, 16
      %v3092 = vrot.slane %v3090, 5
      %v3093 = vsel %vm1735, %v3088, %v3092
      %v3095 = vshrl.u32 %v2773, 16
      %v3097 = vrot.slane %v3095, 4
      %v3098 = vshll.u32 %v2773, 16
      %v3100 = vrot.slane %v3098, 5
      %v3101 = vor.u32 %v3097, %v3100
      %v3102 = vrot.slane %v3101, 4
      %v3104 = vshll.u32 %v2774, 16
      %v3106 = vrot.slane %v3104, 5
      %v3107 = vsel %vm1735, %v3102, %v3106
      %v3108 = vshrl.u32 %v2774, 16
      %v3110 = vrot.slane %v3108, 4
      %v3111 = vor.u32 %v3110, %v3106
      %v3112 = vrot.slane %v3111, 4
      %v3114 = vshll.u32 %v2775, 16
      %v3116 = vrot.slane %v3114, 5
      %v3117 = vsel %vm1735, %v3112, %v3116
      %v3119 = vshrl.u32 %v2776, 16
      %v3121 = vrot.slane %v3119, 4
      %v3122 = vshll.u32 %v2776, 16
      %v3124 = vrot.slane %v3122, 5
      %v3125 = vor.u32 %v3121, %v3124
      %v3126 = vrot.slane %v3125, 4
      %v3128 = vshll.u32 %v2777, 16
      %v3130 = vrot.slane %v3128, 5
      %v3131 = vsel %vm1735, %v3126, %v3130
      %v3132 = vshrl.u32 %v2777, 16
      %v3134 = vrot.slane %v3132, 4
      %v3135 = vor.u32 %v3134, %v3130
      %v3136 = vrot.slane %v3135, 4
      %v3138 = vshll.u32 %v2778, 16
      %v3140 = vrot.slane %v3138, 5
      %v3141 = vsel %vm1735, %v3136, %v3140
      %v3143 = vshrl.u32 %v2779, 16
      %v3145 = vrot.slane %v3143, 4
      %v3146 = vshll.u32 %v2779, 16
      %v3148 = vrot.slane %v3146, 5
      %v3149 = vor.u32 %v3145, %v3148
      %v3150 = vrot.slane %v3149, 4
      %v3152 = vshll.u32 %v2780, 16
      %v3154 = vrot.slane %v3152, 5
      %v3155 = vsel %vm1735, %v3150, %v3154
      %v3156 = vshrl.u32 %v2780, 16
      %v3158 = vrot.slane %v3156, 4
      %v3159 = vor.u32 %v3158, %v3154
      %v3160 = vrot.slane %v3159, 4
      %v3162 = vshll.u32 %v2781, 16
      %v3164 = vrot.slane %v3162, 5
      %v3165 = vsel %vm1735, %v3160, %v3164
      %v3166 = vunpack.c.l.b16 %v2795
      %v3167 = vunpack.c.l.b16 %v2805
      %v3168 = vunpack.c.l.b16 %v2819
      %v3169 = vunpack.c.l.b16 %v2829
      %v3170 = vunpack.c.l.b16 %v2843
      %v3171 = vunpack.c.l.b16 %v2853
      %v3172 = vunpack.c.l.b16 %v2867
      %v3173 = vunpack.c.l.b16 %v2877
      %v3174 = vunpack.c.l.b16 %v2891
      %v3175 = vunpack.c.l.b16 %v2901
      %v3176 = vunpack.c.l.b16 %v2915
      %v3177 = vunpack.c.l.b16 %v2925
      %v3178 = vunpack.c.l.b16 %v2939
      %v3179 = vunpack.c.l.b16 %v2949
      %v3180 = vunpack.c.l.b16 %v2963
      %v3181 = vunpack.c.l.b16 %v2973
      %v3182 = vunpack.c.l.b16 %v2987
      %v3183 = vunpack.c.l.b16 %v2997
      %v3184 = vunpack.c.l.b16 %v3011
      %v3185 = vunpack.c.l.b16 %v3021
      %v3186 = vunpack.c.l.b16 %v3035
      %v3187 = vunpack.c.l.b16 %v3045
      %v3188 = vunpack.c.l.b16 %v3059
      %v3189 = vunpack.c.l.b16 %v3069
      %v3190 = vunpack.c.l.b16 %v3083
      %v3191 = vunpack.c.l.b16 %v3093
      %v3192 = vunpack.c.l.b16 %v3107
      %v3193 = vunpack.c.l.b16 %v3117
      %v3194 = vunpack.c.l.b16 %v3131
      %v3195 = vunpack.c.l.b16 %v3141
      %v3196 = vunpack.c.l.b16 %v3155
      %v3197 = vunpack.c.l.b16 %v3165
      %v3198 = vpack.c.b16 %v3167, %v3166
      %v3199 = vpack.c.b16 %v3169, %v3168
      %v3200 = vpack.c.b16 %v3171, %v3170
      %v3201 = vpack.c.b16 %v3173, %v3172
      %v3202 = vpack.c.b16 %v3175, %v3174
      %v3203 = vpack.c.b16 %v3177, %v3176
      %v3204 = vpack.c.b16 %v3179, %v3178
      %v3205 = vpack.c.b16 %v3181, %v3180
      %v3206 = vpack.c.b16 %v3183, %v3182
      %v3207 = vpack.c.b16 %v3185, %v3184
      %v3208 = vpack.c.b16 %v3187, %v3186
      %v3209 = vpack.c.b16 %v3189, %v3188
      %v3210 = vpack.c.b16 %v3191, %v3190
      %v3211 = vpack.c.b16 %v3193, %v3192
      %v3212 = vpack.c.b16 %v3195, %v3194
      %v3213 = vpack.c.b16 %v3197, %v3196
      %3214 = vrot.lane.b32.xlu0 %v3198, 32
      %v3215 = vpop.permute.xlu0 %3214
      %3216 = vrot.lane.b32.xlu0 %v3199, 32
      %v3217 = vpop.permute.xlu0 %3216
      %3218 = vrot.lane.b32.xlu0 %v3200, 32
      %v3219 = vpop.permute.xlu0 %3218
      %3220 = vrot.lane.b32.xlu0 %v3201, 32
      %v3221 = vpop.permute.xlu0 %3220
      %3222 = vrot.lane.b32.xlu0 %v3202, 32
      %v3223 = vpop.permute.xlu0 %3222
      %3224 = vrot.lane.b32.xlu0 %v3203, 32
      %v3225 = vpop.permute.xlu0 %3224
      %3226 = vrot.lane.b32.xlu0 %v3204, 32
      %v3227 = vpop.permute.xlu0 %3226
      %3228 = vrot.lane.b32.xlu0 %v3205, 32
      %v3229 = vpop.permute.xlu0 %3228
      %3230 = vrot.lane.b32.xlu0 %v3206, 32
      %v3231 = vpop.permute.xlu0 %3230
      %3232 = vrot.lane.b32.xlu0 %v3207, 32
      %v3233 = vpop.permute.xlu0 %3232
      %3234 = vrot.lane.b32.xlu0 %v3208, 32
      %v3235 = vpop.permute.xlu0 %3234
      %3236 = vrot.lane.b32.xlu0 %v3209, 32
      %v3237 = vpop.permute.xlu0 %3236
      %3238 = vrot.lane.b32.xlu0 %v3210, 32
      %v3239 = vpop.permute.xlu0 %3238
      %3240 = vrot.lane.b32.xlu0 %v3211, 32
      %v3241 = vpop.permute.xlu0 %3240
      %3242 = vrot.lane.b32.xlu0 %v3212, 32
      %v3243 = vpop.permute.xlu0 %3242
      %3244 = vrot.lane.b32.xlu0 %v3213, 32
      %v3245 = vpop.permute.xlu0 %3244
      %vm3262 = vcmask 326912
      %3263 = vst.msk [vmem:[#allocation4] sm:$0xff] %vm3262, %v3215
      %3264 = vst.msk [vmem:[#allocation4 + $0x8] sm:$0xff] %vm3262, %v3217
      %3265 = vst.msk [vmem:[#allocation4 + $0x10] sm:$0xff] %vm3262, %v3219
      %3266 = vst.msk [vmem:[#allocation4 + $0x18] sm:$0xff] %vm3262, %v3221
      %3267 = vst.msk [vmem:[#allocation4 + $0x20] sm:$0xff] %vm3262, %v3223
      %3268 = vst.msk [vmem:[#allocation4 + $0x28] sm:$0xff] %vm3262, %v3225
      %3269 = vst.msk [vmem:[#allocation4 + $0x30] sm:$0xff] %vm3262, %v3227
      %3270 = vst.msk [vmem:[#allocation4 + $0x38] sm:$0xff] %vm3262, %v3229
      %3271 = vst.msk [vmem:[#allocation4 + $0x40] sm:$0xff] %vm3262, %v3231
      %3272 = vst.msk [vmem:[#allocation4 + $0x48] sm:$0xff] %vm3262, %v3233
      %3273 = vst.msk [vmem:[#allocation4 + $0x50] sm:$0xff] %vm3262, %v3235
      %3274 = vst.msk [vmem:[#allocation4 + $0x58] sm:$0xff] %vm3262, %v3237
      %3275 = vst.msk [vmem:[#allocation4 + $0x60] sm:$0xff] %vm3262, %v3239
      %3276 = vst.msk [vmem:[#allocation4 + $0x68] sm:$0xff] %vm3262, %v3241
      %3277 = vst.msk [vmem:[#allocation4 + $0x70] sm:$0xff] %vm3262, %v3243
      %3278 = vst.msk [vmem:[#allocation4 + $0x78] sm:$0xff] %vm3262, %v3245
      %v3279 = vld [vmem:[%s861] sm:$0xe]
      %v3280 = vld [vmem:[%s861 + $0x4] sm:$0xf]
      %v3281 = vld [vmem:[%s861 + $0x8] sm:$0x1]
      %v3282 = vld [vmem:[%s861 + $0xc] sm:$0xe]
      %v3283 = vld [vmem:[%s861 + $0x10] sm:$0xf]
      %v3284 = vld [vmem:[%s861 + $0x14] sm:$0x1]
      %v3285 = vld [vmem:[%s861 + $0x18] sm:$0xe]
      %v3286 = vld [vmem:[%s861 + $0x1c] sm:$0xf]
      %v3287 = vld [vmem:[%s861 + $0x20] sm:$0x1]
      %v3288 = vld [vmem:[%s861 + $0x24] sm:$0xe]
      %v3289 = vld [vmem:[%s861 + $0x28] sm:$0xf]
      %v3290 = vld [vmem:[%s861 + $0x2c] sm:$0x1]
      %v3291 = vld [vmem:[%s861 + $0x30] sm:$0xe]
      %v3292 = vld [vmem:[%s861 + $0x34] sm:$0xf]
      %v3293 = vld [vmem:[%s861 + $0x38] sm:$0x1]
      %v3294 = vld [vmem:[%s861 + $0x3c] sm:$0xe]
      %v3295 = vld [vmem:[%s861 + $0x40] sm:$0xf]
      %v3296 = vld [vmem:[%s861 + $0x44] sm:$0x1]
      %v3297 = vld [vmem:[%s861 + $0x48] sm:$0xe]
      %v3298 = vld [vmem:[%s861 + $0x4c] sm:$0xf]
      %v3299 = vld [vmem:[%s861 + $0x50] sm:$0x1]
      %v3300 = vld [vmem:[%s861 + $0x54] sm:$0xe]
      %v3301 = vld [vmem:[%s861 + $0x58] sm:$0xf]
      %v3302 = vld [vmem:[%s861 + $0x5c] sm:$0x1]
      %v3303 = vld [vmem:[%s861 + $0x60] sm:$0xe]
      %v3304 = vld [vmem:[%s861 + $0x64] sm:$0xf]
      %v3305 = vld [vmem:[%s861 + $0x68] sm:$0x1]
      %v3306 = vld [vmem:[%s861 + $0x6c] sm:$0xe]
      %v3307 = vld [vmem:[%s861 + $0x70] sm:$0xf]
      %v3308 = vld [vmem:[%s861 + $0x74] sm:$0x1]
      %v3309 = vld [vmem:[%s861 + $0x78] sm:$0xe]
      %v3310 = vld [vmem:[%s861 + $0x7c] sm:$0xf]
      %v3311 = vld [vmem:[%s861 + $0x80] sm:$0x1]
      %v3312 = vld [vmem:[%s861 + $0x84] sm:$0xe]
      %v3313 = vld [vmem:[%s861 + $0x88] sm:$0xf]
      %v3314 = vld [vmem:[%s861 + $0x8c] sm:$0x1]
      %v3315 = vld [vmem:[%s861 + $0x90] sm:$0xe]
      %v3316 = vld [vmem:[%s861 + $0x94] sm:$0xf]
      %v3317 = vld [vmem:[%s861 + $0x98] sm:$0x1]
      %v3318 = vld [vmem:[%s861 + $0x9c] sm:$0xe]
      %v3319 = vld [vmem:[%s861 + $0xa0] sm:$0xf]
      %v3320 = vld [vmem:[%s861 + $0xa4] sm:$0x1]
      %v3321 = vld [vmem:[%s861 + $0xa8] sm:$0xe]
      %v3322 = vld [vmem:[%s861 + $0xac] sm:$0xf]
      %v3323 = vld [vmem:[%s861 + $0xb0] sm:$0x1]
      %v3324 = vld [vmem:[%s861 + $0xb4] sm:$0xe]
      %v3325 = vld [vmem:[%s861 + $0xb8] sm:$0xf]
      %v3326 = vld [vmem:[%s861 + $0xbc] sm:$0x1]
      %v3375 = vrot.slane %v3279, 5
      %v3376 = vrot.slane %v3375, 4
      %v3377 = vrot.slane %v3280, 5
      %v3378 = vsel %vm2331, %v3376, %v3377
      %v3379 = vrot.slane %v3377, 4
      %v3380 = vrot.slane %v3281, 5
      %v3381 = vsel %vm2331, %v3379, %v3380
      %v3382 = vrot.slane %v3282, 5
      %v3383 = vrot.slane %v3382, 4
      %v3384 = vrot.slane %v3283, 5
      %v3385 = vsel %vm2331, %v3383, %v3384
      %v3386 = vrot.slane %v3384, 4
      %v3387 = vrot.slane %v3284, 5
      %v3388 = vsel %vm2331, %v3386, %v3387
      %v3389 = vrot.slane %v3285, 5
      %v3390 = vrot.slane %v3389, 4
      %v3391 = vrot.slane %v3286, 5
      %v3392 = vsel %vm2331, %v3390, %v3391
      %v3393 = vrot.slane %v3391, 4
      %v3394 = vrot.slane %v3287, 5
      %v3395 = vsel %vm2331, %v3393, %v3394
      %v3396 = vrot.slane %v3288, 5
      %v3397 = vrot.slane %v3396, 4
      %v3398 = vrot.slane %v3289, 5
      %v3399 = vsel %vm2331, %v3397, %v3398
      %v3400 = vrot.slane %v3398, 4
      %v3401 = vrot.slane %v3290, 5
      %v3402 = vsel %vm2331, %v3400, %v3401
      %v3403 = vrot.slane %v3291, 5
      %v3404 = vrot.slane %v3403, 4
      %v3405 = vrot.slane %v3292, 5
      %v3406 = vsel %vm2331, %v3404, %v3405
      %v3407 = vrot.slane %v3405, 4
      %v3408 = vrot.slane %v3293, 5
      %v3409 = vsel %vm2331, %v3407, %v3408
      %v3410 = vrot.slane %v3294, 5
      %v3411 = vrot.slane %v3410, 4
      %v3412 = vrot.slane %v3295, 5
      %v3413 = vsel %vm2331, %v3411, %v3412
      %v3414 = vrot.slane %v3412, 4
      %v3415 = vrot.slane %v3296, 5
      %v3416 = vsel %vm2331, %v3414, %v3415
      %v3417 = vrot.slane %v3297, 5
      %v3418 = vrot.slane %v3417, 4
      %v3419 = vrot.slane %v3298, 5
      %v3420 = vsel %vm2331, %v3418, %v3419
      %v3421 = vrot.slane %v3419, 4
      %v3422 = vrot.slane %v3299, 5
      %v3423 = vsel %vm2331, %v3421, %v3422
      %v3424 = vrot.slane %v3300, 5
      %v3425 = vrot.slane %v3424, 4
      %v3426 = vrot.slane %v3301, 5
      %v3427 = vsel %vm2331, %v3425, %v3426
      %v3428 = vrot.slane %v3426, 4
      %v3429 = vrot.slane %v3302, 5
      %v3430 = vsel %vm2331, %v3428, %v3429
      %v3431 = vrot.slane %v3303, 5
      %v3432 = vrot.slane %v3431, 4
      %v3433 = vrot.slane %v3304, 5
      %v3434 = vsel %vm2331, %v3432, %v3433
      %v3435 = vrot.slane %v3433, 4
      %v3436 = vrot.slane %v3305, 5
      %v3437 = vsel %vm2331, %v3435, %v3436
      %v3438 = vrot.slane %v3306, 5
      %v3439 = vrot.slane %v3438, 4
      %v3440 = vrot.slane %v3307, 5
      %v3441 = vsel %vm2331, %v3439, %v3440
      %v3442 = vrot.slane %v3440, 4
      %v3443 = vrot.slane %v3308, 5
      %v3444 = vsel %vm2331, %v3442, %v3443
      %v3445 = vrot.slane %v3309, 5
      %v3446 = vrot.slane %v3445, 4
      %v3447 = vrot.slane %v3310, 5
      %v3448 = vsel %vm2331, %v3446, %v3447
      %v3449 = vrot.slane %v3447, 4
      %v3450 = vrot.slane %v3311, 5
      %v3451 = vsel %vm2331, %v3449, %v3450
      %v3452 = vrot.slane %v3312, 5
      %v3453 = vrot.slane %v3452, 4
      %v3454 = vrot.slane %v3313, 5
      %v3455 = vsel %vm2331, %v3453, %v3454
      %v3456 = vrot.slane %v3454, 4
      %v3457 = vrot.slane %v3314, 5
      %v3458 = vsel %vm2331, %v3456, %v3457
      %v3459 = vrot.slane %v3315, 5
      %v3460 = vrot.slane %v3459, 4
      %v3461 = vrot.slane %v3316, 5
      %v3462 = vsel %vm2331, %v3460, %v3461
      %v3463 = vrot.slane %v3461, 4
      %v3464 = vrot.slane %v3317, 5
      %v3465 = vsel %vm2331, %v3463, %v3464
      %v3466 = vrot.slane %v3318, 5
      %v3467 = vrot.slane %v3466, 4
      %v3468 = vrot.slane %v3319, 5
      %v3469 = vsel %vm2331, %v3467, %v3468
      %v3470 = vrot.slane %v3468, 4
      %v3471 = vrot.slane %v3320, 5
      %v3472 = vsel %vm2331, %v3470, %v3471
      %v3473 = vrot.slane %v3321, 5
      %v3474 = vrot.slane %v3473, 4
      %v3475 = vrot.slane %v3322, 5
      %v3476 = vsel %vm2331, %v3474, %v3475
      %v3477 = vrot.slane %v3475, 4
      %v3478 = vrot.slane %v3323, 5
      %v3479 = vsel %vm2331, %v3477, %v3478
      %v3480 = vrot.slane %v3324, 5
      %v3481 = vrot.slane %v3480, 4
      %v3482 = vrot.slane %v3325, 5
      %v3483 = vsel %vm2331, %v3481, %v3482
      %v3484 = vrot.slane %v3482, 4
      %v3485 = vrot.slane %v3326, 5
      %v3486 = vsel %vm2331, %v3484, %v3485
      %v3487 = vunpack.c.l.b16 %v3378
      %v3488 = vunpack.c.l.b16 %v3381
      %v3489 = vunpack.c.l.b16 %v3385
      %v3490 = vunpack.c.l.b16 %v3388
      %v3491 = vunpack.c.l.b16 %v3392
      %v3492 = vunpack.c.l.b16 %v3395
      %v3493 = vunpack.c.l.b16 %v3399
      %v3494 = vunpack.c.l.b16 %v3402
      %v3495 = vunpack.c.l.b16 %v3406
      %v3496 = vunpack.c.l.b16 %v3409
      %v3497 = vunpack.c.l.b16 %v3413
      %v3498 = vunpack.c.l.b16 %v3416
      %v3499 = vunpack.c.l.b16 %v3420
      %v3500 = vunpack.c.l.b16 %v3423
      %v3501 = vunpack.c.l.b16 %v3427
      %v3502 = vunpack.c.l.b16 %v3430
      %v3503 = vunpack.c.l.b16 %v3434
      %v3504 = vunpack.c.l.b16 %v3437
      %v3505 = vunpack.c.l.b16 %v3441
      %v3506 = vunpack.c.l.b16 %v3444
      %v3507 = vunpack.c.l.b16 %v3448
      %v3508 = vunpack.c.l.b16 %v3451
      %v3509 = vunpack.c.l.b16 %v3455
      %v3510 = vunpack.c.l.b16 %v3458
      %v3511 = vunpack.c.l.b16 %v3462
      %v3512 = vunpack.c.l.b16 %v3465
      %v3513 = vunpack.c.l.b16 %v3469
      %v3514 = vunpack.c.l.b16 %v3472
      %v3515 = vunpack.c.l.b16 %v3476
      %v3516 = vunpack.c.l.b16 %v3479
      %v3517 = vunpack.c.l.b16 %v3483
      %v3518 = vunpack.c.l.b16 %v3486
      %v3519 = vpack.c.b16 %v3488, %v3487
      %v3520 = vpack.c.b16 %v3490, %v3489
      %v3521 = vpack.c.b16 %v3492, %v3491
      %v3522 = vpack.c.b16 %v3494, %v3493
      %v3523 = vpack.c.b16 %v3496, %v3495
      %v3524 = vpack.c.b16 %v3498, %v3497
      %v3525 = vpack.c.b16 %v3500, %v3499
      %v3526 = vpack.c.b16 %v3502, %v3501
      %v3527 = vpack.c.b16 %v3504, %v3503
      %v3528 = vpack.c.b16 %v3506, %v3505
      %v3529 = vpack.c.b16 %v3508, %v3507
      %v3530 = vpack.c.b16 %v3510, %v3509
      %v3531 = vpack.c.b16 %v3512, %v3511
      %v3532 = vpack.c.b16 %v3514, %v3513
      %v3533 = vpack.c.b16 %v3516, %v3515
      %v3534 = vpack.c.b16 %v3518, %v3517
      %3535 = vrot.lane.b32.xlu0 %v3519, 40
      %v3536 = vpop.permute.xlu0 %3535
      %3537 = vrot.lane.b32.xlu0 %v3520, 40
      %v3538 = vpop.permute.xlu0 %3537
      %3539 = vrot.lane.b32.xlu0 %v3521, 40
      %v3540 = vpop.permute.xlu0 %3539
      %3541 = vrot.lane.b32.xlu0 %v3522, 40
      %v3542 = vpop.permute.xlu0 %3541
      %3543 = vrot.lane.b32.xlu0 %v3523, 40
      %v3544 = vpop.permute.xlu0 %3543
      %3545 = vrot.lane.b32.xlu0 %v3524, 40
      %v3546 = vpop.permute.xlu0 %3545
      %3547 = vrot.lane.b32.xlu0 %v3525, 40
      %v3548 = vpop.permute.xlu0 %3547
      %3549 = vrot.lane.b32.xlu0 %v3526, 40
      %v3550 = vpop.permute.xlu0 %3549
      %3551 = vrot.lane.b32.xlu0 %v3527, 40
      %v3552 = vpop.permute.xlu0 %3551
      %3553 = vrot.lane.b32.xlu0 %v3528, 40
      %v3554 = vpop.permute.xlu0 %3553
      %3555 = vrot.lane.b32.xlu0 %v3529, 40
      %v3556 = vpop.permute.xlu0 %3555
      %3557 = vrot.lane.b32.xlu0 %v3530, 40
      %v3558 = vpop.permute.xlu0 %3557
      %3559 = vrot.lane.b32.xlu0 %v3531, 40
      %v3560 = vpop.permute.xlu0 %3559
      %3561 = vrot.lane.b32.xlu0 %v3532, 40
      %v3562 = vpop.permute.xlu0 %3561
      %3563 = vrot.lane.b32.xlu0 %v3533, 40
      %v3564 = vpop.permute.xlu0 %3563
      %3565 = vrot.lane.b32.xlu0 %v3534, 40
      %v3566 = vpop.permute.xlu0 %3565
      %vm3583 = vcmask 392512
      %3584 = vst.msk [vmem:[#allocation4] sm:$0xff] %vm3583, %v3536
      %3585 = vst.msk [vmem:[#allocation4 + $0x8] sm:$0xff] %vm3583, %v3538
      %3586 = vst.msk [vmem:[#allocation4 + $0x10] sm:$0xff] %vm3583, %v3540
      %3587 = vst.msk [vmem:[#allocation4 + $0x18] sm:$0xff] %vm3583, %v3542
      %3588 = vst.msk [vmem:[#allocation4 + $0x20] sm:$0xff] %vm3583, %v3544
      %3589 = vst.msk [vmem:[#allocation4 + $0x28] sm:$0xff] %vm3583, %v3546
      %3590 = vst.msk [vmem:[#allocation4 + $0x30] sm:$0xff] %vm3583, %v3548
      %3591 = vst.msk [vmem:[#allocation4 + $0x38] sm:$0xff] %vm3583, %v3550
      %3592 = vst.msk [vmem:[#allocation4 + $0x40] sm:$0xff] %vm3583, %v3552
      %3593 = vst.msk [vmem:[#allocation4 + $0x48] sm:$0xff] %vm3583, %v3554
      %3594 = vst.msk [vmem:[#allocation4 + $0x50] sm:$0xff] %vm3583, %v3556
      %3595 = vst.msk [vmem:[#allocation4 + $0x58] sm:$0xff] %vm3583, %v3558
      %3596 = vst.msk [vmem:[#allocation4 + $0x60] sm:$0xff] %vm3583, %v3560
      %3597 = vst.msk [vmem:[#allocation4 + $0x68] sm:$0xff] %vm3583, %v3562
      %3598 = vst.msk [vmem:[#allocation4 + $0x70] sm:$0xff] %vm3583, %v3564
      %3599 = vst.msk [vmem:[#allocation4 + $0x78] sm:$0xff] %vm3583, %v3566
      %s3600 = scalar_lea.vmem [#allocation2], 24
      %v3601 = vld [vmem:[%s3600] sm:$0xf]
      %v3602 = vld [vmem:[%s3600 + $0x4] sm:$0xf]
      %v3603 = vld [vmem:[%s3600 + $0xc] sm:$0xf]
      %v3604 = vld [vmem:[%s3600 + $0x10] sm:$0xf]
      %v3605 = vld [vmem:[%s3600 + $0x18] sm:$0xf]
      %v3606 = vld [vmem:[%s3600 + $0x1c] sm:$0xf]
      %v3607 = vld [vmem:[%s3600 + $0x24] sm:$0xf]
      %v3608 = vld [vmem:[%s3600 + $0x28] sm:$0xf]
      %v3609 = vld [vmem:[%s3600 + $0x30] sm:$0xf]
      %v3610 = vld [vmem:[%s3600 + $0x34] sm:$0xf]
      %v3611 = vld [vmem:[%s3600 + $0x3c] sm:$0xf]
      %v3612 = vld [vmem:[%s3600 + $0x40] sm:$0xf]
      %v3613 = vld [vmem:[%s3600 + $0x48] sm:$0xf]
      %v3614 = vld [vmem:[%s3600 + $0x4c] sm:$0xf]
      %v3615 = vld [vmem:[%s3600 + $0x54] sm:$0xf]
      %v3616 = vld [vmem:[%s3600 + $0x58] sm:$0xf]
      %v3617 = vld [vmem:[%s3600 + $0x60] sm:$0xf]
      %v3618 = vld [vmem:[%s3600 + $0x64] sm:$0xf]
      %v3619 = vld [vmem:[%s3600 + $0x6c] sm:$0xf]
      %v3620 = vld [vmem:[%s3600 + $0x70] sm:$0xf]
      %v3621 = vld [vmem:[%s3600 + $0x78] sm:$0xf]
      %v3622 = vld [vmem:[%s3600 + $0x7c] sm:$0xf]
      %v3623 = vld [vmem:[%s3600 + $0x84] sm:$0xf]
      %v3624 = vld [vmem:[%s3600 + $0x88] sm:$0xf]
      %v3625 = vld [vmem:[%s3600 + $0x90] sm:$0xf]
      %v3626 = vld [vmem:[%s3600 + $0x94] sm:$0xf]
      %v3627 = vld [vmem:[%s3600 + $0x9c] sm:$0xf]
      %v3628 = vld [vmem:[%s3600 + $0xa0] sm:$0xf]
      %v3629 = vld [vmem:[%s3600 + $0xa8] sm:$0xf]
      %v3630 = vld [vmem:[%s3600 + $0xac] sm:$0xf]
      %v3631 = vld [vmem:[%s3600 + $0xb4] sm:$0xf]
      %v3632 = vld [vmem:[%s3600 + $0xb8] sm:$0xf]
      %v3665 = vunpack.c.l.b16 %v3601
      %v3666 = vunpack.c.l.b16 %v3602
      %v3667 = vunpack.c.l.b16 %v3603
      %v3668 = vunpack.c.l.b16 %v3604
      %v3669 = vunpack.c.l.b16 %v3605
      %v3670 = vunpack.c.l.b16 %v3606
      %v3671 = vunpack.c.l.b16 %v3607
      %v3672 = vunpack.c.l.b16 %v3608
      %v3673 = vunpack.c.l.b16 %v3609
      %v3674 = vunpack.c.l.b16 %v3610
      %v3675 = vunpack.c.l.b16 %v3611
      %v3676 = vunpack.c.l.b16 %v3612
      %v3677 = vunpack.c.l.b16 %v3613
      %v3678 = vunpack.c.l.b16 %v3614
      %v3679 = vunpack.c.l.b16 %v3615
      %v3680 = vunpack.c.l.b16 %v3616
      %v3681 = vunpack.c.l.b16 %v3617
      %v3682 = vunpack.c.l.b16 %v3618
      %v3683 = vunpack.c.l.b16 %v3619
      %v3684 = vunpack.c.l.b16 %v3620
      %v3685 = vunpack.c.l.b16 %v3621
      %v3686 = vunpack.c.l.b16 %v3622
      %v3687 = vunpack.c.l.b16 %v3623
      %v3688 = vunpack.c.l.b16 %v3624
      %v3689 = vunpack.c.l.b16 %v3625
      %v3690 = vunpack.c.l.b16 %v3626
      %v3691 = vunpack.c.l.b16 %v3627
      %v3692 = vunpack.c.l.b16 %v3628
      %v3693 = vunpack.c.l.b16 %v3629
      %v3694 = vunpack.c.l.b16 %v3630
      %v3695 = vunpack.c.l.b16 %v3631
      %v3696 = vunpack.c.l.b16 %v3632
      %v3697 = vpack.c.b16 %v3666, %v3665
      %v3698 = vpack.c.b16 %v3668, %v3667
      %v3699 = vpack.c.b16 %v3670, %v3669
      %v3700 = vpack.c.b16 %v3672, %v3671
      %v3701 = vpack.c.b16 %v3674, %v3673
      %v3702 = vpack.c.b16 %v3676, %v3675
      %v3703 = vpack.c.b16 %v3678, %v3677
      %v3704 = vpack.c.b16 %v3680, %v3679
      %v3705 = vpack.c.b16 %v3682, %v3681
      %v3706 = vpack.c.b16 %v3684, %v3683
      %v3707 = vpack.c.b16 %v3686, %v3685
      %v3708 = vpack.c.b16 %v3688, %v3687
      %v3709 = vpack.c.b16 %v3690, %v3689
      %v3710 = vpack.c.b16 %v3692, %v3691
      %v3711 = vpack.c.b16 %v3694, %v3693
      %v3712 = vpack.c.b16 %v3696, %v3695
      %3713 = vrot.lane.b32.xlu0 %v3697, 48
      %v3714 = vpop.permute.xlu0 %3713
      %3715 = vrot.lane.b32.xlu0 %v3698, 48
      %v3716 = vpop.permute.xlu0 %3715
      %3717 = vrot.lane.b32.xlu0 %v3699, 48
      %v3718 = vpop.permute.xlu0 %3717
      %3719 = vrot.lane.b32.xlu0 %v3700, 48
      %v3720 = vpop.permute.xlu0 %3719
      %3721 = vrot.lane.b32.xlu0 %v3701, 48
      %v3722 = vpop.permute.xlu0 %3721
      %3723 = vrot.lane.b32.xlu0 %v3702, 48
      %v3724 = vpop.permute.xlu0 %3723
      %3725 = vrot.lane.b32.xlu0 %v3703, 48
      %v3726 = vpop.permute.xlu0 %3725
      %3727 = vrot.lane.b32.xlu0 %v3704, 48
      %v3728 = vpop.permute.xlu0 %3727
      %3729 = vrot.lane.b32.xlu0 %v3705, 48
      %v3730 = vpop.permute.xlu0 %3729
      %3731 = vrot.lane.b32.xlu0 %v3706, 48
      %v3732 = vpop.permute.xlu0 %3731
      %3733 = vrot.lane.b32.xlu0 %v3707, 48
      %v3734 = vpop.permute.xlu0 %3733
      %3735 = vrot.lane.b32.xlu0 %v3708, 48
      %v3736 = vpop.permute.xlu0 %3735
      %3737 = vrot.lane.b32.xlu0 %v3709, 48
      %v3738 = vpop.permute.xlu0 %3737
      %3739 = vrot.lane.b32.xlu0 %v3710, 48
      %v3740 = vpop.permute.xlu0 %3739
      %3741 = vrot.lane.b32.xlu0 %v3711, 48
      %v3742 = vpop.permute.xlu0 %3741
      %3743 = vrot.lane.b32.xlu0 %v3712, 48
      %v3744 = vpop.permute.xlu0 %3743
      %vm3761 = vcmask 458112
      %3762 = vst.msk [vmem:[#allocation4] sm:$0xff] %vm3761, %v3714
      %3763 = vst.msk [vmem:[#allocation4 + $0x8] sm:$0xff] %vm3761, %v3716
      %3764 = vst.msk [vmem:[#allocation4 + $0x10] sm:$0xff] %vm3761, %v3718
      %3765 = vst.msk [vmem:[#allocation4 + $0x18] sm:$0xff] %vm3761, %v3720
      %3766 = vst.msk [vmem:[#allocation4 + $0x20] sm:$0xff] %vm3761, %v3722
      %3767 = vst.msk [vmem:[#allocation4 + $0x28] sm:$0xff] %vm3761, %v3724
      %3768 = vst.msk [vmem:[#allocation4 + $0x30] sm:$0xff] %vm3761, %v3726
      %3769 = vst.msk [vmem:[#allocation4 + $0x38] sm:$0xff] %vm3761, %v3728
      %3770 = vst.msk [vmem:[#allocation4 + $0x40] sm:$0xff] %vm3761, %v3730
      %3771 = vst.msk [vmem:[#allocation4 + $0x48] sm:$0xff] %vm3761, %v3732
      %3772 = vst.msk [vmem:[#allocation4 + $0x50] sm:$0xff] %vm3761, %v3734
      %3773 = vst.msk [vmem:[#allocation4 + $0x58] sm:$0xff] %vm3761, %v3736
      %3774 = vst.msk [vmem:[#allocation4 + $0x60] sm:$0xff] %vm3761, %v3738
      %3775 = vst.msk [vmem:[#allocation4 + $0x68] sm:$0xff] %vm3761, %v3740
      %3776 = vst.msk [vmem:[#allocation4 + $0x70] sm:$0xff] %vm3761, %v3742
      %3777 = vst.msk [vmem:[#allocation4 + $0x78] sm:$0xff] %vm3761, %v3744
      %v3778 = vld [vmem:[%s3600] sm:$0xf]
      %v3779 = vld [vmem:[%s3600 + $0x4] sm:$0xf]
      %v3780 = vld [vmem:[%s3600 + $0x8] sm:$0x1]
      %v3781 = vld [vmem:[%s3600 + $0xc] sm:$0xf]
      %v3782 = vld [vmem:[%s3600 + $0x10] sm:$0xf]
      %v3783 = vld [vmem:[%s3600 + $0x14] sm:$0x1]
      %v3784 = vld [vmem:[%s3600 + $0x18] sm:$0xf]
      %v3785 = vld [vmem:[%s3600 + $0x1c] sm:$0xf]
      %v3786 = vld [vmem:[%s3600 + $0x20] sm:$0x1]
      %v3787 = vld [vmem:[%s3600 + $0x24] sm:$0xf]
      %v3788 = vld [vmem:[%s3600 + $0x28] sm:$0xf]
      %v3789 = vld [vmem:[%s3600 + $0x2c] sm:$0x1]
      %v3790 = vld [vmem:[%s3600 + $0x30] sm:$0xf]
      %v3791 = vld [vmem:[%s3600 + $0x34] sm:$0xf]
      %v3792 = vld [vmem:[%s3600 + $0x38] sm:$0x1]
      %v3793 = vld [vmem:[%s3600 + $0x3c] sm:$0xf]
      %v3794 = vld [vmem:[%s3600 + $0x40] sm:$0xf]
      %v3795 = vld [vmem:[%s3600 + $0x44] sm:$0x1]
      %v3796 = vld [vmem:[%s3600 + $0x48] sm:$0xf]
      %v3797 = vld [vmem:[%s3600 + $0x4c] sm:$0xf]
      %v3798 = vld [vmem:[%s3600 + $0x50] sm:$0x1]
      %v3799 = vld [vmem:[%s3600 + $0x54] sm:$0xf]
      %v3800 = vld [vmem:[%s3600 + $0x58] sm:$0xf]
      %v3801 = vld [vmem:[%s3600 + $0x5c] sm:$0x1]
      %v3802 = vld [vmem:[%s3600 + $0x60] sm:$0xf]
      %v3803 = vld [vmem:[%s3600 + $0x64] sm:$0xf]
      %v3804 = vld [vmem:[%s3600 + $0x68] sm:$0x1]
      %v3805 = vld [vmem:[%s3600 + $0x6c] sm:$0xf]
      %v3806 = vld [vmem:[%s3600 + $0x70] sm:$0xf]
      %v3807 = vld [vmem:[%s3600 + $0x74] sm:$0x1]
      %v3808 = vld [vmem:[%s3600 + $0x78] sm:$0xf]
      %v3809 = vld [vmem:[%s3600 + $0x7c] sm:$0xf]
      %v3810 = vld [vmem:[%s3600 + $0x80] sm:$0x1]
      %v3811 = vld [vmem:[%s3600 + $0x84] sm:$0xf]
      %v3812 = vld [vmem:[%s3600 + $0x88] sm:$0xf]
      %v3813 = vld [vmem:[%s3600 + $0x8c] sm:$0x1]
      %v3814 = vld [vmem:[%s3600 + $0x90] sm:$0xf]
      %v3815 = vld [vmem:[%s3600 + $0x94] sm:$0xf]
      %v3816 = vld [vmem:[%s3600 + $0x98] sm:$0x1]
      %v3817 = vld [vmem:[%s3600 + $0x9c] sm:$0xf]
      %v3818 = vld [vmem:[%s3600 + $0xa0] sm:$0xf]
      %v3819 = vld [vmem:[%s3600 + $0xa4] sm:$0x1]
      %v3820 = vld [vmem:[%s3600 + $0xa8] sm:$0xf]
      %v3821 = vld [vmem:[%s3600 + $0xac] sm:$0xf]
      %v3822 = vld [vmem:[%s3600 + $0xb0] sm:$0x1]
      %v3823 = vld [vmem:[%s3600 + $0xb4] sm:$0xf]
      %v3824 = vld [vmem:[%s3600 + $0xb8] sm:$0xf]
      %v3825 = vld [vmem:[%s3600 + $0xbc] sm:$0x1]
      %v3827 = vshrl.u32 %v3778, 16
      %v3829 = vrot.slane %v3827, 4
      %v3830 = vshll.u32 %v3778, 16
      %v3832 = vrot.slane %v3830, 5
      %v3833 = vor.u32 %v3829, %v3832
      %v3834 = vrot.slane %v3833, 4
      %v3836 = vshll.u32 %v3779, 16
      %v3838 = vrot.slane %v3836, 5
      %v3839 = vsel %vm1735, %v3834, %v3838
      %v3840 = vshrl.u32 %v3779, 16
      %v3842 = vrot.slane %v3840, 4
      %v3843 = vor.u32 %v3842, %v3838
      %v3844 = vrot.slane %v3843, 4
      %v3846 = vshll.u32 %v3780, 16
      %v3848 = vrot.slane %v3846, 5
      %v3849 = vsel %vm1735, %v3844, %v3848
      %v3851 = vshrl.u32 %v3781, 16
      %v3853 = vrot.slane %v3851, 4
      %v3854 = vshll.u32 %v3781, 16
      %v3856 = vrot.slane %v3854, 5
      %v3857 = vor.u32 %v3853, %v3856
      %v3858 = vrot.slane %v3857, 4
      %v3860 = vshll.u32 %v3782, 16
      %v3862 = vrot.slane %v3860, 5
      %v3863 = vsel %vm1735, %v3858, %v3862
      %v3864 = vshrl.u32 %v3782, 16
      %v3866 = vrot.slane %v3864, 4
      %v3867 = vor.u32 %v3866, %v3862
      %v3868 = vrot.slane %v3867, 4
      %v3870 = vshll.u32 %v3783, 16
      %v3872 = vrot.slane %v3870, 5
      %v3873 = vsel %vm1735, %v3868, %v3872
      %v3875 = vshrl.u32 %v3784, 16
      %v3877 = vrot.slane %v3875, 4
      %v3878 = vshll.u32 %v3784, 16
      %v3880 = vrot.slane %v3878, 5
      %v3881 = vor.u32 %v3877, %v3880
      %v3882 = vrot.slane %v3881, 4
      %v3884 = vshll.u32 %v3785, 16
      %v3886 = vrot.slane %v3884, 5
      %v3887 = vsel %vm1735, %v3882, %v3886
      %v3888 = vshrl.u32 %v3785, 16
      %v3890 = vrot.slane %v3888, 4
      %v3891 = vor.u32 %v3890, %v3886
      %v3892 = vrot.slane %v3891, 4
      %v3894 = vshll.u32 %v3786, 16
      %v3896 = vrot.slane %v3894, 5
      %v3897 = vsel %vm1735, %v3892, %v3896
      %v3899 = vshrl.u32 %v3787, 16
      %v3901 = vrot.slane %v3899, 4
      %v3902 = vshll.u32 %v3787, 16
      %v3904 = vrot.slane %v3902, 5
      %v3905 = vor.u32 %v3901, %v3904
      %v3906 = vrot.slane %v3905, 4
      %v3908 = vshll.u32 %v3788, 16
      %v3910 = vrot.slane %v3908, 5
      %v3911 = vsel %vm1735, %v3906, %v3910
      %v3912 = vshrl.u32 %v3788, 16
      %v3914 = vrot.slane %v3912, 4
      %v3915 = vor.u32 %v3914, %v3910
      %v3916 = vrot.slane %v3915, 4
      %v3918 = vshll.u32 %v3789, 16
      %v3920 = vrot.slane %v3918, 5
      %v3921 = vsel %vm1735, %v3916, %v3920
      %v3923 = vshrl.u32 %v3790, 16
      %v3925 = vrot.slane %v3923, 4
      %v3926 = vshll.u32 %v3790, 16
      %v3928 = vrot.slane %v3926, 5
      %v3929 = vor.u32 %v3925, %v3928
      %v3930 = vrot.slane %v3929, 4
      %v3932 = vshll.u32 %v3791, 16
      %v3934 = vrot.slane %v3932, 5
      %v3935 = vsel %vm1735, %v3930, %v3934
      %v3936 = vshrl.u32 %v3791, 16
      %v3938 = vrot.slane %v3936, 4
      %v3939 = vor.u32 %v3938, %v3934
      %v3940 = vrot.slane %v3939, 4
      %v3942 = vshll.u32 %v3792, 16
      %v3944 = vrot.slane %v3942, 5
      %v3945 = vsel %vm1735, %v3940, %v3944
      %v3947 = vshrl.u32 %v3793, 16
      %v3949 = vrot.slane %v3947, 4
      %v3950 = vshll.u32 %v3793, 16
      %v3952 = vrot.slane %v3950, 5
      %v3953 = vor.u32 %v3949, %v3952
      %v3954 = vrot.slane %v3953, 4
      %v3956 = vshll.u32 %v3794, 16
      %v3958 = vrot.slane %v3956, 5
      %v3959 = vsel %vm1735, %v3954, %v3958
      %v3960 = vshrl.u32 %v3794, 16
      %v3962 = vrot.slane %v3960, 4
      %v3963 = vor.u32 %v3962, %v3958
      %v3964 = vrot.slane %v3963, 4
      %v3966 = vshll.u32 %v3795, 16
      %v3968 = vrot.slane %v3966, 5
      %v3969 = vsel %vm1735, %v3964, %v3968
      %v3971 = vshrl.u32 %v3796, 16
      %v3973 = vrot.slane %v3971, 4
      %v3974 = vshll.u32 %v3796, 16
      %v3976 = vrot.slane %v3974, 5
      %v3977 = vor.u32 %v3973, %v3976
      %v3978 = vrot.slane %v3977, 4
      %v3980 = vshll.u32 %v3797, 16
      %v3982 = vrot.slane %v3980, 5
      %v3983 = vsel %vm1735, %v3978, %v3982
      %v3984 = vshrl.u32 %v3797, 16
      %v3986 = vrot.slane %v3984, 4
      %v3987 = vor.u32 %v3986, %v3982
      %v3988 = vrot.slane %v3987, 4
      %v3990 = vshll.u32 %v3798, 16
      %v3992 = vrot.slane %v3990, 5
      %v3993 = vsel %vm1735, %v3988, %v3992
      %v3995 = vshrl.u32 %v3799, 16
      %v3997 = vrot.slane %v3995, 4
      %v3998 = vshll.u32 %v3799, 16
      %v4000 = vrot.slane %v3998, 5
      %v4001 = vor.u32 %v3997, %v4000
      %v4002 = vrot.slane %v4001, 4
      %v4004 = vshll.u32 %v3800, 16
      %v4006 = vrot.slane %v4004, 5
      %v4007 = vsel %vm1735, %v4002, %v4006
      %v4008 = vshrl.u32 %v3800, 16
      %v4010 = vrot.slane %v4008, 4
      %v4011 = vor.u32 %v4010, %v4006
      %v4012 = vrot.slane %v4011, 4
      %v4014 = vshll.u32 %v3801, 16
      %v4016 = vrot.slane %v4014, 5
      %v4017 = vsel %vm1735, %v4012, %v4016
      %v4019 = vshrl.u32 %v3802, 16
      %v4021 = vrot.slane %v4019, 4
      %v4022 = vshll.u32 %v3802, 16
      %v4024 = vrot.slane %v4022, 5
      %v4025 = vor.u32 %v4021, %v4024
      %v4026 = vrot.slane %v4025, 4
      %v4028 = vshll.u32 %v3803, 16
      %v4030 = vrot.slane %v4028, 5
      %v4031 = vsel %vm1735, %v4026, %v4030
      %v4032 = vshrl.u32 %v3803, 16
      %v4034 = vrot.slane %v4032, 4
      %v4035 = vor.u32 %v4034, %v4030
      %v4036 = vrot.slane %v4035, 4
      %v4038 = vshll.u32 %v3804, 16
      %v4040 = vrot.slane %v4038, 5
      %v4041 = vsel %vm1735, %v4036, %v4040
      %v4043 = vshrl.u32 %v3805, 16
      %v4045 = vrot.slane %v4043, 4
      %v4046 = vshll.u32 %v3805, 16
      %v4048 = vrot.slane %v4046, 5
      %v4049 = vor.u32 %v4045, %v4048
      %v4050 = vrot.slane %v4049, 4
      %v4052 = vshll.u32 %v3806, 16
      %v4054 = vrot.slane %v4052, 5
      %v4055 = vsel %vm1735, %v4050, %v4054
      %v4056 = vshrl.u32 %v3806, 16
      %v4058 = vrot.slane %v4056, 4
      %v4059 = vor.u32 %v4058, %v4054
      %v4060 = vrot.slane %v4059, 4
      %v4062 = vshll.u32 %v3807, 16
      %v4064 = vrot.slane %v4062, 5
      %v4065 = vsel %vm1735, %v4060, %v4064
      %v4067 = vshrl.u32 %v3808, 16
      %v4069 = vrot.slane %v4067, 4
      %v4070 = vshll.u32 %v3808, 16
      %v4072 = vrot.slane %v4070, 5
      %v4073 = vor.u32 %v4069, %v4072
      %v4074 = vrot.slane %v4073, 4
      %v4076 = vshll.u32 %v3809, 16
      %v4078 = vrot.slane %v4076, 5
      %v4079 = vsel %vm1735, %v4074, %v4078
      %v4080 = vshrl.u32 %v3809, 16
      %v4082 = vrot.slane %v4080, 4
      %v4083 = vor.u32 %v4082, %v4078
      %v4084 = vrot.slane %v4083, 4
      %v4086 = vshll.u32 %v3810, 16
      %v4088 = vrot.slane %v4086, 5
      %v4089 = vsel %vm1735, %v4084, %v4088
      %v4091 = vshrl.u32 %v3811, 16
      %v4093 = vrot.slane %v4091, 4
      %v4094 = vshll.u32 %v3811, 16
      %v4096 = vrot.slane %v4094, 5
      %v4097 = vor.u32 %v4093, %v4096
      %v4098 = vrot.slane %v4097, 4
      %v4100 = vshll.u32 %v3812, 16
      %v4102 = vrot.slane %v4100, 5
      %v4103 = vsel %vm1735, %v4098, %v4102
      %v4104 = vshrl.u32 %v3812, 16
      %v4106 = vrot.slane %v4104, 4
      %v4107 = vor.u32 %v4106, %v4102
      %v4108 = vrot.slane %v4107, 4
      %v4110 = vshll.u32 %v3813, 16
      %v4112 = vrot.slane %v4110, 5
      %v4113 = vsel %vm1735, %v4108, %v4112
      %v4115 = vshrl.u32 %v3814, 16
      %v4117 = vrot.slane %v4115, 4
      %v4118 = vshll.u32 %v3814, 16
      %v4120 = vrot.slane %v4118, 5
      %v4121 = vor.u32 %v4117, %v4120
      %v4122 = vrot.slane %v4121, 4
      %v4124 = vshll.u32 %v3815, 16
      %v4126 = vrot.slane %v4124, 5
      %v4127 = vsel %vm1735, %v4122, %v4126
      %v4128 = vshrl.u32 %v3815, 16
      %v4130 = vrot.slane %v4128, 4
      %v4131 = vor.u32 %v4130, %v4126
      %v4132 = vrot.slane %v4131, 4
      %v4134 = vshll.u32 %v3816, 16
      %v4136 = vrot.slane %v4134, 5
      %v4137 = vsel %vm1735, %v4132, %v4136
      %v4139 = vshrl.u32 %v3817, 16
      %v4141 = vrot.slane %v4139, 4
      %v4142 = vshll.u32 %v3817, 16
      %v4144 = vrot.slane %v4142, 5
      %v4145 = vor.u32 %v4141, %v4144
      %v4146 = vrot.slane %v4145, 4
      %v4148 = vshll.u32 %v3818, 16
      %v4150 = vrot.slane %v4148, 5
      %v4151 = vsel %vm1735, %v4146, %v4150
      %v4152 = vshrl.u32 %v3818, 16
      %v4154 = vrot.slane %v4152, 4
      %v4155 = vor.u32 %v4154, %v4150
      %v4156 = vrot.slane %v4155, 4
      %v4158 = vshll.u32 %v3819, 16
      %v4160 = vrot.slane %v4158, 5
      %v4161 = vsel %vm1735, %v4156, %v4160
      %v4163 = vshrl.u32 %v3820, 16
      %v4165 = vrot.slane %v4163, 4
      %v4166 = vshll.u32 %v3820, 16
      %v4168 = vrot.slane %v4166, 5
      %v4169 = vor.u32 %v4165, %v4168
      %v4170 = vrot.slane %v4169, 4
      %v4172 = vshll.u32 %v3821, 16
      %v4174 = vrot.slane %v4172, 5
      %v4175 = vsel %vm1735, %v4170, %v4174
      %v4176 = vshrl.u32 %v3821, 16
      %v4178 = vrot.slane %v4176, 4
      %v4179 = vor.u32 %v4178, %v4174
      %v4180 = vrot.slane %v4179, 4
      %v4182 = vshll.u32 %v3822, 16
      %v4184 = vrot.slane %v4182, 5
      %v4185 = vsel %vm1735, %v4180, %v4184
      %v4187 = vshrl.u32 %v3823, 16
      %v4189 = vrot.slane %v4187, 4
      %v4190 = vshll.u32 %v3823, 16
      %v4192 = vrot.slane %v4190, 5
      %v4193 = vor.u32 %v4189, %v4192
      %v4194 = vrot.slane %v4193, 4
      %v4196 = vshll.u32 %v3824, 16
      %v4198 = vrot.slane %v4196, 5
      %v4199 = vsel %vm1735, %v4194, %v4198
      %v4200 = vshrl.u32 %v3824, 16
      %v4202 = vrot.slane %v4200, 4
      %v4203 = vor.u32 %v4202, %v4198
      %v4204 = vrot.slane %v4203, 4
      %v4206 = vshll.u32 %v3825, 16
      %v4208 = vrot.slane %v4206, 5
      %v4209 = vsel %vm1735, %v4204, %v4208
      %v4210 = vunpack.c.l.b16 %v3839
      %v4211 = vunpack.c.l.b16 %v3849
      %v4212 = vunpack.c.l.b16 %v3863
      %v4213 = vunpack.c.l.b16 %v3873
      %v4214 = vunpack.c.l.b16 %v3887
      %v4215 = vunpack.c.l.b16 %v3897
      %v4216 = vunpack.c.l.b16 %v3911
      %v4217 = vunpack.c.l.b16 %v3921
      %v4218 = vunpack.c.l.b16 %v3935
      %v4219 = vunpack.c.l.b16 %v3945
      %v4220 = vunpack.c.l.b16 %v3959
      %v4221 = vunpack.c.l.b16 %v3969
      %v4222 = vunpack.c.l.b16 %v3983
      %v4223 = vunpack.c.l.b16 %v3993
      %v4224 = vunpack.c.l.b16 %v4007
      %v4225 = vunpack.c.l.b16 %v4017
      %v4226 = vunpack.c.l.b16 %v4031
      %v4227 = vunpack.c.l.b16 %v4041
      %v4228 = vunpack.c.l.b16 %v4055
      %v4229 = vunpack.c.l.b16 %v4065
      %v4230 = vunpack.c.l.b16 %v4079
      %v4231 = vunpack.c.l.b16 %v4089
      %v4232 = vunpack.c.l.b16 %v4103
      %v4233 = vunpack.c.l.b16 %v4113
      %v4234 = vunpack.c.l.b16 %v4127
      %v4235 = vunpack.c.l.b16 %v4137
      %v4236 = vunpack.c.l.b16 %v4151
      %v4237 = vunpack.c.l.b16 %v4161
      %v4238 = vunpack.c.l.b16 %v4175
      %v4239 = vunpack.c.l.b16 %v4185
      %v4240 = vunpack.c.l.b16 %v4199
      %v4241 = vunpack.c.l.b16 %v4209
      %v4242 = vpack.c.b16 %v4211, %v4210
      %v4243 = vpack.c.b16 %v4213, %v4212
      %v4244 = vpack.c.b16 %v4215, %v4214
      %v4245 = vpack.c.b16 %v4217, %v4216
      %v4246 = vpack.c.b16 %v4219, %v4218
      %v4247 = vpack.c.b16 %v4221, %v4220
      %v4248 = vpack.c.b16 %v4223, %v4222
      %v4249 = vpack.c.b16 %v4225, %v4224
      %v4250 = vpack.c.b16 %v4227, %v4226
      %v4251 = vpack.c.b16 %v4229, %v4228
      %v4252 = vpack.c.b16 %v4231, %v4230
      %v4253 = vpack.c.b16 %v4233, %v4232
      %v4254 = vpack.c.b16 %v4235, %v4234
      %v4255 = vpack.c.b16 %v4237, %v4236
      %v4256 = vpack.c.b16 %v4239, %v4238
      %v4257 = vpack.c.b16 %v4241, %v4240
      %4258 = vrot.lane.b32.xlu0 %v4242, 56
      %v4259 = vpop.permute.xlu0 %4258
      %4260 = vrot.lane.b32.xlu0 %v4243, 56
      %v4261 = vpop.permute.xlu0 %4260
      %4262 = vrot.lane.b32.xlu0 %v4244, 56
      %v4263 = vpop.permute.xlu0 %4262
      %4264 = vrot.lane.b32.xlu0 %v4245, 56
      %v4265 = vpop.permute.xlu0 %4264
      %4266 = vrot.lane.b32.xlu0 %v4246, 56
      %v4267 = vpop.permute.xlu0 %4266
      %4268 = vrot.lane.b32.xlu0 %v4247, 56
      %v4269 = vpop.permute.xlu0 %4268
      %4270 = vrot.lane.b32.xlu0 %v4248, 56
      %v4271 = vpop.permute.xlu0 %4270
      %4272 = vrot.lane.b32.xlu0 %v4249, 56
      %v4273 = vpop.permute.xlu0 %4272
      %4274 = vrot.lane.b32.xlu0 %v4250, 56
      %v4275 = vpop.permute.xlu0 %4274
      %4276 = vrot.lane.b32.xlu0 %v4251, 56
      %v4277 = vpop.permute.xlu0 %4276
      %4278 = vrot.lane.b32.xlu0 %v4252, 56
      %v4279 = vpop.permute.xlu0 %4278
      %4280 = vrot.lane.b32.xlu0 %v4253, 56
      %v4281 = vpop.permute.xlu0 %4280
      %4282 = vrot.lane.b32.xlu0 %v4254, 56
      %v4283 = vpop.permute.xlu0 %4282
      %4284 = vrot.lane.b32.xlu0 %v4255, 56
      %v4285 = vpop.permute.xlu0 %4284
      %4286 = vrot.lane.b32.xlu0 %v4256, 56
      %v4287 = vpop.permute.xlu0 %4286
      %4288 = vrot.lane.b32.xlu0 %v4257, 56
      %v4289 = vpop.permute.xlu0 %4288
      %vm4306 = vcmask 523712
      %4307 = vst.msk [vmem:[#allocation4] sm:$0xff] %vm4306, %v4259
      %4308 = vst.msk [vmem:[#allocation4 + $0x8] sm:$0xff] %vm4306, %v4261
      %4309 = vst.msk [vmem:[#allocation4 + $0x10] sm:$0xff] %vm4306, %v4263
      %4310 = vst.msk [vmem:[#allocation4 + $0x18] sm:$0xff] %vm4306, %v4265
      %4311 = vst.msk [vmem:[#allocation4 + $0x20] sm:$0xff] %vm4306, %v4267
      %4312 = vst.msk [vmem:[#allocation4 + $0x28] sm:$0xff] %vm4306, %v4269
      %4313 = vst.msk [vmem:[#allocation4 + $0x30] sm:$0xff] %vm4306, %v4271
      %4314 = vst.msk [vmem:[#allocation4 + $0x38] sm:$0xff] %vm4306, %v4273
      %4315 = vst.msk [vmem:[#allocation4 + $0x40] sm:$0xff] %vm4306, %v4275
      %4316 = vst.msk [vmem:[#allocation4 + $0x48] sm:$0xff] %vm4306, %v4277
      %4317 = vst.msk [vmem:[#allocation4 + $0x50] sm:$0xff] %vm4306, %v4279
      %4318 = vst.msk [vmem:[#allocation4 + $0x58] sm:$0xff] %vm4306, %v4281
      %4319 = vst.msk [vmem:[#allocation4 + $0x60] sm:$0xff] %vm4306, %v4283
      %4320 = vst.msk [vmem:[#allocation4 + $0x68] sm:$0xff] %vm4306, %v4285
      %4321 = vst.msk [vmem:[#allocation4 + $0x70] sm:$0xff] %vm4306, %v4287
      %4322 = vst.msk [vmem:[#allocation4 + $0x78] sm:$0xff] %vm4306, %v4289
      %v4323 = vld [vmem:[%s3600] sm:$0xe]
      %v4324 = vld [vmem:[%s3600 + $0x4] sm:$0xf]
      %v4325 = vld [vmem:[%s3600 + $0x8] sm:$0x1]
      %v4326 = vld [vmem:[%s3600 + $0xc] sm:$0xe]
      %v4327 = vld [vmem:[%s3600 + $0x10] sm:$0xf]
      %v4328 = vld [vmem:[%s3600 + $0x14] sm:$0x1]
      %v4329 = vld [vmem:[%s3600 + $0x18] sm:$0xe]
      %v4330 = vld [vmem:[%s3600 + $0x1c] sm:$0xf]
      %v4331 = vld [vmem:[%s3600 + $0x20] sm:$0x1]
      %v4332 = vld [vmem:[%s3600 + $0x24] sm:$0xe]
      %v4333 = vld [vmem:[%s3600 + $0x28] sm:$0xf]
      %v4334 = vld [vmem:[%s3600 + $0x2c] sm:$0x1]
      %v4335 = vld [vmem:[%s3600 + $0x30] sm:$0xe]
      %v4336 = vld [vmem:[%s3600 + $0x34] sm:$0xf]
      %v4337 = vld [vmem:[%s3600 + $0x38] sm:$0x1]
      %v4338 = vld [vmem:[%s3600 + $0x3c] sm:$0xe]
      %v4339 = vld [vmem:[%s3600 + $0x40] sm:$0xf]
      %v4340 = vld [vmem:[%s3600 + $0x44] sm:$0x1]
      %v4341 = vld [vmem:[%s3600 + $0x48] sm:$0xe]
      %v4342 = vld [vmem:[%s3600 + $0x4c] sm:$0xf]
      %v4343 = vld [vmem:[%s3600 + $0x50] sm:$0x1]
      %v4344 = vld [vmem:[%s3600 + $0x54] sm:$0xe]
      %v4345 = vld [vmem:[%s3600 + $0x58] sm:$0xf]
      %v4346 = vld [vmem:[%s3600 + $0x5c] sm:$0x1]
      %v4347 = vld [vmem:[%s3600 + $0x60] sm:$0xe]
      %v4348 = vld [vmem:[%s3600 + $0x64] sm:$0xf]
      %v4349 = vld [vmem:[%s3600 + $0x68] sm:$0x1]
      %v4350 = vld [vmem:[%s3600 + $0x6c] sm:$0xe]
      %v4351 = vld [vmem:[%s3600 + $0x70] sm:$0xf]
      %v4352 = vld [vmem:[%s3600 + $0x74] sm:$0x1]
      %v4353 = vld [vmem:[%s3600 + $0x78] sm:$0xe]
      %v4354 = vld [vmem:[%s3600 + $0x7c] sm:$0xf]
      %v4355 = vld [vmem:[%s3600 + $0x80] sm:$0x1]
      %v4356 = vld [vmem:[%s3600 + $0x84] sm:$0xe]
      %v4357 = vld [vmem:[%s3600 + $0x88] sm:$0xf]
      %v4358 = vld [vmem:[%s3600 + $0x8c] sm:$0x1]
      %v4359 = vld [vmem:[%s3600 + $0x90] sm:$0xe]
      %v4360 = vld [vmem:[%s3600 + $0x94] sm:$0xf]
      %v4361 = vld [vmem:[%s3600 + $0x98] sm:$0x1]
      %v4362 = vld [vmem:[%s3600 + $0x9c] sm:$0xe]
      %v4363 = vld [vmem:[%s3600 + $0xa0] sm:$0xf]
      %v4364 = vld [vmem:[%s3600 + $0xa4] sm:$0x1]
      %v4365 = vld [vmem:[%s3600 + $0xa8] sm:$0xe]
      %v4366 = vld [vmem:[%s3600 + $0xac] sm:$0xf]
      %v4367 = vld [vmem:[%s3600 + $0xb0] sm:$0x1]
      %v4368 = vld [vmem:[%s3600 + $0xb4] sm:$0xe]
      %v4369 = vld [vmem:[%s3600 + $0xb8] sm:$0xf]
      %v4370 = vld [vmem:[%s3600 + $0xbc] sm:$0x1]
      %v4419 = vrot.slane %v4323, 5
      %v4420 = vrot.slane %v4419, 4
      %v4421 = vrot.slane %v4324, 5
      %v4422 = vsel %vm2331, %v4420, %v4421
      %v4423 = vrot.slane %v4421, 4
      %v4424 = vrot.slane %v4325, 5
      %v4425 = vsel %vm2331, %v4423, %v4424
      %v4426 = vrot.slane %v4326, 5
      %v4427 = vrot.slane %v4426, 4
      %v4428 = vrot.slane %v4327, 5
      %v4429 = vsel %vm2331, %v4427, %v4428
      %v4430 = vrot.slane %v4428, 4
      %v4431 = vrot.slane %v4328, 5
      %v4432 = vsel %vm2331, %v4430, %v4431
      %v4433 = vrot.slane %v4329, 5
      %v4434 = vrot.slane %v4433, 4
      %v4435 = vrot.slane %v4330, 5
      %v4436 = vsel %vm2331, %v4434, %v4435
      %v4437 = vrot.slane %v4435, 4
      %v4438 = vrot.slane %v4331, 5
      %v4439 = vsel %vm2331, %v4437, %v4438
      %v4440 = vrot.slane %v4332, 5
      %v4441 = vrot.slane %v4440, 4
      %v4442 = vrot.slane %v4333, 5
      %v4443 = vsel %vm2331, %v4441, %v4442
      %v4444 = vrot.slane %v4442, 4
      %v4445 = vrot.slane %v4334, 5
      %v4446 = vsel %vm2331, %v4444, %v4445
      %v4447 = vrot.slane %v4335, 5
      %v4448 = vrot.slane %v4447, 4
      %v4449 = vrot.slane %v4336, 5
      %v4450 = vsel %vm2331, %v4448, %v4449
      %v4451 = vrot.slane %v4449, 4
      %v4452 = vrot.slane %v4337, 5
      %v4453 = vsel %vm2331, %v4451, %v4452
      %v4454 = vrot.slane %v4338, 5
      %v4455 = vrot.slane %v4454, 4
      %v4456 = vrot.slane %v4339, 5
      %v4457 = vsel %vm2331, %v4455, %v4456
      %v4458 = vrot.slane %v4456, 4
      %v4459 = vrot.slane %v4340, 5
      %v4460 = vsel %vm2331, %v4458, %v4459
      %v4461 = vrot.slane %v4341, 5
      %v4462 = vrot.slane %v4461, 4
      %v4463 = vrot.slane %v4342, 5
      %v4464 = vsel %vm2331, %v4462, %v4463
      %v4465 = vrot.slane %v4463, 4
      %v4466 = vrot.slane %v4343, 5
      %v4467 = vsel %vm2331, %v4465, %v4466
      %v4468 = vrot.slane %v4344, 5
      %v4469 = vrot.slane %v4468, 4
      %v4470 = vrot.slane %v4345, 5
      %v4471 = vsel %vm2331, %v4469, %v4470
      %v4472 = vrot.slane %v4470, 4
      %v4473 = vrot.slane %v4346, 5
      %v4474 = vsel %vm2331, %v4472, %v4473
      %v4475 = vrot.slane %v4347, 5
      %v4476 = vrot.slane %v4475, 4
      %v4477 = vrot.slane %v4348, 5
      %v4478 = vsel %vm2331, %v4476, %v4477
      %v4479 = vrot.slane %v4477, 4
      %v4480 = vrot.slane %v4349, 5
      %v4481 = vsel %vm2331, %v4479, %v4480
      %v4482 = vrot.slane %v4350, 5
      %v4483 = vrot.slane %v4482, 4
      %v4484 = vrot.slane %v4351, 5
      %v4485 = vsel %vm2331, %v4483, %v4484
      %v4486 = vrot.slane %v4484, 4
      %v4487 = vrot.slane %v4352, 5
      %v4488 = vsel %vm2331, %v4486, %v4487
      %v4489 = vrot.slane %v4353, 5
      %v4490 = vrot.slane %v4489, 4
      %v4491 = vrot.slane %v4354, 5
      %v4492 = vsel %vm2331, %v4490, %v4491
      %v4493 = vrot.slane %v4491, 4
      %v4494 = vrot.slane %v4355, 5
      %v4495 = vsel %vm2331, %v4493, %v4494
      %v4496 = vrot.slane %v4356, 5
      %v4497 = vrot.slane %v4496, 4
      %v4498 = vrot.slane %v4357, 5
      %v4499 = vsel %vm2331, %v4497, %v4498
      %v4500 = vrot.slane %v4498, 4
      %v4501 = vrot.slane %v4358, 5
      %v4502 = vsel %vm2331, %v4500, %v4501
      %v4503 = vrot.slane %v4359, 5
      %v4504 = vrot.slane %v4503, 4
      %v4505 = vrot.slane %v4360, 5
      %v4506 = vsel %vm2331, %v4504, %v4505
      %v4507 = vrot.slane %v4505, 4
      %v4508 = vrot.slane %v4361, 5
      %v4509 = vsel %vm2331, %v4507, %v4508
      %v4510 = vrot.slane %v4362, 5
      %v4511 = vrot.slane %v4510, 4
      %v4512 = vrot.slane %v4363, 5
      %v4513 = vsel %vm2331, %v4511, %v4512
      %v4514 = vrot.slane %v4512, 4
      %v4515 = vrot.slane %v4364, 5
      %v4516 = vsel %vm2331, %v4514, %v4515
      %v4517 = vrot.slane %v4365, 5
      %v4518 = vrot.slane %v4517, 4
      %v4519 = vrot.slane %v4366, 5
      %v4520 = vsel %vm2331, %v4518, %v4519
      %v4521 = vrot.slane %v4519, 4
      %v4522 = vrot.slane %v4367, 5
      %v4523 = vsel %vm2331, %v4521, %v4522
      %v4524 = vrot.slane %v4368, 5
      %v4525 = vrot.slane %v4524, 4
      %v4526 = vrot.slane %v4369, 5
      %v4527 = vsel %vm2331, %v4525, %v4526
      %v4528 = vrot.slane %v4526, 4
      %v4529 = vrot.slane %v4370, 5
      %v4530 = vsel %vm2331, %v4528, %v4529
      %v4531 = vunpack.c.l.b16 %v4422
      %v4532 = vunpack.c.l.b16 %v4425
      %v4533 = vunpack.c.l.b16 %v4429
      %v4534 = vunpack.c.l.b16 %v4432
      %v4535 = vunpack.c.l.b16 %v4436
      %v4536 = vunpack.c.l.b16 %v4439
      %v4537 = vunpack.c.l.b16 %v4443
      %v4538 = vunpack.c.l.b16 %v4446
      %v4539 = vunpack.c.l.b16 %v4450
      %v4540 = vunpack.c.l.b16 %v4453
      %v4541 = vunpack.c.l.b16 %v4457
      %v4542 = vunpack.c.l.b16 %v4460
      %v4543 = vunpack.c.l.b16 %v4464
      %v4544 = vunpack.c.l.b16 %v4467
      %v4545 = vunpack.c.l.b16 %v4471
      %v4546 = vunpack.c.l.b16 %v4474
      %v4547 = vunpack.c.l.b16 %v4478
      %v4548 = vunpack.c.l.b16 %v4481
      %v4549 = vunpack.c.l.b16 %v4485
      %v4550 = vunpack.c.l.b16 %v4488
      %v4551 = vunpack.c.l.b16 %v4492
      %v4552 = vunpack.c.l.b16 %v4495
      %v4553 = vunpack.c.l.b16 %v4499
      %v4554 = vunpack.c.l.b16 %v4502
      %v4555 = vunpack.c.l.b16 %v4506
      %v4556 = vunpack.c.l.b16 %v4509
      %v4557 = vunpack.c.l.b16 %v4513
      %v4558 = vunpack.c.l.b16 %v4516
      %v4559 = vunpack.c.l.b16 %v4520
      %v4560 = vunpack.c.l.b16 %v4523
      %v4561 = vunpack.c.l.b16 %v4527
      %v4562 = vunpack.c.l.b16 %v4530
      %v4563 = vpack.c.b16 %v4532, %v4531
      %v4564 = vpack.c.b16 %v4534, %v4533
      %v4565 = vpack.c.b16 %v4536, %v4535
      %v4566 = vpack.c.b16 %v4538, %v4537
      %v4567 = vpack.c.b16 %v4540, %v4539
      %v4568 = vpack.c.b16 %v4542, %v4541
      %v4569 = vpack.c.b16 %v4544, %v4543
      %v4570 = vpack.c.b16 %v4546, %v4545
      %v4571 = vpack.c.b16 %v4548, %v4547
      %v4572 = vpack.c.b16 %v4550, %v4549
      %v4573 = vpack.c.b16 %v4552, %v4551
      %v4574 = vpack.c.b16 %v4554, %v4553
      %v4575 = vpack.c.b16 %v4556, %v4555
      %v4576 = vpack.c.b16 %v4558, %v4557
      %v4577 = vpack.c.b16 %v4560, %v4559
      %v4578 = vpack.c.b16 %v4562, %v4561
      %4579 = vrot.lane.b32.xlu0 %v4563, 64
      %v4580 = vpop.permute.xlu0 %4579
      %4581 = vrot.lane.b32.xlu0 %v4564, 64
      %v4582 = vpop.permute.xlu0 %4581
      %4583 = vrot.lane.b32.xlu0 %v4565, 64
      %v4584 = vpop.permute.xlu0 %4583
      %4585 = vrot.lane.b32.xlu0 %v4566, 64
      %v4586 = vpop.permute.xlu0 %4585
      %4587 = vrot.lane.b32.xlu0 %v4567, 64
      %v4588 = vpop.permute.xlu0 %4587
      %4589 = vrot.lane.b32.xlu0 %v4568, 64
      %v4590 = vpop.permute.xlu0 %4589
      %4591 = vrot.lane.b32.xlu0 %v4569, 64
      %v4592 = vpop.permute.xlu0 %4591
      %4593 = vrot.lane.b32.xlu0 %v4570, 64
      %v4594 = vpop.permute.xlu0 %4593
      %4595 = vrot.lane.b32.xlu0 %v4571, 64
      %v4596 = vpop.permute.xlu0 %4595
      %4597 = vrot.lane.b32.xlu0 %v4572, 64
      %v4598 = vpop.permute.xlu0 %4597
      %4599 = vrot.lane.b32.xlu0 %v4573, 64
      %v4600 = vpop.permute.xlu0 %4599
      %4601 = vrot.lane.b32.xlu0 %v4574, 64
      %v4602 = vpop.permute.xlu0 %4601
      %4603 = vrot.lane.b32.xlu0 %v4575, 64
      %v4604 = vpop.permute.xlu0 %4603
      %4605 = vrot.lane.b32.xlu0 %v4576, 64
      %v4606 = vpop.permute.xlu0 %4605
      %4607 = vrot.lane.b32.xlu0 %v4577, 64
      %v4608 = vpop.permute.xlu0 %4607
      %4609 = vrot.lane.b32.xlu0 %v4578, 64
      %v4610 = vpop.permute.xlu0 %4609
      %vm4627 = vcmask 589312
      %4628 = vst.msk [vmem:[#allocation4] sm:$0xff] %vm4627, %v4580
      %4629 = vst.msk [vmem:[#allocation4 + $0x8] sm:$0xff] %vm4627, %v4582
      %4630 = vst.msk [vmem:[#allocation4 + $0x10] sm:$0xff] %vm4627, %v4584
      %4631 = vst.msk [vmem:[#allocation4 + $0x18] sm:$0xff] %vm4627, %v4586
      %4632 = vst.msk [vmem:[#allocation4 + $0x20] sm:$0xff] %vm4627, %v4588
      %4633 = vst.msk [vmem:[#allocation4 + $0x28] sm:$0xff] %vm4627, %v4590
      %4634 = vst.msk [vmem:[#allocation4 + $0x30] sm:$0xff] %vm4627, %v4592
      %4635 = vst.msk [vmem:[#allocation4 + $0x38] sm:$0xff] %vm4627, %v4594
      %4636 = vst.msk [vmem:[#allocation4 + $0x40] sm:$0xff] %vm4627, %v4596
      %4637 = vst.msk [vmem:[#allocation4 + $0x48] sm:$0xff] %vm4627, %v4598
      %4638 = vst.msk [vmem:[#allocation4 + $0x50] sm:$0xff] %vm4627, %v4600
      %4639 = vst.msk [vmem:[#allocation4 + $0x58] sm:$0xff] %vm4627, %v4602
      %4640 = vst.msk [vmem:[#allocation4 + $0x60] sm:$0xff] %vm4627, %v4604
      %4641 = vst.msk [vmem:[#allocation4 + $0x68] sm:$0xff] %vm4627, %v4606
      %4642 = vst.msk [vmem:[#allocation4 + $0x70] sm:$0xff] %vm4627, %v4608
      %4643 = vst.msk [vmem:[#allocation4 + $0x78] sm:$0xff] %vm4627, %v4610
      %v4644 = vld [vmem:[#allocation3] sm:$0xf]
      %v4645 = vld [vmem:[#allocation3 + $0x4] sm:$0xf]
      %v4646 = vld [vmem:[#allocation3 + $0xc] sm:$0xf]
      %v4647 = vld [vmem:[#allocation3 + $0x10] sm:$0xf]
      %v4648 = vld [vmem:[#allocation3 + $0x18] sm:$0xf]
      %v4649 = vld [vmem:[#allocation3 + $0x1c] sm:$0xf]
      %v4650 = vld [vmem:[#allocation3 + $0x24] sm:$0xf]
      %v4651 = vld [vmem:[#allocation3 + $0x28] sm:$0xf]
      %v4652 = vld [vmem:[#allocation3 + $0x30] sm:$0xf]
      %v4653 = vld [vmem:[#allocation3 + $0x34] sm:$0xf]
      %v4654 = vld [vmem:[#allocation3 + $0x3c] sm:$0xf]
      %v4655 = vld [vmem:[#allocation3 + $0x40] sm:$0xf]
      %v4656 = vld [vmem:[#allocation3 + $0x48] sm:$0xf]
      %v4657 = vld [vmem:[#allocation3 + $0x4c] sm:$0xf]
      %v4658 = vld [vmem:[#allocation3 + $0x54] sm:$0xf]
      %v4659 = vld [vmem:[#allocation3 + $0x58] sm:$0xf]
      %v4660 = vld [vmem:[#allocation3 + $0x60] sm:$0xf]
      %v4661 = vld [vmem:[#allocation3 + $0x64] sm:$0xf]
      %v4662 = vld [vmem:[#allocation3 + $0x6c] sm:$0xf]
      %v4663 = vld [vmem:[#allocation3 + $0x70] sm:$0xf]
      %v4664 = vld [vmem:[#allocation3 + $0x78] sm:$0xf]
      %v4665 = vld [vmem:[#allocation3 + $0x7c] sm:$0xf]
      %v4666 = vld [vmem:[#allocation3 + $0x84] sm:$0xf]
      %v4667 = vld [vmem:[#allocation3 + $0x88] sm:$0xf]
      %v4668 = vld [vmem:[#allocation3 + $0x90] sm:$0xf]
      %v4669 = vld [vmem:[#allocation3 + $0x94] sm:$0xf]
      %v4670 = vld [vmem:[#allocation3 + $0x9c] sm:$0xf]
      %v4671 = vld [vmem:[#allocation3 + $0xa0] sm:$0xf]
      %v4672 = vld [vmem:[#allocation3 + $0xa8] sm:$0xf]
      %v4673 = vld [vmem:[#allocation3 + $0xac] sm:$0xf]
      %v4674 = vld [vmem:[#allocation3 + $0xb4] sm:$0xf]
      %v4675 = vld [vmem:[#allocation3 + $0xb8] sm:$0xf]
      %v4708 = vunpack.c.l.b16 %v4644
      %v4709 = vunpack.c.l.b16 %v4645
      %v4710 = vunpack.c.l.b16 %v4646
      %v4711 = vunpack.c.l.b16 %v4647
      %v4712 = vunpack.c.l.b16 %v4648
      %v4713 = vunpack.c.l.b16 %v4649
      %v4714 = vunpack.c.l.b16 %v4650
      %v4715 = vunpack.c.l.b16 %v4651
      %v4716 = vunpack.c.l.b16 %v4652
      %v4717 = vunpack.c.l.b16 %v4653
      %v4718 = vunpack.c.l.b16 %v4654
      %v4719 = vunpack.c.l.b16 %v4655
      %v4720 = vunpack.c.l.b16 %v4656
      %v4721 = vunpack.c.l.b16 %v4657
      %v4722 = vunpack.c.l.b16 %v4658
      %v4723 = vunpack.c.l.b16 %v4659
      %v4724 = vunpack.c.l.b16 %v4660
      %v4725 = vunpack.c.l.b16 %v4661
      %v4726 = vunpack.c.l.b16 %v4662
      %v4727 = vunpack.c.l.b16 %v4663
      %v4728 = vunpack.c.l.b16 %v4664
      %v4729 = vunpack.c.l.b16 %v4665
      %v4730 = vunpack.c.l.b16 %v4666
      %v4731 = vunpack.c.l.b16 %v4667
      %v4732 = vunpack.c.l.b16 %v4668
      %v4733 = vunpack.c.l.b16 %v4669
      %v4734 = vunpack.c.l.b16 %v4670
      %v4735 = vunpack.c.l.b16 %v4671
      %v4736 = vunpack.c.l.b16 %v4672
      %v4737 = vunpack.c.l.b16 %v4673
      %v4738 = vunpack.c.l.b16 %v4674
      %v4739 = vunpack.c.l.b16 %v4675
      %v4740 = vpack.c.b16 %v4709, %v4708
      %v4741 = vpack.c.b16 %v4711, %v4710
      %v4742 = vpack.c.b16 %v4713, %v4712
      %v4743 = vpack.c.b16 %v4715, %v4714
      %v4744 = vpack.c.b16 %v4717, %v4716
      %v4745 = vpack.c.b16 %v4719, %v4718
      %v4746 = vpack.c.b16 %v4721, %v4720
      %v4747 = vpack.c.b16 %v4723, %v4722
      %v4748 = vpack.c.b16 %v4725, %v4724
      %v4749 = vpack.c.b16 %v4727, %v4726
      %v4750 = vpack.c.b16 %v4729, %v4728
      %v4751 = vpack.c.b16 %v4731, %v4730
      %v4752 = vpack.c.b16 %v4733, %v4732
      %v4753 = vpack.c.b16 %v4735, %v4734
      %v4754 = vpack.c.b16 %v4737, %v4736
      %v4755 = vpack.c.b16 %v4739, %v4738
      %4772 = vst.msk [vmem:[#allocation5] sm:$0xff] %vm1668, %v4740
      %4773 = vst.msk [vmem:[#allocation5 + $0x8] sm:$0xff] %vm1668, %v4741
      %4774 = vst.msk [vmem:[#allocation5 + $0x10] sm:$0xff] %vm1668, %v4742
      %4775 = vst.msk [vmem:[#allocation5 + $0x18] sm:$0xff] %vm1668, %v4743
      %4776 = vst.msk [vmem:[#allocation5 + $0x20] sm:$0xff] %vm1668, %v4744
      %4777 = vst.msk [vmem:[#allocation5 + $0x28] sm:$0xff] %vm1668, %v4745
      %4778 = vst.msk [vmem:[#allocation5 + $0x30] sm:$0xff] %vm1668, %v4746
      %4779 = vst.msk [vmem:[#allocation5 + $0x38] sm:$0xff] %vm1668, %v4747
      %4780 = vst.msk [vmem:[#allocation5 + $0x40] sm:$0xff] %vm1668, %v4748
      %4781 = vst.msk [vmem:[#allocation5 + $0x48] sm:$0xff] %vm1668, %v4749
      %4782 = vst.msk [vmem:[#allocation5 + $0x50] sm:$0xff] %vm1668, %v4750
      %4783 = vst.msk [vmem:[#allocation5 + $0x58] sm:$0xff] %vm1668, %v4751
      %4784 = vst.msk [vmem:[#allocation5 + $0x60] sm:$0xff] %vm1668, %v4752
      %4785 = vst.msk [vmem:[#allocation5 + $0x68] sm:$0xff] %vm1668, %v4753
      %4786 = vst.msk [vmem:[#allocation5 + $0x70] sm:$0xff] %vm1668, %v4754
      %4787 = vst.msk [vmem:[#allocation5 + $0x78] sm:$0xff] %vm1668, %v4755
      %v4788 = vld [vmem:[#allocation3] sm:$0xf]
      %v4789 = vld [vmem:[#allocation3 + $0x4] sm:$0xf]
      %v4790 = vld [vmem:[#allocation3 + $0x8] sm:$0x1]
      %v4791 = vld [vmem:[#allocation3 + $0xc] sm:$0xf]
      %v4792 = vld [vmem:[#allocation3 + $0x10] sm:$0xf]
      %v4793 = vld [vmem:[#allocation3 + $0x14] sm:$0x1]
      %v4794 = vld [vmem:[#allocation3 + $0x18] sm:$0xf]
      %v4795 = vld [vmem:[#allocation3 + $0x1c] sm:$0xf]
      %v4796 = vld [vmem:[#allocation3 + $0x20] sm:$0x1]
      %v4797 = vld [vmem:[#allocation3 + $0x24] sm:$0xf]
      %v4798 = vld [vmem:[#allocation3 + $0x28] sm:$0xf]
      %v4799 = vld [vmem:[#allocation3 + $0x2c] sm:$0x1]
      %v4800 = vld [vmem:[#allocation3 + $0x30] sm:$0xf]
      %v4801 = vld [vmem:[#allocation3 + $0x34] sm:$0xf]
      %v4802 = vld [vmem:[#allocation3 + $0x38] sm:$0x1]
      %v4803 = vld [vmem:[#allocation3 + $0x3c] sm:$0xf]
      %v4804 = vld [vmem:[#allocation3 + $0x40] sm:$0xf]
      %v4805 = vld [vmem:[#allocation3 + $0x44] sm:$0x1]
      %v4806 = vld [vmem:[#allocation3 + $0x48] sm:$0xf]
      %v4807 = vld [vmem:[#allocation3 + $0x4c] sm:$0xf]
      %v4808 = vld [vmem:[#allocation3 + $0x50] sm:$0x1]
      %v4809 = vld [vmem:[#allocation3 + $0x54] sm:$0xf]
      %v4810 = vld [vmem:[#allocation3 + $0x58] sm:$0xf]
      %v4811 = vld [vmem:[#allocation3 + $0x5c] sm:$0x1]
      %v4812 = vld [vmem:[#allocation3 + $0x60] sm:$0xf]
      %v4813 = vld [vmem:[#allocation3 + $0x64] sm:$0xf]
      %v4814 = vld [vmem:[#allocation3 + $0x68] sm:$0x1]
      %v4815 = vld [vmem:[#allocation3 + $0x6c] sm:$0xf]
      %v4816 = vld [vmem:[#allocation3 + $0x70] sm:$0xf]
      %v4817 = vld [vmem:[#allocation3 + $0x74] sm:$0x1]
      %v4818 = vld [vmem:[#allocation3 + $0x78] sm:$0xf]
      %v4819 = vld [vmem:[#allocation3 + $0x7c] sm:$0xf]
      %v4820 = vld [vmem:[#allocation3 + $0x80] sm:$0x1]
      %v4821 = vld [vmem:[#allocation3 + $0x84] sm:$0xf]
      %v4822 = vld [vmem:[#allocation3 + $0x88] sm:$0xf]
      %v4823 = vld [vmem:[#allocation3 + $0x8c] sm:$0x1]
      %v4824 = vld [vmem:[#allocation3 + $0x90] sm:$0xf]
      %v4825 = vld [vmem:[#allocation3 + $0x94] sm:$0xf]
      %v4826 = vld [vmem:[#allocation3 + $0x98] sm:$0x1]
      %v4827 = vld [vmem:[#allocation3 + $0x9c] sm:$0xf]
      %v4828 = vld [vmem:[#allocation3 + $0xa0] sm:$0xf]
      %v4829 = vld [vmem:[#allocation3 + $0xa4] sm:$0x1]
      %v4830 = vld [vmem:[#allocation3 + $0xa8] sm:$0xf]
      %v4831 = vld [vmem:[#allocation3 + $0xac] sm:$0xf]
      %v4832 = vld [vmem:[#allocation3 + $0xb0] sm:$0x1]
      %v4833 = vld [vmem:[#allocation3 + $0xb4] sm:$0xf]
      %v4834 = vld [vmem:[#allocation3 + $0xb8] sm:$0xf]
      %v4835 = vld [vmem:[#allocation3 + $0xbc] sm:$0x1]
      %v4837 = vshrl.u32 %v4788, 16
      %v4839 = vrot.slane %v4837, 4
      %v4840 = vshll.u32 %v4788, 16
      %v4842 = vrot.slane %v4840, 5
      %v4843 = vor.u32 %v4839, %v4842
      %v4844 = vrot.slane %v4843, 4
      %v4846 = vshll.u32 %v4789, 16
      %v4848 = vrot.slane %v4846, 5
      %v4849 = vsel %vm1735, %v4844, %v4848
      %v4850 = vshrl.u32 %v4789, 16
      %v4852 = vrot.slane %v4850, 4
      %v4853 = vor.u32 %v4852, %v4848
      %v4854 = vrot.slane %v4853, 4
      %v4856 = vshll.u32 %v4790, 16
      %v4858 = vrot.slane %v4856, 5
      %v4859 = vsel %vm1735, %v4854, %v4858
      %v4861 = vshrl.u32 %v4791, 16
      %v4863 = vrot.slane %v4861, 4
      %v4864 = vshll.u32 %v4791, 16
      %v4866 = vrot.slane %v4864, 5
      %v4867 = vor.u32 %v4863, %v4866
      %v4868 = vrot.slane %v4867, 4
      %v4870 = vshll.u32 %v4792, 16
      %v4872 = vrot.slane %v4870, 5
      %v4873 = vsel %vm1735, %v4868, %v4872
      %v4874 = vshrl.u32 %v4792, 16
      %v4876 = vrot.slane %v4874, 4
      %v4877 = vor.u32 %v4876, %v4872
      %v4878 = vrot.slane %v4877, 4
      %v4880 = vshll.u32 %v4793, 16
      %v4882 = vrot.slane %v4880, 5
      %v4883 = vsel %vm1735, %v4878, %v4882
      %v4885 = vshrl.u32 %v4794, 16
      %v4887 = vrot.slane %v4885, 4
      %v4888 = vshll.u32 %v4794, 16
      %v4890 = vrot.slane %v4888, 5
      %v4891 = vor.u32 %v4887, %v4890
      %v4892 = vrot.slane %v4891, 4
      %v4894 = vshll.u32 %v4795, 16
      %v4896 = vrot.slane %v4894, 5
      %v4897 = vsel %vm1735, %v4892, %v4896
      %v4898 = vshrl.u32 %v4795, 16
      %v4900 = vrot.slane %v4898, 4
      %v4901 = vor.u32 %v4900, %v4896
      %v4902 = vrot.slane %v4901, 4
      %v4904 = vshll.u32 %v4796, 16
      %v4906 = vrot.slane %v4904, 5
      %v4907 = vsel %vm1735, %v4902, %v4906
      %v4909 = vshrl.u32 %v4797, 16
      %v4911 = vrot.slane %v4909, 4
      %v4912 = vshll.u32 %v4797, 16
      %v4914 = vrot.slane %v4912, 5
      %v4915 = vor.u32 %v4911, %v4914
      %v4916 = vrot.slane %v4915, 4
      %v4918 = vshll.u32 %v4798, 16
      %v4920 = vrot.slane %v4918, 5
      %v4921 = vsel %vm1735, %v4916, %v4920
      %v4922 = vshrl.u32 %v4798, 16
      %v4924 = vrot.slane %v4922, 4
      %v4925 = vor.u32 %v4924, %v4920
      %v4926 = vrot.slane %v4925, 4
      %v4928 = vshll.u32 %v4799, 16
      %v4930 = vrot.slane %v4928, 5
      %v4931 = vsel %vm1735, %v4926, %v4930
      %v4933 = vshrl.u32 %v4800, 16
      %v4935 = vrot.slane %v4933, 4
      %v4936 = vshll.u32 %v4800, 16
      %v4938 = vrot.slane %v4936, 5
      %v4939 = vor.u32 %v4935, %v4938
      %v4940 = vrot.slane %v4939, 4
      %v4942 = vshll.u32 %v4801, 16
      %v4944 = vrot.slane %v4942, 5
      %v4945 = vsel %vm1735, %v4940, %v4944
      %v4946 = vshrl.u32 %v4801, 16
      %v4948 = vrot.slane %v4946, 4
      %v4949 = vor.u32 %v4948, %v4944
      %v4950 = vrot.slane %v4949, 4
      %v4952 = vshll.u32 %v4802, 16
      %v4954 = vrot.slane %v4952, 5
      %v4955 = vsel %vm1735, %v4950, %v4954
      %v4957 = vshrl.u32 %v4803, 16
      %v4959 = vrot.slane %v4957, 4
      %v4960 = vshll.u32 %v4803, 16
      %v4962 = vrot.slane %v4960, 5
      %v4963 = vor.u32 %v4959, %v4962
      %v4964 = vrot.slane %v4963, 4
      %v4966 = vshll.u32 %v4804, 16
      %v4968 = vrot.slane %v4966, 5
      %v4969 = vsel %vm1735, %v4964, %v4968
      %v4970 = vshrl.u32 %v4804, 16
      %v4972 = vrot.slane %v4970, 4
      %v4973 = vor.u32 %v4972, %v4968
      %v4974 = vrot.slane %v4973, 4
      %v4976 = vshll.u32 %v4805, 16
      %v4978 = vrot.slane %v4976, 5
      %v4979 = vsel %vm1735, %v4974, %v4978
      %v4981 = vshrl.u32 %v4806, 16
      %v4983 = vrot.slane %v4981, 4
      %v4984 = vshll.u32 %v4806, 16
      %v4986 = vrot.slane %v4984, 5
      %v4987 = vor.u32 %v4983, %v4986
      %v4988 = vrot.slane %v4987, 4
      %v4990 = vshll.u32 %v4807, 16
      %v4992 = vrot.slane %v4990, 5
      %v4993 = vsel %vm1735, %v4988, %v4992
      %v4994 = vshrl.u32 %v4807, 16
      %v4996 = vrot.slane %v4994, 4
      %v4997 = vor.u32 %v4996, %v4992
      %v4998 = vrot.slane %v4997, 4
      %v5000 = vshll.u32 %v4808, 16
      %v5002 = vrot.slane %v5000, 5
      %v5003 = vsel %vm1735, %v4998, %v5002
      %v5005 = vshrl.u32 %v4809, 16
      %v5007 = vrot.slane %v5005, 4
      %v5008 = vshll.u32 %v4809, 16
      %v5010 = vrot.slane %v5008, 5
      %v5011 = vor.u32 %v5007, %v5010
      %v5012 = vrot.slane %v5011, 4
      %v5014 = vshll.u32 %v4810, 16
      %v5016 = vrot.slane %v5014, 5
      %v5017 = vsel %vm1735, %v5012, %v5016
      %v5018 = vshrl.u32 %v4810, 16
      %v5020 = vrot.slane %v5018, 4
      %v5021 = vor.u32 %v5020, %v5016
      %v5022 = vrot.slane %v5021, 4
      %v5024 = vshll.u32 %v4811, 16
      %v5026 = vrot.slane %v5024, 5
      %v5027 = vsel %vm1735, %v5022, %v5026
      %v5029 = vshrl.u32 %v4812, 16
      %v5031 = vrot.slane %v5029, 4
      %v5032 = vshll.u32 %v4812, 16
      %v5034 = vrot.slane %v5032, 5
      %v5035 = vor.u32 %v5031, %v5034
      %v5036 = vrot.slane %v5035, 4
      %v5038 = vshll.u32 %v4813, 16
      %v5040 = vrot.slane %v5038, 5
      %v5041 = vsel %vm1735, %v5036, %v5040
      %v5042 = vshrl.u32 %v4813, 16
      %v5044 = vrot.slane %v5042, 4
      %v5045 = vor.u32 %v5044, %v5040
      %v5046 = vrot.slane %v5045, 4
      %v5048 = vshll.u32 %v4814, 16
      %v5050 = vrot.slane %v5048, 5
      %v5051 = vsel %vm1735, %v5046, %v5050
      %v5053 = vshrl.u32 %v4815, 16
      %v5055 = vrot.slane %v5053, 4
      %v5056 = vshll.u32 %v4815, 16
      %v5058 = vrot.slane %v5056, 5
      %v5059 = vor.u32 %v5055, %v5058
      %v5060 = vrot.slane %v5059, 4
      %v5062 = vshll.u32 %v4816, 16
      %v5064 = vrot.slane %v5062, 5
      %v5065 = vsel %vm1735, %v5060, %v5064
      %v5066 = vshrl.u32 %v4816, 16
      %v5068 = vrot.slane %v5066, 4
      %v5069 = vor.u32 %v5068, %v5064
      %v5070 = vrot.slane %v5069, 4
      %v5072 = vshll.u32 %v4817, 16
      %v5074 = vrot.slane %v5072, 5
      %v5075 = vsel %vm1735, %v5070, %v5074
      %v5077 = vshrl.u32 %v4818, 16
      %v5079 = vrot.slane %v5077, 4
      %v5080 = vshll.u32 %v4818, 16
      %v5082 = vrot.slane %v5080, 5
      %v5083 = vor.u32 %v5079, %v5082
      %v5084 = vrot.slane %v5083, 4
      %v5086 = vshll.u32 %v4819, 16
      %v5088 = vrot.slane %v5086, 5
      %v5089 = vsel %vm1735, %v5084, %v5088
      %v5090 = vshrl.u32 %v4819, 16
      %v5092 = vrot.slane %v5090, 4
      %v5093 = vor.u32 %v5092, %v5088
      %v5094 = vrot.slane %v5093, 4
      %v5096 = vshll.u32 %v4820, 16
      %v5098 = vrot.slane %v5096, 5
      %v5099 = vsel %vm1735, %v5094, %v5098
      %v5101 = vshrl.u32 %v4821, 16
      %v5103 = vrot.slane %v5101, 4
      %v5104 = vshll.u32 %v4821, 16
      %v5106 = vrot.slane %v5104, 5
      %v5107 = vor.u32 %v5103, %v5106
      %v5108 = vrot.slane %v5107, 4
      %v5110 = vshll.u32 %v4822, 16
      %v5112 = vrot.slane %v5110, 5
      %v5113 = vsel %vm1735, %v5108, %v5112
      %v5114 = vshrl.u32 %v4822, 16
      %v5116 = vrot.slane %v5114, 4
      %v5117 = vor.u32 %v5116, %v5112
      %v5118 = vrot.slane %v5117, 4
      %v5120 = vshll.u32 %v4823, 16
      %v5122 = vrot.slane %v5120, 5
      %v5123 = vsel %vm1735, %v5118, %v5122
      %v5125 = vshrl.u32 %v4824, 16
      %v5127 = vrot.slane %v5125, 4
      %v5128 = vshll.u32 %v4824, 16
      %v5130 = vrot.slane %v5128, 5
      %v5131 = vor.u32 %v5127, %v5130
      %v5132 = vrot.slane %v5131, 4
      %v5134 = vshll.u32 %v4825, 16
      %v5136 = vrot.slane %v5134, 5
      %v5137 = vsel %vm1735, %v5132, %v5136
      %v5138 = vshrl.u32 %v4825, 16
      %v5140 = vrot.slane %v5138, 4
      %v5141 = vor.u32 %v5140, %v5136
      %v5142 = vrot.slane %v5141, 4
      %v5144 = vshll.u32 %v4826, 16
      %v5146 = vrot.slane %v5144, 5
      %v5147 = vsel %vm1735, %v5142, %v5146
      %v5149 = vshrl.u32 %v4827, 16
      %v5151 = vrot.slane %v5149, 4
      %v5152 = vshll.u32 %v4827, 16
      %v5154 = vrot.slane %v5152, 5
      %v5155 = vor.u32 %v5151, %v5154
      %v5156 = vrot.slane %v5155, 4
      %v5158 = vshll.u32 %v4828, 16
      %v5160 = vrot.slane %v5158, 5
      %v5161 = vsel %vm1735, %v5156, %v5160
      %v5162 = vshrl.u32 %v4828, 16
      %v5164 = vrot.slane %v5162, 4
      %v5165 = vor.u32 %v5164, %v5160
      %v5166 = vrot.slane %v5165, 4
      %v5168 = vshll.u32 %v4829, 16
      %v5170 = vrot.slane %v5168, 5
      %v5171 = vsel %vm1735, %v5166, %v5170
      %v5173 = vshrl.u32 %v4830, 16
      %v5175 = vrot.slane %v5173, 4
      %v5176 = vshll.u32 %v4830, 16
      %v5178 = vrot.slane %v5176, 5
      %v5179 = vor.u32 %v5175, %v5178
      %v5180 = vrot.slane %v5179, 4
      %v5182 = vshll.u32 %v4831, 16
      %v5184 = vrot.slane %v5182, 5
      %v5185 = vsel %vm1735, %v5180, %v5184
      %v5186 = vshrl.u32 %v4831, 16
      %v5188 = vrot.slane %v5186, 4
      %v5189 = vor.u32 %v5188, %v5184
      %v5190 = vrot.slane %v5189, 4
      %v5192 = vshll.u32 %v4832, 16
      %v5194 = vrot.slane %v5192, 5
      %v5195 = vsel %vm1735, %v5190, %v5194
      %v5197 = vshrl.u32 %v4833, 16
      %v5199 = vrot.slane %v5197, 4
      %v5200 = vshll.u32 %v4833, 16
      %v5202 = vrot.slane %v5200, 5
      %v5203 = vor.u32 %v5199, %v5202
      %v5204 = vrot.slane %v5203, 4
      %v5206 = vshll.u32 %v4834, 16
      %v5208 = vrot.slane %v5206, 5
      %v5209 = vsel %vm1735, %v5204, %v5208
      %v5210 = vshrl.u32 %v4834, 16
      %v5212 = vrot.slane %v5210, 4
      %v5213 = vor.u32 %v5212, %v5208
      %v5214 = vrot.slane %v5213, 4
      %v5216 = vshll.u32 %v4835, 16
      %v5218 = vrot.slane %v5216, 5
      %v5219 = vsel %vm1735, %v5214, %v5218
      %v5220 = vunpack.c.l.b16 %v4849
      %v5221 = vunpack.c.l.b16 %v4859
      %v5222 = vunpack.c.l.b16 %v4873
      %v5223 = vunpack.c.l.b16 %v4883
      %v5224 = vunpack.c.l.b16 %v4897
      %v5225 = vunpack.c.l.b16 %v4907
      %v5226 = vunpack.c.l.b16 %v4921
      %v5227 = vunpack.c.l.b16 %v4931
      %v5228 = vunpack.c.l.b16 %v4945
      %v5229 = vunpack.c.l.b16 %v4955
      %v5230 = vunpack.c.l.b16 %v4969
      %v5231 = vunpack.c.l.b16 %v4979
      %v5232 = vunpack.c.l.b16 %v4993
      %v5233 = vunpack.c.l.b16 %v5003
      %v5234 = vunpack.c.l.b16 %v5017
      %v5235 = vunpack.c.l.b16 %v5027
      %v5236 = vunpack.c.l.b16 %v5041
      %v5237 = vunpack.c.l.b16 %v5051
      %v5238 = vunpack.c.l.b16 %v5065
      %v5239 = vunpack.c.l.b16 %v5075
      %v5240 = vunpack.c.l.b16 %v5089
      %v5241 = vunpack.c.l.b16 %v5099
      %v5242 = vunpack.c.l.b16 %v5113
      %v5243 = vunpack.c.l.b16 %v5123
      %v5244 = vunpack.c.l.b16 %v5137
      %v5245 = vunpack.c.l.b16 %v5147
      %v5246 = vunpack.c.l.b16 %v5161
      %v5247 = vunpack.c.l.b16 %v5171
      %v5248 = vunpack.c.l.b16 %v5185
      %v5249 = vunpack.c.l.b16 %v5195
      %v5250 = vunpack.c.l.b16 %v5209
      %v5251 = vunpack.c.l.b16 %v5219
      %v5252 = vpack.c.b16 %v5221, %v5220
      %v5253 = vpack.c.b16 %v5223, %v5222
      %v5254 = vpack.c.b16 %v5225, %v5224
      %v5255 = vpack.c.b16 %v5227, %v5226
      %v5256 = vpack.c.b16 %v5229, %v5228
      %v5257 = vpack.c.b16 %v5231, %v5230
      %v5258 = vpack.c.b16 %v5233, %v5232
      %v5259 = vpack.c.b16 %v5235, %v5234
      %v5260 = vpack.c.b16 %v5237, %v5236
      %v5261 = vpack.c.b16 %v5239, %v5238
      %v5262 = vpack.c.b16 %v5241, %v5240
      %v5263 = vpack.c.b16 %v5243, %v5242
      %v5264 = vpack.c.b16 %v5245, %v5244
      %v5265 = vpack.c.b16 %v5247, %v5246
      %v5266 = vpack.c.b16 %v5249, %v5248
      %v5267 = vpack.c.b16 %v5251, %v5250
      %5268 = vrot.lane.b32.xlu0 %v5252, 8
      %v5269 = vpop.permute.xlu0 %5268
      %5270 = vrot.lane.b32.xlu0 %v5253, 8
      %v5271 = vpop.permute.xlu0 %5270
      %5272 = vrot.lane.b32.xlu0 %v5254, 8
      %v5273 = vpop.permute.xlu0 %5272
      %5274 = vrot.lane.b32.xlu0 %v5255, 8
      %v5275 = vpop.permute.xlu0 %5274
      %5276 = vrot.lane.b32.xlu0 %v5256, 8
      %v5277 = vpop.permute.xlu0 %5276
      %5278 = vrot.lane.b32.xlu0 %v5257, 8
      %v5279 = vpop.permute.xlu0 %5278
      %5280 = vrot.lane.b32.xlu0 %v5258, 8
      %v5281 = vpop.permute.xlu0 %5280
      %5282 = vrot.lane.b32.xlu0 %v5259, 8
      %v5283 = vpop.permute.xlu0 %5282
      %5284 = vrot.lane.b32.xlu0 %v5260, 8
      %v5285 = vpop.permute.xlu0 %5284
      %5286 = vrot.lane.b32.xlu0 %v5261, 8
      %v5287 = vpop.permute.xlu0 %5286
      %5288 = vrot.lane.b32.xlu0 %v5262, 8
      %v5289 = vpop.permute.xlu0 %5288
      %5290 = vrot.lane.b32.xlu0 %v5263, 8
      %v5291 = vpop.permute.xlu0 %5290
      %5292 = vrot.lane.b32.xlu0 %v5264, 8
      %v5293 = vpop.permute.xlu0 %5292
      %5294 = vrot.lane.b32.xlu0 %v5265, 8
      %v5295 = vpop.permute.xlu0 %5294
      %5296 = vrot.lane.b32.xlu0 %v5266, 8
      %v5297 = vpop.permute.xlu0 %5296
      %5298 = vrot.lane.b32.xlu0 %v5267, 8
      %v5299 = vpop.permute.xlu0 %5298
      %5316 = vst.msk [vmem:[#allocation5] sm:$0xff] %vm2216, %v5269
      %5317 = vst.msk [vmem:[#allocation5 + $0x8] sm:$0xff] %vm2216, %v5271
      %5318 = vst.msk [vmem:[#allocation5 + $0x10] sm:$0xff] %vm2216, %v5273
      %5319 = vst.msk [vmem:[#allocation5 + $0x18] sm:$0xff] %vm2216, %v5275
      %5320 = vst.msk [vmem:[#allocation5 + $0x20] sm:$0xff] %vm2216, %v5277
      %5321 = vst.msk [vmem:[#allocation5 + $0x28] sm:$0xff] %vm2216, %v5279
      %5322 = vst.msk [vmem:[#allocation5 + $0x30] sm:$0xff] %vm2216, %v5281
      %5323 = vst.msk [vmem:[#allocation5 + $0x38] sm:$0xff] %vm2216, %v5283
      %5324 = vst.msk [vmem:[#allocation5 + $0x40] sm:$0xff] %vm2216, %v5285
      %5325 = vst.msk [vmem:[#allocation5 + $0x48] sm:$0xff] %vm2216, %v5287
      %5326 = vst.msk [vmem:[#allocation5 + $0x50] sm:$0xff] %vm2216, %v5289
      %5327 = vst.msk [vmem:[#allocation5 + $0x58] sm:$0xff] %vm2216, %v5291
      %5328 = vst.msk [vmem:[#allocation5 + $0x60] sm:$0xff] %vm2216, %v5293
      %5329 = vst.msk [vmem:[#allocation5 + $0x68] sm:$0xff] %vm2216, %v5295
      %5330 = vst.msk [vmem:[#allocation5 + $0x70] sm:$0xff] %vm2216, %v5297
      %5331 = vst.msk [vmem:[#allocation5 + $0x78] sm:$0xff] %vm2216, %v5299
      %v5332 = vld [vmem:[#allocation3] sm:$0xe]
      %v5333 = vld [vmem:[#allocation3 + $0x4] sm:$0xf]
      %v5334 = vld [vmem:[#allocation3 + $0x8] sm:$0x1]
      %v5335 = vld [vmem:[#allocation3 + $0xc] sm:$0xe]
      %v5336 = vld [vmem:[#allocation3 + $0x10] sm:$0xf]
      %v5337 = vld [vmem:[#allocation3 + $0x14] sm:$0x1]
      %v5338 = vld [vmem:[#allocation3 + $0x18] sm:$0xe]
      %v5339 = vld [vmem:[#allocation3 + $0x1c] sm:$0xf]
      %v5340 = vld [vmem:[#allocation3 + $0x20] sm:$0x1]
      %v5341 = vld [vmem:[#allocation3 + $0x24] sm:$0xe]
      %v5342 = vld [vmem:[#allocation3 + $0x28] sm:$0xf]
      %v5343 = vld [vmem:[#allocation3 + $0x2c] sm:$0x1]
      %v5344 = vld [vmem:[#allocation3 + $0x30] sm:$0xe]
      %v5345 = vld [vmem:[#allocation3 + $0x34] sm:$0xf]
      %v5346 = vld [vmem:[#allocation3 + $0x38] sm:$0x1]
      %v5347 = vld [vmem:[#allocation3 + $0x3c] sm:$0xe]
      %v5348 = vld [vmem:[#allocation3 + $0x40] sm:$0xf]
      %v5349 = vld [vmem:[#allocation3 + $0x44] sm:$0x1]
      %v5350 = vld [vmem:[#allocation3 + $0x48] sm:$0xe]
      %v5351 = vld [vmem:[#allocation3 + $0x4c] sm:$0xf]
      %v5352 = vld [vmem:[#allocation3 + $0x50] sm:$0x1]
      %v5353 = vld [vmem:[#allocation3 + $0x54] sm:$0xe]
      %v5354 = vld [vmem:[#allocation3 + $0x58] sm:$0xf]
      %v5355 = vld [vmem:[#allocation3 + $0x5c] sm:$0x1]
      %v5356 = vld [vmem:[#allocation3 + $0x60] sm:$0xe]
      %v5357 = vld [vmem:[#allocation3 + $0x64] sm:$0xf]
      %v5358 = vld [vmem:[#allocation3 + $0x68] sm:$0x1]
      %v5359 = vld [vmem:[#allocation3 + $0x6c] sm:$0xe]
      %v5360 = vld [vmem:[#allocation3 + $0x70] sm:$0xf]
      %v5361 = vld [vmem:[#allocation3 + $0x74] sm:$0x1]
      %v5362 = vld [vmem:[#allocation3 + $0x78] sm:$0xe]
      %v5363 = vld [vmem:[#allocation3 + $0x7c] sm:$0xf]
      %v5364 = vld [vmem:[#allocation3 + $0x80] sm:$0x1]
      %v5365 = vld [vmem:[#allocation3 + $0x84] sm:$0xe]
      %v5366 = vld [vmem:[#allocation3 + $0x88] sm:$0xf]
      %v5367 = vld [vmem:[#allocation3 + $0x8c] sm:$0x1]
      %v5368 = vld [vmem:[#allocation3 + $0x90] sm:$0xe]
      %v5369 = vld [vmem:[#allocation3 + $0x94] sm:$0xf]
      %v5370 = vld [vmem:[#allocation3 + $0x98] sm:$0x1]
      %v5371 = vld [vmem:[#allocation3 + $0x9c] sm:$0xe]
      %v5372 = vld [vmem:[#allocation3 + $0xa0] sm:$0xf]
      %v5373 = vld [vmem:[#allocation3 + $0xa4] sm:$0x1]
      %v5374 = vld [vmem:[#allocation3 + $0xa8] sm:$0xe]
      %v5375 = vld [vmem:[#allocation3 + $0xac] sm:$0xf]
      %v5376 = vld [vmem:[#allocation3 + $0xb0] sm:$0x1]
      %v5377 = vld [vmem:[#allocation3 + $0xb4] sm:$0xe]
      %v5378 = vld [vmem:[#allocation3 + $0xb8] sm:$0xf]
      %v5379 = vld [vmem:[#allocation3 + $0xbc] sm:$0x1]
      %v5428 = vrot.slane %v5332, 5
      %v5429 = vrot.slane %v5428, 4
      %v5430 = vrot.slane %v5333, 5
      %v5431 = vsel %vm2331, %v5429, %v5430
      %v5432 = vrot.slane %v5430, 4
      %v5433 = vrot.slane %v5334, 5
      %v5434 = vsel %vm2331, %v5432, %v5433
      %v5435 = vrot.slane %v5335, 5
      %v5436 = vrot.slane %v5435, 4
      %v5437 = vrot.slane %v5336, 5
      %v5438 = vsel %vm2331, %v5436, %v5437
      %v5439 = vrot.slane %v5437, 4
      %v5440 = vrot.slane %v5337, 5
      %v5441 = vsel %vm2331, %v5439, %v5440
      %v5442 = vrot.slane %v5338, 5
      %v5443 = vrot.slane %v5442, 4
      %v5444 = vrot.slane %v5339, 5
      %v5445 = vsel %vm2331, %v5443, %v5444
      %v5446 = vrot.slane %v5444, 4
      %v5447 = vrot.slane %v5340, 5
      %v5448 = vsel %vm2331, %v5446, %v5447
      %v5449 = vrot.slane %v5341, 5
      %v5450 = vrot.slane %v5449, 4
      %v5451 = vrot.slane %v5342, 5
      %v5452 = vsel %vm2331, %v5450, %v5451
      %v5453 = vrot.slane %v5451, 4
      %v5454 = vrot.slane %v5343, 5
      %v5455 = vsel %vm2331, %v5453, %v5454
      %v5456 = vrot.slane %v5344, 5
      %v5457 = vrot.slane %v5456, 4
      %v5458 = vrot.slane %v5345, 5
      %v5459 = vsel %vm2331, %v5457, %v5458
      %v5460 = vrot.slane %v5458, 4
      %v5461 = vrot.slane %v5346, 5
      %v5462 = vsel %vm2331, %v5460, %v5461
      %v5463 = vrot.slane %v5347, 5
      %v5464 = vrot.slane %v5463, 4
      %v5465 = vrot.slane %v5348, 5
      %v5466 = vsel %vm2331, %v5464, %v5465
      %v5467 = vrot.slane %v5465, 4
      %v5468 = vrot.slane %v5349, 5
      %v5469 = vsel %vm2331, %v5467, %v5468
      %v5470 = vrot.slane %v5350, 5
      %v5471 = vrot.slane %v5470, 4
      %v5472 = vrot.slane %v5351, 5
      %v5473 = vsel %vm2331, %v5471, %v5472
      %v5474 = vrot.slane %v5472, 4
      %v5475 = vrot.slane %v5352, 5
      %v5476 = vsel %vm2331, %v5474, %v5475
      %v5477 = vrot.slane %v5353, 5
      %v5478 = vrot.slane %v5477, 4
      %v5479 = vrot.slane %v5354, 5
      %v5480 = vsel %vm2331, %v5478, %v5479
      %v5481 = vrot.slane %v5479, 4
      %v5482 = vrot.slane %v5355, 5
      %v5483 = vsel %vm2331, %v5481, %v5482
      %v5484 = vrot.slane %v5356, 5
      %v5485 = vrot.slane %v5484, 4
      %v5486 = vrot.slane %v5357, 5
      %v5487 = vsel %vm2331, %v5485, %v5486
      %v5488 = vrot.slane %v5486, 4
      %v5489 = vrot.slane %v5358, 5
      %v5490 = vsel %vm2331, %v5488, %v5489
      %v5491 = vrot.slane %v5359, 5
      %v5492 = vrot.slane %v5491, 4
      %v5493 = vrot.slane %v5360, 5
      %v5494 = vsel %vm2331, %v5492, %v5493
      %v5495 = vrot.slane %v5493, 4
      %v5496 = vrot.slane %v5361, 5
      %v5497 = vsel %vm2331, %v5495, %v5496
      %v5498 = vrot.slane %v5362, 5
      %v5499 = vrot.slane %v5498, 4
      %v5500 = vrot.slane %v5363, 5
      %v5501 = vsel %vm2331, %v5499, %v5500
      %v5502 = vrot.slane %v5500, 4
      %v5503 = vrot.slane %v5364, 5
      %v5504 = vsel %vm2331, %v5502, %v5503
      %v5505 = vrot.slane %v5365, 5
      %v5506 = vrot.slane %v5505, 4
      %v5507 = vrot.slane %v5366, 5
      %v5508 = vsel %vm2331, %v5506, %v5507
      %v5509 = vrot.slane %v5507, 4
      %v5510 = vrot.slane %v5367, 5
      %v5511 = vsel %vm2331, %v5509, %v5510
      %v5512 = vrot.slane %v5368, 5
      %v5513 = vrot.slane %v5512, 4
      %v5514 = vrot.slane %v5369, 5
      %v5515 = vsel %vm2331, %v5513, %v5514
      %v5516 = vrot.slane %v5514, 4
      %v5517 = vrot.slane %v5370, 5
      %v5518 = vsel %vm2331, %v5516, %v5517
      %v5519 = vrot.slane %v5371, 5
      %v5520 = vrot.slane %v5519, 4
      %v5521 = vrot.slane %v5372, 5
      %v5522 = vsel %vm2331, %v5520, %v5521
      %v5523 = vrot.slane %v5521, 4
      %v5524 = vrot.slane %v5373, 5
      %v5525 = vsel %vm2331, %v5523, %v5524
      %v5526 = vrot.slane %v5374, 5
      %v5527 = vrot.slane %v5526, 4
      %v5528 = vrot.slane %v5375, 5
      %v5529 = vsel %vm2331, %v5527, %v5528
      %v5530 = vrot.slane %v5528, 4
      %v5531 = vrot.slane %v5376, 5
      %v5532 = vsel %vm2331, %v5530, %v5531
      %v5533 = vrot.slane %v5377, 5
      %v5534 = vrot.slane %v5533, 4
      %v5535 = vrot.slane %v5378, 5
      %v5536 = vsel %vm2331, %v5534, %v5535
      %v5537 = vrot.slane %v5535, 4
      %v5538 = vrot.slane %v5379, 5
      %v5539 = vsel %vm2331, %v5537, %v5538
      %v5540 = vunpack.c.l.b16 %v5431
      %v5541 = vunpack.c.l.b16 %v5434
      %v5542 = vunpack.c.l.b16 %v5438
      %v5543 = vunpack.c.l.b16 %v5441
      %v5544 = vunpack.c.l.b16 %v5445
      %v5545 = vunpack.c.l.b16 %v5448
      %v5546 = vunpack.c.l.b16 %v5452
      %v5547 = vunpack.c.l.b16 %v5455
      %v5548 = vunpack.c.l.b16 %v5459
      %v5549 = vunpack.c.l.b16 %v5462
      %v5550 = vunpack.c.l.b16 %v5466
      %v5551 = vunpack.c.l.b16 %v5469
      %v5552 = vunpack.c.l.b16 %v5473
      %v5553 = vunpack.c.l.b16 %v5476
      %v5554 = vunpack.c.l.b16 %v5480
      %v5555 = vunpack.c.l.b16 %v5483
      %v5556 = vunpack.c.l.b16 %v5487
      %v5557 = vunpack.c.l.b16 %v5490
      %v5558 = vunpack.c.l.b16 %v5494
      %v5559 = vunpack.c.l.b16 %v5497
      %v5560 = vunpack.c.l.b16 %v5501
      %v5561 = vunpack.c.l.b16 %v5504
      %v5562 = vunpack.c.l.b16 %v5508
      %v5563 = vunpack.c.l.b16 %v5511
      %v5564 = vunpack.c.l.b16 %v5515
      %v5565 = vunpack.c.l.b16 %v5518
      %v5566 = vunpack.c.l.b16 %v5522
      %v5567 = vunpack.c.l.b16 %v5525
      %v5568 = vunpack.c.l.b16 %v5529
      %v5569 = vunpack.c.l.b16 %v5532
      %v5570 = vunpack.c.l.b16 %v5536
      %v5571 = vunpack.c.l.b16 %v5539
      %v5572 = vpack.c.b16 %v5541, %v5540
      %v5573 = vpack.c.b16 %v5543, %v5542
      %v5574 = vpack.c.b16 %v5545, %v5544
      %v5575 = vpack.c.b16 %v5547, %v5546
      %v5576 = vpack.c.b16 %v5549, %v5548
      %v5577 = vpack.c.b16 %v5551, %v5550
      %v5578 = vpack.c.b16 %v5553, %v5552
      %v5579 = vpack.c.b16 %v5555, %v5554
      %v5580 = vpack.c.b16 %v5557, %v5556
      %v5581 = vpack.c.b16 %v5559, %v5558
      %v5582 = vpack.c.b16 %v5561, %v5560
      %v5583 = vpack.c.b16 %v5563, %v5562
      %v5584 = vpack.c.b16 %v5565, %v5564
      %v5585 = vpack.c.b16 %v5567, %v5566
      %v5586 = vpack.c.b16 %v5569, %v5568
      %v5587 = vpack.c.b16 %v5571, %v5570
      %5588 = vrot.lane.b32.xlu0 %v5572, 16
      %v5589 = vpop.permute.xlu0 %5588
      %5590 = vrot.lane.b32.xlu0 %v5573, 16
      %v5591 = vpop.permute.xlu0 %5590
      %5592 = vrot.lane.b32.xlu0 %v5574, 16
      %v5593 = vpop.permute.xlu0 %5592
      %5594 = vrot.lane.b32.xlu0 %v5575, 16
      %v5595 = vpop.permute.xlu0 %5594
      %5596 = vrot.lane.b32.xlu0 %v5576, 16
      %v5597 = vpop.permute.xlu0 %5596
      %5598 = vrot.lane.b32.xlu0 %v5577, 16
      %v5599 = vpop.permute.xlu0 %5598
      %5600 = vrot.lane.b32.xlu0 %v5578, 16
      %v5601 = vpop.permute.xlu0 %5600
      %5602 = vrot.lane.b32.xlu0 %v5579, 16
      %v5603 = vpop.permute.xlu0 %5602
      %5604 = vrot.lane.b32.xlu0 %v5580, 16
      %v5605 = vpop.permute.xlu0 %5604
      %5606 = vrot.lane.b32.xlu0 %v5581, 16
      %v5607 = vpop.permute.xlu0 %5606
      %5608 = vrot.lane.b32.xlu0 %v5582, 16
      %v5609 = vpop.permute.xlu0 %5608
      %5610 = vrot.lane.b32.xlu0 %v5583, 16
      %v5611 = vpop.permute.xlu0 %5610
      %5612 = vrot.lane.b32.xlu0 %v5584, 16
      %v5613 = vpop.permute.xlu0 %5612
      %5614 = vrot.lane.b32.xlu0 %v5585, 16
      %v5615 = vpop.permute.xlu0 %5614
      %5616 = vrot.lane.b32.xlu0 %v5586, 16
      %v5617 = vpop.permute.xlu0 %5616
      %5618 = vrot.lane.b32.xlu0 %v5587, 16
      %v5619 = vpop.permute.xlu0 %5618
      %5636 = vst.msk [vmem:[#allocation5] sm:$0xff] %vm2540, %v5589
      %5637 = vst.msk [vmem:[#allocation5 + $0x8] sm:$0xff] %vm2540, %v5591
      %5638 = vst.msk [vmem:[#allocation5 + $0x10] sm:$0xff] %vm2540, %v5593
      %5639 = vst.msk [vmem:[#allocation5 + $0x18] sm:$0xff] %vm2540, %v5595
      %5640 = vst.msk [vmem:[#allocation5 + $0x20] sm:$0xff] %vm2540, %v5597
      %5641 = vst.msk [vmem:[#allocation5 + $0x28] sm:$0xff] %vm2540, %v5599
      %5642 = vst.msk [vmem:[#allocation5 + $0x30] sm:$0xff] %vm2540, %v5601
      %5643 = vst.msk [vmem:[#allocation5 + $0x38] sm:$0xff] %vm2540, %v5603
      %5644 = vst.msk [vmem:[#allocation5 + $0x40] sm:$0xff] %vm2540, %v5605
      %5645 = vst.msk [vmem:[#allocation5 + $0x48] sm:$0xff] %vm2540, %v5607
      %5646 = vst.msk [vmem:[#allocation5 + $0x50] sm:$0xff] %vm2540, %v5609
      %5647 = vst.msk [vmem:[#allocation5 + $0x58] sm:$0xff] %vm2540, %v5611
      %5648 = vst.msk [vmem:[#allocation5 + $0x60] sm:$0xff] %vm2540, %v5613
      %5649 = vst.msk [vmem:[#allocation5 + $0x68] sm:$0xff] %vm2540, %v5615
      %5650 = vst.msk [vmem:[#allocation5 + $0x70] sm:$0xff] %vm2540, %v5617
      %5651 = vst.msk [vmem:[#allocation5 + $0x78] sm:$0xff] %vm2540, %v5619
      %v5652 = vld [vmem:[%s1427] sm:$0xf]
      %v5653 = vld [vmem:[%s1427 + $0x4] sm:$0xf]
      %v5654 = vld [vmem:[%s1427 + $0xc] sm:$0xf]
      %v5655 = vld [vmem:[%s1427 + $0x10] sm:$0xf]
      %v5656 = vld [vmem:[%s1427 + $0x18] sm:$0xf]
      %v5657 = vld [vmem:[%s1427 + $0x1c] sm:$0xf]
      %v5658 = vld [vmem:[%s1427 + $0x24] sm:$0xf]
      %v5659 = vld [vmem:[%s1427 + $0x28] sm:$0xf]
      %v5660 = vld [vmem:[%s1427 + $0x30] sm:$0xf]
      %v5661 = vld [vmem:[%s1427 + $0x34] sm:$0xf]
      %v5662 = vld [vmem:[%s1427 + $0x3c] sm:$0xf]
      %v5663 = vld [vmem:[%s1427 + $0x40] sm:$0xf]
      %v5664 = vld [vmem:[%s1427 + $0x48] sm:$0xf]
      %v5665 = vld [vmem:[%s1427 + $0x4c] sm:$0xf]
      %v5666 = vld [vmem:[%s1427 + $0x54] sm:$0xf]
      %v5667 = vld [vmem:[%s1427 + $0x58] sm:$0xf]
      %v5668 = vld [vmem:[%s1427 + $0x60] sm:$0xf]
      %v5669 = vld [vmem:[%s1427 + $0x64] sm:$0xf]
      %v5670 = vld [vmem:[%s1427 + $0x6c] sm:$0xf]
      %v5671 = vld [vmem:[%s1427 + $0x70] sm:$0xf]
      %v5672 = vld [vmem:[%s1427 + $0x78] sm:$0xf]
      %v5673 = vld [vmem:[%s1427 + $0x7c] sm:$0xf]
      %v5674 = vld [vmem:[%s1427 + $0x84] sm:$0xf]
      %v5675 = vld [vmem:[%s1427 + $0x88] sm:$0xf]
      %v5676 = vld [vmem:[%s1427 + $0x90] sm:$0xf]
      %v5677 = vld [vmem:[%s1427 + $0x94] sm:$0xf]
      %v5678 = vld [vmem:[%s1427 + $0x9c] sm:$0xf]
      %v5679 = vld [vmem:[%s1427 + $0xa0] sm:$0xf]
      %v5680 = vld [vmem:[%s1427 + $0xa8] sm:$0xf]
      %v5681 = vld [vmem:[%s1427 + $0xac] sm:$0xf]
      %v5682 = vld [vmem:[%s1427 + $0xb4] sm:$0xf]
      %v5683 = vld [vmem:[%s1427 + $0xb8] sm:$0xf]
      %v5716 = vunpack.c.l.b16 %v5652
      %v5717 = vunpack.c.l.b16 %v5653
      %v5718 = vunpack.c.l.b16 %v5654
      %v5719 = vunpack.c.l.b16 %v5655
      %v5720 = vunpack.c.l.b16 %v5656
      %v5721 = vunpack.c.l.b16 %v5657
      %v5722 = vunpack.c.l.b16 %v5658
      %v5723 = vunpack.c.l.b16 %v5659
      %v5724 = vunpack.c.l.b16 %v5660
      %v5725 = vunpack.c.l.b16 %v5661
      %v5726 = vunpack.c.l.b16 %v5662
      %v5727 = vunpack.c.l.b16 %v5663
      %v5728 = vunpack.c.l.b16 %v5664
      %v5729 = vunpack.c.l.b16 %v5665
      %v5730 = vunpack.c.l.b16 %v5666
      %v5731 = vunpack.c.l.b16 %v5667
      %v5732 = vunpack.c.l.b16 %v5668
      %v5733 = vunpack.c.l.b16 %v5669
      %v5734 = vunpack.c.l.b16 %v5670
      %v5735 = vunpack.c.l.b16 %v5671
      %v5736 = vunpack.c.l.b16 %v5672
      %v5737 = vunpack.c.l.b16 %v5673
      %v5738 = vunpack.c.l.b16 %v5674
      %v5739 = vunpack.c.l.b16 %v5675
      %v5740 = vunpack.c.l.b16 %v5676
      %v5741 = vunpack.c.l.b16 %v5677
      %v5742 = vunpack.c.l.b16 %v5678
      %v5743 = vunpack.c.l.b16 %v5679
      %v5744 = vunpack.c.l.b16 %v5680
      %v5745 = vunpack.c.l.b16 %v5681
      %v5746 = vunpack.c.l.b16 %v5682
      %v5747 = vunpack.c.l.b16 %v5683
      %v5748 = vpack.c.b16 %v5717, %v5716
      %v5749 = vpack.c.b16 %v5719, %v5718
      %v5750 = vpack.c.b16 %v5721, %v5720
      %v5751 = vpack.c.b16 %v5723, %v5722
      %v5752 = vpack.c.b16 %v5725, %v5724
      %v5753 = vpack.c.b16 %v5727, %v5726
      %v5754 = vpack.c.b16 %v5729, %v5728
      %v5755 = vpack.c.b16 %v5731, %v5730
      %v5756 = vpack.c.b16 %v5733, %v5732
      %v5757 = vpack.c.b16 %v5735, %v5734
      %v5758 = vpack.c.b16 %v5737, %v5736
      %v5759 = vpack.c.b16 %v5739, %v5738
      %v5760 = vpack.c.b16 %v5741, %v5740
      %v5761 = vpack.c.b16 %v5743, %v5742
      %v5762 = vpack.c.b16 %v5745, %v5744
      %v5763 = vpack.c.b16 %v5747, %v5746
      %5764 = vrot.lane.b32.xlu0 %v5748, 24
      %v5765 = vpop.permute.xlu0 %5764
      %5766 = vrot.lane.b32.xlu0 %v5749, 24
      %v5767 = vpop.permute.xlu0 %5766
      %5768 = vrot.lane.b32.xlu0 %v5750, 24
      %v5769 = vpop.permute.xlu0 %5768
      %5770 = vrot.lane.b32.xlu0 %v5751, 24
      %v5771 = vpop.permute.xlu0 %5770
      %5772 = vrot.lane.b32.xlu0 %v5752, 24
      %v5773 = vpop.permute.xlu0 %5772
      %5774 = vrot.lane.b32.xlu0 %v5753, 24
      %v5775 = vpop.permute.xlu0 %5774
      %5776 = vrot.lane.b32.xlu0 %v5754, 24
      %v5777 = vpop.permute.xlu0 %5776
      %5778 = vrot.lane.b32.xlu0 %v5755, 24
      %v5779 = vpop.permute.xlu0 %5778
      %5780 = vrot.lane.b32.xlu0 %v5756, 24
      %v5781 = vpop.permute.xlu0 %5780
      %5782 = vrot.lane.b32.xlu0 %v5757, 24
      %v5783 = vpop.permute.xlu0 %5782
      %5784 = vrot.lane.b32.xlu0 %v5758, 24
      %v5785 = vpop.permute.xlu0 %5784
      %5786 = vrot.lane.b32.xlu0 %v5759, 24
      %v5787 = vpop.permute.xlu0 %5786
      %5788 = vrot.lane.b32.xlu0 %v5760, 24
      %v5789 = vpop.permute.xlu0 %5788
      %5790 = vrot.lane.b32.xlu0 %v5761, 24
      %v5791 = vpop.permute.xlu0 %5790
      %5792 = vrot.lane.b32.xlu0 %v5762, 24
      %v5793 = vpop.permute.xlu0 %5792
      %5794 = vrot.lane.b32.xlu0 %v5763, 24
      %v5795 = vpop.permute.xlu0 %5794
      %5812 = vst.msk [vmem:[#allocation5] sm:$0xff] %vm2717, %v5765
      %5813 = vst.msk [vmem:[#allocation5 + $0x8] sm:$0xff] %vm2717, %v5767
      %5814 = vst.msk [vmem:[#allocation5 + $0x10] sm:$0xff] %vm2717, %v5769
      %5815 = vst.msk [vmem:[#allocation5 + $0x18] sm:$0xff] %vm2717, %v5771
      %5816 = vst.msk [vmem:[#allocation5 + $0x20] sm:$0xff] %vm2717, %v5773
      %5817 = vst.msk [vmem:[#allocation5 + $0x28] sm:$0xff] %vm2717, %v5775
      %5818 = vst.msk [vmem:[#allocation5 + $0x30] sm:$0xff] %vm2717, %v5777
      %5819 = vst.msk [vmem:[#allocation5 + $0x38] sm:$0xff] %vm2717, %v5779
      %5820 = vst.msk [vmem:[#allocation5 + $0x40] sm:$0xff] %vm2717, %v5781
      %5821 = vst.msk [vmem:[#allocation5 + $0x48] sm:$0xff] %vm2717, %v5783
      %5822 = vst.msk [vmem:[#allocation5 + $0x50] sm:$0xff] %vm2717, %v5785
      %5823 = vst.msk [vmem:[#allocation5 + $0x58] sm:$0xff] %vm2717, %v5787
      %5824 = vst.msk [vmem:[#allocation5 + $0x60] sm:$0xff] %vm2717, %v5789
      %5825 = vst.msk [vmem:[#allocation5 + $0x68] sm:$0xff] %vm2717, %v5791
      %5826 = vst.msk [vmem:[#allocation5 + $0x70] sm:$0xff] %vm2717, %v5793
      %5827 = vst.msk [vmem:[#allocation5 + $0x78] sm:$0xff] %vm2717, %v5795
      %v5828 = vld [vmem:[%s1427] sm:$0xf]
      %v5829 = vld [vmem:[%s1427 + $0x4] sm:$0xf]
      %v5830 = vld [vmem:[%s1427 + $0x8] sm:$0x1]
      %v5831 = vld [vmem:[%s1427 + $0xc] sm:$0xf]
      %v5832 = vld [vmem:[%s1427 + $0x10] sm:$0xf]
      %v5833 = vld [vmem:[%s1427 + $0x14] sm:$0x1]
      %v5834 = vld [vmem:[%s1427 + $0x18] sm:$0xf]
      %v5835 = vld [vmem:[%s1427 + $0x1c] sm:$0xf]
      %v5836 = vld [vmem:[%s1427 + $0x20] sm:$0x1]
      %v5837 = vld [vmem:[%s1427 + $0x24] sm:$0xf]
      %v5838 = vld [vmem:[%s1427 + $0x28] sm:$0xf]
      %v5839 = vld [vmem:[%s1427 + $0x2c] sm:$0x1]
      %v5840 = vld [vmem:[%s1427 + $0x30] sm:$0xf]
      %v5841 = vld [vmem:[%s1427 + $0x34] sm:$0xf]
      %v5842 = vld [vmem:[%s1427 + $0x38] sm:$0x1]
      %v5843 = vld [vmem:[%s1427 + $0x3c] sm:$0xf]
      %v5844 = vld [vmem:[%s1427 + $0x40] sm:$0xf]
      %v5845 = vld [vmem:[%s1427 + $0x44] sm:$0x1]
      %v5846 = vld [vmem:[%s1427 + $0x48] sm:$0xf]
      %v5847 = vld [vmem:[%s1427 + $0x4c] sm:$0xf]
      %v5848 = vld [vmem:[%s1427 + $0x50] sm:$0x1]
      %v5849 = vld [vmem:[%s1427 + $0x54] sm:$0xf]
      %v5850 = vld [vmem:[%s1427 + $0x58] sm:$0xf]
      %v5851 = vld [vmem:[%s1427 + $0x5c] sm:$0x1]
      %v5852 = vld [vmem:[%s1427 + $0x60] sm:$0xf]
      %v5853 = vld [vmem:[%s1427 + $0x64] sm:$0xf]
      %v5854 = vld [vmem:[%s1427 + $0x68] sm:$0x1]
      %v5855 = vld [vmem:[%s1427 + $0x6c] sm:$0xf]
      %v5856 = vld [vmem:[%s1427 + $0x70] sm:$0xf]
      %v5857 = vld [vmem:[%s1427 + $0x74] sm:$0x1]
      %v5858 = vld [vmem:[%s1427 + $0x78] sm:$0xf]
      %v5859 = vld [vmem:[%s1427 + $0x7c] sm:$0xf]
      %v5860 = vld [vmem:[%s1427 + $0x80] sm:$0x1]
      %v5861 = vld [vmem:[%s1427 + $0x84] sm:$0xf]
      %v5862 = vld [vmem:[%s1427 + $0x88] sm:$0xf]
      %v5863 = vld [vmem:[%s1427 + $0x8c] sm:$0x1]
      %v5864 = vld [vmem:[%s1427 + $0x90] sm:$0xf]
      %v5865 = vld [vmem:[%s1427 + $0x94] sm:$0xf]
      %v5866 = vld [vmem:[%s1427 + $0x98] sm:$0x1]
      %v5867 = vld [vmem:[%s1427 + $0x9c] sm:$0xf]
      %v5868 = vld [vmem:[%s1427 + $0xa0] sm:$0xf]
      %v5869 = vld [vmem:[%s1427 + $0xa4] sm:$0x1]
      %v5870 = vld [vmem:[%s1427 + $0xa8] sm:$0xf]
      %v5871 = vld [vmem:[%s1427 + $0xac] sm:$0xf]
      %v5872 = vld [vmem:[%s1427 + $0xb0] sm:$0x1]
      %v5873 = vld [vmem:[%s1427 + $0xb4] sm:$0xf]
      %v5874 = vld [vmem:[%s1427 + $0xb8] sm:$0xf]
      %v5875 = vld [vmem:[%s1427 + $0xbc] sm:$0x1]
      %v5877 = vshrl.u32 %v5828, 16
      %v5879 = vrot.slane %v5877, 4
      %v5880 = vshll.u32 %v5828, 16
      %v5882 = vrot.slane %v5880, 5
      %v5883 = vor.u32 %v5879, %v5882
      %v5884 = vrot.slane %v5883, 4
      %v5886 = vshll.u32 %v5829, 16
      %v5888 = vrot.slane %v5886, 5
      %v5889 = vsel %vm1735, %v5884, %v5888
      %v5890 = vshrl.u32 %v5829, 16
      %v5892 = vrot.slane %v5890, 4
      %v5893 = vor.u32 %v5892, %v5888
      %v5894 = vrot.slane %v5893, 4
      %v5896 = vshll.u32 %v5830, 16
      %v5898 = vrot.slane %v5896, 5
      %v5899 = vsel %vm1735, %v5894, %v5898
      %v5901 = vshrl.u32 %v5831, 16
      %v5903 = vrot.slane %v5901, 4
      %v5904 = vshll.u32 %v5831, 16
      %v5906 = vrot.slane %v5904, 5
      %v5907 = vor.u32 %v5903, %v5906
      %v5908 = vrot.slane %v5907, 4
      %v5910 = vshll.u32 %v5832, 16
      %v5912 = vrot.slane %v5910, 5
      %v5913 = vsel %vm1735, %v5908, %v5912
      %v5914 = vshrl.u32 %v5832, 16
      %v5916 = vrot.slane %v5914, 4
      %v5917 = vor.u32 %v5916, %v5912
      %v5918 = vrot.slane %v5917, 4
      %v5920 = vshll.u32 %v5833, 16
      %v5922 = vrot.slane %v5920, 5
      %v5923 = vsel %vm1735, %v5918, %v5922
      %v5925 = vshrl.u32 %v5834, 16
      %v5927 = vrot.slane %v5925, 4
      %v5928 = vshll.u32 %v5834, 16
      %v5930 = vrot.slane %v5928, 5
      %v5931 = vor.u32 %v5927, %v5930
      %v5932 = vrot.slane %v5931, 4
      %v5934 = vshll.u32 %v5835, 16
      %v5936 = vrot.slane %v5934, 5
      %v5937 = vsel %vm1735, %v5932, %v5936
      %v5938 = vshrl.u32 %v5835, 16
      %v5940 = vrot.slane %v5938, 4
      %v5941 = vor.u32 %v5940, %v5936
      %v5942 = vrot.slane %v5941, 4
      %v5944 = vshll.u32 %v5836, 16
      %v5946 = vrot.slane %v5944, 5
      %v5947 = vsel %vm1735, %v5942, %v5946
      %v5949 = vshrl.u32 %v5837, 16
      %v5951 = vrot.slane %v5949, 4
      %v5952 = vshll.u32 %v5837, 16
      %v5954 = vrot.slane %v5952, 5
      %v5955 = vor.u32 %v5951, %v5954
      %v5956 = vrot.slane %v5955, 4
      %v5958 = vshll.u32 %v5838, 16
      %v5960 = vrot.slane %v5958, 5
      %v5961 = vsel %vm1735, %v5956, %v5960
      %v5962 = vshrl.u32 %v5838, 16
      %v5964 = vrot.slane %v5962, 4
      %v5965 = vor.u32 %v5964, %v5960
      %v5966 = vrot.slane %v5965, 4
      %v5968 = vshll.u32 %v5839, 16
      %v5970 = vrot.slane %v5968, 5
      %v5971 = vsel %vm1735, %v5966, %v5970
      %v5973 = vshrl.u32 %v5840, 16
      %v5975 = vrot.slane %v5973, 4
      %v5976 = vshll.u32 %v5840, 16
      %v5978 = vrot.slane %v5976, 5
      %v5979 = vor.u32 %v5975, %v5978
      %v5980 = vrot.slane %v5979, 4
      %v5982 = vshll.u32 %v5841, 16
      %v5984 = vrot.slane %v5982, 5
      %v5985 = vsel %vm1735, %v5980, %v5984
      %v5986 = vshrl.u32 %v5841, 16
      %v5988 = vrot.slane %v5986, 4
      %v5989 = vor.u32 %v5988, %v5984
      %v5990 = vrot.slane %v5989, 4
      %v5992 = vshll.u32 %v5842, 16
      %v5994 = vrot.slane %v5992, 5
      %v5995 = vsel %vm1735, %v5990, %v5994
      %v5997 = vshrl.u32 %v5843, 16
      %v5999 = vrot.slane %v5997, 4
      %v6000 = vshll.u32 %v5843, 16
      %v6002 = vrot.slane %v6000, 5
      %v6003 = vor.u32 %v5999, %v6002
      %v6004 = vrot.slane %v6003, 4
      %v6006 = vshll.u32 %v5844, 16
      %v6008 = vrot.slane %v6006, 5
      %v6009 = vsel %vm1735, %v6004, %v6008
      %v6010 = vshrl.u32 %v5844, 16
      %v6012 = vrot.slane %v6010, 4
      %v6013 = vor.u32 %v6012, %v6008
      %v6014 = vrot.slane %v6013, 4
      %v6016 = vshll.u32 %v5845, 16
      %v6018 = vrot.slane %v6016, 5
      %v6019 = vsel %vm1735, %v6014, %v6018
      %v6021 = vshrl.u32 %v5846, 16
      %v6023 = vrot.slane %v6021, 4
      %v6024 = vshll.u32 %v5846, 16
      %v6026 = vrot.slane %v6024, 5
      %v6027 = vor.u32 %v6023, %v6026
      %v6028 = vrot.slane %v6027, 4
      %v6030 = vshll.u32 %v5847, 16
      %v6032 = vrot.slane %v6030, 5
      %v6033 = vsel %vm1735, %v6028, %v6032
      %v6034 = vshrl.u32 %v5847, 16
      %v6036 = vrot.slane %v6034, 4
      %v6037 = vor.u32 %v6036, %v6032
      %v6038 = vrot.slane %v6037, 4
      %v6040 = vshll.u32 %v5848, 16
      %v6042 = vrot.slane %v6040, 5
      %v6043 = vsel %vm1735, %v6038, %v6042
      %v6045 = vshrl.u32 %v5849, 16
      %v6047 = vrot.slane %v6045, 4
      %v6048 = vshll.u32 %v5849, 16
      %v6050 = vrot.slane %v6048, 5
      %v6051 = vor.u32 %v6047, %v6050
      %v6052 = vrot.slane %v6051, 4
      %v6054 = vshll.u32 %v5850, 16
      %v6056 = vrot.slane %v6054, 5
      %v6057 = vsel %vm1735, %v6052, %v6056
      %v6058 = vshrl.u32 %v5850, 16
      %v6060 = vrot.slane %v6058, 4
      %v6061 = vor.u32 %v6060, %v6056
      %v6062 = vrot.slane %v6061, 4
      %v6064 = vshll.u32 %v5851, 16
      %v6066 = vrot.slane %v6064, 5
      %v6067 = vsel %vm1735, %v6062, %v6066
      %v6069 = vshrl.u32 %v5852, 16
      %v6071 = vrot.slane %v6069, 4
      %v6072 = vshll.u32 %v5852, 16
      %v6074 = vrot.slane %v6072, 5
      %v6075 = vor.u32 %v6071, %v6074
      %v6076 = vrot.slane %v6075, 4
      %v6078 = vshll.u32 %v5853, 16
      %v6080 = vrot.slane %v6078, 5
      %v6081 = vsel %vm1735, %v6076, %v6080
      %v6082 = vshrl.u32 %v5853, 16
      %v6084 = vrot.slane %v6082, 4
      %v6085 = vor.u32 %v6084, %v6080
      %v6086 = vrot.slane %v6085, 4
      %v6088 = vshll.u32 %v5854, 16
      %v6090 = vrot.slane %v6088, 5
      %v6091 = vsel %vm1735, %v6086, %v6090
      %v6093 = vshrl.u32 %v5855, 16
      %v6095 = vrot.slane %v6093, 4
      %v6096 = vshll.u32 %v5855, 16
      %v6098 = vrot.slane %v6096, 5
      %v6099 = vor.u32 %v6095, %v6098
      %v6100 = vrot.slane %v6099, 4
      %v6102 = vshll.u32 %v5856, 16
      %v6104 = vrot.slane %v6102, 5
      %v6105 = vsel %vm1735, %v6100, %v6104
      %v6106 = vshrl.u32 %v5856, 16
      %v6108 = vrot.slane %v6106, 4
      %v6109 = vor.u32 %v6108, %v6104
      %v6110 = vrot.slane %v6109, 4
      %v6112 = vshll.u32 %v5857, 16
      %v6114 = vrot.slane %v6112, 5
      %v6115 = vsel %vm1735, %v6110, %v6114
      %v6117 = vshrl.u32 %v5858, 16
      %v6119 = vrot.slane %v6117, 4
      %v6120 = vshll.u32 %v5858, 16
      %v6122 = vrot.slane %v6120, 5
      %v6123 = vor.u32 %v6119, %v6122
      %v6124 = vrot.slane %v6123, 4
      %v6126 = vshll.u32 %v5859, 16
      %v6128 = vrot.slane %v6126, 5
      %v6129 = vsel %vm1735, %v6124, %v6128
      %v6130 = vshrl.u32 %v5859, 16
      %v6132 = vrot.slane %v6130, 4
      %v6133 = vor.u32 %v6132, %v6128
      %v6134 = vrot.slane %v6133, 4
      %v6136 = vshll.u32 %v5860, 16
      %v6138 = vrot.slane %v6136, 5
      %v6139 = vsel %vm1735, %v6134, %v6138
      %v6141 = vshrl.u32 %v5861, 16
      %v6143 = vrot.slane %v6141, 4
      %v6144 = vshll.u32 %v5861, 16
      %v6146 = vrot.slane %v6144, 5
      %v6147 = vor.u32 %v6143, %v6146
      %v6148 = vrot.slane %v6147, 4
      %v6150 = vshll.u32 %v5862, 16
      %v6152 = vrot.slane %v6150, 5
      %v6153 = vsel %vm1735, %v6148, %v6152
      %v6154 = vshrl.u32 %v5862, 16
      %v6156 = vrot.slane %v6154, 4
      %v6157 = vor.u32 %v6156, %v6152
      %v6158 = vrot.slane %v6157, 4
      %v6160 = vshll.u32 %v5863, 16
      %v6162 = vrot.slane %v6160, 5
      %v6163 = vsel %vm1735, %v6158, %v6162
      %v6165 = vshrl.u32 %v5864, 16
      %v6167 = vrot.slane %v6165, 4
      %v6168 = vshll.u32 %v5864, 16
      %v6170 = vrot.slane %v6168, 5
      %v6171 = vor.u32 %v6167, %v6170
      %v6172 = vrot.slane %v6171, 4
      %v6174 = vshll.u32 %v5865, 16
      %v6176 = vrot.slane %v6174, 5
      %v6177 = vsel %vm1735, %v6172, %v6176
      %v6178 = vshrl.u32 %v5865, 16
      %v6180 = vrot.slane %v6178, 4
      %v6181 = vor.u32 %v6180, %v6176
      %v6182 = vrot.slane %v6181, 4
      %v6184 = vshll.u32 %v5866, 16
      %v6186 = vrot.slane %v6184, 5
      %v6187 = vsel %vm1735, %v6182, %v6186
      %v6189 = vshrl.u32 %v5867, 16
      %v6191 = vrot.slane %v6189, 4
      %v6192 = vshll.u32 %v5867, 16
      %v6194 = vrot.slane %v6192, 5
      %v6195 = vor.u32 %v6191, %v6194
      %v6196 = vrot.slane %v6195, 4
      %v6198 = vshll.u32 %v5868, 16
      %v6200 = vrot.slane %v6198, 5
      %v6201 = vsel %vm1735, %v6196, %v6200
      %v6202 = vshrl.u32 %v5868, 16
      %v6204 = vrot.slane %v6202, 4
      %v6205 = vor.u32 %v6204, %v6200
      %v6206 = vrot.slane %v6205, 4
      %v6208 = vshll.u32 %v5869, 16
      %v6210 = vrot.slane %v6208, 5
      %v6211 = vsel %vm1735, %v6206, %v6210
      %v6213 = vshrl.u32 %v5870, 16
      %v6215 = vrot.slane %v6213, 4
      %v6216 = vshll.u32 %v5870, 16
      %v6218 = vrot.slane %v6216, 5
      %v6219 = vor.u32 %v6215, %v6218
      %v6220 = vrot.slane %v6219, 4
      %v6222 = vshll.u32 %v5871, 16
      %v6224 = vrot.slane %v6222, 5
      %v6225 = vsel %vm1735, %v6220, %v6224
      %v6226 = vshrl.u32 %v5871, 16
      %v6228 = vrot.slane %v6226, 4
      %v6229 = vor.u32 %v6228, %v6224
      %v6230 = vrot.slane %v6229, 4
      %v6232 = vshll.u32 %v5872, 16
      %v6234 = vrot.slane %v6232, 5
      %v6235 = vsel %vm1735, %v6230, %v6234
      %v6237 = vshrl.u32 %v5873, 16
      %v6239 = vrot.slane %v6237, 4
      %v6240 = vshll.u32 %v5873, 16
      %v6242 = vrot.slane %v6240, 5
      %v6243 = vor.u32 %v6239, %v6242
      %v6244 = vrot.slane %v6243, 4
      %v6246 = vshll.u32 %v5874, 16
      %v6248 = vrot.slane %v6246, 5
      %v6249 = vsel %vm1735, %v6244, %v6248
      %v6250 = vshrl.u32 %v5874, 16
      %v6252 = vrot.slane %v6250, 4
      %v6253 = vor.u32 %v6252, %v6248
      %v6254 = vrot.slane %v6253, 4
      %v6256 = vshll.u32 %v5875, 16
      %v6258 = vrot.slane %v6256, 5
      %v6259 = vsel %vm1735, %v6254, %v6258
      %v6260 = vunpack.c.l.b16 %v5889
      %v6261 = vunpack.c.l.b16 %v5899
      %v6262 = vunpack.c.l.b16 %v5913
      %v6263 = vunpack.c.l.b16 %v5923
      %v6264 = vunpack.c.l.b16 %v5937
      %v6265 = vunpack.c.l.b16 %v5947
      %v6266 = vunpack.c.l.b16 %v5961
      %v6267 = vunpack.c.l.b16 %v5971
      %v6268 = vunpack.c.l.b16 %v5985
      %v6269 = vunpack.c.l.b16 %v5995
      %v6270 = vunpack.c.l.b16 %v6009
      %v6271 = vunpack.c.l.b16 %v6019
      %v6272 = vunpack.c.l.b16 %v6033
      %v6273 = vunpack.c.l.b16 %v6043
      %v6274 = vunpack.c.l.b16 %v6057
      %v6275 = vunpack.c.l.b16 %v6067
      %v6276 = vunpack.c.l.b16 %v6081
      %v6277 = vunpack.c.l.b16 %v6091
      %v6278 = vunpack.c.l.b16 %v6105
      %v6279 = vunpack.c.l.b16 %v6115
      %v6280 = vunpack.c.l.b16 %v6129
      %v6281 = vunpack.c.l.b16 %v6139
      %v6282 = vunpack.c.l.b16 %v6153
      %v6283 = vunpack.c.l.b16 %v6163
      %v6284 = vunpack.c.l.b16 %v6177
      %v6285 = vunpack.c.l.b16 %v6187
      %v6286 = vunpack.c.l.b16 %v6201
      %v6287 = vunpack.c.l.b16 %v6211
      %v6288 = vunpack.c.l.b16 %v6225
      %v6289 = vunpack.c.l.b16 %v6235
      %v6290 = vunpack.c.l.b16 %v6249
      %v6291 = vunpack.c.l.b16 %v6259
      %v6292 = vpack.c.b16 %v6261, %v6260
      %v6293 = vpack.c.b16 %v6263, %v6262
      %v6294 = vpack.c.b16 %v6265, %v6264
      %v6295 = vpack.c.b16 %v6267, %v6266
      %v6296 = vpack.c.b16 %v6269, %v6268
      %v6297 = vpack.c.b16 %v6271, %v6270
      %v6298 = vpack.c.b16 %v6273, %v6272
      %v6299 = vpack.c.b16 %v6275, %v6274
      %v6300 = vpack.c.b16 %v6277, %v6276
      %v6301 = vpack.c.b16 %v6279, %v6278
      %v6302 = vpack.c.b16 %v6281, %v6280
      %v6303 = vpack.c.b16 %v6283, %v6282
      %v6304 = vpack.c.b16 %v6285, %v6284
      %v6305 = vpack.c.b16 %v6287, %v6286
      %v6306 = vpack.c.b16 %v6289, %v6288
      %v6307 = vpack.c.b16 %v6291, %v6290
      %6308 = vrot.lane.b32.xlu0 %v6292, 32
      %v6309 = vpop.permute.xlu0 %6308
      %6310 = vrot.lane.b32.xlu0 %v6293, 32
      %v6311 = vpop.permute.xlu0 %6310
      %6312 = vrot.lane.b32.xlu0 %v6294, 32
      %v6313 = vpop.permute.xlu0 %6312
      %6314 = vrot.lane.b32.xlu0 %v6295, 32
      %v6315 = vpop.permute.xlu0 %6314
      %6316 = vrot.lane.b32.xlu0 %v6296, 32
      %v6317 = vpop.permute.xlu0 %6316
      %6318 = vrot.lane.b32.xlu0 %v6297, 32
      %v6319 = vpop.permute.xlu0 %6318
      %6320 = vrot.lane.b32.xlu0 %v6298, 32
      %v6321 = vpop.permute.xlu0 %6320
      %6322 = vrot.lane.b32.xlu0 %v6299, 32
      %v6323 = vpop.permute.xlu0 %6322
      %6324 = vrot.lane.b32.xlu0 %v6300, 32
      %v6325 = vpop.permute.xlu0 %6324
      %6326 = vrot.lane.b32.xlu0 %v6301, 32
      %v6327 = vpop.permute.xlu0 %6326
      %6328 = vrot.lane.b32.xlu0 %v6302, 32
      %v6329 = vpop.permute.xlu0 %6328
      %6330 = vrot.lane.b32.xlu0 %v6303, 32
      %v6331 = vpop.permute.xlu0 %6330
      %6332 = vrot.lane.b32.xlu0 %v6304, 32
      %v6333 = vpop.permute.xlu0 %6332
      %6334 = vrot.lane.b32.xlu0 %v6305, 32
      %v6335 = vpop.permute.xlu0 %6334
      %6336 = vrot.lane.b32.xlu0 %v6306, 32
      %v6337 = vpop.permute.xlu0 %6336
      %6338 = vrot.lane.b32.xlu0 %v6307, 32
      %v6339 = vpop.permute.xlu0 %6338
      %6356 = vst.msk [vmem:[#allocation5] sm:$0xff] %vm3262, %v6309
      %6357 = vst.msk [vmem:[#allocation5 + $0x8] sm:$0xff] %vm3262, %v6311
      %6358 = vst.msk [vmem:[#allocation5 + $0x10] sm:$0xff] %vm3262, %v6313
      %6359 = vst.msk [vmem:[#allocation5 + $0x18] sm:$0xff] %vm3262, %v6315
      %6360 = vst.msk [vmem:[#allocation5 + $0x20] sm:$0xff] %vm3262, %v6317
      %6361 = vst.msk [vmem:[#allocation5 + $0x28] sm:$0xff] %vm3262, %v6319
      %6362 = vst.msk [vmem:[#allocation5 + $0x30] sm:$0xff] %vm3262, %v6321
      %6363 = vst.msk [vmem:[#allocation5 + $0x38] sm:$0xff] %vm3262, %v6323
      %6364 = vst.msk [vmem:[#allocation5 + $0x40] sm:$0xff] %vm3262, %v6325
      %6365 = vst.msk [vmem:[#allocation5 + $0x48] sm:$0xff] %vm3262, %v6327
      %6366 = vst.msk [vmem:[#allocation5 + $0x50] sm:$0xff] %vm3262, %v6329
      %6367 = vst.msk [vmem:[#allocation5 + $0x58] sm:$0xff] %vm3262, %v6331
      %6368 = vst.msk [vmem:[#allocation5 + $0x60] sm:$0xff] %vm3262, %v6333
      %6369 = vst.msk [vmem:[#allocation5 + $0x68] sm:$0xff] %vm3262, %v6335
      %6370 = vst.msk [vmem:[#allocation5 + $0x70] sm:$0xff] %vm3262, %v6337
      %6371 = vst.msk [vmem:[#allocation5 + $0x78] sm:$0xff] %vm3262, %v6339
      %v6372 = vld [vmem:[%s1427] sm:$0xe]
      %v6373 = vld [vmem:[%s1427 + $0x4] sm:$0xf]
      %v6374 = vld [vmem:[%s1427 + $0x8] sm:$0x1]
      %v6375 = vld [vmem:[%s1427 + $0xc] sm:$0xe]
      %v6376 = vld [vmem:[%s1427 + $0x10] sm:$0xf]
      %v6377 = vld [vmem:[%s1427 + $0x14] sm:$0x1]
      %v6378 = vld [vmem:[%s1427 + $0x18] sm:$0xe]
      %v6379 = vld [vmem:[%s1427 + $0x1c] sm:$0xf]
      %v6380 = vld [vmem:[%s1427 + $0x20] sm:$0x1]
      %v6381 = vld [vmem:[%s1427 + $0x24] sm:$0xe]
      %v6382 = vld [vmem:[%s1427 + $0x28] sm:$0xf]
      %v6383 = vld [vmem:[%s1427 + $0x2c] sm:$0x1]
      %v6384 = vld [vmem:[%s1427 + $0x30] sm:$0xe]
      %v6385 = vld [vmem:[%s1427 + $0x34] sm:$0xf]
      %v6386 = vld [vmem:[%s1427 + $0x38] sm:$0x1]
      %v6387 = vld [vmem:[%s1427 + $0x3c] sm:$0xe]
      %v6388 = vld [vmem:[%s1427 + $0x40] sm:$0xf]
      %v6389 = vld [vmem:[%s1427 + $0x44] sm:$0x1]
      %v6390 = vld [vmem:[%s1427 + $0x48] sm:$0xe]
      %v6391 = vld [vmem:[%s1427 + $0x4c] sm:$0xf]
      %v6392 = vld [vmem:[%s1427 + $0x50] sm:$0x1]
      %v6393 = vld [vmem:[%s1427 + $0x54] sm:$0xe]
      %v6394 = vld [vmem:[%s1427 + $0x58] sm:$0xf]
      %v6395 = vld [vmem:[%s1427 + $0x5c] sm:$0x1]
      %v6396 = vld [vmem:[%s1427 + $0x60] sm:$0xe]
      %v6397 = vld [vmem:[%s1427 + $0x64] sm:$0xf]
      %v6398 = vld [vmem:[%s1427 + $0x68] sm:$0x1]
      %v6399 = vld [vmem:[%s1427 + $0x6c] sm:$0xe]
      %v6400 = vld [vmem:[%s1427 + $0x70] sm:$0xf]
      %v6401 = vld [vmem:[%s1427 + $0x74] sm:$0x1]
      %v6402 = vld [vmem:[%s1427 + $0x78] sm:$0xe]
      %v6403 = vld [vmem:[%s1427 + $0x7c] sm:$0xf]
      %v6404 = vld [vmem:[%s1427 + $0x80] sm:$0x1]
      %v6405 = vld [vmem:[%s1427 + $0x84] sm:$0xe]
      %v6406 = vld [vmem:[%s1427 + $0x88] sm:$0xf]
      %v6407 = vld [vmem:[%s1427 + $0x8c] sm:$0x1]
      %v6408 = vld [vmem:[%s1427 + $0x90] sm:$0xe]
      %v6409 = vld [vmem:[%s1427 + $0x94] sm:$0xf]
      %v6410 = vld [vmem:[%s1427 + $0x98] sm:$0x1]
      %v6411 = vld [vmem:[%s1427 + $0x9c] sm:$0xe]
      %v6412 = vld [vmem:[%s1427 + $0xa0] sm:$0xf]
      %v6413 = vld [vmem:[%s1427 + $0xa4] sm:$0x1]
      %v6414 = vld [vmem:[%s1427 + $0xa8] sm:$0xe]
      %v6415 = vld [vmem:[%s1427 + $0xac] sm:$0xf]
      %v6416 = vld [vmem:[%s1427 + $0xb0] sm:$0x1]
      %v6417 = vld [vmem:[%s1427 + $0xb4] sm:$0xe]
      %v6418 = vld [vmem:[%s1427 + $0xb8] sm:$0xf]
      %v6419 = vld [vmem:[%s1427 + $0xbc] sm:$0x1]
      %v6468 = vrot.slane %v6372, 5
      %v6469 = vrot.slane %v6468, 4
      %v6470 = vrot.slane %v6373, 5
      %v6471 = vsel %vm2331, %v6469, %v6470
      %v6472 = vrot.slane %v6470, 4
      %v6473 = vrot.slane %v6374, 5
      %v6474 = vsel %vm2331, %v6472, %v6473
      %v6475 = vrot.slane %v6375, 5
      %v6476 = vrot.slane %v6475, 4
      %v6477 = vrot.slane %v6376, 5
      %v6478 = vsel %vm2331, %v6476, %v6477
      %v6479 = vrot.slane %v6477, 4
      %v6480 = vrot.slane %v6377, 5
      %v6481 = vsel %vm2331, %v6479, %v6480
      %v6482 = vrot.slane %v6378, 5
      %v6483 = vrot.slane %v6482, 4
      %v6484 = vrot.slane %v6379, 5
      %v6485 = vsel %vm2331, %v6483, %v6484
      %v6486 = vrot.slane %v6484, 4
      %v6487 = vrot.slane %v6380, 5
      %v6488 = vsel %vm2331, %v6486, %v6487
      %v6489 = vrot.slane %v6381, 5
      %v6490 = vrot.slane %v6489, 4
      %v6491 = vrot.slane %v6382, 5
      %v6492 = vsel %vm2331, %v6490, %v6491
      %v6493 = vrot.slane %v6491, 4
      %v6494 = vrot.slane %v6383, 5
      %v6495 = vsel %vm2331, %v6493, %v6494
      %v6496 = vrot.slane %v6384, 5
      %v6497 = vrot.slane %v6496, 4
      %v6498 = vrot.slane %v6385, 5
      %v6499 = vsel %vm2331, %v6497, %v6498
      %v6500 = vrot.slane %v6498, 4
      %v6501 = vrot.slane %v6386, 5
      %v6502 = vsel %vm2331, %v6500, %v6501
      %v6503 = vrot.slane %v6387, 5
      %v6504 = vrot.slane %v6503, 4
      %v6505 = vrot.slane %v6388, 5
      %v6506 = vsel %vm2331, %v6504, %v6505
      %v6507 = vrot.slane %v6505, 4
      %v6508 = vrot.slane %v6389, 5
      %v6509 = vsel %vm2331, %v6507, %v6508
      %v6510 = vrot.slane %v6390, 5
      %v6511 = vrot.slane %v6510, 4
      %v6512 = vrot.slane %v6391, 5
      %v6513 = vsel %vm2331, %v6511, %v6512
      %v6514 = vrot.slane %v6512, 4
      %v6515 = vrot.slane %v6392, 5
      %v6516 = vsel %vm2331, %v6514, %v6515
      %v6517 = vrot.slane %v6393, 5
      %v6518 = vrot.slane %v6517, 4
      %v6519 = vrot.slane %v6394, 5
      %v6520 = vsel %vm2331, %v6518, %v6519
      %v6521 = vrot.slane %v6519, 4
      %v6522 = vrot.slane %v6395, 5
      %v6523 = vsel %vm2331, %v6521, %v6522
      %v6524 = vrot.slane %v6396, 5
      %v6525 = vrot.slane %v6524, 4
      %v6526 = vrot.slane %v6397, 5
      %v6527 = vsel %vm2331, %v6525, %v6526
      %v6528 = vrot.slane %v6526, 4
      %v6529 = vrot.slane %v6398, 5
      %v6530 = vsel %vm2331, %v6528, %v6529
      %v6531 = vrot.slane %v6399, 5
      %v6532 = vrot.slane %v6531, 4
      %v6533 = vrot.slane %v6400, 5
      %v6534 = vsel %vm2331, %v6532, %v6533
      %v6535 = vrot.slane %v6533, 4
      %v6536 = vrot.slane %v6401, 5
      %v6537 = vsel %vm2331, %v6535, %v6536
      %v6538 = vrot.slane %v6402, 5
      %v6539 = vrot.slane %v6538, 4
      %v6540 = vrot.slane %v6403, 5
      %v6541 = vsel %vm2331, %v6539, %v6540
      %v6542 = vrot.slane %v6540, 4
      %v6543 = vrot.slane %v6404, 5
      %v6544 = vsel %vm2331, %v6542, %v6543
      %v6545 = vrot.slane %v6405, 5
      %v6546 = vrot.slane %v6545, 4
      %v6547 = vrot.slane %v6406, 5
      %v6548 = vsel %vm2331, %v6546, %v6547
      %v6549 = vrot.slane %v6547, 4
      %v6550 = vrot.slane %v6407, 5
      %v6551 = vsel %vm2331, %v6549, %v6550
      %v6552 = vrot.slane %v6408, 5
      %v6553 = vrot.slane %v6552, 4
      %v6554 = vrot.slane %v6409, 5
      %v6555 = vsel %vm2331, %v6553, %v6554
      %v6556 = vrot.slane %v6554, 4
      %v6557 = vrot.slane %v6410, 5
      %v6558 = vsel %vm2331, %v6556, %v6557
      %v6559 = vrot.slane %v6411, 5
      %v6560 = vrot.slane %v6559, 4
      %v6561 = vrot.slane %v6412, 5
      %v6562 = vsel %vm2331, %v6560, %v6561
      %v6563 = vrot.slane %v6561, 4
      %v6564 = vrot.slane %v6413, 5
      %v6565 = vsel %vm2331, %v6563, %v6564
      %v6566 = vrot.slane %v6414, 5
      %v6567 = vrot.slane %v6566, 4
      %v6568 = vrot.slane %v6415, 5
      %v6569 = vsel %vm2331, %v6567, %v6568
      %v6570 = vrot.slane %v6568, 4
      %v6571 = vrot.slane %v6416, 5
      %v6572 = vsel %vm2331, %v6570, %v6571
      %v6573 = vrot.slane %v6417, 5
      %v6574 = vrot.slane %v6573, 4
      %v6575 = vrot.slane %v6418, 5
      %v6576 = vsel %vm2331, %v6574, %v6575
      %v6577 = vrot.slane %v6575, 4
      %v6578 = vrot.slane %v6419, 5
      %v6579 = vsel %vm2331, %v6577, %v6578
      %v6580 = vunpack.c.l.b16 %v6471
      %v6581 = vunpack.c.l.b16 %v6474
      %v6582 = vunpack.c.l.b16 %v6478
      %v6583 = vunpack.c.l.b16 %v6481
      %v6584 = vunpack.c.l.b16 %v6485
      %v6585 = vunpack.c.l.b16 %v6488
      %v6586 = vunpack.c.l.b16 %v6492
      %v6587 = vunpack.c.l.b16 %v6495
      %v6588 = vunpack.c.l.b16 %v6499
      %v6589 = vunpack.c.l.b16 %v6502
      %v6590 = vunpack.c.l.b16 %v6506
      %v6591 = vunpack.c.l.b16 %v6509
      %v6592 = vunpack.c.l.b16 %v6513
      %v6593 = vunpack.c.l.b16 %v6516
      %v6594 = vunpack.c.l.b16 %v6520
      %v6595 = vunpack.c.l.b16 %v6523
      %v6596 = vunpack.c.l.b16 %v6527
      %v6597 = vunpack.c.l.b16 %v6530
      %v6598 = vunpack.c.l.b16 %v6534
      %v6599 = vunpack.c.l.b16 %v6537
      %v6600 = vunpack.c.l.b16 %v6541
      %v6601 = vunpack.c.l.b16 %v6544
      %v6602 = vunpack.c.l.b16 %v6548
      %v6603 = vunpack.c.l.b16 %v6551
      %v6604 = vunpack.c.l.b16 %v6555
      %v6605 = vunpack.c.l.b16 %v6558
      %v6606 = vunpack.c.l.b16 %v6562
      %v6607 = vunpack.c.l.b16 %v6565
      %v6608 = vunpack.c.l.b16 %v6569
      %v6609 = vunpack.c.l.b16 %v6572
      %v6610 = vunpack.c.l.b16 %v6576
      %v6611 = vunpack.c.l.b16 %v6579
      %v6612 = vpack.c.b16 %v6581, %v6580
      %v6613 = vpack.c.b16 %v6583, %v6582
      %v6614 = vpack.c.b16 %v6585, %v6584
      %v6615 = vpack.c.b16 %v6587, %v6586
      %v6616 = vpack.c.b16 %v6589, %v6588
      %v6617 = vpack.c.b16 %v6591, %v6590
      %v6618 = vpack.c.b16 %v6593, %v6592
      %v6619 = vpack.c.b16 %v6595, %v6594
      %v6620 = vpack.c.b16 %v6597, %v6596
      %v6621 = vpack.c.b16 %v6599, %v6598
      %v6622 = vpack.c.b16 %v6601, %v6600
      %v6623 = vpack.c.b16 %v6603, %v6602
      %v6624 = vpack.c.b16 %v6605, %v6604
      %v6625 = vpack.c.b16 %v6607, %v6606
      %v6626 = vpack.c.b16 %v6609, %v6608
      %v6627 = vpack.c.b16 %v6611, %v6610
      %6628 = vrot.lane.b32.xlu0 %v6612, 40
      %v6629 = vpop.permute.xlu0 %6628
      %6630 = vrot.lane.b32.xlu0 %v6613, 40
      %v6631 = vpop.permute.xlu0 %6630
      %6632 = vrot.lane.b32.xlu0 %v6614, 40
      %v6633 = vpop.permute.xlu0 %6632
      %6634 = vrot.lane.b32.xlu0 %v6615, 40
      %v6635 = vpop.permute.xlu0 %6634
      %6636 = vrot.lane.b32.xlu0 %v6616, 40
      %v6637 = vpop.permute.xlu0 %6636
      %6638 = vrot.lane.b32.xlu0 %v6617, 40
      %v6639 = vpop.permute.xlu0 %6638
      %6640 = vrot.lane.b32.xlu0 %v6618, 40
      %v6641 = vpop.permute.xlu0 %6640
      %6642 = vrot.lane.b32.xlu0 %v6619, 40
      %v6643 = vpop.permute.xlu0 %6642
      %6644 = vrot.lane.b32.xlu0 %v6620, 40
      %v6645 = vpop.permute.xlu0 %6644
      %6646 = vrot.lane.b32.xlu0 %v6621, 40
      %v6647 = vpop.permute.xlu0 %6646
      %6648 = vrot.lane.b32.xlu0 %v6622, 40
      %v6649 = vpop.permute.xlu0 %6648
      %6650 = vrot.lane.b32.xlu0 %v6623, 40
      %v6651 = vpop.permute.xlu0 %6650
      %6652 = vrot.lane.b32.xlu0 %v6624, 40
      %v6653 = vpop.permute.xlu0 %6652
      %6654 = vrot.lane.b32.xlu0 %v6625, 40
      %v6655 = vpop.permute.xlu0 %6654
      %6656 = vrot.lane.b32.xlu0 %v6626, 40
      %v6657 = vpop.permute.xlu0 %6656
      %6658 = vrot.lane.b32.xlu0 %v6627, 40
      %v6659 = vpop.permute.xlu0 %6658
      %6676 = vst.msk [vmem:[#allocation5] sm:$0xff] %vm3583, %v6629
      %6677 = vst.msk [vmem:[#allocation5 + $0x8] sm:$0xff] %vm3583, %v6631
      %6678 = vst.msk [vmem:[#allocation5 + $0x10] sm:$0xff] %vm3583, %v6633
      %6679 = vst.msk [vmem:[#allocation5 + $0x18] sm:$0xff] %vm3583, %v6635
      %6680 = vst.msk [vmem:[#allocation5 + $0x20] sm:$0xff] %vm3583, %v6637
      %6681 = vst.msk [vmem:[#allocation5 + $0x28] sm:$0xff] %vm3583, %v6639
      %6682 = vst.msk [vmem:[#allocation5 + $0x30] sm:$0xff] %vm3583, %v6641
      %6683 = vst.msk [vmem:[#allocation5 + $0x38] sm:$0xff] %vm3583, %v6643
      %6684 = vst.msk [vmem:[#allocation5 + $0x40] sm:$0xff] %vm3583, %v6645
      %6685 = vst.msk [vmem:[#allocation5 + $0x48] sm:$0xff] %vm3583, %v6647
      %6686 = vst.msk [vmem:[#allocation5 + $0x50] sm:$0xff] %vm3583, %v6649
      %6687 = vst.msk [vmem:[#allocation5 + $0x58] sm:$0xff] %vm3583, %v6651
      %6688 = vst.msk [vmem:[#allocation5 + $0x60] sm:$0xff] %vm3583, %v6653
      %6689 = vst.msk [vmem:[#allocation5 + $0x68] sm:$0xff] %vm3583, %v6655
      %6690 = vst.msk [vmem:[#allocation5 + $0x70] sm:$0xff] %vm3583, %v6657
      %6691 = vst.msk [vmem:[#allocation5 + $0x78] sm:$0xff] %vm3583, %v6659
      %s6692 = scalar_lea.vmem [#allocation3], 24
      %v6693 = vld [vmem:[%s6692] sm:$0xf]
      %v6694 = vld [vmem:[%s6692 + $0x4] sm:$0xf]
      %v6695 = vld [vmem:[%s6692 + $0xc] sm:$0xf]
      %v6696 = vld [vmem:[%s6692 + $0x10] sm:$0xf]
      %v6697 = vld [vmem:[%s6692 + $0x18] sm:$0xf]
      %v6698 = vld [vmem:[%s6692 + $0x1c] sm:$0xf]
      %v6699 = vld [vmem:[%s6692 + $0x24] sm:$0xf]
      %v6700 = vld [vmem:[%s6692 + $0x28] sm:$0xf]
      %v6701 = vld [vmem:[%s6692 + $0x30] sm:$0xf]
      %v6702 = vld [vmem:[%s6692 + $0x34] sm:$0xf]
      %v6703 = vld [vmem:[%s6692 + $0x3c] sm:$0xf]
      %v6704 = vld [vmem:[%s6692 + $0x40] sm:$0xf]
      %v6705 = vld [vmem:[%s6692 + $0x48] sm:$0xf]
      %v6706 = vld [vmem:[%s6692 + $0x4c] sm:$0xf]
      %v6707 = vld [vmem:[%s6692 + $0x54] sm:$0xf]
      %v6708 = vld [vmem:[%s6692 + $0x58] sm:$0xf]
      %v6709 = vld [vmem:[%s6692 + $0x60] sm:$0xf]
      %v6710 = vld [vmem:[%s6692 + $0x64] sm:$0xf]
      %v6711 = vld [vmem:[%s6692 + $0x6c] sm:$0xf]
      %v6712 = vld [vmem:[%s6692 + $0x70] sm:$0xf]
      %v6713 = vld [vmem:[%s6692 + $0x78] sm:$0xf]
      %v6714 = vld [vmem:[%s6692 + $0x7c] sm:$0xf]
      %v6715 = vld [vmem:[%s6692 + $0x84] sm:$0xf]
      %v6716 = vld [vmem:[%s6692 + $0x88] sm:$0xf]
      %v6717 = vld [vmem:[%s6692 + $0x90] sm:$0xf]
      %v6718 = vld [vmem:[%s6692 + $0x94] sm:$0xf]
      %v6719 = vld [vmem:[%s6692 + $0x9c] sm:$0xf]
      %v6720 = vld [vmem:[%s6692 + $0xa0] sm:$0xf]
      %v6721 = vld [vmem:[%s6692 + $0xa8] sm:$0xf]
      %v6722 = vld [vmem:[%s6692 + $0xac] sm:$0xf]
      %v6723 = vld [vmem:[%s6692 + $0xb4] sm:$0xf]
      %v6724 = vld [vmem:[%s6692 + $0xb8] sm:$0xf]
      %v6757 = vunpack.c.l.b16 %v6693
      %v6758 = vunpack.c.l.b16 %v6694
      %v6759 = vunpack.c.l.b16 %v6695
      %v6760 = vunpack.c.l.b16 %v6696
      %v6761 = vunpack.c.l.b16 %v6697
      %v6762 = vunpack.c.l.b16 %v6698
      %v6763 = vunpack.c.l.b16 %v6699
      %v6764 = vunpack.c.l.b16 %v6700
      %v6765 = vunpack.c.l.b16 %v6701
      %v6766 = vunpack.c.l.b16 %v6702
      %v6767 = vunpack.c.l.b16 %v6703
      %v6768 = vunpack.c.l.b16 %v6704
      %v6769 = vunpack.c.l.b16 %v6705
      %v6770 = vunpack.c.l.b16 %v6706
      %v6771 = vunpack.c.l.b16 %v6707
      %v6772 = vunpack.c.l.b16 %v6708
      %v6773 = vunpack.c.l.b16 %v6709
      %v6774 = vunpack.c.l.b16 %v6710
      %v6775 = vunpack.c.l.b16 %v6711
      %v6776 = vunpack.c.l.b16 %v6712
      %v6777 = vunpack.c.l.b16 %v6713
      %v6778 = vunpack.c.l.b16 %v6714
      %v6779 = vunpack.c.l.b16 %v6715
      %v6780 = vunpack.c.l.b16 %v6716
      %v6781 = vunpack.c.l.b16 %v6717
      %v6782 = vunpack.c.l.b16 %v6718
      %v6783 = vunpack.c.l.b16 %v6719
      %v6784 = vunpack.c.l.b16 %v6720
      %v6785 = vunpack.c.l.b16 %v6721
      %v6786 = vunpack.c.l.b16 %v6722
      %v6787 = vunpack.c.l.b16 %v6723
      %v6788 = vunpack.c.l.b16 %v6724
      %v6789 = vpack.c.b16 %v6758, %v6757
      %v6790 = vpack.c.b16 %v6760, %v6759
      %v6791 = vpack.c.b16 %v6762, %v6761
      %v6792 = vpack.c.b16 %v6764, %v6763
      %v6793 = vpack.c.b16 %v6766, %v6765
      %v6794 = vpack.c.b16 %v6768, %v6767
      %v6795 = vpack.c.b16 %v6770, %v6769
      %v6796 = vpack.c.b16 %v6772, %v6771
      %v6797 = vpack.c.b16 %v6774, %v6773
      %v6798 = vpack.c.b16 %v6776, %v6775
      %v6799 = vpack.c.b16 %v6778, %v6777
      %v6800 = vpack.c.b16 %v6780, %v6779
      %v6801 = vpack.c.b16 %v6782, %v6781
      %v6802 = vpack.c.b16 %v6784, %v6783
      %v6803 = vpack.c.b16 %v6786, %v6785
      %v6804 = vpack.c.b16 %v6788, %v6787
      %6805 = vrot.lane.b32.xlu0 %v6789, 48
      %v6806 = vpop.permute.xlu0 %6805
      %6807 = vrot.lane.b32.xlu0 %v6790, 48
      %v6808 = vpop.permute.xlu0 %6807
      %6809 = vrot.lane.b32.xlu0 %v6791, 48
      %v6810 = vpop.permute.xlu0 %6809
      %6811 = vrot.lane.b32.xlu0 %v6792, 48
      %v6812 = vpop.permute.xlu0 %6811
      %6813 = vrot.lane.b32.xlu0 %v6793, 48
      %v6814 = vpop.permute.xlu0 %6813
      %6815 = vrot.lane.b32.xlu0 %v6794, 48
      %v6816 = vpop.permute.xlu0 %6815
      %6817 = vrot.lane.b32.xlu0 %v6795, 48
      %v6818 = vpop.permute.xlu0 %6817
      %6819 = vrot.lane.b32.xlu0 %v6796, 48
      %v6820 = vpop.permute.xlu0 %6819
      %6821 = vrot.lane.b32.xlu0 %v6797, 48
      %v6822 = vpop.permute.xlu0 %6821
      %6823 = vrot.lane.b32.xlu0 %v6798, 48
      %v6824 = vpop.permute.xlu0 %6823
      %6825 = vrot.lane.b32.xlu0 %v6799, 48
      %v6826 = vpop.permute.xlu0 %6825
      %6827 = vrot.lane.b32.xlu0 %v6800, 48
      %v6828 = vpop.permute.xlu0 %6827
      %6829 = vrot.lane.b32.xlu0 %v6801, 48
      %v6830 = vpop.permute.xlu0 %6829
      %6831 = vrot.lane.b32.xlu0 %v6802, 48
      %v6832 = vpop.permute.xlu0 %6831
      %6833 = vrot.lane.b32.xlu0 %v6803, 48
      %v6834 = vpop.permute.xlu0 %6833
      %6835 = vrot.lane.b32.xlu0 %v6804, 48
      %v6836 = vpop.permute.xlu0 %6835
      %6853 = vst.msk [vmem:[#allocation5] sm:$0xff] %vm3761, %v6806
      %6854 = vst.msk [vmem:[#allocation5 + $0x8] sm:$0xff] %vm3761, %v6808
      %6855 = vst.msk [vmem:[#allocation5 + $0x10] sm:$0xff] %vm3761, %v6810
      %6856 = vst.msk [vmem:[#allocation5 + $0x18] sm:$0xff] %vm3761, %v6812
      %6857 = vst.msk [vmem:[#allocation5 + $0x20] sm:$0xff] %vm3761, %v6814
      %6858 = vst.msk [vmem:[#allocation5 + $0x28] sm:$0xff] %vm3761, %v6816
      %6859 = vst.msk [vmem:[#allocation5 + $0x30] sm:$0xff] %vm3761, %v6818
      %6860 = vst.msk [vmem:[#allocation5 + $0x38] sm:$0xff] %vm3761, %v6820
      %6861 = vst.msk [vmem:[#allocation5 + $0x40] sm:$0xff] %vm3761, %v6822
      %6862 = vst.msk [vmem:[#allocation5 + $0x48] sm:$0xff] %vm3761, %v6824
      %6863 = vst.msk [vmem:[#allocation5 + $0x50] sm:$0xff] %vm3761, %v6826
      %6864 = vst.msk [vmem:[#allocation5 + $0x58] sm:$0xff] %vm3761, %v6828
      %6865 = vst.msk [vmem:[#allocation5 + $0x60] sm:$0xff] %vm3761, %v6830
      %6866 = vst.msk [vmem:[#allocation5 + $0x68] sm:$0xff] %vm3761, %v6832
      %6867 = vst.msk [vmem:[#allocation5 + $0x70] sm:$0xff] %vm3761, %v6834
      %6868 = vst.msk [vmem:[#allocation5 + $0x78] sm:$0xff] %vm3761, %v6836
      %v6869 = vld [vmem:[%s6692] sm:$0xf]
      %v6870 = vld [vmem:[%s6692 + $0x4] sm:$0xf]
      %v6871 = vld [vmem:[%s6692 + $0x8] sm:$0x1]
      %v6872 = vld [vmem:[%s6692 + $0xc] sm:$0xf]
      %v6873 = vld [vmem:[%s6692 + $0x10] sm:$0xf]
      %v6874 = vld [vmem:[%s6692 + $0x14] sm:$0x1]
      %v6875 = vld [vmem:[%s6692 + $0x18] sm:$0xf]
      %v6876 = vld [vmem:[%s6692 + $0x1c] sm:$0xf]
      %v6877 = vld [vmem:[%s6692 + $0x20] sm:$0x1]
      %v6878 = vld [vmem:[%s6692 + $0x24] sm:$0xf]
      %v6879 = vld [vmem:[%s6692 + $0x28] sm:$0xf]
      %v6880 = vld [vmem:[%s6692 + $0x2c] sm:$0x1]
      %v6881 = vld [vmem:[%s6692 + $0x30] sm:$0xf]
      %v6882 = vld [vmem:[%s6692 + $0x34] sm:$0xf]
      %v6883 = vld [vmem:[%s6692 + $0x38] sm:$0x1]
      %v6884 = vld [vmem:[%s6692 + $0x3c] sm:$0xf]
      %v6885 = vld [vmem:[%s6692 + $0x40] sm:$0xf]
      %v6886 = vld [vmem:[%s6692 + $0x44] sm:$0x1]
      %v6887 = vld [vmem:[%s6692 + $0x48] sm:$0xf]
      %v6888 = vld [vmem:[%s6692 + $0x4c] sm:$0xf]
      %v6889 = vld [vmem:[%s6692 + $0x50] sm:$0x1]
      %v6890 = vld [vmem:[%s6692 + $0x54] sm:$0xf]
      %v6891 = vld [vmem:[%s6692 + $0x58] sm:$0xf]
      %v6892 = vld [vmem:[%s6692 + $0x5c] sm:$0x1]
      %v6893 = vld [vmem:[%s6692 + $0x60] sm:$0xf]
      %v6894 = vld [vmem:[%s6692 + $0x64] sm:$0xf]
      %v6895 = vld [vmem:[%s6692 + $0x68] sm:$0x1]
      %v6896 = vld [vmem:[%s6692 + $0x6c] sm:$0xf]
      %v6897 = vld [vmem:[%s6692 + $0x70] sm:$0xf]
      %v6898 = vld [vmem:[%s6692 + $0x74] sm:$0x1]
      %v6899 = vld [vmem:[%s6692 + $0x78] sm:$0xf]
      %v6900 = vld [vmem:[%s6692 + $0x7c] sm:$0xf]
      %v6901 = vld [vmem:[%s6692 + $0x80] sm:$0x1]
      %v6902 = vld [vmem:[%s6692 + $0x84] sm:$0xf]
      %v6903 = vld [vmem:[%s6692 + $0x88] sm:$0xf]
      %v6904 = vld [vmem:[%s6692 + $0x8c] sm:$0x1]
      %v6905 = vld [vmem:[%s6692 + $0x90] sm:$0xf]
      %v6906 = vld [vmem:[%s6692 + $0x94] sm:$0xf]
      %v6907 = vld [vmem:[%s6692 + $0x98] sm:$0x1]
      %v6908 = vld [vmem:[%s6692 + $0x9c] sm:$0xf]
      %v6909 = vld [vmem:[%s6692 + $0xa0] sm:$0xf]
      %v6910 = vld [vmem:[%s6692 + $0xa4] sm:$0x1]
      %v6911 = vld [vmem:[%s6692 + $0xa8] sm:$0xf]
      %v6912 = vld [vmem:[%s6692 + $0xac] sm:$0xf]
      %v6913 = vld [vmem:[%s6692 + $0xb0] sm:$0x1]
      %v6914 = vld [vmem:[%s6692 + $0xb4] sm:$0xf]
      %v6915 = vld [vmem:[%s6692 + $0xb8] sm:$0xf]
      %v6916 = vld [vmem:[%s6692 + $0xbc] sm:$0x1]
      %v6918 = vshrl.u32 %v6869, 16
      %v6920 = vrot.slane %v6918, 4
      %v6921 = vshll.u32 %v6869, 16
      %v6923 = vrot.slane %v6921, 5
      %v6924 = vor.u32 %v6920, %v6923
      %v6925 = vrot.slane %v6924, 4
      %v6927 = vshll.u32 %v6870, 16
      %v6929 = vrot.slane %v6927, 5
      %v6930 = vsel %vm1735, %v6925, %v6929
      %v6931 = vshrl.u32 %v6870, 16
      %v6933 = vrot.slane %v6931, 4
      %v6934 = vor.u32 %v6933, %v6929
      %v6935 = vrot.slane %v6934, 4
      %v6937 = vshll.u32 %v6871, 16
      %v6939 = vrot.slane %v6937, 5
      %v6940 = vsel %vm1735, %v6935, %v6939
      %v6942 = vshrl.u32 %v6872, 16
      %v6944 = vrot.slane %v6942, 4
      %v6945 = vshll.u32 %v6872, 16
      %v6947 = vrot.slane %v6945, 5
      %v6948 = vor.u32 %v6944, %v6947
      %v6949 = vrot.slane %v6948, 4
      %v6951 = vshll.u32 %v6873, 16
      %v6953 = vrot.slane %v6951, 5
      %v6954 = vsel %vm1735, %v6949, %v6953
      %v6955 = vshrl.u32 %v6873, 16
      %v6957 = vrot.slane %v6955, 4
      %v6958 = vor.u32 %v6957, %v6953
      %v6959 = vrot.slane %v6958, 4
      %v6961 = vshll.u32 %v6874, 16
      %v6963 = vrot.slane %v6961, 5
      %v6964 = vsel %vm1735, %v6959, %v6963
      %v6966 = vshrl.u32 %v6875, 16
      %v6968 = vrot.slane %v6966, 4
      %v6969 = vshll.u32 %v6875, 16
      %v6971 = vrot.slane %v6969, 5
      %v6972 = vor.u32 %v6968, %v6971
      %v6973 = vrot.slane %v6972, 4
      %v6975 = vshll.u32 %v6876, 16
      %v6977 = vrot.slane %v6975, 5
      %v6978 = vsel %vm1735, %v6973, %v6977
      %v6979 = vshrl.u32 %v6876, 16
      %v6981 = vrot.slane %v6979, 4
      %v6982 = vor.u32 %v6981, %v6977
      %v6983 = vrot.slane %v6982, 4
      %v6985 = vshll.u32 %v6877, 16
      %v6987 = vrot.slane %v6985, 5
      %v6988 = vsel %vm1735, %v6983, %v6987
      %v6990 = vshrl.u32 %v6878, 16
      %v6992 = vrot.slane %v6990, 4
      %v6993 = vshll.u32 %v6878, 16
      %v6995 = vrot.slane %v6993, 5
      %v6996 = vor.u32 %v6992, %v6995
      %v6997 = vrot.slane %v6996, 4
      %v6999 = vshll.u32 %v6879, 16
      %v7001 = vrot.slane %v6999, 5
      %v7002 = vsel %vm1735, %v6997, %v7001
      %v7003 = vshrl.u32 %v6879, 16
      %v7005 = vrot.slane %v7003, 4
      %v7006 = vor.u32 %v7005, %v7001
      %v7007 = vrot.slane %v7006, 4
      %v7009 = vshll.u32 %v6880, 16
      %v7011 = vrot.slane %v7009, 5
      %v7012 = vsel %vm1735, %v7007, %v7011
      %v7014 = vshrl.u32 %v6881, 16
      %v7016 = vrot.slane %v7014, 4
      %v7017 = vshll.u32 %v6881, 16
      %v7019 = vrot.slane %v7017, 5
      %v7020 = vor.u32 %v7016, %v7019
      %v7021 = vrot.slane %v7020, 4
      %v7023 = vshll.u32 %v6882, 16
      %v7025 = vrot.slane %v7023, 5
      %v7026 = vsel %vm1735, %v7021, %v7025
      %v7027 = vshrl.u32 %v6882, 16
      %v7029 = vrot.slane %v7027, 4
      %v7030 = vor.u32 %v7029, %v7025
      %v7031 = vrot.slane %v7030, 4
      %v7033 = vshll.u32 %v6883, 16
      %v7035 = vrot.slane %v7033, 5
      %v7036 = vsel %vm1735, %v7031, %v7035
      %v7038 = vshrl.u32 %v6884, 16
      %v7040 = vrot.slane %v7038, 4
      %v7041 = vshll.u32 %v6884, 16
      %v7043 = vrot.slane %v7041, 5
      %v7044 = vor.u32 %v7040, %v7043
      %v7045 = vrot.slane %v7044, 4
      %v7047 = vshll.u32 %v6885, 16
      %v7049 = vrot.slane %v7047, 5
      %v7050 = vsel %vm1735, %v7045, %v7049
      %v7051 = vshrl.u32 %v6885, 16
      %v7053 = vrot.slane %v7051, 4
      %v7054 = vor.u32 %v7053, %v7049
      %v7055 = vrot.slane %v7054, 4
      %v7057 = vshll.u32 %v6886, 16
      %v7059 = vrot.slane %v7057, 5
      %v7060 = vsel %vm1735, %v7055, %v7059
      %v7062 = vshrl.u32 %v6887, 16
      %v7064 = vrot.slane %v7062, 4
      %v7065 = vshll.u32 %v6887, 16
      %v7067 = vrot.slane %v7065, 5
      %v7068 = vor.u32 %v7064, %v7067
      %v7069 = vrot.slane %v7068, 4
      %v7071 = vshll.u32 %v6888, 16
      %v7073 = vrot.slane %v7071, 5
      %v7074 = vsel %vm1735, %v7069, %v7073
      %v7075 = vshrl.u32 %v6888, 16
      %v7077 = vrot.slane %v7075, 4
      %v7078 = vor.u32 %v7077, %v7073
      %v7079 = vrot.slane %v7078, 4
      %v7081 = vshll.u32 %v6889, 16
      %v7083 = vrot.slane %v7081, 5
      %v7084 = vsel %vm1735, %v7079, %v7083
      %v7086 = vshrl.u32 %v6890, 16
      %v7088 = vrot.slane %v7086, 4
      %v7089 = vshll.u32 %v6890, 16
      %v7091 = vrot.slane %v7089, 5
      %v7092 = vor.u32 %v7088, %v7091
      %v7093 = vrot.slane %v7092, 4
      %v7095 = vshll.u32 %v6891, 16
      %v7097 = vrot.slane %v7095, 5
      %v7098 = vsel %vm1735, %v7093, %v7097
      %v7099 = vshrl.u32 %v6891, 16
      %v7101 = vrot.slane %v7099, 4
      %v7102 = vor.u32 %v7101, %v7097
      %v7103 = vrot.slane %v7102, 4
      %v7105 = vshll.u32 %v6892, 16
      %v7107 = vrot.slane %v7105, 5
      %v7108 = vsel %vm1735, %v7103, %v7107
      %v7110 = vshrl.u32 %v6893, 16
      %v7112 = vrot.slane %v7110, 4
      %v7113 = vshll.u32 %v6893, 16
      %v7115 = vrot.slane %v7113, 5
      %v7116 = vor.u32 %v7112, %v7115
      %v7117 = vrot.slane %v7116, 4
      %v7119 = vshll.u32 %v6894, 16
      %v7121 = vrot.slane %v7119, 5
      %v7122 = vsel %vm1735, %v7117, %v7121
      %v7123 = vshrl.u32 %v6894, 16
      %v7125 = vrot.slane %v7123, 4
      %v7126 = vor.u32 %v7125, %v7121
      %v7127 = vrot.slane %v7126, 4
      %v7129 = vshll.u32 %v6895, 16
      %v7131 = vrot.slane %v7129, 5
      %v7132 = vsel %vm1735, %v7127, %v7131
      %v7134 = vshrl.u32 %v6896, 16
      %v7136 = vrot.slane %v7134, 4
      %v7137 = vshll.u32 %v6896, 16
      %v7139 = vrot.slane %v7137, 5
      %v7140 = vor.u32 %v7136, %v7139
      %v7141 = vrot.slane %v7140, 4
      %v7143 = vshll.u32 %v6897, 16
      %v7145 = vrot.slane %v7143, 5
      %v7146 = vsel %vm1735, %v7141, %v7145
      %v7147 = vshrl.u32 %v6897, 16
      %v7149 = vrot.slane %v7147, 4
      %v7150 = vor.u32 %v7149, %v7145
      %v7151 = vrot.slane %v7150, 4
      %v7153 = vshll.u32 %v6898, 16
      %v7155 = vrot.slane %v7153, 5
      %v7156 = vsel %vm1735, %v7151, %v7155
      %v7158 = vshrl.u32 %v6899, 16
      %v7160 = vrot.slane %v7158, 4
      %v7161 = vshll.u32 %v6899, 16
      %v7163 = vrot.slane %v7161, 5
      %v7164 = vor.u32 %v7160, %v7163
      %v7165 = vrot.slane %v7164, 4
      %v7167 = vshll.u32 %v6900, 16
      %v7169 = vrot.slane %v7167, 5
      %v7170 = vsel %vm1735, %v7165, %v7169
      %v7171 = vshrl.u32 %v6900, 16
      %v7173 = vrot.slane %v7171, 4
      %v7174 = vor.u32 %v7173, %v7169
      %v7175 = vrot.slane %v7174, 4
      %v7177 = vshll.u32 %v6901, 16
      %v7179 = vrot.slane %v7177, 5
      %v7180 = vsel %vm1735, %v7175, %v7179
      %v7182 = vshrl.u32 %v6902, 16
      %v7184 = vrot.slane %v7182, 4
      %v7185 = vshll.u32 %v6902, 16
      %v7187 = vrot.slane %v7185, 5
      %v7188 = vor.u32 %v7184, %v7187
      %v7189 = vrot.slane %v7188, 4
      %v7191 = vshll.u32 %v6903, 16
      %v7193 = vrot.slane %v7191, 5
      %v7194 = vsel %vm1735, %v7189, %v7193
      %v7195 = vshrl.u32 %v6903, 16
      %v7197 = vrot.slane %v7195, 4
      %v7198 = vor.u32 %v7197, %v7193
      %v7199 = vrot.slane %v7198, 4
      %v7201 = vshll.u32 %v6904, 16
      %v7203 = vrot.slane %v7201, 5
      %v7204 = vsel %vm1735, %v7199, %v7203
      %v7206 = vshrl.u32 %v6905, 16
      %v7208 = vrot.slane %v7206, 4
      %v7209 = vshll.u32 %v6905, 16
      %v7211 = vrot.slane %v7209, 5
      %v7212 = vor.u32 %v7208, %v7211
      %v7213 = vrot.slane %v7212, 4
      %v7215 = vshll.u32 %v6906, 16
      %v7217 = vrot.slane %v7215, 5
      %v7218 = vsel %vm1735, %v7213, %v7217
      %v7219 = vshrl.u32 %v6906, 16
      %v7221 = vrot.slane %v7219, 4
      %v7222 = vor.u32 %v7221, %v7217
      %v7223 = vrot.slane %v7222, 4
      %v7225 = vshll.u32 %v6907, 16
      %v7227 = vrot.slane %v7225, 5
      %v7228 = vsel %vm1735, %v7223, %v7227
      %v7230 = vshrl.u32 %v6908, 16
      %v7232 = vrot.slane %v7230, 4
      %v7233 = vshll.u32 %v6908, 16
      %v7235 = vrot.slane %v7233, 5
      %v7236 = vor.u32 %v7232, %v7235
      %v7237 = vrot.slane %v7236, 4
      %v7239 = vshll.u32 %v6909, 16
      %v7241 = vrot.slane %v7239, 5
      %v7242 = vsel %vm1735, %v7237, %v7241
      %v7243 = vshrl.u32 %v6909, 16
      %v7245 = vrot.slane %v7243, 4
      %v7246 = vor.u32 %v7245, %v7241
      %v7247 = vrot.slane %v7246, 4
      %v7249 = vshll.u32 %v6910, 16
      %v7251 = vrot.slane %v7249, 5
      %v7252 = vsel %vm1735, %v7247, %v7251
      %v7254 = vshrl.u32 %v6911, 16
      %v7256 = vrot.slane %v7254, 4
      %v7257 = vshll.u32 %v6911, 16
      %v7259 = vrot.slane %v7257, 5
      %v7260 = vor.u32 %v7256, %v7259
      %v7261 = vrot.slane %v7260, 4
      %v7263 = vshll.u32 %v6912, 16
      %v7265 = vrot.slane %v7263, 5
      %v7266 = vsel %vm1735, %v7261, %v7265
      %v7267 = vshrl.u32 %v6912, 16
      %v7269 = vrot.slane %v7267, 4
      %v7270 = vor.u32 %v7269, %v7265
      %v7271 = vrot.slane %v7270, 4
      %v7273 = vshll.u32 %v6913, 16
      %v7275 = vrot.slane %v7273, 5
      %v7276 = vsel %vm1735, %v7271, %v7275
      %v7278 = vshrl.u32 %v6914, 16
      %v7280 = vrot.slane %v7278, 4
      %v7281 = vshll.u32 %v6914, 16
      %v7283 = vrot.slane %v7281, 5
      %v7284 = vor.u32 %v7280, %v7283
      %v7285 = vrot.slane %v7284, 4
      %v7287 = vshll.u32 %v6915, 16
      %v7289 = vrot.slane %v7287, 5
      %v7290 = vsel %vm1735, %v7285, %v7289
      %v7291 = vshrl.u32 %v6915, 16
      %v7293 = vrot.slane %v7291, 4
      %v7294 = vor.u32 %v7293, %v7289
      %v7295 = vrot.slane %v7294, 4
      %v7297 = vshll.u32 %v6916, 16
      %v7299 = vrot.slane %v7297, 5
      %v7300 = vsel %vm1735, %v7295, %v7299
      %v7301 = vunpack.c.l.b16 %v6930
      %v7302 = vunpack.c.l.b16 %v6940
      %v7303 = vunpack.c.l.b16 %v6954
      %v7304 = vunpack.c.l.b16 %v6964
      %v7305 = vunpack.c.l.b16 %v6978
      %v7306 = vunpack.c.l.b16 %v6988
      %v7307 = vunpack.c.l.b16 %v7002
      %v7308 = vunpack.c.l.b16 %v7012
      %v7309 = vunpack.c.l.b16 %v7026
      %v7310 = vunpack.c.l.b16 %v7036
      %v7311 = vunpack.c.l.b16 %v7050
      %v7312 = vunpack.c.l.b16 %v7060
      %v7313 = vunpack.c.l.b16 %v7074
      %v7314 = vunpack.c.l.b16 %v7084
      %v7315 = vunpack.c.l.b16 %v7098
      %v7316 = vunpack.c.l.b16 %v7108
      %v7317 = vunpack.c.l.b16 %v7122
      %v7318 = vunpack.c.l.b16 %v7132
      %v7319 = vunpack.c.l.b16 %v7146
      %v7320 = vunpack.c.l.b16 %v7156
      %v7321 = vunpack.c.l.b16 %v7170
      %v7322 = vunpack.c.l.b16 %v7180
      %v7323 = vunpack.c.l.b16 %v7194
      %v7324 = vunpack.c.l.b16 %v7204
      %v7325 = vunpack.c.l.b16 %v7218
      %v7326 = vunpack.c.l.b16 %v7228
      %v7327 = vunpack.c.l.b16 %v7242
      %v7328 = vunpack.c.l.b16 %v7252
      %v7329 = vunpack.c.l.b16 %v7266
      %v7330 = vunpack.c.l.b16 %v7276
      %v7331 = vunpack.c.l.b16 %v7290
      %v7332 = vunpack.c.l.b16 %v7300
      %v7333 = vpack.c.b16 %v7302, %v7301
      %v7334 = vpack.c.b16 %v7304, %v7303
      %v7335 = vpack.c.b16 %v7306, %v7305
      %v7336 = vpack.c.b16 %v7308, %v7307
      %v7337 = vpack.c.b16 %v7310, %v7309
      %v7338 = vpack.c.b16 %v7312, %v7311
      %v7339 = vpack.c.b16 %v7314, %v7313
      %v7340 = vpack.c.b16 %v7316, %v7315
      %v7341 = vpack.c.b16 %v7318, %v7317
      %v7342 = vpack.c.b16 %v7320, %v7319
      %v7343 = vpack.c.b16 %v7322, %v7321
      %v7344 = vpack.c.b16 %v7324, %v7323
      %v7345 = vpack.c.b16 %v7326, %v7325
      %v7346 = vpack.c.b16 %v7328, %v7327
      %v7347 = vpack.c.b16 %v7330, %v7329
      %v7348 = vpack.c.b16 %v7332, %v7331
      %7349 = vrot.lane.b32.xlu0 %v7333, 56
      %v7350 = vpop.permute.xlu0 %7349
      %7351 = vrot.lane.b32.xlu0 %v7334, 56
      %v7352 = vpop.permute.xlu0 %7351
      %7353 = vrot.lane.b32.xlu0 %v7335, 56
      %v7354 = vpop.permute.xlu0 %7353
      %7355 = vrot.lane.b32.xlu0 %v7336, 56
      %v7356 = vpop.permute.xlu0 %7355
      %7357 = vrot.lane.b32.xlu0 %v7337, 56
      %v7358 = vpop.permute.xlu0 %7357
      %7359 = vrot.lane.b32.xlu0 %v7338, 56
      %v7360 = vpop.permute.xlu0 %7359
      %7361 = vrot.lane.b32.xlu0 %v7339, 56
      %v7362 = vpop.permute.xlu0 %7361
      %7363 = vrot.lane.b32.xlu0 %v7340, 56
      %v7364 = vpop.permute.xlu0 %7363
      %7365 = vrot.lane.b32.xlu0 %v7341, 56
      %v7366 = vpop.permute.xlu0 %7365
      %7367 = vrot.lane.b32.xlu0 %v7342, 56
      %v7368 = vpop.permute.xlu0 %7367
      %7369 = vrot.lane.b32.xlu0 %v7343, 56
      %v7370 = vpop.permute.xlu0 %7369
      %7371 = vrot.lane.b32.xlu0 %v7344, 56
      %v7372 = vpop.permute.xlu0 %7371
      %7373 = vrot.lane.b32.xlu0 %v7345, 56
      %v7374 = vpop.permute.xlu0 %7373
      %7375 = vrot.lane.b32.xlu0 %v7346, 56
      %v7376 = vpop.permute.xlu0 %7375
      %7377 = vrot.lane.b32.xlu0 %v7347, 56
      %v7378 = vpop.permute.xlu0 %7377
      %7379 = vrot.lane.b32.xlu0 %v7348, 56
      %v7380 = vpop.permute.xlu0 %7379
      %7397 = vst.msk [vmem:[#allocation5] sm:$0xff] %vm4306, %v7350
      %7398 = vst.msk [vmem:[#allocation5 + $0x8] sm:$0xff] %vm4306, %v7352
      %7399 = vst.msk [vmem:[#allocation5 + $0x10] sm:$0xff] %vm4306, %v7354
      %7400 = vst.msk [vmem:[#allocation5 + $0x18] sm:$0xff] %vm4306, %v7356
      %7401 = vst.msk [vmem:[#allocation5 + $0x20] sm:$0xff] %vm4306, %v7358
      %7402 = vst.msk [vmem:[#allocation5 + $0x28] sm:$0xff] %vm4306, %v7360
      %7403 = vst.msk [vmem:[#allocation5 + $0x30] sm:$0xff] %vm4306, %v7362
      %7404 = vst.msk [vmem:[#allocation5 + $0x38] sm:$0xff] %vm4306, %v7364
      %7405 = vst.msk [vmem:[#allocation5 + $0x40] sm:$0xff] %vm4306, %v7366
      %7406 = vst.msk [vmem:[#allocation5 + $0x48] sm:$0xff] %vm4306, %v7368
      %7407 = vst.msk [vmem:[#allocation5 + $0x50] sm:$0xff] %vm4306, %v7370
      %7408 = vst.msk [vmem:[#allocation5 + $0x58] sm:$0xff] %vm4306, %v7372
      %7409 = vst.msk [vmem:[#allocation5 + $0x60] sm:$0xff] %vm4306, %v7374
      %7410 = vst.msk [vmem:[#allocation5 + $0x68] sm:$0xff] %vm4306, %v7376
      %7411 = vst.msk [vmem:[#allocation5 + $0x70] sm:$0xff] %vm4306, %v7378
      %7412 = vst.msk [vmem:[#allocation5 + $0x78] sm:$0xff] %vm4306, %v7380
      %v7413 = vld [vmem:[%s6692] sm:$0xe]
      %v7414 = vld [vmem:[%s6692 + $0x4] sm:$0xf]
      %v7415 = vld [vmem:[%s6692 + $0x8] sm:$0x1]
      %v7416 = vld [vmem:[%s6692 + $0xc] sm:$0xe]
      %v7417 = vld [vmem:[%s6692 + $0x10] sm:$0xf]
      %v7418 = vld [vmem:[%s6692 + $0x14] sm:$0x1]
      %v7419 = vld [vmem:[%s6692 + $0x18] sm:$0xe]
      %v7420 = vld [vmem:[%s6692 + $0x1c] sm:$0xf]
      %v7421 = vld [vmem:[%s6692 + $0x20] sm:$0x1]
      %v7422 = vld [vmem:[%s6692 + $0x24] sm:$0xe]
      %v7423 = vld [vmem:[%s6692 + $0x28] sm:$0xf]
      %v7424 = vld [vmem:[%s6692 + $0x2c] sm:$0x1]
      %v7425 = vld [vmem:[%s6692 + $0x30] sm:$0xe]
      %v7426 = vld [vmem:[%s6692 + $0x34] sm:$0xf]
      %v7427 = vld [vmem:[%s6692 + $0x38] sm:$0x1]
      %v7428 = vld [vmem:[%s6692 + $0x3c] sm:$0xe]
      %v7429 = vld [vmem:[%s6692 + $0x40] sm:$0xf]
      %v7430 = vld [vmem:[%s6692 + $0x44] sm:$0x1]
      %v7431 = vld [vmem:[%s6692 + $0x48] sm:$0xe]
      %v7432 = vld [vmem:[%s6692 + $0x4c] sm:$0xf]
      %v7433 = vld [vmem:[%s6692 + $0x50] sm:$0x1]
      %v7434 = vld [vmem:[%s6692 + $0x54] sm:$0xe]
      %v7435 = vld [vmem:[%s6692 + $0x58] sm:$0xf]
      %v7436 = vld [vmem:[%s6692 + $0x5c] sm:$0x1]
      %v7437 = vld [vmem:[%s6692 + $0x60] sm:$0xe]
      %v7438 = vld [vmem:[%s6692 + $0x64] sm:$0xf]
      %v7439 = vld [vmem:[%s6692 + $0x68] sm:$0x1]
      %v7440 = vld [vmem:[%s6692 + $0x6c] sm:$0xe]
      %v7441 = vld [vmem:[%s6692 + $0x70] sm:$0xf]
      %v7442 = vld [vmem:[%s6692 + $0x74] sm:$0x1]
      %v7443 = vld [vmem:[%s6692 + $0x78] sm:$0xe]
      %v7444 = vld [vmem:[%s6692 + $0x7c] sm:$0xf]
      %v7445 = vld [vmem:[%s6692 + $0x80] sm:$0x1]
      %v7446 = vld [vmem:[%s6692 + $0x84] sm:$0xe]
      %v7447 = vld [vmem:[%s6692 + $0x88] sm:$0xf]
      %v7448 = vld [vmem:[%s6692 + $0x8c] sm:$0x1]
      %v7449 = vld [vmem:[%s6692 + $0x90] sm:$0xe]
      %v7450 = vld [vmem:[%s6692 + $0x94] sm:$0xf]
      %v7451 = vld [vmem:[%s6692 + $0x98] sm:$0x1]
      %v7452 = vld [vmem:[%s6692 + $0x9c] sm:$0xe]
      %v7453 = vld [vmem:[%s6692 + $0xa0] sm:$0xf]
      %v7454 = vld [vmem:[%s6692 + $0xa4] sm:$0x1]
      %v7455 = vld [vmem:[%s6692 + $0xa8] sm:$0xe]
      %v7456 = vld [vmem:[%s6692 + $0xac] sm:$0xf]
      %v7457 = vld [vmem:[%s6692 + $0xb0] sm:$0x1]
      %v7458 = vld [vmem:[%s6692 + $0xb4] sm:$0xe]
      %v7459 = vld [vmem:[%s6692 + $0xb8] sm:$0xf]
      %v7460 = vld [vmem:[%s6692 + $0xbc] sm:$0x1]
      %v7509 = vrot.slane %v7413, 5
      %v7510 = vrot.slane %v7509, 4
      %v7511 = vrot.slane %v7414, 5
      %v7512 = vsel %vm2331, %v7510, %v7511
      %v7513 = vrot.slane %v7511, 4
      %v7514 = vrot.slane %v7415, 5
      %v7515 = vsel %vm2331, %v7513, %v7514
      %v7516 = vrot.slane %v7416, 5
      %v7517 = vrot.slane %v7516, 4
      %v7518 = vrot.slane %v7417, 5
      %v7519 = vsel %vm2331, %v7517, %v7518
      %v7520 = vrot.slane %v7518, 4
      %v7521 = vrot.slane %v7418, 5
      %v7522 = vsel %vm2331, %v7520, %v7521
      %v7523 = vrot.slane %v7419, 5
      %v7524 = vrot.slane %v7523, 4
      %v7525 = vrot.slane %v7420, 5
      %v7526 = vsel %vm2331, %v7524, %v7525
      %v7527 = vrot.slane %v7525, 4
      %v7528 = vrot.slane %v7421, 5
      %v7529 = vsel %vm2331, %v7527, %v7528
      %v7530 = vrot.slane %v7422, 5
      %v7531 = vrot.slane %v7530, 4
      %v7532 = vrot.slane %v7423, 5
      %v7533 = vsel %vm2331, %v7531, %v7532
      %v7534 = vrot.slane %v7532, 4
      %v7535 = vrot.slane %v7424, 5
      %v7536 = vsel %vm2331, %v7534, %v7535
      %v7537 = vrot.slane %v7425, 5
      %v7538 = vrot.slane %v7537, 4
      %v7539 = vrot.slane %v7426, 5
      %v7540 = vsel %vm2331, %v7538, %v7539
      %v7541 = vrot.slane %v7539, 4
      %v7542 = vrot.slane %v7427, 5
      %v7543 = vsel %vm2331, %v7541, %v7542
      %v7544 = vrot.slane %v7428, 5
      %v7545 = vrot.slane %v7544, 4
      %v7546 = vrot.slane %v7429, 5
      %v7547 = vsel %vm2331, %v7545, %v7546
      %v7548 = vrot.slane %v7546, 4
      %v7549 = vrot.slane %v7430, 5
      %v7550 = vsel %vm2331, %v7548, %v7549
      %v7551 = vrot.slane %v7431, 5
      %v7552 = vrot.slane %v7551, 4
      %v7553 = vrot.slane %v7432, 5
      %v7554 = vsel %vm2331, %v7552, %v7553
      %v7555 = vrot.slane %v7553, 4
      %v7556 = vrot.slane %v7433, 5
      %v7557 = vsel %vm2331, %v7555, %v7556
      %v7558 = vrot.slane %v7434, 5
      %v7559 = vrot.slane %v7558, 4
      %v7560 = vrot.slane %v7435, 5
      %v7561 = vsel %vm2331, %v7559, %v7560
      %v7562 = vrot.slane %v7560, 4
      %v7563 = vrot.slane %v7436, 5
      %v7564 = vsel %vm2331, %v7562, %v7563
      %v7565 = vrot.slane %v7437, 5
      %v7566 = vrot.slane %v7565, 4
      %v7567 = vrot.slane %v7438, 5
      %v7568 = vsel %vm2331, %v7566, %v7567
      %v7569 = vrot.slane %v7567, 4
      %v7570 = vrot.slane %v7439, 5
      %v7571 = vsel %vm2331, %v7569, %v7570
      %v7572 = vrot.slane %v7440, 5
      %v7573 = vrot.slane %v7572, 4
      %v7574 = vrot.slane %v7441, 5
      %v7575 = vsel %vm2331, %v7573, %v7574
      %v7576 = vrot.slane %v7574, 4
      %v7577 = vrot.slane %v7442, 5
      %v7578 = vsel %vm2331, %v7576, %v7577
      %v7579 = vrot.slane %v7443, 5
      %v7580 = vrot.slane %v7579, 4
      %v7581 = vrot.slane %v7444, 5
      %v7582 = vsel %vm2331, %v7580, %v7581
      %v7583 = vrot.slane %v7581, 4
      %v7584 = vrot.slane %v7445, 5
      %v7585 = vsel %vm2331, %v7583, %v7584
      %v7586 = vrot.slane %v7446, 5
      %v7587 = vrot.slane %v7586, 4
      %v7588 = vrot.slane %v7447, 5
      %v7589 = vsel %vm2331, %v7587, %v7588
      %v7590 = vrot.slane %v7588, 4
      %v7591 = vrot.slane %v7448, 5
      %v7592 = vsel %vm2331, %v7590, %v7591
      %v7593 = vrot.slane %v7449, 5
      %v7594 = vrot.slane %v7593, 4
      %v7595 = vrot.slane %v7450, 5
      %v7596 = vsel %vm2331, %v7594, %v7595
      %v7597 = vrot.slane %v7595, 4
      %v7598 = vrot.slane %v7451, 5
      %v7599 = vsel %vm2331, %v7597, %v7598
      %v7600 = vrot.slane %v7452, 5
      %v7601 = vrot.slane %v7600, 4
      %v7602 = vrot.slane %v7453, 5
      %v7603 = vsel %vm2331, %v7601, %v7602
      %v7604 = vrot.slane %v7602, 4
      %v7605 = vrot.slane %v7454, 5
      %v7606 = vsel %vm2331, %v7604, %v7605
      %v7607 = vrot.slane %v7455, 5
      %v7608 = vrot.slane %v7607, 4
      %v7609 = vrot.slane %v7456, 5
      %v7610 = vsel %vm2331, %v7608, %v7609
      %v7611 = vrot.slane %v7609, 4
      %v7612 = vrot.slane %v7457, 5
      %v7613 = vsel %vm2331, %v7611, %v7612
      %v7614 = vrot.slane %v7458, 5
      %v7615 = vrot.slane %v7614, 4
      %v7616 = vrot.slane %v7459, 5
      %v7617 = vsel %vm2331, %v7615, %v7616
      %v7618 = vrot.slane %v7616, 4
      %v7619 = vrot.slane %v7460, 5
      %v7620 = vsel %vm2331, %v7618, %v7619
      %v7621 = vunpack.c.l.b16 %v7512
      %v7622 = vunpack.c.l.b16 %v7515
      %v7623 = vunpack.c.l.b16 %v7519
      %v7624 = vunpack.c.l.b16 %v7522
      %v7625 = vunpack.c.l.b16 %v7526
      %v7626 = vunpack.c.l.b16 %v7529
      %v7627 = vunpack.c.l.b16 %v7533
      %v7628 = vunpack.c.l.b16 %v7536
      %v7629 = vunpack.c.l.b16 %v7540
      %v7630 = vunpack.c.l.b16 %v7543
      %v7631 = vunpack.c.l.b16 %v7547
      %v7632 = vunpack.c.l.b16 %v7550
      %v7633 = vunpack.c.l.b16 %v7554
      %v7634 = vunpack.c.l.b16 %v7557
      %v7635 = vunpack.c.l.b16 %v7561
      %v7636 = vunpack.c.l.b16 %v7564
      %v7637 = vunpack.c.l.b16 %v7568
      %v7638 = vunpack.c.l.b16 %v7571
      %v7639 = vunpack.c.l.b16 %v7575
      %v7640 = vunpack.c.l.b16 %v7578
      %v7641 = vunpack.c.l.b16 %v7582
      %v7642 = vunpack.c.l.b16 %v7585
      %v7643 = vunpack.c.l.b16 %v7589
      %v7644 = vunpack.c.l.b16 %v7592
      %v7645 = vunpack.c.l.b16 %v7596
      %v7646 = vunpack.c.l.b16 %v7599
      %v7647 = vunpack.c.l.b16 %v7603
      %v7648 = vunpack.c.l.b16 %v7606
      %v7649 = vunpack.c.l.b16 %v7610
      %v7650 = vunpack.c.l.b16 %v7613
      %v7651 = vunpack.c.l.b16 %v7617
      %v7652 = vunpack.c.l.b16 %v7620
      %v7653 = vpack.c.b16 %v7622, %v7621
      %v7654 = vpack.c.b16 %v7624, %v7623
      %v7655 = vpack.c.b16 %v7626, %v7625
      %v7656 = vpack.c.b16 %v7628, %v7627
      %v7657 = vpack.c.b16 %v7630, %v7629
      %v7658 = vpack.c.b16 %v7632, %v7631
      %v7659 = vpack.c.b16 %v7634, %v7633
      %v7660 = vpack.c.b16 %v7636, %v7635
      %v7661 = vpack.c.b16 %v7638, %v7637
      %v7662 = vpack.c.b16 %v7640, %v7639
      %v7663 = vpack.c.b16 %v7642, %v7641
      %v7664 = vpack.c.b16 %v7644, %v7643
      %v7665 = vpack.c.b16 %v7646, %v7645
      %v7666 = vpack.c.b16 %v7648, %v7647
      %v7667 = vpack.c.b16 %v7650, %v7649
      %v7668 = vpack.c.b16 %v7652, %v7651
      %7669 = vrot.lane.b32.xlu0 %v7653, 64
      %v7670 = vpop.permute.xlu0 %7669
      %7671 = vrot.lane.b32.xlu0 %v7654, 64
      %v7672 = vpop.permute.xlu0 %7671
      %7673 = vrot.lane.b32.xlu0 %v7655, 64
      %v7674 = vpop.permute.xlu0 %7673
      %7675 = vrot.lane.b32.xlu0 %v7656, 64
      %v7676 = vpop.permute.xlu0 %7675
      %7677 = vrot.lane.b32.xlu0 %v7657, 64
      %v7678 = vpop.permute.xlu0 %7677
      %7679 = vrot.lane.b32.xlu0 %v7658, 64
      %v7680 = vpop.permute.xlu0 %7679
      %7681 = vrot.lane.b32.xlu0 %v7659, 64
      %v7682 = vpop.permute.xlu0 %7681
      %7683 = vrot.lane.b32.xlu0 %v7660, 64
      %v7684 = vpop.permute.xlu0 %7683
      %7685 = vrot.lane.b32.xlu0 %v7661, 64
      %v7686 = vpop.permute.xlu0 %7685
      %7687 = vrot.lane.b32.xlu0 %v7662, 64
      %v7688 = vpop.permute.xlu0 %7687
      %7689 = vrot.lane.b32.xlu0 %v7663, 64
      %v7690 = vpop.permute.xlu0 %7689
      %7691 = vrot.lane.b32.xlu0 %v7664, 64
      %v7692 = vpop.permute.xlu0 %7691
      %7693 = vrot.lane.b32.xlu0 %v7665, 64
      %v7694 = vpop.permute.xlu0 %7693
      %7695 = vrot.lane.b32.xlu0 %v7666, 64
      %v7696 = vpop.permute.xlu0 %7695
      %7697 = vrot.lane.b32.xlu0 %v7667, 64
      %v7698 = vpop.permute.xlu0 %7697
      %7699 = vrot.lane.b32.xlu0 %v7668, 64
      %v7700 = vpop.permute.xlu0 %7699
      %7717 = vst.msk [vmem:[#allocation5] sm:$0xff] %vm4627, %v7670
      %7718 = vst.msk [vmem:[#allocation5 + $0x8] sm:$0xff] %vm4627, %v7672
      %7719 = vst.msk [vmem:[#allocation5 + $0x10] sm:$0xff] %vm4627, %v7674
      %7720 = vst.msk [vmem:[#allocation5 + $0x18] sm:$0xff] %vm4627, %v7676
      %7721 = vst.msk [vmem:[#allocation5 + $0x20] sm:$0xff] %vm4627, %v7678
      %7722 = vst.msk [vmem:[#allocation5 + $0x28] sm:$0xff] %vm4627, %v7680
      %7723 = vst.msk [vmem:[#allocation5 + $0x30] sm:$0xff] %vm4627, %v7682
      %7724 = vst.msk [vmem:[#allocation5 + $0x38] sm:$0xff] %vm4627, %v7684
      %7725 = vst.msk [vmem:[#allocation5 + $0x40] sm:$0xff] %vm4627, %v7686
      %7726 = vst.msk [vmem:[#allocation5 + $0x48] sm:$0xff] %vm4627, %v7688
      %7727 = vst.msk [vmem:[#allocation5 + $0x50] sm:$0xff] %vm4627, %v7690
      %7728 = vst.msk [vmem:[#allocation5 + $0x58] sm:$0xff] %vm4627, %v7692
      %7729 = vst.msk [vmem:[#allocation5 + $0x60] sm:$0xff] %vm4627, %v7694
      %7730 = vst.msk [vmem:[#allocation5 + $0x68] sm:$0xff] %vm4627, %v7696
      %7731 = vst.msk [vmem:[#allocation5 + $0x70] sm:$0xff] %vm4627, %v7698
      %7732 = vst.msk [vmem:[#allocation5 + $0x78] sm:$0xff] %vm4627, %v7700
      %v7733 = vld [vmem:[#allocation4] sm:$0xff]
      %v7734 = vld [vmem:[#allocation4 + $0x8] sm:$0xff]
      %v7735 = vld [vmem:[#allocation4 + $0x10] sm:$0xff]
      %v7736 = vld [vmem:[#allocation4 + $0x18] sm:$0xff]
      %v7737 = vld [vmem:[#allocation4 + $0x20] sm:$0xff]
      %v7738 = vld [vmem:[#allocation4 + $0x28] sm:$0xff]
      %v7739 = vld [vmem:[#allocation4 + $0x30] sm:$0xff]
      %v7740 = vld [vmem:[#allocation4 + $0x38] sm:$0xff]
      %v7741 = vld [vmem:[#allocation4 + $0x40] sm:$0xff]
      %v7742 = vld [vmem:[#allocation4 + $0x48] sm:$0xff]
      %v7743 = vld [vmem:[#allocation4 + $0x50] sm:$0xff]
      %v7744 = vld [vmem:[#allocation4 + $0x58] sm:$0xff]
      %v7745 = vld [vmem:[#allocation4 + $0x60] sm:$0xff]
      %v7746 = vld [vmem:[#allocation4 + $0x68] sm:$0xff]
      %v7747 = vld [vmem:[#allocation4 + $0x70] sm:$0xff]
      %v7748 = vld [vmem:[#allocation4 + $0x78] sm:$0xff]
      %v7749 = vld [vmem:[%s2] sm:$0xf]
      %v7750 = vld [vmem:[%s2 + $0x4] sm:$0xf]
      %v7751 = vld [vmem:[%s2 + $0x8] sm:$0xf]
      %v7752 = vld [vmem:[%s2 + $0xc] sm:$0xf]
      %v7753 = vld [vmem:[%s2 + $0x10] sm:$0xf]
      %v7754 = vld [vmem:[%s2 + $0x14] sm:$0xf]
      %v7755 = vld [vmem:[%s2 + $0x18] sm:$0xf]
      %v7756 = vld [vmem:[%s2 + $0x1c] sm:$0xf]
      %v7757 = vld [vmem:[%s2 + $0x20] sm:$0xf]
      %v7767 = vunpack.c.l.b16 %v7749
      %v7768 = vunpack.c.l.b16 %v7750
      %v7769 = vunpack.c.l.b16 %v7751
      %v7770 = vunpack.c.l.b16 %v7752
      %v7771 = vunpack.c.l.b16 %v7753
      %v7772 = vunpack.c.l.b16 %v7754
      %v7773 = vunpack.c.l.b16 %v7755
      %v7774 = vunpack.c.l.b16 %v7756
      %v7775 = vunpack.c.l.b16 %v7757
      %v7776 = vpack.c.b16 %v7768, %v7767
      %v7777 = vpack.c.b16 %v7770, %v7769
      %v7778 = vpack.c.b16 %v7772, %v7771
      %v7779 = vpack.c.b16 %v7774, %v7773
      %v7780 = vpack.c.b16 %v7775, %v7775
      %vm7785 = vcmask 588800
      %v7787 = vsel %vm7785, %v7733, 0
      %v7790 = vsel %vm7785, %v7734, 0
      %v7793 = vsel %vm7785, %v7735, 0
      %v7796 = vsel %vm7785, %v7736, 0
      %v7799 = vsel %vm7785, %v7737, 0
      %v7802 = vsel %vm7785, %v7738, 0
      %v7805 = vsel %vm7785, %v7739, 0
      %v7808 = vsel %vm7785, %v7740, 0
      %v7811 = vsel %vm7785, %v7741, 0
      %v7814 = vsel %vm7785, %v7742, 0
      %v7817 = vsel %vm7785, %v7743, 0
      %v7820 = vsel %vm7785, %v7744, 0
      %v7823 = vsel %vm7785, %v7745, 0
      %v7826 = vsel %vm7785, %v7746, 0
      %v7829 = vsel %vm7785, %v7747, 0
      %v7832 = vsel %vm7785, %v7748, 0
      %vm7834 = vcmask 1043456
      %v7836 = vsel %vm7834, %v7780, 0
      %7838 = vmatprep.subr.bf16.mxu0 0
      %7839 = vmatpush1.bf16.msra.mxu0 %v7776
      %7840 = vmatprep.subr.bf16.mxu0 0
      %7841 = vmatpush1.bf16.msra.mxu0 %v7777
      %7842 = vmatprep.subr.bf16.mxu0 0
      %7843 = vmatpush1.bf16.msra.mxu0 %v7778
      %7844 = vmatprep.subr.bf16.mxu0 0
      %7845 = vmatpush1.bf16.msra.mxu0 %v7779
      %7846 = vmatprep.subr.bf16.mxu0 0
      %7847 = vmatpush1.bf16.msra.mxu0 %v7836
      %7848 = vmatprep.subr.bf16.mxu0 0
      %7849 = vmatpush1.bf16.msra.mxu0 0
      %7850 = vmatprep.subr.bf16.mxu0 0
      %7851 = vmatpush1.bf16.msra.mxu0 0
      %7852 = vmatprep.subr.bf16.mxu0 0
      %7853 = vmatpush1.bf16.msra.mxu0 0
      %7854 = vmatprep.subr.bf16.mxu0 0
      %7855 = vmatpush1.bf16.msra.mxu0 0
      %7856 = vmatprep.subr.bf16.mxu0 0
      %7857 = vmatpush1.bf16.msra.mxu0 0
      %7858 = vmatprep.subr.bf16.mxu0 0
      %7859 = vmatpush1.bf16.msra.mxu0 0
      %7860 = vmatprep.subr.bf16.mxu0 0
      %7861 = vmatpush1.bf16.msra.mxu0 0
      %7862 = vmatprep.subr.bf16.mxu0 0
      %7863 = vmatpush1.bf16.msra.mxu0 0
      %7864 = vmatprep.subr.bf16.mxu0 0
      %7865 = vmatpush1.bf16.msra.mxu0 0
      %7866 = vmatprep.subr.bf16.mxu0 0
      %7867 = vmatpush1.bf16.msra.mxu0 0
      %7868 = vmatprep.subr.bf16.mxu0 0
      %7869 = vmatpush1.bf16.msra.mxu0 0
      %7870 = vmatprep.mubr.bf16.mxu0 0
      %7871 = vmatmul.mubr.bf16.gmra.mrb[0].mxu0 %v7787
      %v7872 = vpop.f32.mrb[0].mxu0
      %v7873 = vadd.f32 0.0, %v7872
      %v7874 = vpop.f32.mrb[0].mxu0
      %v7875 = vpop.f32.mrb[0].mxu0
      %v7876 = vadd.f32 0.0, %v7875
      %v7877 = vpop.f32.mrb[0].mxu0
      %7878 = vmatprep.mubr.bf16.mxu0 0
      %7879 = vmatmul.mubr.bf16.gmra.mrb[0].mxu0 %v7790
      %v7880 = vpop.f32.mrb[0].mxu0
      %v7881 = vadd.f32 0.0, %v7880
      %v7882 = vpop.f32.mrb[0].mxu0
      %v7883 = vpop.f32.mrb[0].mxu0
      %v7884 = vadd.f32 0.0, %v7883
      %v7885 = vpop.f32.mrb[0].mxu0
      %7886 = vmatprep.mubr.bf16.mxu0 0
      %7887 = vmatmul.mubr.bf16.gmra.mrb[0].mxu0 %v7793
      %v7888 = vpop.f32.mrb[0].mxu0
      %v7889 = vadd.f32 0.0, %v7888
      %v7890 = vpop.f32.mrb[0].mxu0
      %v7891 = vpop.f32.mrb[0].mxu0
      %v7892 = vadd.f32 0.0, %v7891
      %v7893 = vpop.f32.mrb[0].mxu0
      %7894 = vmatprep.mubr.bf16.mxu0 0
      %7895 = vmatmul.mubr.bf16.gmra.mrb[0].mxu0 %v7796
      %v7896 = vpop.f32.mrb[0].mxu0
      %v7897 = vadd.f32 0.0, %v7896
      %v7898 = vpop.f32.mrb[0].mxu0
      %v7899 = vpop.f32.mrb[0].mxu0
      %v7900 = vadd.f32 0.0, %v7899
      %v7901 = vpop.f32.mrb[0].mxu0
      %7902 = vmatprep.mubr.bf16.mxu0 0
      %7903 = vmatmul.mubr.bf16.gmra.mrb[0].mxu0 %v7799
      %v7904 = vpop.f32.mrb[0].mxu0
      %v7905 = vadd.f32 0.0, %v7904
      %v7906 = vpop.f32.mrb[0].mxu0
      %v7907 = vpop.f32.mrb[0].mxu0
      %v7908 = vadd.f32 0.0, %v7907
      %v7909 = vpop.f32.mrb[0].mxu0
      %7910 = vmatprep.mubr.bf16.mxu0 0
      %7911 = vmatmul.mubr.bf16.gmra.mrb[0].mxu0 %v7802
      %v7912 = vpop.f32.mrb[0].mxu0
      %v7913 = vadd.f32 0.0, %v7912
      %v7914 = vpop.f32.mrb[0].mxu0
      %v7915 = vpop.f32.mrb[0].mxu0
      %v7916 = vadd.f32 0.0, %v7915
      %v7917 = vpop.f32.mrb[0].mxu0
      %7918 = vmatprep.mubr.bf16.mxu0 0
      %7919 = vmatmul.mubr.bf16.gmra.mrb[0].mxu0 %v7805
      %v7920 = vpop.f32.mrb[0].mxu0
      %v7921 = vadd.f32 0.0, %v7920
      %v7922 = vpop.f32.mrb[0].mxu0
      %v7923 = vpop.f32.mrb[0].mxu0
      %v7924 = vadd.f32 0.0, %v7923
      %v7925 = vpop.f32.mrb[0].mxu0
      %7926 = vmatprep.mubr.bf16.mxu0 0
      %7927 = vmatmul.mubr.bf16.gmra.mrb[0].mxu0 %v7808
      %v7928 = vpop.f32.mrb[0].mxu0
      %v7929 = vadd.f32 0.0, %v7928
      %v7930 = vpop.f32.mrb[0].mxu0
      %v7931 = vpop.f32.mrb[0].mxu0
      %v7932 = vadd.f32 0.0, %v7931
      %v7933 = vpop.f32.mrb[0].mxu0
      %7934 = vmatprep.mubr.bf16.mxu0 0
      %7935 = vmatmul.mubr.bf16.gmra.mrb[0].mxu0 %v7811
      %v7936 = vpop.f32.mrb[0].mxu0
      %v7937 = vadd.f32 0.0, %v7936
      %v7938 = vpop.f32.mrb[0].mxu0
      %v7939 = vpop.f32.mrb[0].mxu0
      %v7940 = vadd.f32 0.0, %v7939
      %v7941 = vpop.f32.mrb[0].mxu0
      %7942 = vmatprep.mubr.bf16.mxu0 0
      %7943 = vmatmul.mubr.bf16.gmra.mrb[0].mxu0 %v7814
      %v7944 = vpop.f32.mrb[0].mxu0
      %v7945 = vadd.f32 0.0, %v7944
      %v7946 = vpop.f32.mrb[0].mxu0
      %v7947 = vpop.f32.mrb[0].mxu0
      %v7948 = vadd.f32 0.0, %v7947
      %v7949 = vpop.f32.mrb[0].mxu0
      %7950 = vmatprep.mubr.bf16.mxu0 0
      %7951 = vmatmul.mubr.bf16.gmra.mrb[0].mxu0 %v7817
      %v7952 = vpop.f32.mrb[0].mxu0
      %v7953 = vadd.f32 0.0, %v7952
      %v7954 = vpop.f32.mrb[0].mxu0
      %v7955 = vpop.f32.mrb[0].mxu0
      %v7956 = vadd.f32 0.0, %v7955
      %v7957 = vpop.f32.mrb[0].mxu0
      %7958 = vmatprep.mubr.bf16.mxu0 0
      %7959 = vmatmul.mubr.bf16.gmra.mrb[0].mxu0 %v7820
      %v7960 = vpop.f32.mrb[0].mxu0
      %v7961 = vadd.f32 0.0, %v7960
      %v7962 = vpop.f32.mrb[0].mxu0
      %v7963 = vpop.f32.mrb[0].mxu0
      %v7964 = vadd.f32 0.0, %v7963
      %v7965 = vpop.f32.mrb[0].mxu0
      %7966 = vmatprep.mubr.bf16.mxu0 0
      %7967 = vmatmul.mubr.bf16.gmra.mrb[0].mxu0 %v7823
      %v7968 = vpop.f32.mrb[0].mxu0
      %v7969 = vadd.f32 0.0, %v7968
      %v7970 = vpop.f32.mrb[0].mxu0
      %v7971 = vpop.f32.mrb[0].mxu0
      %v7972 = vadd.f32 0.0, %v7971
      %v7973 = vpop.f32.mrb[0].mxu0
      %7974 = vmatprep.mubr.bf16.mxu0 0
      %7975 = vmatmul.mubr.bf16.gmra.mrb[0].mxu0 %v7826
      %v7976 = vpop.f32.mrb[0].mxu0
      %v7977 = vadd.f32 0.0, %v7976
      %v7978 = vpop.f32.mrb[0].mxu0
      %v7979 = vpop.f32.mrb[0].mxu0
      %v7980 = vadd.f32 0.0, %v7979
      %v7981 = vpop.f32.mrb[0].mxu0
      %7982 = vmatprep.mubr.bf16.mxu0 0
      %7983 = vmatmul.mubr.bf16.gmra.mrb[0].mxu0 %v7829
      %v7984 = vpop.f32.mrb[0].mxu0
      %v7985 = vadd.f32 0.0, %v7984
      %v7986 = vpop.f32.mrb[0].mxu0
      %v7987 = vpop.f32.mrb[0].mxu0
      %v7988 = vadd.f32 0.0, %v7987
      %v7989 = vpop.f32.mrb[0].mxu0
      %7990 = vmatprep.mubr.bf16.mxu0 0
      %7991 = vmatmul.mubr.bf16.gmra.mrb[0].mxu0 %v7832
      %v7992 = vpop.f32.mrb[0].mxu0
      %v7993 = vadd.f32 0.0, %v7992
      %v7994 = vpop.f32.mrb[0].mxu0
      %v7995 = vpop.f32.mrb[0].mxu0
      %v7996 = vadd.f32 0.0, %v7995
      %v7997 = vpop.f32.mrb[0].mxu0
      %7998 = vdwg.mxu0
      %v7999 = vmax.f32 %v7873, 0.0
      %v8000 = vmax.f32 %v7876, 0.0
      %v8001 = vmax.f32 %v7881, 0.0
      %v8002 = vmax.f32 %v7884, 0.0
      %v8003 = vmax.f32 %v7889, 0.0
      %v8004 = vmax.f32 %v7892, 0.0
      %v8005 = vmax.f32 %v7897, 0.0
      %v8006 = vmax.f32 %v7900, 0.0
      %v8007 = vmax.f32 %v7905, 0.0
      %v8008 = vmax.f32 %v7908, 0.0
      %v8009 = vmax.f32 %v7913, 0.0
      %v8010 = vmax.f32 %v7916, 0.0
      %v8011 = vmax.f32 %v7921, 0.0
      %v8012 = vmax.f32 %v7924, 0.0
      %v8013 = vmax.f32 %v7929, 0.0
      %v8014 = vmax.f32 %v7932, 0.0
      %v8015 = vmax.f32 %v7937, 0.0
      %v8016 = vmax.f32 %v7940, 0.0
      %v8017 = vmax.f32 %v7945, 0.0
      %v8018 = vmax.f32 %v7948, 0.0
      %v8019 = vmax.f32 %v7953, 0.0
      %v8020 = vmax.f32 %v7956, 0.0
      %v8021 = vmax.f32 %v7961, 0.0
      %v8022 = vmax.f32 %v7964, 0.0
      %v8023 = vmax.f32 %v7969, 0.0
      %v8024 = vmax.f32 %v7972, 0.0
      %v8025 = vmax.f32 %v7977, 0.0
      %v8026 = vmax.f32 %v7980, 0.0
      %v8027 = vmax.f32 %v7985, 0.0
      %v8028 = vmax.f32 %v7988, 0.0
      %v8029 = vmax.f32 %v7993, 0.0
      %v8030 = vmax.f32 %v7996, 0.0
      %v8031 = vpack.c.bf16 %v8000, %v7999
      %v8032 = vpack.c.bf16 %v8002, %v8001
      %v8033 = vpack.c.bf16 %v8004, %v8003
      %v8034 = vpack.c.bf16 %v8006, %v8005
      %v8035 = vpack.c.bf16 %v8008, %v8007
      %v8036 = vpack.c.bf16 %v8010, %v8009
      %v8037 = vpack.c.bf16 %v8012, %v8011
      %v8038 = vpack.c.bf16 %v8014, %v8013
      %v8039 = vpack.c.bf16 %v8016, %v8015
      %v8040 = vpack.c.bf16 %v8018, %v8017
      %v8041 = vpack.c.bf16 %v8020, %v8019
      %v8042 = vpack.c.bf16 %v8022, %v8021
      %v8043 = vpack.c.bf16 %v8024, %v8023
      %v8044 = vpack.c.bf16 %v8026, %v8025
      %v8045 = vpack.c.bf16 %v8028, %v8027
      %v8046 = vpack.c.bf16 %v8030, %v8029
      %v8047 = vld [vmem:[%s3] sm:$0x1]
      %vm8048 = vcmask 15360
      %v8050 = vsel %vm8048, %v8031, 0
      %v8053 = vsel %vm8048, %v8032, 0
      %v8056 = vsel %vm8048, %v8033, 0
      %v8059 = vsel %vm8048, %v8034, 0
      %v8062 = vsel %vm8048, %v8035, 0
      %v8065 = vsel %vm8048, %v8036, 0
      %v8068 = vsel %vm8048, %v8037, 0
      %v8071 = vsel %vm8048, %v8038, 0
      %v8074 = vsel %vm8048, %v8039, 0
      %v8077 = vsel %vm8048, %v8040, 0
      %v8080 = vsel %vm8048, %v8041, 0
      %v8083 = vsel %vm8048, %v8042, 0
      %v8086 = vsel %vm8048, %v8043, 0
      %v8089 = vsel %vm8048, %v8044, 0
      %v8092 = vsel %vm8048, %v8045, 0
      %v8095 = vsel %vm8048, %v8046, 0
      %vm8097 = vcmask 1040384
      %v8099 = vsel %vm8097, %v8047, 0
      %8101 = vmatprep.subr.bf16.mxu0 0
      %8102 = vmatpush1.bf16.msra.mxu0 %v8099
      %8103 = vmatprep.subr.bf16.mxu0 0
      %8104 = vmatpush1.bf16.msra.mxu0 0
      %8105 = vmatprep.subr.bf16.mxu0 0
      %8106 = vmatpush1.bf16.msra.mxu0 0
      %8107 = vmatprep.subr.bf16.mxu0 0
      %8108 = vmatpush1.bf16.msra.mxu0 0
      %8109 = vmatprep.subr.bf16.mxu0 0
      %8110 = vmatpush1.bf16.msra.mxu0 0
      %8111 = vmatprep.subr.bf16.mxu0 0
      %8112 = vmatpush1.bf16.msra.mxu0 0
      %8113 = vmatprep.subr.bf16.mxu0 0
      %8114 = vmatpush1.bf16.msra.mxu0 0
      %8115 = vmatprep.subr.bf16.mxu0 0
      %8116 = vmatpush1.bf16.msra.mxu0 0
      %8117 = vmatprep.subr.bf16.mxu0 0
      %8118 = vmatpush1.bf16.msra.mxu0 0
      %8119 = vmatprep.subr.bf16.mxu0 0
      %8120 = vmatpush1.bf16.msra.mxu0 0
      %8121 = vmatprep.subr.bf16.mxu0 0
      %8122 = vmatpush1.bf16.msra.mxu0 0
      %8123 = vmatprep.subr.bf16.mxu0 0
      %8124 = vmatpush1.bf16.msra.mxu0 0
      %8125 = vmatprep.subr.bf16.mxu0 0
      %8126 = vmatpush1.bf16.msra.mxu0 0
      %8127 = vmatprep.subr.bf16.mxu0 0
      %8128 = vmatpush1.bf16.msra.mxu0 0
      %8129 = vmatprep.subr.bf16.mxu0 0
      %8130 = vmatpush1.bf16.msra.mxu0 0
      %8131 = vmatprep.subr.bf16.mxu0 0
      %8132 = vmatpush1.bf16.msra.mxu0 0
      %8133 = vmatprep.mubr.bf16.mxu0 0
      %8134 = vmatmul.mubr.bf16.gmra.mrb[0].mxu0 %v8050
      %v8135 = vpop.f32.mrb[0].mxu0
      %v8136 = vadd.f32 0.0, %v8135
      %v8137 = vpop.f32.mrb[0].mxu0
      %v8138 = vpop.f32.mrb[0].mxu0
      %v8139 = vadd.f32 0.0, %v8138
      %v8140 = vpop.f32.mrb[0].mxu0
      %8141 = vmatprep.mubr.bf16.mxu0 0
      %8142 = vmatmul.mubr.bf16.gmra.mrb[0].mxu0 %v8053
      %v8143 = vpop.f32.mrb[0].mxu0
      %v8144 = vadd.f32 0.0, %v8143
      %v8145 = vpop.f32.mrb[0].mxu0
      %v8146 = vpop.f32.mrb[0].mxu0
      %v8147 = vadd.f32 0.0, %v8146
      %v8148 = vpop.f32.mrb[0].mxu0
      %8149 = vmatprep.mubr.bf16.mxu0 0
      %8150 = vmatmul.mubr.bf16.gmra.mrb[0].mxu0 %v8056
      %v8151 = vpop.f32.mrb[0].mxu0
      %v8152 = vadd.f32 0.0, %v8151
      %v8153 = vpop.f32.mrb[0].mxu0
      %v8154 = vpop.f32.mrb[0].mxu0
      %v8155 = vadd.f32 0.0, %v8154
      %v8156 = vpop.f32.mrb[0].mxu0
      %8157 = vmatprep.mubr.bf16.mxu0 0
      %8158 = vmatmul.mubr.bf16.gmra.mrb[0].mxu0 %v8059
      %v8159 = vpop.f32.mrb[0].mxu0
      %v8160 = vadd.f32 0.0, %v8159
      %v8161 = vpop.f32.mrb[0].mxu0
      %v8162 = vpop.f32.mrb[0].mxu0
      %v8163 = vadd.f32 0.0, %v8162
      %v8164 = vpop.f32.mrb[0].mxu0
      %8165 = vmatprep.mubr.bf16.mxu0 0
      %8166 = vmatmul.mubr.bf16.gmra.mrb[0].mxu0 %v8062
      %v8167 = vpop.f32.mrb[0].mxu0
      %v8168 = vadd.f32 0.0, %v8167
      %v8169 = vpop.f32.mrb[0].mxu0
      %v8170 = vpop.f32.mrb[0].mxu0
      %v8171 = vadd.f32 0.0, %v8170
      %v8172 = vpop.f32.mrb[0].mxu0
      %8173 = vmatprep.mubr.bf16.mxu0 0
      %8174 = vmatmul.mubr.bf16.gmra.mrb[0].mxu0 %v8065
      %v8175 = vpop.f32.mrb[0].mxu0
      %v8176 = vadd.f32 0.0, %v8175
      %v8177 = vpop.f32.mrb[0].mxu0
      %v8178 = vpop.f32.mrb[0].mxu0
      %v8179 = vadd.f32 0.0, %v8178
      %v8180 = vpop.f32.mrb[0].mxu0
      %8181 = vmatprep.mubr.bf16.mxu0 0
      %8182 = vmatmul.mubr.bf16.gmra.mrb[0].mxu0 %v8068
      %v8183 = vpop.f32.mrb[0].mxu0
      %v8184 = vadd.f32 0.0, %v8183
      %v8185 = vpop.f32.mrb[0].mxu0
      %v8186 = vpop.f32.mrb[0].mxu0
      %v8187 = vadd.f32 0.0, %v8186
      %v8188 = vpop.f32.mrb[0].mxu0
      %8189 = vmatprep.mubr.bf16.mxu0 0
      %8190 = vmatmul.mubr.bf16.gmra.mrb[0].mxu0 %v8071
      %v8191 = vpop.f32.mrb[0].mxu0
      %v8192 = vadd.f32 0.0, %v8191
      %v8193 = vpop.f32.mrb[0].mxu0
      %v8194 = vpop.f32.mrb[0].mxu0
      %v8195 = vadd.f32 0.0, %v8194
      %v8196 = vpop.f32.mrb[0].mxu0
      %8197 = vmatprep.mubr.bf16.mxu0 0
      %8198 = vmatmul.mubr.bf16.gmra.mrb[0].mxu0 %v8074
      %v8199 = vpop.f32.mrb[0].mxu0
      %v8200 = vadd.f32 0.0, %v8199
      %v8201 = vpop.f32.mrb[0].mxu0
      %v8202 = vpop.f32.mrb[0].mxu0
      %v8203 = vadd.f32 0.0, %v8202
      %v8204 = vpop.f32.mrb[0].mxu0
      %8205 = vmatprep.mubr.bf16.mxu0 0
      %8206 = vmatmul.mubr.bf16.gmra.mrb[0].mxu0 %v8077
      %v8207 = vpop.f32.mrb[0].mxu0
      %v8208 = vadd.f32 0.0, %v8207
      %v8209 = vpop.f32.mrb[0].mxu0
      %v8210 = vpop.f32.mrb[0].mxu0
      %v8211 = vadd.f32 0.0, %v8210
      %v8212 = vpop.f32.mrb[0].mxu0
      %8213 = vmatprep.mubr.bf16.mxu0 0
      %8214 = vmatmul.mubr.bf16.gmra.mrb[0].mxu0 %v8080
      %v8215 = vpop.f32.mrb[0].mxu0
      %v8216 = vadd.f32 0.0, %v8215
      %v8217 = vpop.f32.mrb[0].mxu0
      %v8218 = vpop.f32.mrb[0].mxu0
      %v8219 = vadd.f32 0.0, %v8218
      %v8220 = vpop.f32.mrb[0].mxu0
      %8221 = vmatprep.mubr.bf16.mxu0 0
      %8222 = vmatmul.mubr.bf16.gmra.mrb[0].mxu0 %v8083
      %v8223 = vpop.f32.mrb[0].mxu0
      %v8224 = vadd.f32 0.0, %v8223
      %v8225 = vpop.f32.mrb[0].mxu0
      %v8226 = vpop.f32.mrb[0].mxu0
      %v8227 = vadd.f32 0.0, %v8226
      %v8228 = vpop.f32.mrb[0].mxu0
      %8229 = vmatprep.mubr.bf16.mxu0 0
      %8230 = vmatmul.mubr.bf16.gmra.mrb[0].mxu0 %v8086
      %v8231 = vpop.f32.mrb[0].mxu0
      %v8232 = vadd.f32 0.0, %v8231
      %v8233 = vpop.f32.mrb[0].mxu0
      %v8234 = vpop.f32.mrb[0].mxu0
      %v8235 = vadd.f32 0.0, %v8234
      %v8236 = vpop.f32.mrb[0].mxu0
      %8237 = vmatprep.mubr.bf16.mxu0 0
      %8238 = vmatmul.mubr.bf16.gmra.mrb[0].mxu0 %v8089
      %v8239 = vpop.f32.mrb[0].mxu0
      %v8240 = vadd.f32 0.0, %v8239
      %v8241 = vpop.f32.mrb[0].mxu0
      %v8242 = vpop.f32.mrb[0].mxu0
      %v8243 = vadd.f32 0.0, %v8242
      %v8244 = vpop.f32.mrb[0].mxu0
      %8245 = vmatprep.mubr.bf16.mxu0 0
      %8246 = vmatmul.mubr.bf16.gmra.mrb[0].mxu0 %v8092
      %v8247 = vpop.f32.mrb[0].mxu0
      %v8248 = vadd.f32 0.0, %v8247
      %v8249 = vpop.f32.mrb[0].mxu0
      %v8250 = vpop.f32.mrb[0].mxu0
      %v8251 = vadd.f32 0.0, %v8250
      %v8252 = vpop.f32.mrb[0].mxu0
      %8253 = vmatprep.mubr.bf16.mxu0 0
      %8254 = vmatmul.mubr.bf16.gmra.mrb[0].mxu0 %v8095
      %v8255 = vpop.f32.mrb[0].mxu0
      %v8256 = vadd.f32 0.0, %v8255
      %v8257 = vpop.f32.mrb[0].mxu0
      %v8258 = vpop.f32.mrb[0].mxu0
      %v8259 = vadd.f32 0.0, %v8258
      %v8260 = vpop.f32.mrb[0].mxu0
      %8261 = vdwg.mxu0
      %v8262 = vld [vmem:[#allocation5] sm:$0xff]
      %v8263 = vld [vmem:[#allocation5 + $0x8] sm:$0xff]
      %v8264 = vld [vmem:[#allocation5 + $0x10] sm:$0xff]
      %v8265 = vld [vmem:[#allocation5 + $0x18] sm:$0xff]
      %v8266 = vld [vmem:[#allocation5 + $0x20] sm:$0xff]
      %v8267 = vld [vmem:[#allocation5 + $0x28] sm:$0xff]
      %v8268 = vld [vmem:[#allocation5 + $0x30] sm:$0xff]
      %v8269 = vld [vmem:[#allocation5 + $0x38] sm:$0xff]
      %v8270 = vld [vmem:[#allocation5 + $0x40] sm:$0xff]
      %v8271 = vld [vmem:[#allocation5 + $0x48] sm:$0xff]
      %v8272 = vld [vmem:[#allocation5 + $0x50] sm:$0xff]
      %v8273 = vld [vmem:[#allocation5 + $0x58] sm:$0xff]
      %v8274 = vld [vmem:[#allocation5 + $0x60] sm:$0xff]
      %v8275 = vld [vmem:[#allocation5 + $0x68] sm:$0xff]
      %v8276 = vld [vmem:[#allocation5 + $0x70] sm:$0xff]
      %v8277 = vld [vmem:[#allocation5 + $0x78] sm:$0xff]
      %v8278 = vld [vmem:[%s4] sm:$0xf]
      %v8279 = vld [vmem:[%s4 + $0x4] sm:$0xf]
      %v8280 = vld [vmem:[%s4 + $0x8] sm:$0xf]
      %v8281 = vld [vmem:[%s4 + $0xc] sm:$0xf]
      %v8282 = vld [vmem:[%s4 + $0x10] sm:$0xf]
      %v8283 = vld [vmem:[%s4 + $0x14] sm:$0xf]
      %v8284 = vld [vmem:[%s4 + $0x18] sm:$0xf]
      %v8285 = vld [vmem:[%s4 + $0x1c] sm:$0xf]
      %v8286 = vld [vmem:[%s4 + $0x20] sm:$0xf]
      %v8287 = vpack.c.bf16 %v8139, %v8136
      %v8288 = vpack.c.bf16 %v8147, %v8144
      %v8289 = vpack.c.bf16 %v8155, %v8152
      %v8290 = vpack.c.bf16 %v8163, %v8160
      %v8291 = vpack.c.bf16 %v8171, %v8168
      %v8292 = vpack.c.bf16 %v8179, %v8176
      %v8293 = vpack.c.bf16 %v8187, %v8184
      %v8294 = vpack.c.bf16 %v8195, %v8192
      %v8295 = vpack.c.bf16 %v8203, %v8200
      %v8296 = vpack.c.bf16 %v8211, %v8208
      %v8297 = vpack.c.bf16 %v8219, %v8216
      %v8298 = vpack.c.bf16 %v8227, %v8224
      %v8299 = vpack.c.bf16 %v8235, %v8232
      %v8300 = vpack.c.bf16 %v8243, %v8240
      %v8301 = vpack.c.bf16 %v8251, %v8248
      %v8302 = vpack.c.bf16 %v8259, %v8256
      %v8319 = vunpack.c.l.b16 %v8287
      %v8320 = vunpack.c.h.b16 %v8287
      %v8321 = vunpack.c.l.b16 %v8288
      %v8322 = vunpack.c.h.b16 %v8288
      %v8323 = vunpack.c.l.b16 %v8289
      %v8324 = vunpack.c.h.b16 %v8289
      %v8325 = vunpack.c.l.b16 %v8290
      %v8326 = vunpack.c.h.b16 %v8290
      %v8327 = vunpack.c.l.b16 %v8291
      %v8328 = vunpack.c.h.b16 %v8291
      %v8329 = vunpack.c.l.b16 %v8292
      %v8330 = vunpack.c.h.b16 %v8292
      %v8331 = vunpack.c.l.b16 %v8293
      %v8332 = vunpack.c.h.b16 %v8293
      %v8333 = vunpack.c.l.b16 %v8294
      %v8334 = vunpack.c.h.b16 %v8294
      %v8335 = vunpack.c.l.b16 %v8295
      %v8336 = vunpack.c.h.b16 %v8295
      %v8337 = vunpack.c.l.b16 %v8296
      %v8338 = vunpack.c.h.b16 %v8296
      %v8339 = vunpack.c.l.b16 %v8297
      %v8340 = vunpack.c.h.b16 %v8297
      %v8341 = vunpack.c.l.b16 %v8298
      %v8342 = vunpack.c.h.b16 %v8298
      %v8343 = vunpack.c.l.b16 %v8299
      %v8344 = vunpack.c.h.b16 %v8299
      %v8345 = vunpack.c.l.b16 %v8300
      %v8346 = vunpack.c.h.b16 %v8300
      %v8347 = vunpack.c.l.b16 %v8301
      %v8348 = vunpack.c.h.b16 %v8301
      %v8349 = vunpack.c.l.b16 %v8302
      %v8350 = vunpack.c.h.b16 %v8302
      %v8351 = vpack.c.b16 %v8319, %v8319
      %v8352 = vpack.c.b16 %v8320, %v8320
      %v8353 = vpack.c.b16 %v8321, %v8321
      %v8354 = vpack.c.b16 %v8322, %v8322
      %v8355 = vpack.c.b16 %v8323, %v8323
      %v8356 = vpack.c.b16 %v8324, %v8324
      %v8357 = vpack.c.b16 %v8325, %v8325
      %v8358 = vpack.c.b16 %v8326, %v8326
      %v8359 = vpack.c.b16 %v8327, %v8327
      %v8360 = vpack.c.b16 %v8328, %v8328
      %v8361 = vpack.c.b16 %v8329, %v8329
      %v8362 = vpack.c.b16 %v8330, %v8330
      %v8363 = vpack.c.b16 %v8331, %v8331
      %v8364 = vpack.c.b16 %v8332, %v8332
      %v8365 = vpack.c.b16 %v8333, %v8333
      %v8366 = vpack.c.b16 %v8334, %v8334
      %v8367 = vpack.c.b16 %v8335, %v8335
      %v8368 = vpack.c.b16 %v8336, %v8336
      %v8369 = vpack.c.b16 %v8337, %v8337
      %v8370 = vpack.c.b16 %v8338, %v8338
      %v8371 = vpack.c.b16 %v8339, %v8339
      %v8372 = vpack.c.b16 %v8340, %v8340
      %v8373 = vpack.c.b16 %v8341, %v8341
      %v8374 = vpack.c.b16 %v8342, %v8342
      %v8375 = vpack.c.b16 %v8343, %v8343
      %v8376 = vpack.c.b16 %v8344, %v8344
      %v8377 = vpack.c.b16 %v8345, %v8345
      %v8378 = vpack.c.b16 %v8346, %v8346
      %v8379 = vpack.c.b16 %v8347, %v8347
      %v8380 = vpack.c.b16 %v8348, %v8348
      %v8381 = vpack.c.b16 %v8349, %v8349
      %v8382 = vpack.c.b16 %v8350, %v8350
      %v8384 = vshrl.u32 %v8351, 16
      %v8386 = vrot.slane %v8384, 7
      %v8387 = vshll.u32 %v8351, 16
      %v8389 = vor.u32 %v8386, %v8387
      %v8390 = vrot.slane %v8386, 4
      %v8392 = vshrl.u32 %v8352, 16
      %v8394 = vrot.slane %v8392, 7
      %v8395 = vshll.u32 %v8352, 16
      %v8397 = vor.u32 %v8394, %v8395
      %v8398 = vsel %vm540, %v8390, %v8397
      %v8399 = vrot.slane %v8394, 4
      %v8401 = vshrl.u32 %v8353, 16
      %v8403 = vrot.slane %v8401, 7
      %v8404 = vshll.u32 %v8353, 16
      %v8406 = vor.u32 %v8403, %v8404
      %v8407 = vrot.slane %v8403, 4
      %v8409 = vshrl.u32 %v8354, 16
      %v8411 = vrot.slane %v8409, 7
      %v8412 = vshll.u32 %v8354, 16
      %v8414 = vor.u32 %v8411, %v8412
      %v8415 = vsel %vm540, %v8407, %v8414
      %v8416 = vrot.slane %v8411, 4
      %v8418 = vshrl.u32 %v8355, 16
      %v8420 = vrot.slane %v8418, 7
      %v8421 = vshll.u32 %v8355, 16
      %v8423 = vor.u32 %v8420, %v8421
      %v8424 = vrot.slane %v8420, 4
      %v8426 = vshrl.u32 %v8356, 16
      %v8428 = vrot.slane %v8426, 7
      %v8429 = vshll.u32 %v8356, 16
      %v8431 = vor.u32 %v8428, %v8429
      %v8432 = vsel %vm540, %v8424, %v8431
      %v8433 = vrot.slane %v8428, 4
      %v8435 = vshrl.u32 %v8357, 16
      %v8437 = vrot.slane %v8435, 7
      %v8438 = vshll.u32 %v8357, 16
      %v8440 = vor.u32 %v8437, %v8438
      %v8441 = vrot.slane %v8437, 4
      %v8443 = vshrl.u32 %v8358, 16
      %v8445 = vrot.slane %v8443, 7
      %v8446 = vshll.u32 %v8358, 16
      %v8448 = vor.u32 %v8445, %v8446
      %v8449 = vsel %vm540, %v8441, %v8448
      %v8450 = vrot.slane %v8445, 4
      %v8452 = vshrl.u32 %v8359, 16
      %v8454 = vrot.slane %v8452, 7
      %v8455 = vshll.u32 %v8359, 16
      %v8457 = vor.u32 %v8454, %v8455
      %v8458 = vrot.slane %v8454, 4
      %v8460 = vshrl.u32 %v8360, 16
      %v8462 = vrot.slane %v8460, 7
      %v8463 = vshll.u32 %v8360, 16
      %v8465 = vor.u32 %v8462, %v8463
      %v8466 = vsel %vm540, %v8458, %v8465
      %v8467 = vrot.slane %v8462, 4
      %v8469 = vshrl.u32 %v8361, 16
      %v8471 = vrot.slane %v8469, 7
      %v8472 = vshll.u32 %v8361, 16
      %v8474 = vor.u32 %v8471, %v8472
      %v8475 = vrot.slane %v8471, 4
      %v8477 = vshrl.u32 %v8362, 16
      %v8479 = vrot.slane %v8477, 7
      %v8480 = vshll.u32 %v8362, 16
      %v8482 = vor.u32 %v8479, %v8480
      %v8483 = vsel %vm540, %v8475, %v8482
      %v8484 = vrot.slane %v8479, 4
      %v8486 = vshrl.u32 %v8363, 16
      %v8488 = vrot.slane %v8486, 7
      %v8489 = vshll.u32 %v8363, 16
      %v8491 = vor.u32 %v8488, %v8489
      %v8492 = vrot.slane %v8488, 4
      %v8494 = vshrl.u32 %v8364, 16
      %v8496 = vrot.slane %v8494, 7
      %v8497 = vshll.u32 %v8364, 16
      %v8499 = vor.u32 %v8496, %v8497
      %v8500 = vsel %vm540, %v8492, %v8499
      %v8501 = vrot.slane %v8496, 4
      %v8503 = vshrl.u32 %v8365, 16
      %v8505 = vrot.slane %v8503, 7
      %v8506 = vshll.u32 %v8365, 16
      %v8508 = vor.u32 %v8505, %v8506
      %v8509 = vrot.slane %v8505, 4
      %v8511 = vshrl.u32 %v8366, 16
      %v8513 = vrot.slane %v8511, 7
      %v8514 = vshll.u32 %v8366, 16
      %v8516 = vor.u32 %v8513, %v8514
      %v8517 = vsel %vm540, %v8509, %v8516
      %v8518 = vrot.slane %v8513, 4
      %v8520 = vshrl.u32 %v8367, 16
      %v8522 = vrot.slane %v8520, 7
      %v8523 = vshll.u32 %v8367, 16
      %v8525 = vor.u32 %v8522, %v8523
      %v8526 = vrot.slane %v8522, 4
      %v8528 = vshrl.u32 %v8368, 16
      %v8530 = vrot.slane %v8528, 7
      %v8531 = vshll.u32 %v8368, 16
      %v8533 = vor.u32 %v8530, %v8531
      %v8534 = vsel %vm540, %v8526, %v8533
      %v8535 = vrot.slane %v8530, 4
      %v8537 = vshrl.u32 %v8369, 16
      %v8539 = vrot.slane %v8537, 7
      %v8540 = vshll.u32 %v8369, 16
      %v8542 = vor.u32 %v8539, %v8540
      %v8543 = vrot.slane %v8539, 4
      %v8545 = vshrl.u32 %v8370, 16
      %v8547 = vrot.slane %v8545, 7
      %v8548 = vshll.u32 %v8370, 16
      %v8550 = vor.u32 %v8547, %v8548
      %v8551 = vsel %vm540, %v8543, %v8550
      %v8552 = vrot.slane %v8547, 4
      %v8554 = vshrl.u32 %v8371, 16
      %v8556 = vrot.slane %v8554, 7
      %v8557 = vshll.u32 %v8371, 16
      %v8559 = vor.u32 %v8556, %v8557
      %v8560 = vrot.slane %v8556, 4
      %v8562 = vshrl.u32 %v8372, 16
      %v8564 = vrot.slane %v8562, 7
      %v8565 = vshll.u32 %v8372, 16
      %v8567 = vor.u32 %v8564, %v8565
      %v8568 = vsel %vm540, %v8560, %v8567
      %v8569 = vrot.slane %v8564, 4
      %v8571 = vshrl.u32 %v8373, 16
      %v8573 = vrot.slane %v8571, 7
      %v8574 = vshll.u32 %v8373, 16
      %v8576 = vor.u32 %v8573, %v8574
      %v8577 = vrot.slane %v8573, 4
      %v8579 = vshrl.u32 %v8374, 16
      %v8581 = vrot.slane %v8579, 7
      %v8582 = vshll.u32 %v8374, 16
      %v8584 = vor.u32 %v8581, %v8582
      %v8585 = vsel %vm540, %v8577, %v8584
      %v8586 = vrot.slane %v8581, 4
      %v8588 = vshrl.u32 %v8375, 16
      %v8590 = vrot.slane %v8588, 7
      %v8591 = vshll.u32 %v8375, 16
      %v8593 = vor.u32 %v8590, %v8591
      %v8594 = vrot.slane %v8590, 4
      %v8596 = vshrl.u32 %v8376, 16
      %v8598 = vrot.slane %v8596, 7
      %v8599 = vshll.u32 %v8376, 16
      %v8601 = vor.u32 %v8598, %v8599
      %v8602 = vsel %vm540, %v8594, %v8601
      %v8603 = vrot.slane %v8598, 4
      %v8605 = vshrl.u32 %v8377, 16
      %v8607 = vrot.slane %v8605, 7
      %v8608 = vshll.u32 %v8377, 16
      %v8610 = vor.u32 %v8607, %v8608
      %v8611 = vrot.slane %v8607, 4
      %v8613 = vshrl.u32 %v8378, 16
      %v8615 = vrot.slane %v8613, 7
      %v8616 = vshll.u32 %v8378, 16
      %v8618 = vor.u32 %v8615, %v8616
      %v8619 = vsel %vm540, %v8611, %v8618
      %v8620 = vrot.slane %v8615, 4
      %v8622 = vshrl.u32 %v8379, 16
      %v8624 = vrot.slane %v8622, 7
      %v8625 = vshll.u32 %v8379, 16
      %v8627 = vor.u32 %v8624, %v8625
      %v8628 = vrot.slane %v8624, 4
      %v8630 = vshrl.u32 %v8380, 16
      %v8632 = vrot.slane %v8630, 7
      %v8633 = vshll.u32 %v8380, 16
      %v8635 = vor.u32 %v8632, %v8633
      %v8636 = vsel %vm540, %v8628, %v8635
      %v8637 = vrot.slane %v8632, 4
      %v8639 = vshrl.u32 %v8381, 16
      %v8641 = vrot.slane %v8639, 7
      %v8642 = vshll.u32 %v8381, 16
      %v8644 = vor.u32 %v8641, %v8642
      %v8645 = vrot.slane %v8641, 4
      %v8647 = vshrl.u32 %v8382, 16
      %v8649 = vrot.slane %v8647, 7
      %v8650 = vshll.u32 %v8382, 16
      %v8652 = vor.u32 %v8649, %v8650
      %v8653 = vsel %vm540, %v8645, %v8652
      %v8654 = vrot.slane %v8649, 4
      %v8703 = vld [vmem:[%s861] sm:$0xf]
      %v8704 = vsel %vm864, %v8389, %v8703
      %8705 = vst [vmem:[%s861] sm:$0xf] %v8704
      %8706 = vst.msk [vmem:[%s861 + $0x4] sm:$0xf] %vm300, %v8398
      %v8707 = vld [vmem:[%s861 + $0x8] sm:$0x1]
      %v8708 = vsel %vm870, %v8399, %v8707
      %8709 = vst [vmem:[%s861 + $0x8] sm:$0x1] %v8708
      %v8710 = vld [vmem:[%s861 + $0xc] sm:$0xf]
      %v8711 = vsel %vm864, %v8406, %v8710
      %8712 = vst [vmem:[%s861 + $0xc] sm:$0xf] %v8711
      %8713 = vst.msk [vmem:[%s861 + $0x10] sm:$0xf] %vm300, %v8415
      %v8714 = vld [vmem:[%s861 + $0x14] sm:$0x1]
      %v8715 = vsel %vm870, %v8416, %v8714
      %8716 = vst [vmem:[%s861 + $0x14] sm:$0x1] %v8715
      %v8717 = vld [vmem:[%s861 + $0x18] sm:$0xf]
      %v8718 = vsel %vm864, %v8423, %v8717
      %8719 = vst [vmem:[%s861 + $0x18] sm:$0xf] %v8718
      %8720 = vst.msk [vmem:[%s861 + $0x1c] sm:$0xf] %vm300, %v8432
      %v8721 = vld [vmem:[%s861 + $0x20] sm:$0x1]
      %v8722 = vsel %vm870, %v8433, %v8721
      %8723 = vst [vmem:[%s861 + $0x20] sm:$0x1] %v8722
      %v8724 = vld [vmem:[%s861 + $0x24] sm:$0xf]
      %v8725 = vsel %vm864, %v8440, %v8724
      %8726 = vst [vmem:[%s861 + $0x24] sm:$0xf] %v8725
      %8727 = vst.msk [vmem:[%s861 + $0x28] sm:$0xf] %vm300, %v8449
      %v8728 = vld [vmem:[%s861 + $0x2c] sm:$0x1]
      %v8729 = vsel %vm870, %v8450, %v8728
      %8730 = vst [vmem:[%s861 + $0x2c] sm:$0x1] %v8729
      %v8731 = vld [vmem:[%s861 + $0x30] sm:$0xf]
      %v8732 = vsel %vm864, %v8457, %v8731
      %8733 = vst [vmem:[%s861 + $0x30] sm:$0xf] %v8732
      %8734 = vst.msk [vmem:[%s861 + $0x34] sm:$0xf] %vm300, %v8466
      %v8735 = vld [vmem:[%s861 + $0x38] sm:$0x1]
      %v8736 = vsel %vm870, %v8467, %v8735
      %8737 = vst [vmem:[%s861 + $0x38] sm:$0x1] %v8736
      %v8738 = vld [vmem:[%s861 + $0x3c] sm:$0xf]
      %v8739 = vsel %vm864, %v8474, %v8738
      %8740 = vst [vmem:[%s861 + $0x3c] sm:$0xf] %v8739
      %8741 = vst.msk [vmem:[%s861 + $0x40] sm:$0xf] %vm300, %v8483
      %v8742 = vld [vmem:[%s861 + $0x44] sm:$0x1]
      %v8743 = vsel %vm870, %v8484, %v8742
      %8744 = vst [vmem:[%s861 + $0x44] sm:$0x1] %v8743
      %v8745 = vld [vmem:[%s861 + $0x48] sm:$0xf]
      %v8746 = vsel %vm864, %v8491, %v8745
      %8747 = vst [vmem:[%s861 + $0x48] sm:$0xf] %v8746
      %8748 = vst.msk [vmem:[%s861 + $0x4c] sm:$0xf] %vm300, %v8500
      %v8749 = vld [vmem:[%s861 + $0x50] sm:$0x1]
      %v8750 = vsel %vm870, %v8501, %v8749
      %8751 = vst [vmem:[%s861 + $0x50] sm:$0x1] %v8750
      %v8752 = vld [vmem:[%s861 + $0x54] sm:$0xf]
      %v8753 = vsel %vm864, %v8508, %v8752
      %8754 = vst [vmem:[%s861 + $0x54] sm:$0xf] %v8753
      %8755 = vst.msk [vmem:[%s861 + $0x58] sm:$0xf] %vm300, %v8517
      %v8756 = vld [vmem:[%s861 + $0x5c] sm:$0x1]
      %v8757 = vsel %vm870, %v8518, %v8756
      %8758 = vst [vmem:[%s861 + $0x5c] sm:$0x1] %v8757
      %v8759 = vld [vmem:[%s861 + $0x60] sm:$0xf]
      %v8760 = vsel %vm864, %v8525, %v8759
      %8761 = vst [vmem:[%s861 + $0x60] sm:$0xf] %v8760
      %8762 = vst.msk [vmem:[%s861 + $0x64] sm:$0xf] %vm300, %v8534
      %v8763 = vld [vmem:[%s861 + $0x68] sm:$0x1]
      %v8764 = vsel %vm870, %v8535, %v8763
      %8765 = vst [vmem:[%s861 + $0x68] sm:$0x1] %v8764
      %v8766 = vld [vmem:[%s861 + $0x6c] sm:$0xf]
      %v8767 = vsel %vm864, %v8542, %v8766
      %8768 = vst [vmem:[%s861 + $0x6c] sm:$0xf] %v8767
      %8769 = vst.msk [vmem:[%s861 + $0x70] sm:$0xf] %vm300, %v8551
      %v8770 = vld [vmem:[%s861 + $0x74] sm:$0x1]
      %v8771 = vsel %vm870, %v8552, %v8770
      %8772 = vst [vmem:[%s861 + $0x74] sm:$0x1] %v8771
      %v8773 = vld [vmem:[%s861 + $0x78] sm:$0xf]
      %v8774 = vsel %vm864, %v8559, %v8773
      %8775 = vst [vmem:[%s861 + $0x78] sm:$0xf] %v8774
      %8776 = vst.msk [vmem:[%s861 + $0x7c] sm:$0xf] %vm300, %v8568
      %v8777 = vld [vmem:[%s861 + $0x80] sm:$0x1]
      %v8778 = vsel %vm870, %v8569, %v8777
      %8779 = vst [vmem:[%s861 + $0x80] sm:$0x1] %v8778
      %v8780 = vld [vmem:[%s861 + $0x84] sm:$0xf]
      %v8781 = vsel %vm864, %v8576, %v8780
      %8782 = vst [vmem:[%s861 + $0x84] sm:$0xf] %v8781
      %8783 = vst.msk [vmem:[%s861 + $0x88] sm:$0xf] %vm300, %v8585
      %v8784 = vld [vmem:[%s861 + $0x8c] sm:$0x1]
      %v8785 = vsel %vm870, %v8586, %v8784
      %8786 = vst [vmem:[%s861 + $0x8c] sm:$0x1] %v8785
      %v8787 = vld [vmem:[%s861 + $0x90] sm:$0xf]
      %v8788 = vsel %vm864, %v8593, %v8787
      %8789 = vst [vmem:[%s861 + $0x90] sm:$0xf] %v8788
      %8790 = vst.msk [vmem:[%s861 + $0x94] sm:$0xf] %vm300, %v8602
      %v8791 = vld [vmem:[%s861 + $0x98] sm:$0x1]
      %v8792 = vsel %vm870, %v8603, %v8791
      %8793 = vst [vmem:[%s861 + $0x98] sm:$0x1] %v8792
      %v8794 = vld [vmem:[%s861 + $0x9c] sm:$0xf]
      %v8795 = vsel %vm864, %v8610, %v8794
      %8796 = vst [vmem:[%s861 + $0x9c] sm:$0xf] %v8795
      %8797 = vst.msk [vmem:[%s861 + $0xa0] sm:$0xf] %vm300, %v8619
      %v8798 = vld [vmem:[%s861 + $0xa4] sm:$0x1]
      %v8799 = vsel %vm870, %v8620, %v8798
      %8800 = vst [vmem:[%s861 + $0xa4] sm:$0x1] %v8799
      %v8801 = vld [vmem:[%s861 + $0xa8] sm:$0xf]
      %v8802 = vsel %vm864, %v8627, %v8801
      %8803 = vst [vmem:[%s861 + $0xa8] sm:$0xf] %v8802
      %8804 = vst.msk [vmem:[%s861 + $0xac] sm:$0xf] %vm300, %v8636
      %v8805 = vld [vmem:[%s861 + $0xb0] sm:$0x1]
      %v8806 = vsel %vm870, %v8637, %v8805
      %8807 = vst [vmem:[%s861 + $0xb0] sm:$0x1] %v8806
      %v8808 = vld [vmem:[%s861 + $0xb4] sm:$0xf]
      %v8809 = vsel %vm864, %v8644, %v8808
      %8810 = vst [vmem:[%s861 + $0xb4] sm:$0xf] %v8809
      %8811 = vst.msk [vmem:[%s861 + $0xb8] sm:$0xf] %vm300, %v8653
      %v8812 = vld [vmem:[%s861 + $0xbc] sm:$0x1]
      %v8813 = vsel %vm870, %v8654, %v8812
      %8814 = vst [vmem:[%s861 + $0xbc] sm:$0x1] %v8813
      %v8815 = vld [vmem:[#allocation2] sm:$0xf]
      %v8816 = vld [vmem:[#allocation2 + $0x4] sm:$0xf]
      %v8817 = vld [vmem:[#allocation2 + $0xc] sm:$0xf]
      %v8818 = vld [vmem:[#allocation2 + $0x10] sm:$0xf]
      %v8819 = vld [vmem:[#allocation2 + $0x18] sm:$0xf]
      %v8820 = vld [vmem:[#allocation2 + $0x1c] sm:$0xf]
      %v8821 = vld [vmem:[#allocation2 + $0x24] sm:$0xf]
      %v8822 = vld [vmem:[#allocation2 + $0x28] sm:$0xf]
      %v8823 = vld [vmem:[#allocation2 + $0x30] sm:$0xf]
      %v8824 = vld [vmem:[#allocation2 + $0x34] sm:$0xf]
      %v8825 = vld [vmem:[#allocation2 + $0x3c] sm:$0xf]
      %v8826 = vld [vmem:[#allocation2 + $0x40] sm:$0xf]
      %v8827 = vld [vmem:[#allocation2 + $0x48] sm:$0xf]
      %v8828 = vld [vmem:[#allocation2 + $0x4c] sm:$0xf]
      %v8829 = vld [vmem:[#allocation2 + $0x54] sm:$0xf]
      %v8830 = vld [vmem:[#allocation2 + $0x58] sm:$0xf]
      %v8831 = vld [vmem:[#allocation2 + $0x60] sm:$0xf]
      %v8832 = vld [vmem:[#allocation2 + $0x64] sm:$0xf]
      %v8833 = vld [vmem:[#allocation2 + $0x6c] sm:$0xf]
      %v8834 = vld [vmem:[#allocation2 + $0x70] sm:$0xf]
      %v8835 = vld [vmem:[#allocation2 + $0x78] sm:$0xf]
      %v8836 = vld [vmem:[#allocation2 + $0x7c] sm:$0xf]
      %v8837 = vld [vmem:[#allocation2 + $0x84] sm:$0xf]
      %v8838 = vld [vmem:[#allocation2 + $0x88] sm:$0xf]
      %v8839 = vld [vmem:[#allocation2 + $0x90] sm:$0xf]
      %v8840 = vld [vmem:[#allocation2 + $0x94] sm:$0xf]
      %v8841 = vld [vmem:[#allocation2 + $0x9c] sm:$0xf]
      %v8842 = vld [vmem:[#allocation2 + $0xa0] sm:$0xf]
      %v8843 = vld [vmem:[#allocation2 + $0xa8] sm:$0xf]
      %v8844 = vld [vmem:[#allocation2 + $0xac] sm:$0xf]
      %v8845 = vld [vmem:[#allocation2 + $0xb4] sm:$0xf]
      %v8846 = vld [vmem:[#allocation2 + $0xb8] sm:$0xf]
      %v8879 = vunpack.c.l.b16 %v8815
      %v8880 = vunpack.c.l.b16 %v8816
      %v8881 = vunpack.c.l.b16 %v8817
      %v8882 = vunpack.c.l.b16 %v8818
      %v8883 = vunpack.c.l.b16 %v8819
      %v8884 = vunpack.c.l.b16 %v8820
      %v8885 = vunpack.c.l.b16 %v8821
      %v8886 = vunpack.c.l.b16 %v8822
      %v8887 = vunpack.c.l.b16 %v8823
      %v8888 = vunpack.c.l.b16 %v8824
      %v8889 = vunpack.c.l.b16 %v8825
      %v8890 = vunpack.c.l.b16 %v8826
      %v8891 = vunpack.c.l.b16 %v8827
      %v8892 = vunpack.c.l.b16 %v8828
      %v8893 = vunpack.c.l.b16 %v8829
      %v8894 = vunpack.c.l.b16 %v8830
      %v8895 = vunpack.c.l.b16 %v8831
      %v8896 = vunpack.c.l.b16 %v8832
      %v8897 = vunpack.c.l.b16 %v8833
      %v8898 = vunpack.c.l.b16 %v8834
      %v8899 = vunpack.c.l.b16 %v8835
      %v8900 = vunpack.c.l.b16 %v8836
      %v8901 = vunpack.c.l.b16 %v8837
      %v8902 = vunpack.c.l.b16 %v8838
      %v8903 = vunpack.c.l.b16 %v8839
      %v8904 = vunpack.c.l.b16 %v8840
      %v8905 = vunpack.c.l.b16 %v8841
      %v8906 = vunpack.c.l.b16 %v8842
      %v8907 = vunpack.c.l.b16 %v8843
      %v8908 = vunpack.c.l.b16 %v8844
      %v8909 = vunpack.c.l.b16 %v8845
      %v8910 = vunpack.c.l.b16 %v8846
      %v8911 = vpack.c.b16 %v8880, %v8879
      %v8912 = vpack.c.b16 %v8882, %v8881
      %v8913 = vpack.c.b16 %v8884, %v8883
      %v8914 = vpack.c.b16 %v8886, %v8885
      %v8915 = vpack.c.b16 %v8888, %v8887
      %v8916 = vpack.c.b16 %v8890, %v8889
      %v8917 = vpack.c.b16 %v8892, %v8891
      %v8918 = vpack.c.b16 %v8894, %v8893
      %v8919 = vpack.c.b16 %v8896, %v8895
      %v8920 = vpack.c.b16 %v8898, %v8897
      %v8921 = vpack.c.b16 %v8900, %v8899
      %v8922 = vpack.c.b16 %v8902, %v8901
      %v8923 = vpack.c.b16 %v8904, %v8903
      %v8924 = vpack.c.b16 %v8906, %v8905
      %v8925 = vpack.c.b16 %v8908, %v8907
      %v8926 = vpack.c.b16 %v8910, %v8909
      %8943 = vst.msk [vmem:[#allocation4] sm:$0xff] %vm1668, %v8911
      %8944 = vst.msk [vmem:[#allocation4 + $0x8] sm:$0xff] %vm1668, %v8912
      %8945 = vst.msk [vmem:[#allocation4 + $0x10] sm:$0xff] %vm1668, %v8913
      %8946 = vst.msk [vmem:[#allocation4 + $0x18] sm:$0xff] %vm1668, %v8914
      %8947 = vst.msk [vmem:[#allocation4 + $0x20] sm:$0xff] %vm1668, %v8915
      %8948 = vst.msk [vmem:[#allocation4 + $0x28] sm:$0xff] %vm1668, %v8916
      %8949 = vst.msk [vmem:[#allocation4 + $0x30] sm:$0xff] %vm1668, %v8917
      %8950 = vst.msk [vmem:[#allocation4 + $0x38] sm:$0xff] %vm1668, %v8918
      %8951 = vst.msk [vmem:[#allocation4 + $0x40] sm:$0xff] %vm1668, %v8919
      %8952 = vst.msk [vmem:[#allocation4 + $0x48] sm:$0xff] %vm1668, %v8920
      %8953 = vst.msk [vmem:[#allocation4 + $0x50] sm:$0xff] %vm1668, %v8921
      %8954 = vst.msk [vmem:[#allocation4 + $0x58] sm:$0xff] %vm1668, %v8922
      %8955 = vst.msk [vmem:[#allocation4 + $0x60] sm:$0xff] %vm1668, %v8923
      %8956 = vst.msk [vmem:[#allocation4 + $0x68] sm:$0xff] %vm1668, %v8924
      %8957 = vst.msk [vmem:[#allocation4 + $0x70] sm:$0xff] %vm1668, %v8925
      %8958 = vst.msk [vmem:[#allocation4 + $0x78] sm:$0xff] %vm1668, %v8926
      %v8959 = vld [vmem:[#allocation2] sm:$0xf]
      %v8960 = vld [vmem:[#allocation2 + $0x4] sm:$0xf]
      %v8961 = vld [vmem:[#allocation2 + $0x8] sm:$0x1]
      %v8962 = vld [vmem:[#allocation2 + $0xc] sm:$0xf]
      %v8963 = vld [vmem:[#allocation2 + $0x10] sm:$0xf]
      %v8964 = vld [vmem:[#allocation2 + $0x14] sm:$0x1]
      %v8965 = vld [vmem:[#allocation2 + $0x18] sm:$0xf]
      %v8966 = vld [vmem:[#allocation2 + $0x1c] sm:$0xf]
      %v8967 = vld [vmem:[#allocation2 + $0x20] sm:$0x1]
      %v8968 = vld [vmem:[#allocation2 + $0x24] sm:$0xf]
      %v8969 = vld [vmem:[#allocation2 + $0x28] sm:$0xf]
      %v8970 = vld [vmem:[#allocation2 + $0x2c] sm:$0x1]
      %v8971 = vld [vmem:[#allocation2 + $0x30] sm:$0xf]
      %v8972 = vld [vmem:[#allocation2 + $0x34] sm:$0xf]
      %v8973 = vld [vmem:[#allocation2 + $0x38] sm:$0x1]
      %v8974 = vld [vmem:[#allocation2 + $0x3c] sm:$0xf]
      %v8975 = vld [vmem:[#allocation2 + $0x40] sm:$0xf]
      %v8976 = vld [vmem:[#allocation2 + $0x44] sm:$0x1]
      %v8977 = vld [vmem:[#allocation2 + $0x48] sm:$0xf]
      %v8978 = vld [vmem:[#allocation2 + $0x4c] sm:$0xf]
      %v8979 = vld [vmem:[#allocation2 + $0x50] sm:$0x1]
      %v8980 = vld [vmem:[#allocation2 + $0x54] sm:$0xf]
      %v8981 = vld [vmem:[#allocation2 + $0x58] sm:$0xf]
      %v8982 = vld [vmem:[#allocation2 + $0x5c] sm:$0x1]
      %v8983 = vld [vmem:[#allocation2 + $0x60] sm:$0xf]
      %v8984 = vld [vmem:[#allocation2 + $0x64] sm:$0xf]
      %v8985 = vld [vmem:[#allocation2 + $0x68] sm:$0x1]
      %v8986 = vld [vmem:[#allocation2 + $0x6c] sm:$0xf]
      %v8987 = vld [vmem:[#allocation2 + $0x70] sm:$0xf]
      %v8988 = vld [vmem:[#allocation2 + $0x74] sm:$0x1]
      %v8989 = vld [vmem:[#allocation2 + $0x78] sm:$0xf]
      %v8990 = vld [vmem:[#allocation2 + $0x7c] sm:$0xf]
      %v8991 = vld [vmem:[#allocation2 + $0x80] sm:$0x1]
      %v8992 = vld [vmem:[#allocation2 + $0x84] sm:$0xf]
      %v8993 = vld [vmem:[#allocation2 + $0x88] sm:$0xf]
      %v8994 = vld [vmem:[#allocation2 + $0x8c] sm:$0x1]
      %v8995 = vld [vmem:[#allocation2 + $0x90] sm:$0xf]
      %v8996 = vld [vmem:[#allocation2 + $0x94] sm:$0xf]
      %v8997 = vld [vmem:[#allocation2 + $0x98] sm:$0x1]
      %v8998 = vld [vmem:[#allocation2 + $0x9c] sm:$0xf]
      %v8999 = vld [vmem:[#allocation2 + $0xa0] sm:$0xf]
      %v9000 = vld [vmem:[#allocation2 + $0xa4] sm:$0x1]
      %v9001 = vld [vmem:[#allocation2 + $0xa8] sm:$0xf]
      %v9002 = vld [vmem:[#allocation2 + $0xac] sm:$0xf]
      %v9003 = vld [vmem:[#allocation2 + $0xb0] sm:$0x1]
      %v9004 = vld [vmem:[#allocation2 + $0xb4] sm:$0xf]
      %v9005 = vld [vmem:[#allocation2 + $0xb8] sm:$0xf]
      %v9006 = vld [vmem:[#allocation2 + $0xbc] sm:$0x1]
      %v9008 = vshrl.u32 %v8959, 16
      %v9010 = vrot.slane %v9008, 4
      %v9011 = vshll.u32 %v8959, 16
      %v9013 = vrot.slane %v9011, 5
      %v9014 = vor.u32 %v9010, %v9013
      %v9015 = vrot.slane %v9014, 4
      %v9017 = vshll.u32 %v8960, 16
      %v9019 = vrot.slane %v9017, 5
      %v9020 = vsel %vm1735, %v9015, %v9019
      %v9021 = vshrl.u32 %v8960, 16
      %v9023 = vrot.slane %v9021, 4
      %v9024 = vor.u32 %v9023, %v9019
      %v9025 = vrot.slane %v9024, 4
      %v9027 = vshll.u32 %v8961, 16
      %v9029 = vrot.slane %v9027, 5
      %v9030 = vsel %vm1735, %v9025, %v9029
      %v9032 = vshrl.u32 %v8962, 16
      %v9034 = vrot.slane %v9032, 4
      %v9035 = vshll.u32 %v8962, 16
      %v9037 = vrot.slane %v9035, 5
      %v9038 = vor.u32 %v9034, %v9037
      %v9039 = vrot.slane %v9038, 4
      %v9041 = vshll.u32 %v8963, 16
      %v9043 = vrot.slane %v9041, 5
      %v9044 = vsel %vm1735, %v9039, %v9043
      %v9045 = vshrl.u32 %v8963, 16
      %v9047 = vrot.slane %v9045, 4
      %v9048 = vor.u32 %v9047, %v9043
      %v9049 = vrot.slane %v9048, 4
      %v9051 = vshll.u32 %v8964, 16
      %v9053 = vrot.slane %v9051, 5
      %v9054 = vsel %vm1735, %v9049, %v9053
      %v9056 = vshrl.u32 %v8965, 16
      %v9058 = vrot.slane %v9056, 4
      %v9059 = vshll.u32 %v8965, 16
      %v9061 = vrot.slane %v9059, 5
      %v9062 = vor.u32 %v9058, %v9061
      %v9063 = vrot.slane %v9062, 4
      %v9065 = vshll.u32 %v8966, 16
      %v9067 = vrot.slane %v9065, 5
      %v9068 = vsel %vm1735, %v9063, %v9067
      %v9069 = vshrl.u32 %v8966, 16
      %v9071 = vrot.slane %v9069, 4
      %v9072 = vor.u32 %v9071, %v9067
      %v9073 = vrot.slane %v9072, 4
      %v9075 = vshll.u32 %v8967, 16
      %v9077 = vrot.slane %v9075, 5
      %v9078 = vsel %vm1735, %v9073, %v9077
      %v9080 = vshrl.u32 %v8968, 16
      %v9082 = vrot.slane %v9080, 4
      %v9083 = vshll.u32 %v8968, 16
      %v9085 = vrot.slane %v9083, 5
      %v9086 = vor.u32 %v9082, %v9085
      %v9087 = vrot.slane %v9086, 4
      %v9089 = vshll.u32 %v8969, 16
      %v9091 = vrot.slane %v9089, 5
      %v9092 = vsel %vm1735, %v9087, %v9091
      %v9093 = vshrl.u32 %v8969, 16
      %v9095 = vrot.slane %v9093, 4
      %v9096 = vor.u32 %v9095, %v9091
      %v9097 = vrot.slane %v9096, 4
      %v9099 = vshll.u32 %v8970, 16
      %v9101 = vrot.slane %v9099, 5
      %v9102 = vsel %vm1735, %v9097, %v9101
      %v9104 = vshrl.u32 %v8971, 16
      %v9106 = vrot.slane %v9104, 4
      %v9107 = vshll.u32 %v8971, 16
      %v9109 = vrot.slane %v9107, 5
      %v9110 = vor.u32 %v9106, %v9109
      %v9111 = vrot.slane %v9110, 4
      %v9113 = vshll.u32 %v8972, 16
      %v9115 = vrot.slane %v9113, 5
      %v9116 = vsel %vm1735, %v9111, %v9115
      %v9117 = vshrl.u32 %v8972, 16
      %v9119 = vrot.slane %v9117, 4
      %v9120 = vor.u32 %v9119, %v9115
      %v9121 = vrot.slane %v9120, 4
      %v9123 = vshll.u32 %v8973, 16
      %v9125 = vrot.slane %v9123, 5
      %v9126 = vsel %vm1735, %v9121, %v9125
      %v9128 = vshrl.u32 %v8974, 16
      %v9130 = vrot.slane %v9128, 4
      %v9131 = vshll.u32 %v8974, 16
      %v9133 = vrot.slane %v9131, 5
      %v9134 = vor.u32 %v9130, %v9133
      %v9135 = vrot.slane %v9134, 4
      %v9137 = vshll.u32 %v8975, 16
      %v9139 = vrot.slane %v9137, 5
      %v9140 = vsel %vm1735, %v9135, %v9139
      %v9141 = vshrl.u32 %v8975, 16
      %v9143 = vrot.slane %v9141, 4
      %v9144 = vor.u32 %v9143, %v9139
      %v9145 = vrot.slane %v9144, 4
      %v9147 = vshll.u32 %v8976, 16
      %v9149 = vrot.slane %v9147, 5
      %v9150 = vsel %vm1735, %v9145, %v9149
      %v9152 = vshrl.u32 %v8977, 16
      %v9154 = vrot.slane %v9152, 4
      %v9155 = vshll.u32 %v8977, 16
      %v9157 = vrot.slane %v9155, 5
      %v9158 = vor.u32 %v9154, %v9157
      %v9159 = vrot.slane %v9158, 4
      %v9161 = vshll.u32 %v8978, 16
      %v9163 = vrot.slane %v9161, 5
      %v9164 = vsel %vm1735, %v9159, %v9163
      %v9165 = vshrl.u32 %v8978, 16
      %v9167 = vrot.slane %v9165, 4
      %v9168 = vor.u32 %v9167, %v9163
      %v9169 = vrot.slane %v9168, 4
      %v9171 = vshll.u32 %v8979, 16
      %v9173 = vrot.slane %v9171, 5
      %v9174 = vsel %vm1735, %v9169, %v9173
      %v9176 = vshrl.u32 %v8980, 16
      %v9178 = vrot.slane %v9176, 4
      %v9179 = vshll.u32 %v8980, 16
      %v9181 = vrot.slane %v9179, 5
      %v9182 = vor.u32 %v9178, %v9181
      %v9183 = vrot.slane %v9182, 4
      %v9185 = vshll.u32 %v8981, 16
      %v9187 = vrot.slane %v9185, 5
      %v9188 = vsel %vm1735, %v9183, %v9187
      %v9189 = vshrl.u32 %v8981, 16
      %v9191 = vrot.slane %v9189, 4
      %v9192 = vor.u32 %v9191, %v9187
      %v9193 = vrot.slane %v9192, 4
      %v9195 = vshll.u32 %v8982, 16
      %v9197 = vrot.slane %v9195, 5
      %v9198 = vsel %vm1735, %v9193, %v9197
      %v9200 = vshrl.u32 %v8983, 16
      %v9202 = vrot.slane %v9200, 4
      %v9203 = vshll.u32 %v8983, 16
      %v9205 = vrot.slane %v9203, 5
      %v9206 = vor.u32 %v9202, %v9205
      %v9207 = vrot.slane %v9206, 4
      %v9209 = vshll.u32 %v8984, 16
      %v9211 = vrot.slane %v9209, 5
      %v9212 = vsel %vm1735, %v9207, %v9211
      %v9213 = vshrl.u32 %v8984, 16
      %v9215 = vrot.slane %v9213, 4
      %v9216 = vor.u32 %v9215, %v9211
      %v9217 = vrot.slane %v9216, 4
      %v9219 = vshll.u32 %v8985, 16
      %v9221 = vrot.slane %v9219, 5
      %v9222 = vsel %vm1735, %v9217, %v9221
      %v9224 = vshrl.u32 %v8986, 16
      %v9226 = vrot.slane %v9224, 4
      %v9227 = vshll.u32 %v8986, 16
      %v9229 = vrot.slane %v9227, 5
      %v9230 = vor.u32 %v9226, %v9229
      %v9231 = vrot.slane %v9230, 4
      %v9233 = vshll.u32 %v8987, 16
      %v9235 = vrot.slane %v9233, 5
      %v9236 = vsel %vm1735, %v9231, %v9235
      %v9237 = vshrl.u32 %v8987, 16
      %v9239 = vrot.slane %v9237, 4
      %v9240 = vor.u32 %v9239, %v9235
      %v9241 = vrot.slane %v9240, 4
      %v9243 = vshll.u32 %v8988, 16
      %v9245 = vrot.slane %v9243, 5
      %v9246 = vsel %vm1735, %v9241, %v9245
      %v9248 = vshrl.u32 %v8989, 16
      %v9250 = vrot.slane %v9248, 4
      %v9251 = vshll.u32 %v8989, 16
      %v9253 = vrot.slane %v9251, 5
      %v9254 = vor.u32 %v9250, %v9253
      %v9255 = vrot.slane %v9254, 4
      %v9257 = vshll.u32 %v8990, 16
      %v9259 = vrot.slane %v9257, 5
      %v9260 = vsel %vm1735, %v9255, %v9259
      %v9261 = vshrl.u32 %v8990, 16
      %v9263 = vrot.slane %v9261, 4
      %v9264 = vor.u32 %v9263, %v9259
      %v9265 = vrot.slane %v9264, 4
      %v9267 = vshll.u32 %v8991, 16
      %v9269 = vrot.slane %v9267, 5
      %v9270 = vsel %vm1735, %v9265, %v9269
      %v9272 = vshrl.u32 %v8992, 16
      %v9274 = vrot.slane %v9272, 4
      %v9275 = vshll.u32 %v8992, 16
      %v9277 = vrot.slane %v9275, 5
      %v9278 = vor.u32 %v9274, %v9277
      %v9279 = vrot.slane %v9278, 4
      %v9281 = vshll.u32 %v8993, 16
      %v9283 = vrot.slane %v9281, 5
      %v9284 = vsel %vm1735, %v9279, %v9283
      %v9285 = vshrl.u32 %v8993, 16
      %v9287 = vrot.slane %v9285, 4
      %v9288 = vor.u32 %v9287, %v9283
      %v9289 = vrot.slane %v9288, 4
      %v9291 = vshll.u32 %v8994, 16
      %v9293 = vrot.slane %v9291, 5
      %v9294 = vsel %vm1735, %v9289, %v9293
      %v9296 = vshrl.u32 %v8995, 16
      %v9298 = vrot.slane %v9296, 4
      %v9299 = vshll.u32 %v8995, 16
      %v9301 = vrot.slane %v9299, 5
      %v9302 = vor.u32 %v9298, %v9301
      %v9303 = vrot.slane %v9302, 4
      %v9305 = vshll.u32 %v8996, 16
      %v9307 = vrot.slane %v9305, 5
      %v9308 = vsel %vm1735, %v9303, %v9307
      %v9309 = vshrl.u32 %v8996, 16
      %v9311 = vrot.slane %v9309, 4
      %v9312 = vor.u32 %v9311, %v9307
      %v9313 = vrot.slane %v9312, 4
      %v9315 = vshll.u32 %v8997, 16
      %v9317 = vrot.slane %v9315, 5
      %v9318 = vsel %vm1735, %v9313, %v9317
      %v9320 = vshrl.u32 %v8998, 16
      %v9322 = vrot.slane %v9320, 4
      %v9323 = vshll.u32 %v8998, 16
      %v9325 = vrot.slane %v9323, 5
      %v9326 = vor.u32 %v9322, %v9325
      %v9327 = vrot.slane %v9326, 4
      %v9329 = vshll.u32 %v8999, 16
      %v9331 = vrot.slane %v9329, 5
      %v9332 = vsel %vm1735, %v9327, %v9331
      %v9333 = vshrl.u32 %v8999, 16
      %v9335 = vrot.slane %v9333, 4
      %v9336 = vor.u32 %v9335, %v9331
      %v9337 = vrot.slane %v9336, 4
      %v9339 = vshll.u32 %v9000, 16
      %v9341 = vrot.slane %v9339, 5
      %v9342 = vsel %vm1735, %v9337, %v9341
      %v9344 = vshrl.u32 %v9001, 16
      %v9346 = vrot.slane %v9344, 4
      %v9347 = vshll.u32 %v9001, 16
      %v9349 = vrot.slane %v9347, 5
      %v9350 = vor.u32 %v9346, %v9349
      %v9351 = vrot.slane %v9350, 4
      %v9353 = vshll.u32 %v9002, 16
      %v9355 = vrot.slane %v9353, 5
      %v9356 = vsel %vm1735, %v9351, %v9355
      %v9357 = vshrl.u32 %v9002, 16
      %v9359 = vrot.slane %v9357, 4
      %v9360 = vor.u32 %v9359, %v9355
      %v9361 = vrot.slane %v9360, 4
      %v9363 = vshll.u32 %v9003, 16
      %v9365 = vrot.slane %v9363, 5
      %v9366 = vsel %vm1735, %v9361, %v9365
      %v9368 = vshrl.u32 %v9004, 16
      %v9370 = vrot.slane %v9368, 4
      %v9371 = vshll.u32 %v9004, 16
      %v9373 = vrot.slane %v9371, 5
      %v9374 = vor.u32 %v9370, %v9373
      %v9375 = vrot.slane %v9374, 4
      %v9377 = vshll.u32 %v9005, 16
      %v9379 = vrot.slane %v9377, 5
      %v9380 = vsel %vm1735, %v9375, %v9379
      %v9381 = vshrl.u32 %v9005, 16
      %v9383 = vrot.slane %v9381, 4
      %v9384 = vor.u32 %v9383, %v9379
      %v9385 = vrot.slane %v9384, 4
      %v9387 = vshll.u32 %v9006, 16
      %v9389 = vrot.slane %v9387, 5
      %v9390 = vsel %vm1735, %v9385, %v9389
      %v9391 = vunpack.c.l.b16 %v9020
      %v9392 = vunpack.c.l.b16 %v9030
      %v9393 = vunpack.c.l.b16 %v9044
      %v9394 = vunpack.c.l.b16 %v9054
      %v9395 = vunpack.c.l.b16 %v9068
      %v9396 = vunpack.c.l.b16 %v9078
      %v9397 = vunpack.c.l.b16 %v9092
      %v9398 = vunpack.c.l.b16 %v9102
      %v9399 = vunpack.c.l.b16 %v9116
      %v9400 = vunpack.c.l.b16 %v9126
      %v9401 = vunpack.c.l.b16 %v9140
      %v9402 = vunpack.c.l.b16 %v9150
      %v9403 = vunpack.c.l.b16 %v9164
      %v9404 = vunpack.c.l.b16 %v9174
      %v9405 = vunpack.c.l.b16 %v9188
      %v9406 = vunpack.c.l.b16 %v9198
      %v9407 = vunpack.c.l.b16 %v9212
      %v9408 = vunpack.c.l.b16 %v9222
      %v9409 = vunpack.c.l.b16 %v9236
      %v9410 = vunpack.c.l.b16 %v9246
      %v9411 = vunpack.c.l.b16 %v9260
      %v9412 = vunpack.c.l.b16 %v9270
      %v9413 = vunpack.c.l.b16 %v9284
      %v9414 = vunpack.c.l.b16 %v9294
      %v9415 = vunpack.c.l.b16 %v9308
      %v9416 = vunpack.c.l.b16 %v9318
      %v9417 = vunpack.c.l.b16 %v9332
      %v9418 = vunpack.c.l.b16 %v9342
      %v9419 = vunpack.c.l.b16 %v9356
      %v9420 = vunpack.c.l.b16 %v9366
      %v9421 = vunpack.c.l.b16 %v9380
      %v9422 = vunpack.c.l.b16 %v9390
      %v9423 = vpack.c.b16 %v9392, %v9391
      %v9424 = vpack.c.b16 %v9394, %v9393
      %v9425 = vpack.c.b16 %v9396, %v9395
      %v9426 = vpack.c.b16 %v9398, %v9397
      %v9427 = vpack.c.b16 %v9400, %v9399
      %v9428 = vpack.c.b16 %v9402, %v9401
      %v9429 = vpack.c.b16 %v9404, %v9403
      %v9430 = vpack.c.b16 %v9406, %v9405
      %v9431 = vpack.c.b16 %v9408, %v9407
      %v9432 = vpack.c.b16 %v9410, %v9409
      %v9433 = vpack.c.b16 %v9412, %v9411
      %v9434 = vpack.c.b16 %v9414, %v9413
      %v9435 = vpack.c.b16 %v9416, %v9415
      %v9436 = vpack.c.b16 %v9418, %v9417
      %v9437 = vpack.c.b16 %v9420, %v9419
      %v9438 = vpack.c.b16 %v9422, %v9421
      %9439 = vrot.lane.b32.xlu0 %v9423, 8
      %v9440 = vpop.permute.xlu0 %9439
      %9441 = vrot.lane.b32.xlu0 %v9424, 8
      %v9442 = vpop.permute.xlu0 %9441
      %9443 = vrot.lane.b32.xlu0 %v9425, 8
      %v9444 = vpop.permute.xlu0 %9443
      %9445 = vrot.lane.b32.xlu0 %v9426, 8
      %v9446 = vpop.permute.xlu0 %9445
      %9447 = vrot.lane.b32.xlu0 %v9427, 8
      %v9448 = vpop.permute.xlu0 %9447
      %9449 = vrot.lane.b32.xlu0 %v9428, 8
      %v9450 = vpop.permute.xlu0 %9449
      %9451 = vrot.lane.b32.xlu0 %v9429, 8
      %v9452 = vpop.permute.xlu0 %9451
      %9453 = vrot.lane.b32.xlu0 %v9430, 8
      %v9454 = vpop.permute.xlu0 %9453
      %9455 = vrot.lane.b32.xlu0 %v9431, 8
      %v9456 = vpop.permute.xlu0 %9455
      %9457 = vrot.lane.b32.xlu0 %v9432, 8
      %v9458 = vpop.permute.xlu0 %9457
      %9459 = vrot.lane.b32.xlu0 %v9433, 8
      %v9460 = vpop.permute.xlu0 %9459
      %9461 = vrot.lane.b32.xlu0 %v9434, 8
      %v9462 = vpop.permute.xlu0 %9461
      %9463 = vrot.lane.b32.xlu0 %v9435, 8
      %v9464 = vpop.permute.xlu0 %9463
      %9465 = vrot.lane.b32.xlu0 %v9436, 8
      %v9466 = vpop.permute.xlu0 %9465
      %9467 = vrot.lane.b32.xlu0 %v9437, 8
      %v9468 = vpop.permute.xlu0 %9467
      %9469 = vrot.lane.b32.xlu0 %v9438, 8
      %v9470 = vpop.permute.xlu0 %9469
      %9487 = vst.msk [vmem:[#allocation4] sm:$0xff] %vm2216, %v9440
      %9488 = vst.msk [vmem:[#allocation4 + $0x8] sm:$0xff] %vm2216, %v9442
      %9489 = vst.msk [vmem:[#allocation4 + $0x10] sm:$0xff] %vm2216, %v9444
      %9490 = vst.msk [vmem:[#allocation4 + $0x18] sm:$0xff] %vm2216, %v9446
      %9491 = vst.msk [vmem:[#allocation4 + $0x20] sm:$0xff] %vm2216, %v9448
      %9492 = vst.msk [vmem:[#allocation4 + $0x28] sm:$0xff] %vm2216, %v9450
      %9493 = vst.msk [vmem:[#allocation4 + $0x30] sm:$0xff] %vm2216, %v9452
      %9494 = vst.msk [vmem:[#allocation4 + $0x38] sm:$0xff] %vm2216, %v9454
      %9495 = vst.msk [vmem:[#allocation4 + $0x40] sm:$0xff] %vm2216, %v9456
      %9496 = vst.msk [vmem:[#allocation4 + $0x48] sm:$0xff] %vm2216, %v9458
      %9497 = vst.msk [vmem:[#allocation4 + $0x50] sm:$0xff] %vm2216, %v9460
      %9498 = vst.msk [vmem:[#allocation4 + $0x58] sm:$0xff] %vm2216, %v9462
      %9499 = vst.msk [vmem:[#allocation4 + $0x60] sm:$0xff] %vm2216, %v9464
      %9500 = vst.msk [vmem:[#allocation4 + $0x68] sm:$0xff] %vm2216, %v9466
      %9501 = vst.msk [vmem:[#allocation4 + $0x70] sm:$0xff] %vm2216, %v9468
      %9502 = vst.msk [vmem:[#allocation4 + $0x78] sm:$0xff] %vm2216, %v9470
      %v9503 = vld [vmem:[#allocation2] sm:$0xe]
      %v9504 = vld [vmem:[#allocation2 + $0x4] sm:$0xf]
      %v9505 = vld [vmem:[#allocation2 + $0x8] sm:$0x1]
      %v9506 = vld [vmem:[#allocation2 + $0xc] sm:$0xe]
      %v9507 = vld [vmem:[#allocation2 + $0x10] sm:$0xf]
      %v9508 = vld [vmem:[#allocation2 + $0x14] sm:$0x1]
      %v9509 = vld [vmem:[#allocation2 + $0x18] sm:$0xe]
      %v9510 = vld [vmem:[#allocation2 + $0x1c] sm:$0xf]
      %v9511 = vld [vmem:[#allocation2 + $0x20] sm:$0x1]
      %v9512 = vld [vmem:[#allocation2 + $0x24] sm:$0xe]
      %v9513 = vld [vmem:[#allocation2 + $0x28] sm:$0xf]
      %v9514 = vld [vmem:[#allocation2 + $0x2c] sm:$0x1]
      %v9515 = vld [vmem:[#allocation2 + $0x30] sm:$0xe]
      %v9516 = vld [vmem:[#allocation2 + $0x34] sm:$0xf]
      %v9517 = vld [vmem:[#allocation2 + $0x38] sm:$0x1]
      %v9518 = vld [vmem:[#allocation2 + $0x3c] sm:$0xe]
      %v9519 = vld [vmem:[#allocation2 + $0x40] sm:$0xf]
      %v9520 = vld [vmem:[#allocation2 + $0x44] sm:$0x1]
      %v9521 = vld [vmem:[#allocation2 + $0x48] sm:$0xe]
      %v9522 = vld [vmem:[#allocation2 + $0x4c] sm:$0xf]
      %v9523 = vld [vmem:[#allocation2 + $0x50] sm:$0x1]
      %v9524 = vld [vmem:[#allocation2 + $0x54] sm:$0xe]
      %v9525 = vld [vmem:[#allocation2 + $0x58] sm:$0xf]
      %v9526 = vld [vmem:[#allocation2 + $0x5c] sm:$0x1]
      %v9527 = vld [vmem:[#allocation2 + $0x60] sm:$0xe]
      %v9528 = vld [vmem:[#allocation2 + $0x64] sm:$0xf]
      %v9529 = vld [vmem:[#allocation2 + $0x68] sm:$0x1]
      %v9530 = vld [vmem:[#allocation2 + $0x6c] sm:$0xe]
      %v9531 = vld [vmem:[#allocation2 + $0x70] sm:$0xf]
      %v9532 = vld [vmem:[#allocation2 + $0x74] sm:$0x1]
      %v9533 = vld [vmem:[#allocation2 + $0x78] sm:$0xe]
      %v9534 = vld [vmem:[#allocation2 + $0x7c] sm:$0xf]
      %v9535 = vld [vmem:[#allocation2 + $0x80] sm:$0x1]
      %v9536 = vld [vmem:[#allocation2 + $0x84] sm:$0xe]
      %v9537 = vld [vmem:[#allocation2 + $0x88] sm:$0xf]
      %v9538 = vld [vmem:[#allocation2 + $0x8c] sm:$0x1]
      %v9539 = vld [vmem:[#allocation2 + $0x90] sm:$0xe]
      %v9540 = vld [vmem:[#allocation2 + $0x94] sm:$0xf]
      %v9541 = vld [vmem:[#allocation2 + $0x98] sm:$0x1]
      %v9542 = vld [vmem:[#allocation2 + $0x9c] sm:$0xe]
      %v9543 = vld [vmem:[#allocation2 + $0xa0] sm:$0xf]
      %v9544 = vld [vmem:[#allocation2 + $0xa4] sm:$0x1]
      %v9545 = vld [vmem:[#allocation2 + $0xa8] sm:$0xe]
      %v9546 = vld [vmem:[#allocation2 + $0xac] sm:$0xf]
      %v9547 = vld [vmem:[#allocation2 + $0xb0] sm:$0x1]
      %v9548 = vld [vmem:[#allocation2 + $0xb4] sm:$0xe]
      %v9549 = vld [vmem:[#allocation2 + $0xb8] sm:$0xf]
      %v9550 = vld [vmem:[#allocation2 + $0xbc] sm:$0x1]
      %v9599 = vrot.slane %v9503, 5
      %v9600 = vrot.slane %v9599, 4
      %v9601 = vrot.slane %v9504, 5
      %v9602 = vsel %vm2331, %v9600, %v9601
      %v9603 = vrot.slane %v9601, 4
      %v9604 = vrot.slane %v9505, 5
      %v9605 = vsel %vm2331, %v9603, %v9604
      %v9606 = vrot.slane %v9506, 5
      %v9607 = vrot.slane %v9606, 4
      %v9608 = vrot.slane %v9507, 5
      %v9609 = vsel %vm2331, %v9607, %v9608
      %v9610 = vrot.slane %v9608, 4
      %v9611 = vrot.slane %v9508, 5
      %v9612 = vsel %vm2331, %v9610, %v9611
      %v9613 = vrot.slane %v9509, 5
      %v9614 = vrot.slane %v9613, 4
      %v9615 = vrot.slane %v9510, 5
      %v9616 = vsel %vm2331, %v9614, %v9615
      %v9617 = vrot.slane %v9615, 4
      %v9618 = vrot.slane %v9511, 5
      %v9619 = vsel %vm2331, %v9617, %v9618
      %v9620 = vrot.slane %v9512, 5
      %v9621 = vrot.slane %v9620, 4
      %v9622 = vrot.slane %v9513, 5
      %v9623 = vsel %vm2331, %v9621, %v9622
      %v9624 = vrot.slane %v9622, 4
      %v9625 = vrot.slane %v9514, 5
      %v9626 = vsel %vm2331, %v9624, %v9625
      %v9627 = vrot.slane %v9515, 5
      %v9628 = vrot.slane %v9627, 4
      %v9629 = vrot.slane %v9516, 5
      %v9630 = vsel %vm2331, %v9628, %v9629
      %v9631 = vrot.slane %v9629, 4
      %v9632 = vrot.slane %v9517, 5
      %v9633 = vsel %vm2331, %v9631, %v9632
      %v9634 = vrot.slane %v9518, 5
      %v9635 = vrot.slane %v9634, 4
      %v9636 = vrot.slane %v9519, 5
      %v9637 = vsel %vm2331, %v9635, %v9636
      %v9638 = vrot.slane %v9636, 4
      %v9639 = vrot.slane %v9520, 5
      %v9640 = vsel %vm2331, %v9638, %v9639
      %v9641 = vrot.slane %v9521, 5
      %v9642 = vrot.slane %v9641, 4
      %v9643 = vrot.slane %v9522, 5
      %v9644 = vsel %vm2331, %v9642, %v9643
      %v9645 = vrot.slane %v9643, 4
      %v9646 = vrot.slane %v9523, 5
      %v9647 = vsel %vm2331, %v9645, %v9646
      %v9648 = vrot.slane %v9524, 5
      %v9649 = vrot.slane %v9648, 4
      %v9650 = vrot.slane %v9525, 5
      %v9651 = vsel %vm2331, %v9649, %v9650
      %v9652 = vrot.slane %v9650, 4
      %v9653 = vrot.slane %v9526, 5
      %v9654 = vsel %vm2331, %v9652, %v9653
      %v9655 = vrot.slane %v9527, 5
      %v9656 = vrot.slane %v9655, 4
      %v9657 = vrot.slane %v9528, 5
      %v9658 = vsel %vm2331, %v9656, %v9657
      %v9659 = vrot.slane %v9657, 4
      %v9660 = vrot.slane %v9529, 5
      %v9661 = vsel %vm2331, %v9659, %v9660
      %v9662 = vrot.slane %v9530, 5
      %v9663 = vrot.slane %v9662, 4
      %v9664 = vrot.slane %v9531, 5
      %v9665 = vsel %vm2331, %v9663, %v9664
      %v9666 = vrot.slane %v9664, 4
      %v9667 = vrot.slane %v9532, 5
      %v9668 = vsel %vm2331, %v9666, %v9667
      %v9669 = vrot.slane %v9533, 5
      %v9670 = vrot.slane %v9669, 4
      %v9671 = vrot.slane %v9534, 5
      %v9672 = vsel %vm2331, %v9670, %v9671
      %v9673 = vrot.slane %v9671, 4
      %v9674 = vrot.slane %v9535, 5
      %v9675 = vsel %vm2331, %v9673, %v9674
      %v9676 = vrot.slane %v9536, 5
      %v9677 = vrot.slane %v9676, 4
      %v9678 = vrot.slane %v9537, 5
      %v9679 = vsel %vm2331, %v9677, %v9678
      %v9680 = vrot.slane %v9678, 4
      %v9681 = vrot.slane %v9538, 5
      %v9682 = vsel %vm2331, %v9680, %v9681
      %v9683 = vrot.slane %v9539, 5
      %v9684 = vrot.slane %v9683, 4
      %v9685 = vrot.slane %v9540, 5
      %v9686 = vsel %vm2331, %v9684, %v9685
      %v9687 = vrot.slane %v9685, 4
      %v9688 = vrot.slane %v9541, 5
      %v9689 = vsel %vm2331, %v9687, %v9688
      %v9690 = vrot.slane %v9542, 5
      %v9691 = vrot.slane %v9690, 4
      %v9692 = vrot.slane %v9543, 5
      %v9693 = vsel %vm2331, %v9691, %v9692
      %v9694 = vrot.slane %v9692, 4
      %v9695 = vrot.slane %v9544, 5
      %v9696 = vsel %vm2331, %v9694, %v9695
      %v9697 = vrot.slane %v9545, 5
      %v9698 = vrot.slane %v9697, 4
      %v9699 = vrot.slane %v9546, 5
      %v9700 = vsel %vm2331, %v9698, %v9699
      %v9701 = vrot.slane %v9699, 4
      %v9702 = vrot.slane %v9547, 5
      %v9703 = vsel %vm2331, %v9701, %v9702
      %v9704 = vrot.slane %v9548, 5
      %v9705 = vrot.slane %v9704, 4
      %v9706 = vrot.slane %v9549, 5
      %v9707 = vsel %vm2331, %v9705, %v9706
      %v9708 = vrot.slane %v9706, 4
      %v9709 = vrot.slane %v9550, 5
      %v9710 = vsel %vm2331, %v9708, %v9709
      %v9711 = vunpack.c.l.b16 %v9602
      %v9712 = vunpack.c.l.b16 %v9605
      %v9713 = vunpack.c.l.b16 %v9609
      %v9714 = vunpack.c.l.b16 %v9612
      %v9715 = vunpack.c.l.b16 %v9616
      %v9716 = vunpack.c.l.b16 %v9619
      %v9717 = vunpack.c.l.b16 %v9623
      %v9718 = vunpack.c.l.b16 %v9626
      %v9719 = vunpack.c.l.b16 %v9630
      %v9720 = vunpack.c.l.b16 %v9633
      %v9721 = vunpack.c.l.b16 %v9637
      %v9722 = vunpack.c.l.b16 %v9640
      %v9723 = vunpack.c.l.b16 %v9644
      %v9724 = vunpack.c.l.b16 %v9647
      %v9725 = vunpack.c.l.b16 %v9651
      %v9726 = vunpack.c.l.b16 %v9654
      %v9727 = vunpack.c.l.b16 %v9658
      %v9728 = vunpack.c.l.b16 %v9661
      %v9729 = vunpack.c.l.b16 %v9665
      %v9730 = vunpack.c.l.b16 %v9668
      %v9731 = vunpack.c.l.b16 %v9672
      %v9732 = vunpack.c.l.b16 %v9675
      %v9733 = vunpack.c.l.b16 %v9679
      %v9734 = vunpack.c.l.b16 %v9682
      %v9735 = vunpack.c.l.b16 %v9686
      %v9736 = vunpack.c.l.b16 %v9689
      %v9737 = vunpack.c.l.b16 %v9693
      %v9738 = vunpack.c.l.b16 %v9696
      %v9739 = vunpack.c.l.b16 %v9700
      %v9740 = vunpack.c.l.b16 %v9703
      %v9741 = vunpack.c.l.b16 %v9707
      %v9742 = vunpack.c.l.b16 %v9710
      %v9743 = vpack.c.b16 %v9712, %v9711
      %v9744 = vpack.c.b16 %v9714, %v9713
      %v9745 = vpack.c.b16 %v9716, %v9715
      %v9746 = vpack.c.b16 %v9718, %v9717
      %v9747 = vpack.c.b16 %v9720, %v9719
      %v9748 = vpack.c.b16 %v9722, %v9721
      %v9749 = vpack.c.b16 %v9724, %v9723
      %v9750 = vpack.c.b16 %v9726, %v9725
      %v9751 = vpack.c.b16 %v9728, %v9727
      %v9752 = vpack.c.b16 %v9730, %v9729
      %v9753 = vpack.c.b16 %v9732, %v9731
      %v9754 = vpack.c.b16 %v9734, %v9733
      %v9755 = vpack.c.b16 %v9736, %v9735
      %v9756 = vpack.c.b16 %v9738, %v9737
      %v9757 = vpack.c.b16 %v9740, %v9739
      %v9758 = vpack.c.b16 %v9742, %v9741
      %9759 = vrot.lane.b32.xlu0 %v9743, 16
      %v9760 = vpop.permute.xlu0 %9759
      %9761 = vrot.lane.b32.xlu0 %v9744, 16
      %v9762 = vpop.permute.xlu0 %9761
      %9763 = vrot.lane.b32.xlu0 %v9745, 16
      %v9764 = vpop.permute.xlu0 %9763
      %9765 = vrot.lane.b32.xlu0 %v9746, 16
      %v9766 = vpop.permute.xlu0 %9765
      %9767 = vrot.lane.b32.xlu0 %v9747, 16
      %v9768 = vpop.permute.xlu0 %9767
      %9769 = vrot.lane.b32.xlu0 %v9748, 16
      %v9770 = vpop.permute.xlu0 %9769
      %9771 = vrot.lane.b32.xlu0 %v9749, 16
      %v9772 = vpop.permute.xlu0 %9771
      %9773 = vrot.lane.b32.xlu0 %v9750, 16
      %v9774 = vpop.permute.xlu0 %9773
      %9775 = vrot.lane.b32.xlu0 %v9751, 16
      %v9776 = vpop.permute.xlu0 %9775
      %9777 = vrot.lane.b32.xlu0 %v9752, 16
      %v9778 = vpop.permute.xlu0 %9777
      %9779 = vrot.lane.b32.xlu0 %v9753, 16
      %v9780 = vpop.permute.xlu0 %9779
      %9781 = vrot.lane.b32.xlu0 %v9754, 16
      %v9782 = vpop.permute.xlu0 %9781
      %9783 = vrot.lane.b32.xlu0 %v9755, 16
      %v9784 = vpop.permute.xlu0 %9783
      %9785 = vrot.lane.b32.xlu0 %v9756, 16
      %v9786 = vpop.permute.xlu0 %9785
      %9787 = vrot.lane.b32.xlu0 %v9757, 16
      %v9788 = vpop.permute.xlu0 %9787
      %9789 = vrot.lane.b32.xlu0 %v9758, 16
      %v9790 = vpop.permute.xlu0 %9789
      %9807 = vst.msk [vmem:[#allocation4] sm:$0xff] %vm2540, %v9760
      %9808 = vst.msk [vmem:[#allocation4 + $0x8] sm:$0xff] %vm2540, %v9762
      %9809 = vst.msk [vmem:[#allocation4 + $0x10] sm:$0xff] %vm2540, %v9764
      %9810 = vst.msk [vmem:[#allocation4 + $0x18] sm:$0xff] %vm2540, %v9766
      %9811 = vst.msk [vmem:[#allocation4 + $0x20] sm:$0xff] %vm2540, %v9768
      %9812 = vst.msk [vmem:[#allocation4 + $0x28] sm:$0xff] %vm2540, %v9770
      %9813 = vst.msk [vmem:[#allocation4 + $0x30] sm:$0xff] %vm2540, %v9772
      %9814 = vst.msk [vmem:[#allocation4 + $0x38] sm:$0xff] %vm2540, %v9774
      %9815 = vst.msk [vmem:[#allocation4 + $0x40] sm:$0xff] %vm2540, %v9776
      %9816 = vst.msk [vmem:[#allocation4 + $0x48] sm:$0xff] %vm2540, %v9778
      %9817 = vst.msk [vmem:[#allocation4 + $0x50] sm:$0xff] %vm2540, %v9780
      %9818 = vst.msk [vmem:[#allocation4 + $0x58] sm:$0xff] %vm2540, %v9782
      %9819 = vst.msk [vmem:[#allocation4 + $0x60] sm:$0xff] %vm2540, %v9784
      %9820 = vst.msk [vmem:[#allocation4 + $0x68] sm:$0xff] %vm2540, %v9786
      %9821 = vst.msk [vmem:[#allocation4 + $0x70] sm:$0xff] %vm2540, %v9788
      %9822 = vst.msk [vmem:[#allocation4 + $0x78] sm:$0xff] %vm2540, %v9790
      %v9823 = vld [vmem:[%s861] sm:$0xf]
      %v9824 = vld [vmem:[%s861 + $0x4] sm:$0xf]
      %v9825 = vld [vmem:[%s861 + $0xc] sm:$0xf]
      %v9826 = vld [vmem:[%s861 + $0x10] sm:$0xf]
      %v9827 = vld [vmem:[%s861 + $0x18] sm:$0xf]
      %v9828 = vld [vmem:[%s861 + $0x1c] sm:$0xf]
      %v9829 = vld [vmem:[%s861 + $0x24] sm:$0xf]
      %v9830 = vld [vmem:[%s861 + $0x28] sm:$0xf]
      %v9831 = vld [vmem:[%s861 + $0x30] sm:$0xf]
      %v9832 = vld [vmem:[%s861 + $0x34] sm:$0xf]
      %v9833 = vld [vmem:[%s861 + $0x3c] sm:$0xf]
      %v9834 = vld [vmem:[%s861 + $0x40] sm:$0xf]
      %v9835 = vld [vmem:[%s861 + $0x48] sm:$0xf]
      %v9836 = vld [vmem:[%s861 + $0x4c] sm:$0xf]
      %v9837 = vld [vmem:[%s861 + $0x54] sm:$0xf]
      %v9838 = vld [vmem:[%s861 + $0x58] sm:$0xf]
      %v9839 = vld [vmem:[%s861 + $0x60] sm:$0xf]
      %v9840 = vld [vmem:[%s861 + $0x64] sm:$0xf]
      %v9841 = vld [vmem:[%s861 + $0x6c] sm:$0xf]
      %v9842 = vld [vmem:[%s861 + $0x70] sm:$0xf]
      %v9843 = vld [vmem:[%s861 + $0x78] sm:$0xf]
      %v9844 = vld [vmem:[%s861 + $0x7c] sm:$0xf]
      %v9845 = vld [vmem:[%s861 + $0x84] sm:$0xf]
      %v9846 = vld [vmem:[%s861 + $0x88] sm:$0xf]
      %v9847 = vld [vmem:[%s861 + $0x90] sm:$0xf]
      %v9848 = vld [vmem:[%s861 + $0x94] sm:$0xf]
      %v9849 = vld [vmem:[%s861 + $0x9c] sm:$0xf]
      %v9850 = vld [vmem:[%s861 + $0xa0] sm:$0xf]
      %v9851 = vld [vmem:[%s861 + $0xa8] sm:$0xf]
      %v9852 = vld [vmem:[%s861 + $0xac] sm:$0xf]
      %v9853 = vld [vmem:[%s861 + $0xb4] sm:$0xf]
      %v9854 = vld [vmem:[%s861 + $0xb8] sm:$0xf]
      %v9887 = vunpack.c.l.b16 %v9823
      %v9888 = vunpack.c.l.b16 %v9824
      %v9889 = vunpack.c.l.b16 %v9825
      %v9890 = vunpack.c.l.b16 %v9826
      %v9891 = vunpack.c.l.b16 %v9827
      %v9892 = vunpack.c.l.b16 %v9828
      %v9893 = vunpack.c.l.b16 %v9829
      %v9894 = vunpack.c.l.b16 %v9830
      %v9895 = vunpack.c.l.b16 %v9831
      %v9896 = vunpack.c.l.b16 %v9832
      %v9897 = vunpack.c.l.b16 %v9833
      %v9898 = vunpack.c.l.b16 %v9834
      %v9899 = vunpack.c.l.b16 %v9835
      %v9900 = vunpack.c.l.b16 %v9836
      %v9901 = vunpack.c.l.b16 %v9837
      %v9902 = vunpack.c.l.b16 %v9838
      %v9903 = vunpack.c.l.b16 %v9839
      %v9904 = vunpack.c.l.b16 %v9840
      %v9905 = vunpack.c.l.b16 %v9841
      %v9906 = vunpack.c.l.b16 %v9842
      %v9907 = vunpack.c.l.b16 %v9843
      %v9908 = vunpack.c.l.b16 %v9844
      %v9909 = vunpack.c.l.b16 %v9845
      %v9910 = vunpack.c.l.b16 %v9846
      %v9911 = vunpack.c.l.b16 %v9847
      %v9912 = vunpack.c.l.b16 %v9848
      %v9913 = vunpack.c.l.b16 %v9849
      %v9914 = vunpack.c.l.b16 %v9850
      %v9915 = vunpack.c.l.b16 %v9851
      %v9916 = vunpack.c.l.b16 %v9852
      %v9917 = vunpack.c.l.b16 %v9853
      %v9918 = vunpack.c.l.b16 %v9854
      %v9919 = vpack.c.b16 %v9888, %v9887
      %v9920 = vpack.c.b16 %v9890, %v9889
      %v9921 = vpack.c.b16 %v9892, %v9891
      %v9922 = vpack.c.b16 %v9894, %v9893
      %v9923 = vpack.c.b16 %v9896, %v9895
      %v9924 = vpack.c.b16 %v9898, %v9897
      %v9925 = vpack.c.b16 %v9900, %v9899
      %v9926 = vpack.c.b16 %v9902, %v9901
      %v9927 = vpack.c.b16 %v9904, %v9903
      %v9928 = vpack.c.b16 %v9906, %v9905
      %v9929 = vpack.c.b16 %v9908, %v9907
      %v9930 = vpack.c.b16 %v9910, %v9909
      %v9931 = vpack.c.b16 %v9912, %v9911
      %v9932 = vpack.c.b16 %v9914, %v9913
      %v9933 = vpack.c.b16 %v9916, %v9915
      %v9934 = vpack.c.b16 %v9918, %v9917
      %9935 = vrot.lane.b32.xlu0 %v9919, 24
      %v9936 = vpop.permute.xlu0 %9935
      %9937 = vrot.lane.b32.xlu0 %v9920, 24
      %v9938 = vpop.permute.xlu0 %9937
      %9939 = vrot.lane.b32.xlu0 %v9921, 24
      %v9940 = vpop.permute.xlu0 %9939
      %9941 = vrot.lane.b32.xlu0 %v9922, 24
      %v9942 = vpop.permute.xlu0 %9941
      %9943 = vrot.lane.b32.xlu0 %v9923, 24
      %v9944 = vpop.permute.xlu0 %9943
      %9945 = vrot.lane.b32.xlu0 %v9924, 24
      %v9946 = vpop.permute.xlu0 %9945
      %9947 = vrot.lane.b32.xlu0 %v9925, 24
      %v9948 = vpop.permute.xlu0 %9947
      %9949 = vrot.lane.b32.xlu0 %v9926, 24
      %v9950 = vpop.permute.xlu0 %9949
      %9951 = vrot.lane.b32.xlu0 %v9927, 24
      %v9952 = vpop.permute.xlu0 %9951
      %9953 = vrot.lane.b32.xlu0 %v9928, 24
      %v9954 = vpop.permute.xlu0 %9953
      %9955 = vrot.lane.b32.xlu0 %v9929, 24
      %v9956 = vpop.permute.xlu0 %9955
      %9957 = vrot.lane.b32.xlu0 %v9930, 24
      %v9958 = vpop.permute.xlu0 %9957
      %9959 = vrot.lane.b32.xlu0 %v9931, 24
      %v9960 = vpop.permute.xlu0 %9959
      %9961 = vrot.lane.b32.xlu0 %v9932, 24
      %v9962 = vpop.permute.xlu0 %9961
      %9963 = vrot.lane.b32.xlu0 %v9933, 24
      %v9964 = vpop.permute.xlu0 %9963
      %9965 = vrot.lane.b32.xlu0 %v9934, 24
      %v9966 = vpop.permute.xlu0 %9965
      %9983 = vst.msk [vmem:[#allocation4] sm:$0xff] %vm2717, %v9936
      %9984 = vst.msk [vmem:[#allocation4 + $0x8] sm:$0xff] %vm2717, %v9938
      %9985 = vst.msk [vmem:[#allocation4 + $0x10] sm:$0xff] %vm2717, %v9940
      %9986 = vst.msk [vmem:[#allocation4 + $0x18] sm:$0xff] %vm2717, %v9942
      %9987 = vst.msk [vmem:[#allocation4 + $0x20] sm:$0xff] %vm2717, %v9944
      %9988 = vst.msk [vmem:[#allocation4 + $0x28] sm:$0xff] %vm2717, %v9946
      %9989 = vst.msk [vmem:[#allocation4 + $0x30] sm:$0xff] %vm2717, %v9948
      %9990 = vst.msk [vmem:[#allocation4 + $0x38] sm:$0xff] %vm2717, %v9950
      %9991 = vst.msk [vmem:[#allocation4 + $0x40] sm:$0xff] %vm2717, %v9952
      %9992 = vst.msk [vmem:[#allocation4 + $0x48] sm:$0xff] %vm2717, %v9954
      %9993 = vst.msk [vmem:[#allocation4 + $0x50] sm:$0xff] %vm2717, %v9956
      %9994 = vst.msk [vmem:[#allocation4 + $0x58] sm:$0xff] %vm2717, %v9958
      %9995 = vst.msk [vmem:[#allocation4 + $0x60] sm:$0xff] %vm2717, %v9960
      %9996 = vst.msk [vmem:[#allocation4 + $0x68] sm:$0xff] %vm2717, %v9962
      %9997 = vst.msk [vmem:[#allocation4 + $0x70] sm:$0xff] %vm2717, %v9964
      %9998 = vst.msk [vmem:[#allocation4 + $0x78] sm:$0xff] %vm2717, %v9966
      %v9999 = vld [vmem:[%s861] sm:$0xf]
      %v10000 = vld [vmem:[%s861 + $0x4] sm:$0xf]
      %v10001 = vld [vmem:[%s861 + $0x8] sm:$0x1]
      %v10002 = vld [vmem:[%s861 + $0xc] sm:$0xf]
      %v10003 = vld [vmem:[%s861 + $0x10] sm:$0xf]
      %v10004 = vld [vmem:[%s861 + $0x14] sm:$0x1]
      %v10005 = vld [vmem:[%s861 + $0x18] sm:$0xf]
      %v10006 = vld [vmem:[%s861 + $0x1c] sm:$0xf]
      %v10007 = vld [vmem:[%s861 + $0x20] sm:$0x1]
      %v10008 = vld [vmem:[%s861 + $0x24] sm:$0xf]
      %v10009 = vld [vmem:[%s861 + $0x28] sm:$0xf]
      %v10010 = vld [vmem:[%s861 + $0x2c] sm:$0x1]
      %v10011 = vld [vmem:[%s861 + $0x30] sm:$0xf]
      %v10012 = vld [vmem:[%s861 + $0x34] sm:$0xf]
      %v10013 = vld [vmem:[%s861 + $0x38] sm:$0x1]
      %v10014 = vld [vmem:[%s861 + $0x3c] sm:$0xf]
      %v10015 = vld [vmem:[%s861 + $0x40] sm:$0xf]
      %v10016 = vld [vmem:[%s861 + $0x44] sm:$0x1]
      %v10017 = vld [vmem:[%s861 + $0x48] sm:$0xf]
      %v10018 = vld [vmem:[%s861 + $0x4c] sm:$0xf]
      %v10019 = vld [vmem:[%s861 + $0x50] sm:$0x1]
      %v10020 = vld [vmem:[%s861 + $0x54] sm:$0xf]
      %v10021 = vld [vmem:[%s861 + $0x58] sm:$0xf]
      %v10022 = vld [vmem:[%s861 + $0x5c] sm:$0x1]
      %v10023 = vld [vmem:[%s861 + $0x60] sm:$0xf]
      %v10024 = vld [vmem:[%s861 + $0x64] sm:$0xf]
      %v10025 = vld [vmem:[%s861 + $0x68] sm:$0x1]
      %v10026 = vld [vmem:[%s861 + $0x6c] sm:$0xf]
      %v10027 = vld [vmem:[%s861 + $0x70] sm:$0xf]
      %v10028 = vld [vmem:[%s861 + $0x74] sm:$0x1]
      %v10029 = vld [vmem:[%s861 + $0x78] sm:$0xf]
      %v10030 = vld [vmem:[%s861 + $0x7c] sm:$0xf]
      %v10031 = vld [vmem:[%s861 + $0x80] sm:$0x1]
      %v10032 = vld [vmem:[%s861 + $0x84] sm:$0xf]
      %v10033 = vld [vmem:[%s861 + $0x88] sm:$0xf]
      %v10034 = vld [vmem:[%s861 + $0x8c] sm:$0x1]
      %v10035 = vld [vmem:[%s861 + $0x90] sm:$0xf]
      %v10036 = vld [vmem:[%s861 + $0x94] sm:$0xf]
      %v10037 = vld [vmem:[%s861 + $0x98] sm:$0x1]
      %v10038 = vld [vmem:[%s861 + $0x9c] sm:$0xf]
      %v10039 = vld [vmem:[%s861 + $0xa0] sm:$0xf]
      %v10040 = vld [vmem:[%s861 + $0xa4] sm:$0x1]
      %v10041 = vld [vmem:[%s861 + $0xa8] sm:$0xf]
      %v10042 = vld [vmem:[%s861 + $0xac] sm:$0xf]
      %v10043 = vld [vmem:[%s861 + $0xb0] sm:$0x1]
      %v10044 = vld [vmem:[%s861 + $0xb4] sm:$0xf]
      %v10045 = vld [vmem:[%s861 + $0xb8] sm:$0xf]
      %v10046 = vld [vmem:[%s861 + $0xbc] sm:$0x1]
      %v10048 = vshrl.u32 %v9999, 16
      %v10050 = vrot.slane %v10048, 4
      %v10051 = vshll.u32 %v9999, 16
      %v10053 = vrot.slane %v10051, 5
      %v10054 = vor.u32 %v10050, %v10053
      %v10055 = vrot.slane %v10054, 4
      %v10057 = vshll.u32 %v10000, 16
      %v10059 = vrot.slane %v10057, 5
      %v10060 = vsel %vm1735, %v10055, %v10059
      %v10061 = vshrl.u32 %v10000, 16
      %v10063 = vrot.slane %v10061, 4
      %v10064 = vor.u32 %v10063, %v10059
      %v10065 = vrot.slane %v10064, 4
      %v10067 = vshll.u32 %v10001, 16
      %v10069 = vrot.slane %v10067, 5
      %v10070 = vsel %vm1735, %v10065, %v10069
      %v10072 = vshrl.u32 %v10002, 16
      %v10074 = vrot.slane %v10072, 4
      %v10075 = vshll.u32 %v10002, 16
      %v10077 = vrot.slane %v10075, 5
      %v10078 = vor.u32 %v10074, %v10077
      %v10079 = vrot.slane %v10078, 4
      %v10081 = vshll.u32 %v10003, 16
      %v10083 = vrot.slane %v10081, 5
      %v10084 = vsel %vm1735, %v10079, %v10083
      %v10085 = vshrl.u32 %v10003, 16
      %v10087 = vrot.slane %v10085, 4
      %v10088 = vor.u32 %v10087, %v10083
      %v10089 = vrot.slane %v10088, 4
      %v10091 = vshll.u32 %v10004, 16
      %v10093 = vrot.slane %v10091, 5
      %v10094 = vsel %vm1735, %v10089, %v10093
      %v10096 = vshrl.u32 %v10005, 16
      %v10098 = vrot.slane %v10096, 4
      %v10099 = vshll.u32 %v10005, 16
      %v10101 = vrot.slane %v10099, 5
      %v10102 = vor.u32 %v10098, %v10101
      %v10103 = vrot.slane %v10102, 4
      %v10105 = vshll.u32 %v10006, 16
      %v10107 = vrot.slane %v10105, 5
      %v10108 = vsel %vm1735, %v10103, %v10107
      %v10109 = vshrl.u32 %v10006, 16
      %v10111 = vrot.slane %v10109, 4
      %v10112 = vor.u32 %v10111, %v10107
      %v10113 = vrot.slane %v10112, 4
      %v10115 = vshll.u32 %v10007, 16
      %v10117 = vrot.slane %v10115, 5
      %v10118 = vsel %vm1735, %v10113, %v10117
      %v10120 = vshrl.u32 %v10008, 16
      %v10122 = vrot.slane %v10120, 4
      %v10123 = vshll.u32 %v10008, 16
      %v10125 = vrot.slane %v10123, 5
      %v10126 = vor.u32 %v10122, %v10125
      %v10127 = vrot.slane %v10126, 4
      %v10129 = vshll.u32 %v10009, 16
      %v10131 = vrot.slane %v10129, 5
      %v10132 = vsel %vm1735, %v10127, %v10131
      %v10133 = vshrl.u32 %v10009, 16
      %v10135 = vrot.slane %v10133, 4
      %v10136 = vor.u32 %v10135, %v10131
      %v10137 = vrot.slane %v10136, 4
      %v10139 = vshll.u32 %v10010, 16
      %v10141 = vrot.slane %v10139, 5
      %v10142 = vsel %vm1735, %v10137, %v10141
      %v10144 = vshrl.u32 %v10011, 16
      %v10146 = vrot.slane %v10144, 4
      %v10147 = vshll.u32 %v10011, 16
      %v10149 = vrot.slane %v10147, 5
      %v10150 = vor.u32 %v10146, %v10149
      %v10151 = vrot.slane %v10150, 4
      %v10153 = vshll.u32 %v10012, 16
      %v10155 = vrot.slane %v10153, 5
      %v10156 = vsel %vm1735, %v10151, %v10155
      %v10157 = vshrl.u32 %v10012, 16
      %v10159 = vrot.slane %v10157, 4
      %v10160 = vor.u32 %v10159, %v10155
      %v10161 = vrot.slane %v10160, 4
      %v10163 = vshll.u32 %v10013, 16
      %v10165 = vrot.slane %v10163, 5
      %v10166 = vsel %vm1735, %v10161, %v10165
      %v10168 = vshrl.u32 %v10014, 16
      %v10170 = vrot.slane %v10168, 4
      %v10171 = vshll.u32 %v10014, 16
      %v10173 = vrot.slane %v10171, 5
      %v10174 = vor.u32 %v10170, %v10173
      %v10175 = vrot.slane %v10174, 4
      %v10177 = vshll.u32 %v10015, 16
      %v10179 = vrot.slane %v10177, 5
      %v10180 = vsel %vm1735, %v10175, %v10179
      %v10181 = vshrl.u32 %v10015, 16
      %v10183 = vrot.slane %v10181, 4
      %v10184 = vor.u32 %v10183, %v10179
      %v10185 = vrot.slane %v10184, 4
      %v10187 = vshll.u32 %v10016, 16
      %v10189 = vrot.slane %v10187, 5
      %v10190 = vsel %vm1735, %v10185, %v10189
      %v10192 = vshrl.u32 %v10017, 16
      %v10194 = vrot.slane %v10192, 4
      %v10195 = vshll.u32 %v10017, 16
      %v10197 = vrot.slane %v10195, 5
      %v10198 = vor.u32 %v10194, %v10197
      %v10199 = vrot.slane %v10198, 4
      %v10201 = vshll.u32 %v10018, 16
      %v10203 = vrot.slane %v10201, 5
      %v10204 = vsel %vm1735, %v10199, %v10203
      %v10205 = vshrl.u32 %v10018, 16
      %v10207 = vrot.slane %v10205, 4
      %v10208 = vor.u32 %v10207, %v10203
      %v10209 = vrot.slane %v10208, 4
      %v10211 = vshll.u32 %v10019, 16
      %v10213 = vrot.slane %v10211, 5
      %v10214 = vsel %vm1735, %v10209, %v10213
      %v10216 = vshrl.u32 %v10020, 16
      %v10218 = vrot.slane %v10216, 4
      %v10219 = vshll.u32 %v10020, 16
      %v10221 = vrot.slane %v10219, 5
      %v10222 = vor.u32 %v10218, %v10221
      %v10223 = vrot.slane %v10222, 4
      %v10225 = vshll.u32 %v10021, 16
      %v10227 = vrot.slane %v10225, 5
      %v10228 = vsel %vm1735, %v10223, %v10227
      %v10229 = vshrl.u32 %v10021, 16
      %v10231 = vrot.slane %v10229, 4
      %v10232 = vor.u32 %v10231, %v10227
      %v10233 = vrot.slane %v10232, 4
      %v10235 = vshll.u32 %v10022, 16
      %v10237 = vrot.slane %v10235, 5
      %v10238 = vsel %vm1735, %v10233, %v10237
      %v10240 = vshrl.u32 %v10023, 16
      %v10242 = vrot.slane %v10240, 4
      %v10243 = vshll.u32 %v10023, 16
      %v10245 = vrot.slane %v10243, 5
      %v10246 = vor.u32 %v10242, %v10245
      %v10247 = vrot.slane %v10246, 4
      %v10249 = vshll.u32 %v10024, 16
      %v10251 = vrot.slane %v10249, 5
      %v10252 = vsel %vm1735, %v10247, %v10251
      %v10253 = vshrl.u32 %v10024, 16
      %v10255 = vrot.slane %v10253, 4
      %v10256 = vor.u32 %v10255, %v10251
      %v10257 = vrot.slane %v10256, 4
      %v10259 = vshll.u32 %v10025, 16
      %v10261 = vrot.slane %v10259, 5
      %v10262 = vsel %vm1735, %v10257, %v10261
      %v10264 = vshrl.u32 %v10026, 16
      %v10266 = vrot.slane %v10264, 4
      %v10267 = vshll.u32 %v10026, 16
      %v10269 = vrot.slane %v10267, 5
      %v10270 = vor.u32 %v10266, %v10269
      %v10271 = vrot.slane %v10270, 4
      %v10273 = vshll.u32 %v10027, 16
      %v10275 = vrot.slane %v10273, 5
      %v10276 = vsel %vm1735, %v10271, %v10275
      %v10277 = vshrl.u32 %v10027, 16
      %v10279 = vrot.slane %v10277, 4
      %v10280 = vor.u32 %v10279, %v10275
      %v10281 = vrot.slane %v10280, 4
      %v10283 = vshll.u32 %v10028, 16
      %v10285 = vrot.slane %v10283, 5
      %v10286 = vsel %vm1735, %v10281, %v10285
      %v10288 = vshrl.u32 %v10029, 16
      %v10290 = vrot.slane %v10288, 4
      %v10291 = vshll.u32 %v10029, 16
      %v10293 = vrot.slane %v10291, 5
      %v10294 = vor.u32 %v10290, %v10293
      %v10295 = vrot.slane %v10294, 4
      %v10297 = vshll.u32 %v10030, 16
      %v10299 = vrot.slane %v10297, 5
      %v10300 = vsel %vm1735, %v10295, %v10299
      %v10301 = vshrl.u32 %v10030, 16
      %v10303 = vrot.slane %v10301, 4
      %v10304 = vor.u32 %v10303, %v10299
      %v10305 = vrot.slane %v10304, 4
      %v10307 = vshll.u32 %v10031, 16
      %v10309 = vrot.slane %v10307, 5
      %v10310 = vsel %vm1735, %v10305, %v10309
      %v10312 = vshrl.u32 %v10032, 16
      %v10314 = vrot.slane %v10312, 4
      %v10315 = vshll.u32 %v10032, 16
      %v10317 = vrot.slane %v10315, 5
      %v10318 = vor.u32 %v10314, %v10317
      %v10319 = vrot.slane %v10318, 4
      %v10321 = vshll.u32 %v10033, 16
      %v10323 = vrot.slane %v10321, 5
      %v10324 = vsel %vm1735, %v10319, %v10323
      %v10325 = vshrl.u32 %v10033, 16
      %v10327 = vrot.slane %v10325, 4
      %v10328 = vor.u32 %v10327, %v10323
      %v10329 = vrot.slane %v10328, 4
      %v10331 = vshll.u32 %v10034, 16
      %v10333 = vrot.slane %v10331, 5
      %v10334 = vsel %vm1735, %v10329, %v10333
      %v10336 = vshrl.u32 %v10035, 16
      %v10338 = vrot.slane %v10336, 4
      %v10339 = vshll.u32 %v10035, 16
      %v10341 = vrot.slane %v10339, 5
      %v10342 = vor.u32 %v10338, %v10341
      %v10343 = vrot.slane %v10342, 4
      %v10345 = vshll.u32 %v10036, 16
      %v10347 = vrot.slane %v10345, 5
      %v10348 = vsel %vm1735, %v10343, %v10347
      %v10349 = vshrl.u32 %v10036, 16
      %v10351 = vrot.slane %v10349, 4
      %v10352 = vor.u32 %v10351, %v10347
      %v10353 = vrot.slane %v10352, 4
      %v10355 = vshll.u32 %v10037, 16
      %v10357 = vrot.slane %v10355, 5
      %v10358 = vsel %vm1735, %v10353, %v10357
      %v10360 = vshrl.u32 %v10038, 16
      %v10362 = vrot.slane %v10360, 4
      %v10363 = vshll.u32 %v10038, 16
      %v10365 = vrot.slane %v10363, 5
      %v10366 = vor.u32 %v10362, %v10365
      %v10367 = vrot.slane %v10366, 4
      %v10369 = vshll.u32 %v10039, 16
      %v10371 = vrot.slane %v10369, 5
      %v10372 = vsel %vm1735, %v10367, %v10371
      %v10373 = vshrl.u32 %v10039, 16
      %v10375 = vrot.slane %v10373, 4
      %v10376 = vor.u32 %v10375, %v10371
      %v10377 = vrot.slane %v10376, 4
      %v10379 = vshll.u32 %v10040, 16
      %v10381 = vrot.slane %v10379, 5
      %v10382 = vsel %vm1735, %v10377, %v10381
      %v10384 = vshrl.u32 %v10041, 16
      %v10386 = vrot.slane %v10384, 4
      %v10387 = vshll.u32 %v10041, 16
      %v10389 = vrot.slane %v10387, 5
      %v10390 = vor.u32 %v10386, %v10389
      %v10391 = vrot.slane %v10390, 4
      %v10393 = vshll.u32 %v10042, 16
      %v10395 = vrot.slane %v10393, 5
      %v10396 = vsel %vm1735, %v10391, %v10395
      %v10397 = vshrl.u32 %v10042, 16
      %v10399 = vrot.slane %v10397, 4
      %v10400 = vor.u32 %v10399, %v10395
      %v10401 = vrot.slane %v10400, 4
      %v10403 = vshll.u32 %v10043, 16
      %v10405 = vrot.slane %v10403, 5
      %v10406 = vsel %vm1735, %v10401, %v10405
      %v10408 = vshrl.u32 %v10044, 16
      %v10410 = vrot.slane %v10408, 4
      %v10411 = vshll.u32 %v10044, 16
      %v10413 = vrot.slane %v10411, 5
      %v10414 = vor.u32 %v10410, %v10413
      %v10415 = vrot.slane %v10414, 4
      %v10417 = vshll.u32 %v10045, 16
      %v10419 = vrot.slane %v10417, 5
      %v10420 = vsel %vm1735, %v10415, %v10419
      %v10421 = vshrl.u32 %v10045, 16
      %v10423 = vrot.slane %v10421, 4
      %v10424 = vor.u32 %v10423, %v10419
      %v10425 = vrot.slane %v10424, 4
      %v10427 = vshll.u32 %v10046, 16
      %v10429 = vrot.slane %v10427, 5
      %v10430 = vsel %vm1735, %v10425, %v10429
      %v10431 = vunpack.c.l.b16 %v10060
      %v10432 = vunpack.c.l.b16 %v10070
      %v10433 = vunpack.c.l.b16 %v10084
      %v10434 = vunpack.c.l.b16 %v10094
      %v10435 = vunpack.c.l.b16 %v10108
      %v10436 = vunpack.c.l.b16 %v10118
      %v10437 = vunpack.c.l.b16 %v10132
      %v10438 = vunpack.c.l.b16 %v10142
      %v10439 = vunpack.c.l.b16 %v10156
      %v10440 = vunpack.c.l.b16 %v10166
      %v10441 = vunpack.c.l.b16 %v10180
      %v10442 = vunpack.c.l.b16 %v10190
      %v10443 = vunpack.c.l.b16 %v10204
      %v10444 = vunpack.c.l.b16 %v10214
      %v10445 = vunpack.c.l.b16 %v10228
      %v10446 = vunpack.c.l.b16 %v10238
      %v10447 = vunpack.c.l.b16 %v10252
      %v10448 = vunpack.c.l.b16 %v10262
      %v10449 = vunpack.c.l.b16 %v10276
      %v10450 = vunpack.c.l.b16 %v10286
      %v10451 = vunpack.c.l.b16 %v10300
      %v10452 = vunpack.c.l.b16 %v10310
      %v10453 = vunpack.c.l.b16 %v10324
      %v10454 = vunpack.c.l.b16 %v10334
      %v10455 = vunpack.c.l.b16 %v10348
      %v10456 = vunpack.c.l.b16 %v10358
      %v10457 = vunpack.c.l.b16 %v10372
      %v10458 = vunpack.c.l.b16 %v10382
      %v10459 = vunpack.c.l.b16 %v10396
      %v10460 = vunpack.c.l.b16 %v10406
      %v10461 = vunpack.c.l.b16 %v10420
      %v10462 = vunpack.c.l.b16 %v10430
      %v10463 = vpack.c.b16 %v10432, %v10431
      %v10464 = vpack.c.b16 %v10434, %v10433
      %v10465 = vpack.c.b16 %v10436, %v10435
      %v10466 = vpack.c.b16 %v10438, %v10437
      %v10467 = vpack.c.b16 %v10440, %v10439
      %v10468 = vpack.c.b16 %v10442, %v10441
      %v10469 = vpack.c.b16 %v10444, %v10443
      %v10470 = vpack.c.b16 %v10446, %v10445
      %v10471 = vpack.c.b16 %v10448, %v10447
      %v10472 = vpack.c.b16 %v10450, %v10449
      %v10473 = vpack.c.b16 %v10452, %v10451
      %v10474 = vpack.c.b16 %v10454, %v10453
      %v10475 = vpack.c.b16 %v10456, %v10455
      %v10476 = vpack.c.b16 %v10458, %v10457
      %v10477 = vpack.c.b16 %v10460, %v10459
      %v10478 = vpack.c.b16 %v10462, %v10461
      %10479 = vrot.lane.b32.xlu0 %v10463, 32
      %v10480 = vpop.permute.xlu0 %10479
      %10481 = vrot.lane.b32.xlu0 %v10464, 32
      %v10482 = vpop.permute.xlu0 %10481
      %10483 = vrot.lane.b32.xlu0 %v10465, 32
      %v10484 = vpop.permute.xlu0 %10483
      %10485 = vrot.lane.b32.xlu0 %v10466, 32
      %v10486 = vpop.permute.xlu0 %10485
      %10487 = vrot.lane.b32.xlu0 %v10467, 32
      %v10488 = vpop.permute.xlu0 %10487
      %10489 = vrot.lane.b32.xlu0 %v10468, 32
      %v10490 = vpop.permute.xlu0 %10489
      %10491 = vrot.lane.b32.xlu0 %v10469, 32
      %v10492 = vpop.permute.xlu0 %10491
      %10493 = vrot.lane.b32.xlu0 %v10470, 32
      %v10494 = vpop.permute.xlu0 %10493
      %10495 = vrot.lane.b32.xlu0 %v10471, 32
      %v10496 = vpop.permute.xlu0 %10495
      %10497 = vrot.lane.b32.xlu0 %v10472, 32
      %v10498 = vpop.permute.xlu0 %10497
      %10499 = vrot.lane.b32.xlu0 %v10473, 32
      %v10500 = vpop.permute.xlu0 %10499
      %10501 = vrot.lane.b32.xlu0 %v10474, 32
      %v10502 = vpop.permute.xlu0 %10501
      %10503 = vrot.lane.b32.xlu0 %v10475, 32
      %v10504 = vpop.permute.xlu0 %10503
      %10505 = vrot.lane.b32.xlu0 %v10476, 32
      %v10506 = vpop.permute.xlu0 %10505
      %10507 = vrot.lane.b32.xlu0 %v10477, 32
      %v10508 = vpop.permute.xlu0 %10507
      %10509 = vrot.lane.b32.xlu0 %v10478, 32
      %v10510 = vpop.permute.xlu0 %10509
      %10527 = vst.msk [vmem:[#allocation4] sm:$0xff] %vm3262, %v10480
      %10528 = vst.msk [vmem:[#allocation4 + $0x8] sm:$0xff] %vm3262, %v10482
      %10529 = vst.msk [vmem:[#allocation4 + $0x10] sm:$0xff] %vm3262, %v10484
      %10530 = vst.msk [vmem:[#allocation4 + $0x18] sm:$0xff] %vm3262, %v10486
      %10531 = vst.msk [vmem:[#allocation4 + $0x20] sm:$0xff] %vm3262, %v10488
      %10532 = vst.msk [vmem:[#allocation4 + $0x28] sm:$0xff] %vm3262, %v10490
      %10533 = vst.msk [vmem:[#allocation4 + $0x30] sm:$0xff] %vm3262, %v10492
      %10534 = vst.msk [vmem:[#allocation4 + $0x38] sm:$0xff] %vm3262, %v10494
      %10535 = vst.msk [vmem:[#allocation4 + $0x40] sm:$0xff] %vm3262, %v10496
      %10536 = vst.msk [vmem:[#allocation4 + $0x48] sm:$0xff] %vm3262, %v10498
      %10537 = vst.msk [vmem:[#allocation4 + $0x50] sm:$0xff] %vm3262, %v10500
      %10538 = vst.msk [vmem:[#allocation4 + $0x58] sm:$0xff] %vm3262, %v10502
      %10539 = vst.msk [vmem:[#allocation4 + $0x60] sm:$0xff] %vm3262, %v10504
      %10540 = vst.msk [vmem:[#allocation4 + $0x68] sm:$0xff] %vm3262, %v10506
      %10541 = vst.msk [vmem:[#allocation4 + $0x70] sm:$0xff] %vm3262, %v10508
      %10542 = vst.msk [vmem:[#allocation4 + $0x78] sm:$0xff] %vm3262, %v10510
      %v10543 = vld [vmem:[%s861] sm:$0xe]
      %v10544 = vld [vmem:[%s861 + $0x4] sm:$0xf]
      %v10545 = vld [vmem:[%s861 + $0x8] sm:$0x1]
      %v10546 = vld [vmem:[%s861 + $0xc] sm:$0xe]
      %v10547 = vld [vmem:[%s861 + $0x10] sm:$0xf]
      %v10548 = vld [vmem:[%s861 + $0x14] sm:$0x1]
      %v10549 = vld [vmem:[%s861 + $0x18] sm:$0xe]
      %v10550 = vld [vmem:[%s861 + $0x1c] sm:$0xf]
      %v10551 = vld [vmem:[%s861 + $0x20] sm:$0x1]
      %v10552 = vld [vmem:[%s861 + $0x24] sm:$0xe]
      %v10553 = vld [vmem:[%s861 + $0x28] sm:$0xf]
      %v10554 = vld [vmem:[%s861 + $0x2c] sm:$0x1]
      %v10555 = vld [vmem:[%s861 + $0x30] sm:$0xe]
      %v10556 = vld [vmem:[%s861 + $0x34] sm:$0xf]
      %v10557 = vld [vmem:[%s861 + $0x38] sm:$0x1]
      %v10558 = vld [vmem:[%s861 + $0x3c] sm:$0xe]
      %v10559 = vld [vmem:[%s861 + $0x40] sm:$0xf]
      %v10560 = vld [vmem:[%s861 + $0x44] sm:$0x1]
      %v10561 = vld [vmem:[%s861 + $0x48] sm:$0xe]
      %v10562 = vld [vmem:[%s861 + $0x4c] sm:$0xf]
      %v10563 = vld [vmem:[%s861 + $0x50] sm:$0x1]
      %v10564 = vld [vmem:[%s861 + $0x54] sm:$0xe]
      %v10565 = vld [vmem:[%s861 + $0x58] sm:$0xf]
      %v10566 = vld [vmem:[%s861 + $0x5c] sm:$0x1]
      %v10567 = vld [vmem:[%s861 + $0x60] sm:$0xe]
      %v10568 = vld [vmem:[%s861 + $0x64] sm:$0xf]
      %v10569 = vld [vmem:[%s861 + $0x68] sm:$0x1]
      %v10570 = vld [vmem:[%s861 + $0x6c] sm:$0xe]
      %v10571 = vld [vmem:[%s861 + $0x70] sm:$0xf]
      %v10572 = vld [vmem:[%s861 + $0x74] sm:$0x1]
      %v10573 = vld [vmem:[%s861 + $0x78] sm:$0xe]
      %v10574 = vld [vmem:[%s861 + $0x7c] sm:$0xf]
      %v10575 = vld [vmem:[%s861 + $0x80] sm:$0x1]
      %v10576 = vld [vmem:[%s861 + $0x84] sm:$0xe]
      %v10577 = vld [vmem:[%s861 + $0x88] sm:$0xf]
      %v10578 = vld [vmem:[%s861 + $0x8c] sm:$0x1]
      %v10579 = vld [vmem:[%s861 + $0x90] sm:$0xe]
      %v10580 = vld [vmem:[%s861 + $0x94] sm:$0xf]
      %v10581 = vld [vmem:[%s861 + $0x98] sm:$0x1]
      %v10582 = vld [vmem:[%s861 + $0x9c] sm:$0xe]
      %v10583 = vld [vmem:[%s861 + $0xa0] sm:$0xf]
      %v10584 = vld [vmem:[%s861 + $0xa4] sm:$0x1]
      %v10585 = vld [vmem:[%s861 + $0xa8] sm:$0xe]
      %v10586 = vld [vmem:[%s861 + $0xac] sm:$0xf]
      %v10587 = vld [vmem:[%s861 + $0xb0] sm:$0x1]
      %v10588 = vld [vmem:[%s861 + $0xb4] sm:$0xe]
      %v10589 = vld [vmem:[%s861 + $0xb8] sm:$0xf]
      %v10590 = vld [vmem:[%s861 + $0xbc] sm:$0x1]
      %v10639 = vrot.slane %v10543, 5
      %v10640 = vrot.slane %v10639, 4
      %v10641 = vrot.slane %v10544, 5
      %v10642 = vsel %vm2331, %v10640, %v10641
      %v10643 = vrot.slane %v10641, 4
      %v10644 = vrot.slane %v10545, 5
      %v10645 = vsel %vm2331, %v10643, %v10644
      %v10646 = vrot.slane %v10546, 5
      %v10647 = vrot.slane %v10646, 4
      %v10648 = vrot.slane %v10547, 5
      %v10649 = vsel %vm2331, %v10647, %v10648
      %v10650 = vrot.slane %v10648, 4
      %v10651 = vrot.slane %v10548, 5
      %v10652 = vsel %vm2331, %v10650, %v10651
      %v10653 = vrot.slane %v10549, 5
      %v10654 = vrot.slane %v10653, 4
      %v10655 = vrot.slane %v10550, 5
      %v10656 = vsel %vm2331, %v10654, %v10655
      %v10657 = vrot.slane %v10655, 4
      %v10658 = vrot.slane %v10551, 5
      %v10659 = vsel %vm2331, %v10657, %v10658
      %v10660 = vrot.slane %v10552, 5
      %v10661 = vrot.slane %v10660, 4
      %v10662 = vrot.slane %v10553, 5
      %v10663 = vsel %vm2331, %v10661, %v10662
      %v10664 = vrot.slane %v10662, 4
      %v10665 = vrot.slane %v10554, 5
      %v10666 = vsel %vm2331, %v10664, %v10665
      %v10667 = vrot.slane %v10555, 5
      %v10668 = vrot.slane %v10667, 4
      %v10669 = vrot.slane %v10556, 5
      %v10670 = vsel %vm2331, %v10668, %v10669
      %v10671 = vrot.slane %v10669, 4
      %v10672 = vrot.slane %v10557, 5
      %v10673 = vsel %vm2331, %v10671, %v10672
      %v10674 = vrot.slane %v10558, 5
      %v10675 = vrot.slane %v10674, 4
      %v10676 = vrot.slane %v10559, 5
      %v10677 = vsel %vm2331, %v10675, %v10676
      %v10678 = vrot.slane %v10676, 4
      %v10679 = vrot.slane %v10560, 5
      %v10680 = vsel %vm2331, %v10678, %v10679
      %v10681 = vrot.slane %v10561, 5
      %v10682 = vrot.slane %v10681, 4
      %v10683 = vrot.slane %v10562, 5
      %v10684 = vsel %vm2331, %v10682, %v10683
      %v10685 = vrot.slane %v10683, 4
      %v10686 = vrot.slane %v10563, 5
      %v10687 = vsel %vm2331, %v10685, %v10686
      %v10688 = vrot.slane %v10564, 5
      %v10689 = vrot.slane %v10688, 4
      %v10690 = vrot.slane %v10565, 5
      %v10691 = vsel %vm2331, %v10689, %v10690
      %v10692 = vrot.slane %v10690, 4
      %v10693 = vrot.slane %v10566, 5
      %v10694 = vsel %vm2331, %v10692, %v10693
      %v10695 = vrot.slane %v10567, 5
      %v10696 = vrot.slane %v10695, 4
      %v10697 = vrot.slane %v10568, 5
      %v10698 = vsel %vm2331, %v10696, %v10697
      %v10699 = vrot.slane %v10697, 4
      %v10700 = vrot.slane %v10569, 5
      %v10701 = vsel %vm2331, %v10699, %v10700
      %v10702 = vrot.slane %v10570, 5
      %v10703 = vrot.slane %v10702, 4
      %v10704 = vrot.slane %v10571, 5
      %v10705 = vsel %vm2331, %v10703, %v10704
      %v10706 = vrot.slane %v10704, 4
      %v10707 = vrot.slane %v10572, 5
      %v10708 = vsel %vm2331, %v10706, %v10707
      %v10709 = vrot.slane %v10573, 5
      %v10710 = vrot.slane %v10709, 4
      %v10711 = vrot.slane %v10574, 5
      %v10712 = vsel %vm2331, %v10710, %v10711
      %v10713 = vrot.slane %v10711, 4
      %v10714 = vrot.slane %v10575, 5
      %v10715 = vsel %vm2331, %v10713, %v10714
      %v10716 = vrot.slane %v10576, 5
      %v10717 = vrot.slane %v10716, 4
      %v10718 = vrot.slane %v10577, 5
      %v10719 = vsel %vm2331, %v10717, %v10718
      %v10720 = vrot.slane %v10718, 4
      %v10721 = vrot.slane %v10578, 5
      %v10722 = vsel %vm2331, %v10720, %v10721
      %v10723 = vrot.slane %v10579, 5
      %v10724 = vrot.slane %v10723, 4
      %v10725 = vrot.slane %v10580, 5
      %v10726 = vsel %vm2331, %v10724, %v10725
      %v10727 = vrot.slane %v10725, 4
      %v10728 = vrot.slane %v10581, 5
      %v10729 = vsel %vm2331, %v10727, %v10728
      %v10730 = vrot.slane %v10582, 5
      %v10731 = vrot.slane %v10730, 4
      %v10732 = vrot.slane %v10583, 5
      %v10733 = vsel %vm2331, %v10731, %v10732
      %v10734 = vrot.slane %v10732, 4
      %v10735 = vrot.slane %v10584, 5
      %v10736 = vsel %vm2331, %v10734, %v10735
      %v10737 = vrot.slane %v10585, 5
      %v10738 = vrot.slane %v10737, 4
      %v10739 = vrot.slane %v10586, 5
      %v10740 = vsel %vm2331, %v10738, %v10739
      %v10741 = vrot.slane %v10739, 4
      %v10742 = vrot.slane %v10587, 5
      %v10743 = vsel %vm2331, %v10741, %v10742
      %v10744 = vrot.slane %v10588, 5
      %v10745 = vrot.slane %v10744, 4
      %v10746 = vrot.slane %v10589, 5
      %v10747 = vsel %vm2331, %v10745, %v10746
      %v10748 = vrot.slane %v10746, 4
      %v10749 = vrot.slane %v10590, 5
      %v10750 = vsel %vm2331, %v10748, %v10749
      %v10751 = vunpack.c.l.b16 %v10642
      %v10752 = vunpack.c.l.b16 %v10645
      %v10753 = vunpack.c.l.b16 %v10649
      %v10754 = vunpack.c.l.b16 %v10652
      %v10755 = vunpack.c.l.b16 %v10656
      %v10756 = vunpack.c.l.b16 %v10659
      %v10757 = vunpack.c.l.b16 %v10663
      %v10758 = vunpack.c.l.b16 %v10666
      %v10759 = vunpack.c.l.b16 %v10670
      %v10760 = vunpack.c.l.b16 %v10673
      %v10761 = vunpack.c.l.b16 %v10677
      %v10762 = vunpack.c.l.b16 %v10680
      %v10763 = vunpack.c.l.b16 %v10684
      %v10764 = vunpack.c.l.b16 %v10687
      %v10765 = vunpack.c.l.b16 %v10691
      %v10766 = vunpack.c.l.b16 %v10694
      %v10767 = vunpack.c.l.b16 %v10698
      %v10768 = vunpack.c.l.b16 %v10701
      %v10769 = vunpack.c.l.b16 %v10705
      %v10770 = vunpack.c.l.b16 %v10708
      %v10771 = vunpack.c.l.b16 %v10712
      %v10772 = vunpack.c.l.b16 %v10715
      %v10773 = vunpack.c.l.b16 %v10719
      %v10774 = vunpack.c.l.b16 %v10722
      %v10775 = vunpack.c.l.b16 %v10726
      %v10776 = vunpack.c.l.b16 %v10729
      %v10777 = vunpack.c.l.b16 %v10733
      %v10778 = vunpack.c.l.b16 %v10736
      %v10779 = vunpack.c.l.b16 %v10740
      %v10780 = vunpack.c.l.b16 %v10743
      %v10781 = vunpack.c.l.b16 %v10747
      %v10782 = vunpack.c.l.b16 %v10750
      %v10783 = vpack.c.b16 %v10752, %v10751
      %v10784 = vpack.c.b16 %v10754, %v10753
      %v10785 = vpack.c.b16 %v10756, %v10755
      %v10786 = vpack.c.b16 %v10758, %v10757
      %v10787 = vpack.c.b16 %v10760, %v10759
      %v10788 = vpack.c.b16 %v10762, %v10761
      %v10789 = vpack.c.b16 %v10764, %v10763
      %v10790 = vpack.c.b16 %v10766, %v10765
      %v10791 = vpack.c.b16 %v10768, %v10767
      %v10792 = vpack.c.b16 %v10770, %v10769
      %v10793 = vpack.c.b16 %v10772, %v10771
      %v10794 = vpack.c.b16 %v10774, %v10773
      %v10795 = vpack.c.b16 %v10776, %v10775
      %v10796 = vpack.c.b16 %v10778, %v10777
      %v10797 = vpack.c.b16 %v10780, %v10779
      %v10798 = vpack.c.b16 %v10782, %v10781
      %10799 = vrot.lane.b32.xlu0 %v10783, 40
      %v10800 = vpop.permute.xlu0 %10799
      %10801 = vrot.lane.b32.xlu0 %v10784, 40
      %v10802 = vpop.permute.xlu0 %10801
      %10803 = vrot.lane.b32.xlu0 %v10785, 40
      %v10804 = vpop.permute.xlu0 %10803
      %10805 = vrot.lane.b32.xlu0 %v10786, 40
      %v10806 = vpop.permute.xlu0 %10805
      %10807 = vrot.lane.b32.xlu0 %v10787, 40
      %v10808 = vpop.permute.xlu0 %10807
      %10809 = vrot.lane.b32.xlu0 %v10788, 40
      %v10810 = vpop.permute.xlu0 %10809
      %10811 = vrot.lane.b32.xlu0 %v10789, 40
      %v10812 = vpop.permute.xlu0 %10811
      %10813 = vrot.lane.b32.xlu0 %v10790, 40
      %v10814 = vpop.permute.xlu0 %10813
      %10815 = vrot.lane.b32.xlu0 %v10791, 40
      %v10816 = vpop.permute.xlu0 %10815
      %10817 = vrot.lane.b32.xlu0 %v10792, 40
      %v10818 = vpop.permute.xlu0 %10817
      %10819 = vrot.lane.b32.xlu0 %v10793, 40
      %v10820 = vpop.permute.xlu0 %10819
      %10821 = vrot.lane.b32.xlu0 %v10794, 40
      %v10822 = vpop.permute.xlu0 %10821
      %10823 = vrot.lane.b32.xlu0 %v10795, 40
      %v10824 = vpop.permute.xlu0 %10823
      %10825 = vrot.lane.b32.xlu0 %v10796, 40
      %v10826 = vpop.permute.xlu0 %10825
      %10827 = vrot.lane.b32.xlu0 %v10797, 40
      %v10828 = vpop.permute.xlu0 %10827
      %10829 = vrot.lane.b32.xlu0 %v10798, 40
      %v10830 = vpop.permute.xlu0 %10829
      %10847 = vst.msk [vmem:[#allocation4] sm:$0xff] %vm3583, %v10800
      %10848 = vst.msk [vmem:[#allocation4 + $0x8] sm:$0xff] %vm3583, %v10802
      %10849 = vst.msk [vmem:[#allocation4 + $0x10] sm:$0xff] %vm3583, %v10804
      %10850 = vst.msk [vmem:[#allocation4 + $0x18] sm:$0xff] %vm3583, %v10806
      %10851 = vst.msk [vmem:[#allocation4 + $0x20] sm:$0xff] %vm3583, %v10808
      %10852 = vst.msk [vmem:[#allocation4 + $0x28] sm:$0xff] %vm3583, %v10810
      %10853 = vst.msk [vmem:[#allocation4 + $0x30] sm:$0xff] %vm3583, %v10812
      %10854 = vst.msk [vmem:[#allocation4 + $0x38] sm:$0xff] %vm3583, %v10814
      %10855 = vst.msk [vmem:[#allocation4 + $0x40] sm:$0xff] %vm3583, %v10816
      %10856 = vst.msk [vmem:[#allocation4 + $0x48] sm:$0xff] %vm3583, %v10818
      %10857 = vst.msk [vmem:[#allocation4 + $0x50] sm:$0xff] %vm3583, %v10820
      %10858 = vst.msk [vmem:[#allocation4 + $0x58] sm:$0xff] %vm3583, %v10822
      %10859 = vst.msk [vmem:[#allocation4 + $0x60] sm:$0xff] %vm3583, %v10824
      %10860 = vst.msk [vmem:[#allocation4 + $0x68] sm:$0xff] %vm3583, %v10826
      %10861 = vst.msk [vmem:[#allocation4 + $0x70] sm:$0xff] %vm3583, %v10828
      %10862 = vst.msk [vmem:[#allocation4 + $0x78] sm:$0xff] %vm3583, %v10830
      %v10863 = vld [vmem:[%s3600] sm:$0xf]
      %v10864 = vld [vmem:[%s3600 + $0x4] sm:$0xf]
      %v10865 = vld [vmem:[%s3600 + $0xc] sm:$0xf]
      %v10866 = vld [vmem:[%s3600 + $0x10] sm:$0xf]
      %v10867 = vld [vmem:[%s3600 + $0x18] sm:$0xf]
      %v10868 = vld [vmem:[%s3600 + $0x1c] sm:$0xf]
      %v10869 = vld [vmem:[%s3600 + $0x24] sm:$0xf]
      %v10870 = vld [vmem:[%s3600 + $0x28] sm:$0xf]
      %v10871 = vld [vmem:[%s3600 + $0x30] sm:$0xf]
      %v10872 = vld [vmem:[%s3600 + $0x34] sm:$0xf]
      %v10873 = vld [vmem:[%s3600 + $0x3c] sm:$0xf]
      %v10874 = vld [vmem:[%s3600 + $0x40] sm:$0xf]
      %v10875 = vld [vmem:[%s3600 + $0x48] sm:$0xf]
      %v10876 = vld [vmem:[%s3600 + $0x4c] sm:$0xf]
      %v10877 = vld [vmem:[%s3600 + $0x54] sm:$0xf]
      %v10878 = vld [vmem:[%s3600 + $0x58] sm:$0xf]
      %v10879 = vld [vmem:[%s3600 + $0x60] sm:$0xf]
      %v10880 = vld [vmem:[%s3600 + $0x64] sm:$0xf]
      %v10881 = vld [vmem:[%s3600 + $0x6c] sm:$0xf]
      %v10882 = vld [vmem:[%s3600 + $0x70] sm:$0xf]
      %v10883 = vld [vmem:[%s3600 + $0x78] sm:$0xf]
      %v10884 = vld [vmem:[%s3600 + $0x7c] sm:$0xf]
      %v10885 = vld [vmem:[%s3600 + $0x84] sm:$0xf]
      %v10886 = vld [vmem:[%s3600 + $0x88] sm:$0xf]
      %v10887 = vld [vmem:[%s3600 + $0x90] sm:$0xf]
      %v10888 = vld [vmem:[%s3600 + $0x94] sm:$0xf]
      %v10889 = vld [vmem:[%s3600 + $0x9c] sm:$0xf]
      %v10890 = vld [vmem:[%s3600 + $0xa0] sm:$0xf]
      %v10891 = vld [vmem:[%s3600 + $0xa8] sm:$0xf]
      %v10892 = vld [vmem:[%s3600 + $0xac] sm:$0xf]
      %v10893 = vld [vmem:[%s3600 + $0xb4] sm:$0xf]
      %v10894 = vld [vmem:[%s3600 + $0xb8] sm:$0xf]
      %v10927 = vunpack.c.l.b16 %v10863
      %v10928 = vunpack.c.l.b16 %v10864
      %v10929 = vunpack.c.l.b16 %v10865
      %v10930 = vunpack.c.l.b16 %v10866
      %v10931 = vunpack.c.l.b16 %v10867
      %v10932 = vunpack.c.l.b16 %v10868
      %v10933 = vunpack.c.l.b16 %v10869
      %v10934 = vunpack.c.l.b16 %v10870
      %v10935 = vunpack.c.l.b16 %v10871
      %v10936 = vunpack.c.l.b16 %v10872
      %v10937 = vunpack.c.l.b16 %v10873
      %v10938 = vunpack.c.l.b16 %v10874
      %v10939 = vunpack.c.l.b16 %v10875
      %v10940 = vunpack.c.l.b16 %v10876
      %v10941 = vunpack.c.l.b16 %v10877
      %v10942 = vunpack.c.l.b16 %v10878
      %v10943 = vunpack.c.l.b16 %v10879
      %v10944 = vunpack.c.l.b16 %v10880
      %v10945 = vunpack.c.l.b16 %v10881
      %v10946 = vunpack.c.l.b16 %v10882
      %v10947 = vunpack.c.l.b16 %v10883
      %v10948 = vunpack.c.l.b16 %v10884
      %v10949 = vunpack.c.l.b16 %v10885
      %v10950 = vunpack.c.l.b16 %v10886
      %v10951 = vunpack.c.l.b16 %v10887
      %v10952 = vunpack.c.l.b16 %v10888
      %v10953 = vunpack.c.l.b16 %v10889
      %v10954 = vunpack.c.l.b16 %v10890
      %v10955 = vunpack.c.l.b16 %v10891
      %v10956 = vunpack.c.l.b16 %v10892
      %v10957 = vunpack.c.l.b16 %v10893
      %v10958 = vunpack.c.l.b16 %v10894
      %v10959 = vpack.c.b16 %v10928, %v10927
      %v10960 = vpack.c.b16 %v10930, %v10929
      %v10961 = vpack.c.b16 %v10932, %v10931
      %v10962 = vpack.c.b16 %v10934, %v10933
      %v10963 = vpack.c.b16 %v10936, %v10935
      %v10964 = vpack.c.b16 %v10938, %v10937
      %v10965 = vpack.c.b16 %v10940, %v10939
      %v10966 = vpack.c.b16 %v10942, %v10941
      %v10967 = vpack.c.b16 %v10944, %v10943
      %v10968 = vpack.c.b16 %v10946, %v10945
      %v10969 = vpack.c.b16 %v10948, %v10947
      %v10970 = vpack.c.b16 %v10950, %v10949
      %v10971 = vpack.c.b16 %v10952, %v10951
      %v10972 = vpack.c.b16 %v10954, %v10953
      %v10973 = vpack.c.b16 %v10956, %v10955
      %v10974 = vpack.c.b16 %v10958, %v10957
      %10975 = vrot.lane.b32.xlu0 %v10959, 48
      %v10976 = vpop.permute.xlu0 %10975
      %10977 = vrot.lane.b32.xlu0 %v10960, 48
      %v10978 = vpop.permute.xlu0 %10977
      %10979 = vrot.lane.b32.xlu0 %v10961, 48
      %v10980 = vpop.permute.xlu0 %10979
      %10981 = vrot.lane.b32.xlu0 %v10962, 48
      %v10982 = vpop.permute.xlu0 %10981
      %10983 = vrot.lane.b32.xlu0 %v10963, 48
      %v10984 = vpop.permute.xlu0 %10983
      %10985 = vrot.lane.b32.xlu0 %v10964, 48
      %v10986 = vpop.permute.xlu0 %10985
      %10987 = vrot.lane.b32.xlu0 %v10965, 48
      %v10988 = vpop.permute.xlu0 %10987
      %10989 = vrot.lane.b32.xlu0 %v10966, 48
      %v10990 = vpop.permute.xlu0 %10989
      %10991 = vrot.lane.b32.xlu0 %v10967, 48
      %v10992 = vpop.permute.xlu0 %10991
      %10993 = vrot.lane.b32.xlu0 %v10968, 48
      %v10994 = vpop.permute.xlu0 %10993
      %10995 = vrot.lane.b32.xlu0 %v10969, 48
      %v10996 = vpop.permute.xlu0 %10995
      %10997 = vrot.lane.b32.xlu0 %v10970, 48
      %v10998 = vpop.permute.xlu0 %10997
      %10999 = vrot.lane.b32.xlu0 %v10971, 48
      %v11000 = vpop.permute.xlu0 %10999
      %11001 = vrot.lane.b32.xlu0 %v10972, 48
      %v11002 = vpop.permute.xlu0 %11001
      %11003 = vrot.lane.b32.xlu0 %v10973, 48
      %v11004 = vpop.permute.xlu0 %11003
      %11005 = vrot.lane.b32.xlu0 %v10974, 48
      %v11006 = vpop.permute.xlu0 %11005
      %11023 = vst.msk [vmem:[#allocation4] sm:$0xff] %vm3761, %v10976
      %11024 = vst.msk [vmem:[#allocation4 + $0x8] sm:$0xff] %vm3761, %v10978
      %11025 = vst.msk [vmem:[#allocation4 + $0x10] sm:$0xff] %vm3761, %v10980
      %11026 = vst.msk [vmem:[#allocation4 + $0x18] sm:$0xff] %vm3761, %v10982
      %11027 = vst.msk [vmem:[#allocation4 + $0x20] sm:$0xff] %vm3761, %v10984
      %11028 = vst.msk [vmem:[#allocation4 + $0x28] sm:$0xff] %vm3761, %v10986
      %11029 = vst.msk [vmem:[#allocation4 + $0x30] sm:$0xff] %vm3761, %v10988
      %11030 = vst.msk [vmem:[#allocation4 + $0x38] sm:$0xff] %vm3761, %v10990
      %11031 = vst.msk [vmem:[#allocation4 + $0x40] sm:$0xff] %vm3761, %v10992
      %11032 = vst.msk [vmem:[#allocation4 + $0x48] sm:$0xff] %vm3761, %v10994
      %11033 = vst.msk [vmem:[#allocation4 + $0x50] sm:$0xff] %vm3761, %v10996
      %11034 = vst.msk [vmem:[#allocation4 + $0x58] sm:$0xff] %vm3761, %v10998
      %11035 = vst.msk [vmem:[#allocation4 + $0x60] sm:$0xff] %vm3761, %v11000
      %11036 = vst.msk [vmem:[#allocation4 + $0x68] sm:$0xff] %vm3761, %v11002
      %11037 = vst.msk [vmem:[#allocation4 + $0x70] sm:$0xff] %vm3761, %v11004
      %11038 = vst.msk [vmem:[#allocation4 + $0x78] sm:$0xff] %vm3761, %v11006
      %v11039 = vld [vmem:[%s3600] sm:$0xf]
      %v11040 = vld [vmem:[%s3600 + $0x4] sm:$0xf]
      %v11041 = vld [vmem:[%s3600 + $0x8] sm:$0x1]
      %v11042 = vld [vmem:[%s3600 + $0xc] sm:$0xf]
      %v11043 = vld [vmem:[%s3600 + $0x10] sm:$0xf]
      %v11044 = vld [vmem:[%s3600 + $0x14] sm:$0x1]
      %v11045 = vld [vmem:[%s3600 + $0x18] sm:$0xf]
      %v11046 = vld [vmem:[%s3600 + $0x1c] sm:$0xf]
      %v11047 = vld [vmem:[%s3600 + $0x20] sm:$0x1]
      %v11048 = vld [vmem:[%s3600 + $0x24] sm:$0xf]
      %v11049 = vld [vmem:[%s3600 + $0x28] sm:$0xf]
      %v11050 = vld [vmem:[%s3600 + $0x2c] sm:$0x1]
      %v11051 = vld [vmem:[%s3600 + $0x30] sm:$0xf]
      %v11052 = vld [vmem:[%s3600 + $0x34] sm:$0xf]
      %v11053 = vld [vmem:[%s3600 + $0x38] sm:$0x1]
      %v11054 = vld [vmem:[%s3600 + $0x3c] sm:$0xf]
      %v11055 = vld [vmem:[%s3600 + $0x40] sm:$0xf]
      %v11056 = vld [vmem:[%s3600 + $0x44] sm:$0x1]
      %v11057 = vld [vmem:[%s3600 + $0x48] sm:$0xf]
      %v11058 = vld [vmem:[%s3600 + $0x4c] sm:$0xf]
      %v11059 = vld [vmem:[%s3600 + $0x50] sm:$0x1]
      %v11060 = vld [vmem:[%s3600 + $0x54] sm:$0xf]
      %v11061 = vld [vmem:[%s3600 + $0x58] sm:$0xf]
      %v11062 = vld [vmem:[%s3600 + $0x5c] sm:$0x1]
      %v11063 = vld [vmem:[%s3600 + $0x60] sm:$0xf]
      %v11064 = vld [vmem:[%s3600 + $0x64] sm:$0xf]
      %v11065 = vld [vmem:[%s3600 + $0x68] sm:$0x1]
      %v11066 = vld [vmem:[%s3600 + $0x6c] sm:$0xf]
      %v11067 = vld [vmem:[%s3600 + $0x70] sm:$0xf]
      %v11068 = vld [vmem:[%s3600 + $0x74] sm:$0x1]
      %v11069 = vld [vmem:[%s3600 + $0x78] sm:$0xf]
      %v11070 = vld [vmem:[%s3600 + $0x7c] sm:$0xf]
      %v11071 = vld [vmem:[%s3600 + $0x80] sm:$0x1]
      %v11072 = vld [vmem:[%s3600 + $0x84] sm:$0xf]
      %v11073 = vld [vmem:[%s3600 + $0x88] sm:$0xf]
      %v11074 = vld [vmem:[%s3600 + $0x8c] sm:$0x1]
      %v11075 = vld [vmem:[%s3600 + $0x90] sm:$0xf]
      %v11076 = vld [vmem:[%s3600 + $0x94] sm:$0xf]
      %v11077 = vld [vmem:[%s3600 + $0x98] sm:$0x1]
      %v11078 = vld [vmem:[%s3600 + $0x9c] sm:$0xf]
      %v11079 = vld [vmem:[%s3600 + $0xa0] sm:$0xf]
      %v11080 = vld [vmem:[%s3600 + $0xa4] sm:$0x1]
      %v11081 = vld [vmem:[%s3600 + $0xa8] sm:$0xf]
      %v11082 = vld [vmem:[%s3600 + $0xac] sm:$0xf]
      %v11083 = vld [vmem:[%s3600 + $0xb0] sm:$0x1]
      %v11084 = vld [vmem:[%s3600 + $0xb4] sm:$0xf]
      %v11085 = vld [vmem:[%s3600 + $0xb8] sm:$0xf]
      %v11086 = vld [vmem:[%s3600 + $0xbc] sm:$0x1]
      %v11088 = vshrl.u32 %v11039, 16
      %v11090 = vrot.slane %v11088, 4
      %v11091 = vshll.u32 %v11039, 16
      %v11093 = vrot.slane %v11091, 5
      %v11094 = vor.u32 %v11090, %v11093
      %v11095 = vrot.slane %v11094, 4
      %v11097 = vshll.u32 %v11040, 16
      %v11099 = vrot.slane %v11097, 5
      %v11100 = vsel %vm1735, %v11095, %v11099
      %v11101 = vshrl.u32 %v11040, 16
      %v11103 = vrot.slane %v11101, 4
      %v11104 = vor.u32 %v11103, %v11099
      %v11105 = vrot.slane %v11104, 4
      %v11107 = vshll.u32 %v11041, 16
      %v11109 = vrot.slane %v11107, 5
      %v11110 = vsel %vm1735, %v11105, %v11109
      %v11112 = vshrl.u32 %v11042, 16
      %v11114 = vrot.slane %v11112, 4
      %v11115 = vshll.u32 %v11042, 16
      %v11117 = vrot.slane %v11115, 5
      %v11118 = vor.u32 %v11114, %v11117
      %v11119 = vrot.slane %v11118, 4
      %v11121 = vshll.u32 %v11043, 16
      %v11123 = vrot.slane %v11121, 5
      %v11124 = vsel %vm1735, %v11119, %v11123
      %v11125 = vshrl.u32 %v11043, 16
      %v11127 = vrot.slane %v11125, 4
      %v11128 = vor.u32 %v11127, %v11123
      %v11129 = vrot.slane %v11128, 4
      %v11131 = vshll.u32 %v11044, 16
      %v11133 = vrot.slane %v11131, 5
      %v11134 = vsel %vm1735, %v11129, %v11133
      %v11136 = vshrl.u32 %v11045, 16
      %v11138 = vrot.slane %v11136, 4
      %v11139 = vshll.u32 %v11045, 16
      %v11141 = vrot.slane %v11139, 5
      %v11142 = vor.u32 %v11138, %v11141
      %v11143 = vrot.slane %v11142, 4
      %v11145 = vshll.u32 %v11046, 16
      %v11147 = vrot.slane %v11145, 5
      %v11148 = vsel %vm1735, %v11143, %v11147
      %v11149 = vshrl.u32 %v11046, 16
      %v11151 = vrot.slane %v11149, 4
      %v11152 = vor.u32 %v11151, %v11147
      %v11153 = vrot.slane %v11152, 4
      %v11155 = vshll.u32 %v11047, 16
      %v11157 = vrot.slane %v11155, 5
      %v11158 = vsel %vm1735, %v11153, %v11157
      %v11160 = vshrl.u32 %v11048, 16
      %v11162 = vrot.slane %v11160, 4
      %v11163 = vshll.u32 %v11048, 16
      %v11165 = vrot.slane %v11163, 5
      %v11166 = vor.u32 %v11162, %v11165
      %v11167 = vrot.slane %v11166, 4
      %v11169 = vshll.u32 %v11049, 16
      %v11171 = vrot.slane %v11169, 5
      %v11172 = vsel %vm1735, %v11167, %v11171
      %v11173 = vshrl.u32 %v11049, 16
      %v11175 = vrot.slane %v11173, 4
      %v11176 = vor.u32 %v11175, %v11171
      %v11177 = vrot.slane %v11176, 4
      %v11179 = vshll.u32 %v11050, 16
      %v11181 = vrot.slane %v11179, 5
      %v11182 = vsel %vm1735, %v11177, %v11181
      %v11184 = vshrl.u32 %v11051, 16
      %v11186 = vrot.slane %v11184, 4
      %v11187 = vshll.u32 %v11051, 16
      %v11189 = vrot.slane %v11187, 5
      %v11190 = vor.u32 %v11186, %v11189
      %v11191 = vrot.slane %v11190, 4
      %v11193 = vshll.u32 %v11052, 16
      %v11195 = vrot.slane %v11193, 5
      %v11196 = vsel %vm1735, %v11191, %v11195
      %v11197 = vshrl.u32 %v11052, 16
      %v11199 = vrot.slane %v11197, 4
      %v11200 = vor.u32 %v11199, %v11195
      %v11201 = vrot.slane %v11200, 4
      %v11203 = vshll.u32 %v11053, 16
      %v11205 = vrot.slane %v11203, 5
      %v11206 = vsel %vm1735, %v11201, %v11205
      %v11208 = vshrl.u32 %v11054, 16
      %v11210 = vrot.slane %v11208, 4
      %v11211 = vshll.u32 %v11054, 16
      %v11213 = vrot.slane %v11211, 5
      %v11214 = vor.u32 %v11210, %v11213
      %v11215 = vrot.slane %v11214, 4
      %v11217 = vshll.u32 %v11055, 16
      %v11219 = vrot.slane %v11217, 5
      %v11220 = vsel %vm1735, %v11215, %v11219
      %v11221 = vshrl.u32 %v11055, 16
      %v11223 = vrot.slane %v11221, 4
      %v11224 = vor.u32 %v11223, %v11219
      %v11225 = vrot.slane %v11224, 4
      %v11227 = vshll.u32 %v11056, 16
      %v11229 = vrot.slane %v11227, 5
      %v11230 = vsel %vm1735, %v11225, %v11229
      %v11232 = vshrl.u32 %v11057, 16
      %v11234 = vrot.slane %v11232, 4
      %v11235 = vshll.u32 %v11057, 16
      %v11237 = vrot.slane %v11235, 5
      %v11238 = vor.u32 %v11234, %v11237
      %v11239 = vrot.slane %v11238, 4
      %v11241 = vshll.u32 %v11058, 16
      %v11243 = vrot.slane %v11241, 5
      %v11244 = vsel %vm1735, %v11239, %v11243
      %v11245 = vshrl.u32 %v11058, 16
      %v11247 = vrot.slane %v11245, 4
      %v11248 = vor.u32 %v11247, %v11243
      %v11249 = vrot.slane %v11248, 4
      %v11251 = vshll.u32 %v11059, 16
      %v11253 = vrot.slane %v11251, 5
      %v11254 = vsel %vm1735, %v11249, %v11253
      %v11256 = vshrl.u32 %v11060, 16
      %v11258 = vrot.slane %v11256, 4
      %v11259 = vshll.u32 %v11060, 16
      %v11261 = vrot.slane %v11259, 5
      %v11262 = vor.u32 %v11258, %v11261
      %v11263 = vrot.slane %v11262, 4
      %v11265 = vshll.u32 %v11061, 16
      %v11267 = vrot.slane %v11265, 5
      %v11268 = vsel %vm1735, %v11263, %v11267
      %v11269 = vshrl.u32 %v11061, 16
      %v11271 = vrot.slane %v11269, 4
      %v11272 = vor.u32 %v11271, %v11267
      %v11273 = vrot.slane %v11272, 4
      %v11275 = vshll.u32 %v11062, 16
      %v11277 = vrot.slane %v11275, 5
      %v11278 = vsel %vm1735, %v11273, %v11277
      %v11280 = vshrl.u32 %v11063, 16
      %v11282 = vrot.slane %v11280, 4
      %v11283 = vshll.u32 %v11063, 16
      %v11285 = vrot.slane %v11283, 5
      %v11286 = vor.u32 %v11282, %v11285
      %v11287 = vrot.slane %v11286, 4
      %v11289 = vshll.u32 %v11064, 16
      %v11291 = vrot.slane %v11289, 5
      %v11292 = vsel %vm1735, %v11287, %v11291
      %v11293 = vshrl.u32 %v11064, 16
      %v11295 = vrot.slane %v11293, 4
      %v11296 = vor.u32 %v11295, %v11291
      %v11297 = vrot.slane %v11296, 4
      %v11299 = vshll.u32 %v11065, 16
      %v11301 = vrot.slane %v11299, 5
      %v11302 = vsel %vm1735, %v11297, %v11301
      %v11304 = vshrl.u32 %v11066, 16
      %v11306 = vrot.slane %v11304, 4
      %v11307 = vshll.u32 %v11066, 16
      %v11309 = vrot.slane %v11307, 5
      %v11310 = vor.u32 %v11306, %v11309
      %v11311 = vrot.slane %v11310, 4
      %v11313 = vshll.u32 %v11067, 16
      %v11315 = vrot.slane %v11313, 5
      %v11316 = vsel %vm1735, %v11311, %v11315
      %v11317 = vshrl.u32 %v11067, 16
      %v11319 = vrot.slane %v11317, 4
      %v11320 = vor.u32 %v11319, %v11315
      %v11321 = vrot.slane %v11320, 4
      %v11323 = vshll.u32 %v11068, 16
      %v11325 = vrot.slane %v11323, 5
      %v11326 = vsel %vm1735, %v11321, %v11325
      %v11328 = vshrl.u32 %v11069, 16
      %v11330 = vrot.slane %v11328, 4
      %v11331 = vshll.u32 %v11069, 16
      %v11333 = vrot.slane %v11331, 5
      %v11334 = vor.u32 %v11330, %v11333
      %v11335 = vrot.slane %v11334, 4
      %v11337 = vshll.u32 %v11070, 16
      %v11339 = vrot.slane %v11337, 5
      %v11340 = vsel %vm1735, %v11335, %v11339
      %v11341 = vshrl.u32 %v11070, 16
      %v11343 = vrot.slane %v11341, 4
      %v11344 = vor.u32 %v11343, %v11339
      %v11345 = vrot.slane %v11344, 4
      %v11347 = vshll.u32 %v11071, 16
      %v11349 = vrot.slane %v11347, 5
      %v11350 = vsel %vm1735, %v11345, %v11349
      %v11352 = vshrl.u32 %v11072, 16
      %v11354 = vrot.slane %v11352, 4
      %v11355 = vshll.u32 %v11072, 16
      %v11357 = vrot.slane %v11355, 5
      %v11358 = vor.u32 %v11354, %v11357
      %v11359 = vrot.slane %v11358, 4
      %v11361 = vshll.u32 %v11073, 16
      %v11363 = vrot.slane %v11361, 5
      %v11364 = vsel %vm1735, %v11359, %v11363
      %v11365 = vshrl.u32 %v11073, 16
      %v11367 = vrot.slane %v11365, 4
      %v11368 = vor.u32 %v11367, %v11363
      %v11369 = vrot.slane %v11368, 4
      %v11371 = vshll.u32 %v11074, 16
      %v11373 = vrot.slane %v11371, 5
      %v11374 = vsel %vm1735, %v11369, %v11373
      %v11376 = vshrl.u32 %v11075, 16
      %v11378 = vrot.slane %v11376, 4
      %v11379 = vshll.u32 %v11075, 16
      %v11381 = vrot.slane %v11379, 5
      %v11382 = vor.u32 %v11378, %v11381
      %v11383 = vrot.slane %v11382, 4
      %v11385 = vshll.u32 %v11076, 16
      %v11387 = vrot.slane %v11385, 5
      %v11388 = vsel %vm1735, %v11383, %v11387
      %v11389 = vshrl.u32 %v11076, 16
      %v11391 = vrot.slane %v11389, 4
      %v11392 = vor.u32 %v11391, %v11387
      %v11393 = vrot.slane %v11392, 4
      %v11395 = vshll.u32 %v11077, 16
      %v11397 = vrot.slane %v11395, 5
      %v11398 = vsel %vm1735, %v11393, %v11397
      %v11400 = vshrl.u32 %v11078, 16
      %v11402 = vrot.slane %v11400, 4
      %v11403 = vshll.u32 %v11078, 16
      %v11405 = vrot.slane %v11403, 5
      %v11406 = vor.u32 %v11402, %v11405
      %v11407 = vrot.slane %v11406, 4
      %v11409 = vshll.u32 %v11079, 16
      %v11411 = vrot.slane %v11409, 5
      %v11412 = vsel %vm1735, %v11407, %v11411
      %v11413 = vshrl.u32 %v11079, 16
      %v11415 = vrot.slane %v11413, 4
      %v11416 = vor.u32 %v11415, %v11411
      %v11417 = vrot.slane %v11416, 4
      %v11419 = vshll.u32 %v11080, 16
      %v11421 = vrot.slane %v11419, 5
      %v11422 = vsel %vm1735, %v11417, %v11421
      %v11424 = vshrl.u32 %v11081, 16
      %v11426 = vrot.slane %v11424, 4
      %v11427 = vshll.u32 %v11081, 16
      %v11429 = vrot.slane %v11427, 5
      %v11430 = vor.u32 %v11426, %v11429
      %v11431 = vrot.slane %v11430, 4
      %v11433 = vshll.u32 %v11082, 16
      %v11435 = vrot.slane %v11433, 5
      %v11436 = vsel %vm1735, %v11431, %v11435
      %v11437 = vshrl.u32 %v11082, 16
      %v11439 = vrot.slane %v11437, 4
      %v11440 = vor.u32 %v11439, %v11435
      %v11441 = vrot.slane %v11440, 4
      %v11443 = vshll.u32 %v11083, 16
      %v11445 = vrot.slane %v11443, 5
      %v11446 = vsel %vm1735, %v11441, %v11445
      %v11448 = vshrl.u32 %v11084, 16
      %v11450 = vrot.slane %v11448, 4
      %v11451 = vshll.u32 %v11084, 16
      %v11453 = vrot.slane %v11451, 5
      %v11454 = vor.u32 %v11450, %v11453
      %v11455 = vrot.slane %v11454, 4
      %v11457 = vshll.u32 %v11085, 16
      %v11459 = vrot.slane %v11457, 5
      %v11460 = vsel %vm1735, %v11455, %v11459
      %v11461 = vshrl.u32 %v11085, 16
      %v11463 = vrot.slane %v11461, 4
      %v11464 = vor.u32 %v11463, %v11459
      %v11465 = vrot.slane %v11464, 4
      %v11467 = vshll.u32 %v11086, 16
      %v11469 = vrot.slane %v11467, 5
      %v11470 = vsel %vm1735, %v11465, %v11469
      %v11471 = vunpack.c.l.b16 %v11100
      %v11472 = vunpack.c.l.b16 %v11110
      %v11473 = vunpack.c.l.b16 %v11124
      %v11474 = vunpack.c.l.b16 %v11134
      %v11475 = vunpack.c.l.b16 %v11148
      %v11476 = vunpack.c.l.b16 %v11158
      %v11477 = vunpack.c.l.b16 %v11172
      %v11478 = vunpack.c.l.b16 %v11182
      %v11479 = vunpack.c.l.b16 %v11196
      %v11480 = vunpack.c.l.b16 %v11206
      %v11481 = vunpack.c.l.b16 %v11220
      %v11482 = vunpack.c.l.b16 %v11230
      %v11483 = vunpack.c.l.b16 %v11244
      %v11484 = vunpack.c.l.b16 %v11254
      %v11485 = vunpack.c.l.b16 %v11268
      %v11486 = vunpack.c.l.b16 %v11278
      %v11487 = vunpack.c.l.b16 %v11292
      %v11488 = vunpack.c.l.b16 %v11302
      %v11489 = vunpack.c.l.b16 %v11316
      %v11490 = vunpack.c.l.b16 %v11326
      %v11491 = vunpack.c.l.b16 %v11340
      %v11492 = vunpack.c.l.b16 %v11350
      %v11493 = vunpack.c.l.b16 %v11364
      %v11494 = vunpack.c.l.b16 %v11374
      %v11495 = vunpack.c.l.b16 %v11388
      %v11496 = vunpack.c.l.b16 %v11398
      %v11497 = vunpack.c.l.b16 %v11412
      %v11498 = vunpack.c.l.b16 %v11422
      %v11499 = vunpack.c.l.b16 %v11436
      %v11500 = vunpack.c.l.b16 %v11446
      %v11501 = vunpack.c.l.b16 %v11460
      %v11502 = vunpack.c.l.b16 %v11470
      %v11503 = vpack.c.b16 %v11472, %v11471
      %v11504 = vpack.c.b16 %v11474, %v11473
      %v11505 = vpack.c.b16 %v11476, %v11475
      %v11506 = vpack.c.b16 %v11478, %v11477
      %v11507 = vpack.c.b16 %v11480, %v11479
      %v11508 = vpack.c.b16 %v11482, %v11481
      %v11509 = vpack.c.b16 %v11484, %v11483
      %v11510 = vpack.c.b16 %v11486, %v11485
      %v11511 = vpack.c.b16 %v11488, %v11487
      %v11512 = vpack.c.b16 %v11490, %v11489
      %v11513 = vpack.c.b16 %v11492, %v11491
      %v11514 = vpack.c.b16 %v11494, %v11493
      %v11515 = vpack.c.b16 %v11496, %v11495
      %v11516 = vpack.c.b16 %v11498, %v11497
      %v11517 = vpack.c.b16 %v11500, %v11499
      %v11518 = vpack.c.b16 %v11502, %v11501
      %11519 = vrot.lane.b32.xlu0 %v11503, 56
      %v11520 = vpop.permute.xlu0 %11519
      %11521 = vrot.lane.b32.xlu0 %v11504, 56
      %v11522 = vpop.permute.xlu0 %11521
      %11523 = vrot.lane.b32.xlu0 %v11505, 56
      %v11524 = vpop.permute.xlu0 %11523
      %11525 = vrot.lane.b32.xlu0 %v11506, 56
      %v11526 = vpop.permute.xlu0 %11525
      %11527 = vrot.lane.b32.xlu0 %v11507, 56
      %v11528 = vpop.permute.xlu0 %11527
      %11529 = vrot.lane.b32.xlu0 %v11508, 56
      %v11530 = vpop.permute.xlu0 %11529
      %11531 = vrot.lane.b32.xlu0 %v11509, 56
      %v11532 = vpop.permute.xlu0 %11531
      %11533 = vrot.lane.b32.xlu0 %v11510, 56
      %v11534 = vpop.permute.xlu0 %11533
      %11535 = vrot.lane.b32.xlu0 %v11511, 56
      %v11536 = vpop.permute.xlu0 %11535
      %11537 = vrot.lane.b32.xlu0 %v11512, 56
      %v11538 = vpop.permute.xlu0 %11537
      %11539 = vrot.lane.b32.xlu0 %v11513, 56
      %v11540 = vpop.permute.xlu0 %11539
      %11541 = vrot.lane.b32.xlu0 %v11514, 56
      %v11542 = vpop.permute.xlu0 %11541
      %11543 = vrot.lane.b32.xlu0 %v11515, 56
      %v11544 = vpop.permute.xlu0 %11543
      %11545 = vrot.lane.b32.xlu0 %v11516, 56
      %v11546 = vpop.permute.xlu0 %11545
      %11547 = vrot.lane.b32.xlu0 %v11517, 56
      %v11548 = vpop.permute.xlu0 %11547
      %11549 = vrot.lane.b32.xlu0 %v11518, 56
      %v11550 = vpop.permute.xlu0 %11549
      %11567 = vst.msk [vmem:[#allocation4] sm:$0xff] %vm4306, %v11520
      %11568 = vst.msk [vmem:[#allocation4 + $0x8] sm:$0xff] %vm4306, %v11522
      %11569 = vst.msk [vmem:[#allocation4 + $0x10] sm:$0xff] %vm4306, %v11524
      %11570 = vst.msk [vmem:[#allocation4 + $0x18] sm:$0xff] %vm4306, %v11526
      %11571 = vst.msk [vmem:[#allocation4 + $0x20] sm:$0xff] %vm4306, %v11528
      %11572 = vst.msk [vmem:[#allocation4 + $0x28] sm:$0xff] %vm4306, %v11530
      %11573 = vst.msk [vmem:[#allocation4 + $0x30] sm:$0xff] %vm4306, %v11532
      %11574 = vst.msk [vmem:[#allocation4 + $0x38] sm:$0xff] %vm4306, %v11534
      %11575 = vst.msk [vmem:[#allocation4 + $0x40] sm:$0xff] %vm4306, %v11536
      %11576 = vst.msk [vmem:[#allocation4 + $0x48] sm:$0xff] %vm4306, %v11538
      %11577 = vst.msk [vmem:[#allocation4 + $0x50] sm:$0xff] %vm4306, %v11540
      %11578 = vst.msk [vmem:[#allocation4 + $0x58] sm:$0xff] %vm4306, %v11542
      %11579 = vst.msk [vmem:[#allocation4 + $0x60] sm:$0xff] %vm4306, %v11544
      %11580 = vst.msk [vmem:[#allocation4 + $0x68] sm:$0xff] %vm4306, %v11546
      %11581 = vst.msk [vmem:[#allocation4 + $0x70] sm:$0xff] %vm4306, %v11548
      %11582 = vst.msk [vmem:[#allocation4 + $0x78] sm:$0xff] %vm4306, %v11550
      %v11583 = vld [vmem:[%s3600] sm:$0xe]
      %v11584 = vld [vmem:[%s3600 + $0x4] sm:$0xf]
      %v11585 = vld [vmem:[%s3600 + $0x8] sm:$0x1]
      %v11586 = vld [vmem:[%s3600 + $0xc] sm:$0xe]
      %v11587 = vld [vmem:[%s3600 + $0x10] sm:$0xf]
      %v11588 = vld [vmem:[%s3600 + $0x14] sm:$0x1]
      %v11589 = vld [vmem:[%s3600 + $0x18] sm:$0xe]
      %v11590 = vld [vmem:[%s3600 + $0x1c] sm:$0xf]
      %v11591 = vld [vmem:[%s3600 + $0x20] sm:$0x1]
      %v11592 = vld [vmem:[%s3600 + $0x24] sm:$0xe]
      %v11593 = vld [vmem:[%s3600 + $0x28] sm:$0xf]
      %v11594 = vld [vmem:[%s3600 + $0x2c] sm:$0x1]
      %v11595 = vld [vmem:[%s3600 + $0x30] sm:$0xe]
      %v11596 = vld [vmem:[%s3600 + $0x34] sm:$0xf]
      %v11597 = vld [vmem:[%s3600 + $0x38] sm:$0x1]
      %v11598 = vld [vmem:[%s3600 + $0x3c] sm:$0xe]
      %v11599 = vld [vmem:[%s3600 + $0x40] sm:$0xf]
      %v11600 = vld [vmem:[%s3600 + $0x44] sm:$0x1]
      %v11601 = vld [vmem:[%s3600 + $0x48] sm:$0xe]
      %v11602 = vld [vmem:[%s3600 + $0x4c] sm:$0xf]
      %v11603 = vld [vmem:[%s3600 + $0x50] sm:$0x1]
      %v11604 = vld [vmem:[%s3600 + $0x54] sm:$0xe]
      %v11605 = vld [vmem:[%s3600 + $0x58] sm:$0xf]
      %v11606 = vld [vmem:[%s3600 + $0x5c] sm:$0x1]
      %v11607 = vld [vmem:[%s3600 + $0x60] sm:$0xe]
      %v11608 = vld [vmem:[%s3600 + $0x64] sm:$0xf]
      %v11609 = vld [vmem:[%s3600 + $0x68] sm:$0x1]
      %v11610 = vld [vmem:[%s3600 + $0x6c] sm:$0xe]
      %v11611 = vld [vmem:[%s3600 + $0x70] sm:$0xf]
      %v11612 = vld [vmem:[%s3600 + $0x74] sm:$0x1]
      %v11613 = vld [vmem:[%s3600 + $0x78] sm:$0xe]
      %v11614 = vld [vmem:[%s3600 + $0x7c] sm:$0xf]
      %v11615 = vld [vmem:[%s3600 + $0x80] sm:$0x1]
      %v11616 = vld [vmem:[%s3600 + $0x84] sm:$0xe]
      %v11617 = vld [vmem:[%s3600 + $0x88] sm:$0xf]
      %v11618 = vld [vmem:[%s3600 + $0x8c] sm:$0x1]
      %v11619 = vld [vmem:[%s3600 + $0x90] sm:$0xe]
      %v11620 = vld [vmem:[%s3600 + $0x94] sm:$0xf]
      %v11621 = vld [vmem:[%s3600 + $0x98] sm:$0x1]
      %v11622 = vld [vmem:[%s3600 + $0x9c] sm:$0xe]
      %v11623 = vld [vmem:[%s3600 + $0xa0] sm:$0xf]
      %v11624 = vld [vmem:[%s3600 + $0xa4] sm:$0x1]
      %v11625 = vld [vmem:[%s3600 + $0xa8] sm:$0xe]
      %v11626 = vld [vmem:[%s3600 + $0xac] sm:$0xf]
      %v11627 = vld [vmem:[%s3600 + $0xb0] sm:$0x1]
      %v11628 = vld [vmem:[%s3600 + $0xb4] sm:$0xe]
      %v11629 = vld [vmem:[%s3600 + $0xb8] sm:$0xf]
      %v11630 = vld [vmem:[%s3600 + $0xbc] sm:$0x1]
      %v11679 = vrot.slane %v11583, 5
      %v11680 = vrot.slane %v11679, 4
      %v11681 = vrot.slane %v11584, 5
      %v11682 = vsel %vm2331, %v11680, %v11681
      %v11683 = vrot.slane %v11681, 4
      %v11684 = vrot.slane %v11585, 5
      %v11685 = vsel %vm2331, %v11683, %v11684
      %v11686 = vrot.slane %v11586, 5
      %v11687 = vrot.slane %v11686, 4
      %v11688 = vrot.slane %v11587, 5
      %v11689 = vsel %vm2331, %v11687, %v11688
      %v11690 = vrot.slane %v11688, 4
      %v11691 = vrot.slane %v11588, 5
      %v11692 = vsel %vm2331, %v11690, %v11691
      %v11693 = vrot.slane %v11589, 5
      %v11694 = vrot.slane %v11693, 4
      %v11695 = vrot.slane %v11590, 5
      %v11696 = vsel %vm2331, %v11694, %v11695
      %v11697 = vrot.slane %v11695, 4
      %v11698 = vrot.slane %v11591, 5
      %v11699 = vsel %vm2331, %v11697, %v11698
      %v11700 = vrot.slane %v11592, 5
      %v11701 = vrot.slane %v11700, 4
      %v11702 = vrot.slane %v11593, 5
      %v11703 = vsel %vm2331, %v11701, %v11702
      %v11704 = vrot.slane %v11702, 4
      %v11705 = vrot.slane %v11594, 5
      %v11706 = vsel %vm2331, %v11704, %v11705
      %v11707 = vrot.slane %v11595, 5
      %v11708 = vrot.slane %v11707, 4
      %v11709 = vrot.slane %v11596, 5
      %v11710 = vsel %vm2331, %v11708, %v11709
      %v11711 = vrot.slane %v11709, 4
      %v11712 = vrot.slane %v11597, 5
      %v11713 = vsel %vm2331, %v11711, %v11712
      %v11714 = vrot.slane %v11598, 5
      %v11715 = vrot.slane %v11714, 4
      %v11716 = vrot.slane %v11599, 5
      %v11717 = vsel %vm2331, %v11715, %v11716
      %v11718 = vrot.slane %v11716, 4
      %v11719 = vrot.slane %v11600, 5
      %v11720 = vsel %vm2331, %v11718, %v11719
      %v11721 = vrot.slane %v11601, 5
      %v11722 = vrot.slane %v11721, 4
      %v11723 = vrot.slane %v11602, 5
      %v11724 = vsel %vm2331, %v11722, %v11723
      %v11725 = vrot.slane %v11723, 4
      %v11726 = vrot.slane %v11603, 5
      %v11727 = vsel %vm2331, %v11725, %v11726
      %v11728 = vrot.slane %v11604, 5
      %v11729 = vrot.slane %v11728, 4
      %v11730 = vrot.slane %v11605, 5
      %v11731 = vsel %vm2331, %v11729, %v11730
      %v11732 = vrot.slane %v11730, 4
      %v11733 = vrot.slane %v11606, 5
      %v11734 = vsel %vm2331, %v11732, %v11733
      %v11735 = vrot.slane %v11607, 5
      %v11736 = vrot.slane %v11735, 4
      %v11737 = vrot.slane %v11608, 5
      %v11738 = vsel %vm2331, %v11736, %v11737
      %v11739 = vrot.slane %v11737, 4
      %v11740 = vrot.slane %v11609, 5
      %v11741 = vsel %vm2331, %v11739, %v11740
      %v11742 = vrot.slane %v11610, 5
      %v11743 = vrot.slane %v11742, 4
      %v11744 = vrot.slane %v11611, 5
      %v11745 = vsel %vm2331, %v11743, %v11744
      %v11746 = vrot.slane %v11744, 4
      %v11747 = vrot.slane %v11612, 5
      %v11748 = vsel %vm2331, %v11746, %v11747
      %v11749 = vrot.slane %v11613, 5
      %v11750 = vrot.slane %v11749, 4
      %v11751 = vrot.slane %v11614, 5
      %v11752 = vsel %vm2331, %v11750, %v11751
      %v11753 = vrot.slane %v11751, 4
      %v11754 = vrot.slane %v11615, 5
      %v11755 = vsel %vm2331, %v11753, %v11754
      %v11756 = vrot.slane %v11616, 5
      %v11757 = vrot.slane %v11756, 4
      %v11758 = vrot.slane %v11617, 5
      %v11759 = vsel %vm2331, %v11757, %v11758
      %v11760 = vrot.slane %v11758, 4
      %v11761 = vrot.slane %v11618, 5
      %v11762 = vsel %vm2331, %v11760, %v11761
      %v11763 = vrot.slane %v11619, 5
      %v11764 = vrot.slane %v11763, 4
      %v11765 = vrot.slane %v11620, 5
      %v11766 = vsel %vm2331, %v11764, %v11765
      %v11767 = vrot.slane %v11765, 4
      %v11768 = vrot.slane %v11621, 5
      %v11769 = vsel %vm2331, %v11767, %v11768
      %v11770 = vrot.slane %v11622, 5
      %v11771 = vrot.slane %v11770, 4
      %v11772 = vrot.slane %v11623, 5
      %v11773 = vsel %vm2331, %v11771, %v11772
      %v11774 = vrot.slane %v11772, 4
      %v11775 = vrot.slane %v11624, 5
      %v11776 = vsel %vm2331, %v11774, %v11775
      %v11777 = vrot.slane %v11625, 5
      %v11778 = vrot.slane %v11777, 4
      %v11779 = vrot.slane %v11626, 5
      %v11780 = vsel %vm2331, %v11778, %v11779
      %v11781 = vrot.slane %v11779, 4
      %v11782 = vrot.slane %v11627, 5
      %v11783 = vsel %vm2331, %v11781, %v11782
      %v11784 = vrot.slane %v11628, 5
      %v11785 = vrot.slane %v11784, 4
      %v11786 = vrot.slane %v11629, 5
      %v11787 = vsel %vm2331, %v11785, %v11786
      %v11788 = vrot.slane %v11786, 4
      %v11789 = vrot.slane %v11630, 5
      %v11790 = vsel %vm2331, %v11788, %v11789
      %v11791 = vunpack.c.l.b16 %v11682
      %v11792 = vunpack.c.l.b16 %v11685
      %v11793 = vunpack.c.l.b16 %v11689
      %v11794 = vunpack.c.l.b16 %v11692
      %v11795 = vunpack.c.l.b16 %v11696
      %v11796 = vunpack.c.l.b16 %v11699
      %v11797 = vunpack.c.l.b16 %v11703
      %v11798 = vunpack.c.l.b16 %v11706
      %v11799 = vunpack.c.l.b16 %v11710
      %v11800 = vunpack.c.l.b16 %v11713
      %v11801 = vunpack.c.l.b16 %v11717
      %v11802 = vunpack.c.l.b16 %v11720
      %v11803 = vunpack.c.l.b16 %v11724
      %v11804 = vunpack.c.l.b16 %v11727
      %v11805 = vunpack.c.l.b16 %v11731
      %v11806 = vunpack.c.l.b16 %v11734
      %v11807 = vunpack.c.l.b16 %v11738
      %v11808 = vunpack.c.l.b16 %v11741
      %v11809 = vunpack.c.l.b16 %v11745
      %v11810 = vunpack.c.l.b16 %v11748
      %v11811 = vunpack.c.l.b16 %v11752
      %v11812 = vunpack.c.l.b16 %v11755
      %v11813 = vunpack.c.l.b16 %v11759
      %v11814 = vunpack.c.l.b16 %v11762
      %v11815 = vunpack.c.l.b16 %v11766
      %v11816 = vunpack.c.l.b16 %v11769
      %v11817 = vunpack.c.l.b16 %v11773
      %v11818 = vunpack.c.l.b16 %v11776
      %v11819 = vunpack.c.l.b16 %v11780
      %v11820 = vunpack.c.l.b16 %v11783
      %v11821 = vunpack.c.l.b16 %v11787
      %v11822 = vunpack.c.l.b16 %v11790
      %v11823 = vpack.c.b16 %v11792, %v11791
      %v11824 = vpack.c.b16 %v11794, %v11793
      %v11825 = vpack.c.b16 %v11796, %v11795
      %v11826 = vpack.c.b16 %v11798, %v11797
      %v11827 = vpack.c.b16 %v11800, %v11799
      %v11828 = vpack.c.b16 %v11802, %v11801
      %v11829 = vpack.c.b16 %v11804, %v11803
      %v11830 = vpack.c.b16 %v11806, %v11805
      %v11831 = vpack.c.b16 %v11808, %v11807
      %v11832 = vpack.c.b16 %v11810, %v11809
      %v11833 = vpack.c.b16 %v11812, %v11811
      %v11834 = vpack.c.b16 %v11814, %v11813
      %v11835 = vpack.c.b16 %v11816, %v11815
      %v11836 = vpack.c.b16 %v11818, %v11817
      %v11837 = vpack.c.b16 %v11820, %v11819
      %v11838 = vpack.c.b16 %v11822, %v11821
      %11839 = vrot.lane.b32.xlu0 %v11823, 64
      %v11840 = vpop.permute.xlu0 %11839
      %11841 = vrot.lane.b32.xlu0 %v11824, 64
      %v11842 = vpop.permute.xlu0 %11841
      %11843 = vrot.lane.b32.xlu0 %v11825, 64
      %v11844 = vpop.permute.xlu0 %11843
      %11845 = vrot.lane.b32.xlu0 %v11826, 64
      %v11846 = vpop.permute.xlu0 %11845
      %11847 = vrot.lane.b32.xlu0 %v11827, 64
      %v11848 = vpop.permute.xlu0 %11847
      %11849 = vrot.lane.b32.xlu0 %v11828, 64
      %v11850 = vpop.permute.xlu0 %11849
      %11851 = vrot.lane.b32.xlu0 %v11829, 64
      %v11852 = vpop.permute.xlu0 %11851
      %11853 = vrot.lane.b32.xlu0 %v11830, 64
      %v11854 = vpop.permute.xlu0 %11853
      %11855 = vrot.lane.b32.xlu0 %v11831, 64
      %v11856 = vpop.permute.xlu0 %11855
      %11857 = vrot.lane.b32.xlu0 %v11832, 64
      %v11858 = vpop.permute.xlu0 %11857
      %11859 = vrot.lane.b32.xlu0 %v11833, 64
      %v11860 = vpop.permute.xlu0 %11859
      %11861 = vrot.lane.b32.xlu0 %v11834, 64
      %v11862 = vpop.permute.xlu0 %11861
      %11863 = vrot.lane.b32.xlu0 %v11835, 64
      %v11864 = vpop.permute.xlu0 %11863
      %11865 = vrot.lane.b32.xlu0 %v11836, 64
      %v11866 = vpop.permute.xlu0 %11865
      %11867 = vrot.lane.b32.xlu0 %v11837, 64
      %v11868 = vpop.permute.xlu0 %11867
      %11869 = vrot.lane.b32.xlu0 %v11838, 64
      %v11870 = vpop.permute.xlu0 %11869
      %11887 = vst.msk [vmem:[#allocation4] sm:$0xff] %vm4627, %v11840
      %11888 = vst.msk [vmem:[#allocation4 + $0x8] sm:$0xff] %vm4627, %v11842
      %11889 = vst.msk [vmem:[#allocation4 + $0x10] sm:$0xff] %vm4627, %v11844
      %11890 = vst.msk [vmem:[#allocation4 + $0x18] sm:$0xff] %vm4627, %v11846
      %11891 = vst.msk [vmem:[#allocation4 + $0x20] sm:$0xff] %vm4627, %v11848
      %11892 = vst.msk [vmem:[#allocation4 + $0x28] sm:$0xff] %vm4627, %v11850
      %11893 = vst.msk [vmem:[#allocation4 + $0x30] sm:$0xff] %vm4627, %v11852
      %11894 = vst.msk [vmem:[#allocation4 + $0x38] sm:$0xff] %vm4627, %v11854
      %11895 = vst.msk [vmem:[#allocation4 + $0x40] sm:$0xff] %vm4627, %v11856
      %11896 = vst.msk [vmem:[#allocation4 + $0x48] sm:$0xff] %vm4627, %v11858
      %11897 = vst.msk [vmem:[#allocation4 + $0x50] sm:$0xff] %vm4627, %v11860
      %11898 = vst.msk [vmem:[#allocation4 + $0x58] sm:$0xff] %vm4627, %v11862
      %11899 = vst.msk [vmem:[#allocation4 + $0x60] sm:$0xff] %vm4627, %v11864
      %11900 = vst.msk [vmem:[#allocation4 + $0x68] sm:$0xff] %vm4627, %v11866
      %11901 = vst.msk [vmem:[#allocation4 + $0x70] sm:$0xff] %vm4627, %v11868
      %11902 = vst.msk [vmem:[#allocation4 + $0x78] sm:$0xff] %vm4627, %v11870
      %v11903 = vld [vmem:[#allocation4] sm:$0xff]
      %v11904 = vld [vmem:[#allocation4 + $0x8] sm:$0xff]
      %v11905 = vld [vmem:[#allocation4 + $0x10] sm:$0xff]
      %v11906 = vld [vmem:[#allocation4 + $0x18] sm:$0xff]
      %v11907 = vld [vmem:[#allocation4 + $0x20] sm:$0xff]
      %v11908 = vld [vmem:[#allocation4 + $0x28] sm:$0xff]
      %v11909 = vld [vmem:[#allocation4 + $0x30] sm:$0xff]
      %v11910 = vld [vmem:[#allocation4 + $0x38] sm:$0xff]
      %v11911 = vld [vmem:[#allocation4 + $0x40] sm:$0xff]
      %v11912 = vld [vmem:[#allocation4 + $0x48] sm:$0xff]
      %v11913 = vld [vmem:[#allocation4 + $0x50] sm:$0xff]
      %v11914 = vld [vmem:[#allocation4 + $0x58] sm:$0xff]
      %v11915 = vld [vmem:[#allocation4 + $0x60] sm:$0xff]
      %v11916 = vld [vmem:[#allocation4 + $0x68] sm:$0xff]
      %v11917 = vld [vmem:[#allocation4 + $0x70] sm:$0xff]
      %v11918 = vld [vmem:[#allocation4 + $0x78] sm:$0xff]
      %v11919 = vld [vmem:[%s5] sm:$0xf]
      %v11920 = vld [vmem:[%s5 + $0x4] sm:$0xf]
      %v11921 = vld [vmem:[%s5 + $0x8] sm:$0xf]
      %v11922 = vld [vmem:[%s5 + $0xc] sm:$0xf]
      %v11923 = vld [vmem:[%s5 + $0x10] sm:$0xf]
      %v11924 = vld [vmem:[%s5 + $0x14] sm:$0xf]
      %v11925 = vld [vmem:[%s5 + $0x18] sm:$0xf]
      %v11926 = vld [vmem:[%s5 + $0x1c] sm:$0xf]
      %v11927 = vld [vmem:[%s5 + $0x20] sm:$0xf]
      %v11937 = vunpack.c.l.b16 %v11919
      %v11938 = vunpack.c.l.b16 %v11920
      %v11939 = vunpack.c.l.b16 %v11921
      %v11940 = vunpack.c.l.b16 %v11922
      %v11941 = vunpack.c.l.b16 %v11923
      %v11942 = vunpack.c.l.b16 %v11924
      %v11943 = vunpack.c.l.b16 %v11925
      %v11944 = vunpack.c.l.b16 %v11926
      %v11945 = vunpack.c.l.b16 %v11927
      %v11946 = vpack.c.b16 %v11938, %v11937
      %v11947 = vpack.c.b16 %v11940, %v11939
      %v11948 = vpack.c.b16 %v11942, %v11941
      %v11949 = vpack.c.b16 %v11944, %v11943
      %v11950 = vpack.c.b16 %v11945, %v11945
      %v11956 = vsel %vm7785, %v11903, 0
      %v11959 = vsel %vm7785, %v11904, 0
      %v11962 = vsel %vm7785, %v11905, 0
      %v11965 = vsel %vm7785, %v11906, 0
      %v11968 = vsel %vm7785, %v11907, 0
      %v11971 = vsel %vm7785, %v11908, 0
      %v11974 = vsel %vm7785, %v11909, 0
      %v11977 = vsel %vm7785, %v11910, 0
      %v11980 = vsel %vm7785, %v11911, 0
      %v11983 = vsel %vm7785, %v11912, 0
      %v11986 = vsel %vm7785, %v11913, 0
      %v11989 = vsel %vm7785, %v11914, 0
      %v11992 = vsel %vm7785, %v11915, 0
      %v11995 = vsel %vm7785, %v11916, 0
      %v11998 = vsel %vm7785, %v11917, 0
      %v12001 = vsel %vm7785, %v11918, 0
      %v12004 = vsel %vm7834, %v11950, 0
      %12006 = vmatprep.subr.bf16.mxu0 0
      %12007 = vmatpush1.bf16.msra.mxu0 %v11946
      %12008 = vmatprep.subr.bf16.mxu0 0
      %12009 = vmatpush1.bf16.msra.mxu0 %v11947
      %12010 = vmatprep.subr.bf16.mxu0 0
      %12011 = vmatpush1.bf16.msra.mxu0 %v11948
      %12012 = vmatprep.subr.bf16.mxu0 0
      %12013 = vmatpush1.bf16.msra.mxu0 %v11949
      %12014 = vmatprep.subr.bf16.mxu0 0
      %12015 = vmatpush1.bf16.msra.mxu0 %v12004
      %12016 = vmatprep.subr.bf16.mxu0 0
      %12017 = vmatpush1.bf16.msra.mxu0 0
      %12018 = vmatprep.subr.bf16.mxu0 0
      %12019 = vmatpush1.bf16.msra.mxu0 0
      %12020 = vmatprep.subr.bf16.mxu0 0
      %12021 = vmatpush1.bf16.msra.mxu0 0
      %12022 = vmatprep.subr.bf16.mxu0 0
      %12023 = vmatpush1.bf16.msra.mxu0 0
      %12024 = vmatprep.subr.bf16.mxu0 0
      %12025 = vmatpush1.bf16.msra.mxu0 0
      %12026 = vmatprep.subr.bf16.mxu0 0
      %12027 = vmatpush1.bf16.msra.mxu0 0
      %12028 = vmatprep.subr.bf16.mxu0 0
      %12029 = vmatpush1.bf16.msra.mxu0 0
      %12030 = vmatprep.subr.bf16.mxu0 0
      %12031 = vmatpush1.bf16.msra.mxu0 0
      %12032 = vmatprep.subr.bf16.mxu0 0
      %12033 = vmatpush1.bf16.msra.mxu0 0
      %12034 = vmatprep.subr.bf16.mxu0 0
      %12035 = vmatpush1.bf16.msra.mxu0 0
      %12036 = vmatprep.subr.bf16.mxu0 0
      %12037 = vmatpush1.bf16.msra.mxu0 0
      %12038 = vmatprep.mubr.bf16.mxu0 0
      %12039 = vmatmul.mubr.bf16.gmra.mrb[0].mxu0 %v11956
      %v12040 = vpop.f32.mrb[0].mxu0
      %v12041 = vadd.f32 0.0, %v12040
      %v12042 = vpop.f32.mrb[0].mxu0
      %v12043 = vpop.f32.mrb[0].mxu0
      %v12044 = vadd.f32 0.0, %v12043
      %v12045 = vpop.f32.mrb[0].mxu0
      %12046 = vmatprep.mubr.bf16.mxu0 0
      %12047 = vmatmul.mubr.bf16.gmra.mrb[0].mxu0 %v11959
      %v12048 = vpop.f32.mrb[0].mxu0
      %v12049 = vadd.f32 0.0, %v12048
      %v12050 = vpop.f32.mrb[0].mxu0
      %v12051 = vpop.f32.mrb[0].mxu0
      %v12052 = vadd.f32 0.0, %v12051
      %v12053 = vpop.f32.mrb[0].mxu0
      %12054 = vmatprep.mubr.bf16.mxu0 0
      %12055 = vmatmul.mubr.bf16.gmra.mrb[0].mxu0 %v11962
      %v12056 = vpop.f32.mrb[0].mxu0
      %v12057 = vadd.f32 0.0, %v12056
      %v12058 = vpop.f32.mrb[0].mxu0
      %v12059 = vpop.f32.mrb[0].mxu0
      %v12060 = vadd.f32 0.0, %v12059
      %v12061 = vpop.f32.mrb[0].mxu0
      %12062 = vmatprep.mubr.bf16.mxu0 0
      %12063 = vmatmul.mubr.bf16.gmra.mrb[0].mxu0 %v11965
      %v12064 = vpop.f32.mrb[0].mxu0
      %v12065 = vadd.f32 0.0, %v12064
      %v12066 = vpop.f32.mrb[0].mxu0
      %v12067 = vpop.f32.mrb[0].mxu0
      %v12068 = vadd.f32 0.0, %v12067
      %v12069 = vpop.f32.mrb[0].mxu0
      %12070 = vmatprep.mubr.bf16.mxu0 0
      %12071 = vmatmul.mubr.bf16.gmra.mrb[0].mxu0 %v11968
      %v12072 = vpop.f32.mrb[0].mxu0
      %v12073 = vadd.f32 0.0, %v12072
      %v12074 = vpop.f32.mrb[0].mxu0
      %v12075 = vpop.f32.mrb[0].mxu0
      %v12076 = vadd.f32 0.0, %v12075
      %v12077 = vpop.f32.mrb[0].mxu0
      %12078 = vmatprep.mubr.bf16.mxu0 0
      %12079 = vmatmul.mubr.bf16.gmra.mrb[0].mxu0 %v11971
      %v12080 = vpop.f32.mrb[0].mxu0
      %v12081 = vadd.f32 0.0, %v12080
      %v12082 = vpop.f32.mrb[0].mxu0
      %v12083 = vpop.f32.mrb[0].mxu0
      %v12084 = vadd.f32 0.0, %v12083
      %v12085 = vpop.f32.mrb[0].mxu0
      %12086 = vmatprep.mubr.bf16.mxu0 0
      %12087 = vmatmul.mubr.bf16.gmra.mrb[0].mxu0 %v11974
      %v12088 = vpop.f32.mrb[0].mxu0
      %v12089 = vadd.f32 0.0, %v12088
      %v12090 = vpop.f32.mrb[0].mxu0
      %v12091 = vpop.f32.mrb[0].mxu0
      %v12092 = vadd.f32 0.0, %v12091
      %v12093 = vpop.f32.mrb[0].mxu0
      %12094 = vmatprep.mubr.bf16.mxu0 0
      %12095 = vmatmul.mubr.bf16.gmra.mrb[0].mxu0 %v11977
      %v12096 = vpop.f32.mrb[0].mxu0
      %v12097 = vadd.f32 0.0, %v12096
      %v12098 = vpop.f32.mrb[0].mxu0
      %v12099 = vpop.f32.mrb[0].mxu0
      %v12100 = vadd.f32 0.0, %v12099
      %v12101 = vpop.f32.mrb[0].mxu0
      %12102 = vmatprep.mubr.bf16.mxu0 0
      %12103 = vmatmul.mubr.bf16.gmra.mrb[0].mxu0 %v11980
      %v12104 = vpop.f32.mrb[0].mxu0
      %v12105 = vadd.f32 0.0, %v12104
      %v12106 = vpop.f32.mrb[0].mxu0
      %v12107 = vpop.f32.mrb[0].mxu0
      %v12108 = vadd.f32 0.0, %v12107
      %v12109 = vpop.f32.mrb[0].mxu0
      %12110 = vmatprep.mubr.bf16.mxu0 0
      %12111 = vmatmul.mubr.bf16.gmra.mrb[0].mxu0 %v11983
      %v12112 = vpop.f32.mrb[0].mxu0
      %v12113 = vadd.f32 0.0, %v12112
      %v12114 = vpop.f32.mrb[0].mxu0
      %v12115 = vpop.f32.mrb[0].mxu0
      %v12116 = vadd.f32 0.0, %v12115
      %v12117 = vpop.f32.mrb[0].mxu0
      %12118 = vmatprep.mubr.bf16.mxu0 0
      %12119 = vmatmul.mubr.bf16.gmra.mrb[0].mxu0 %v11986
      %v12120 = vpop.f32.mrb[0].mxu0
      %v12121 = vadd.f32 0.0, %v12120
      %v12122 = vpop.f32.mrb[0].mxu0
      %v12123 = vpop.f32.mrb[0].mxu0
      %v12124 = vadd.f32 0.0, %v12123
      %v12125 = vpop.f32.mrb[0].mxu0
      %12126 = vmatprep.mubr.bf16.mxu0 0
      %12127 = vmatmul.mubr.bf16.gmra.mrb[0].mxu0 %v11989
      %v12128 = vpop.f32.mrb[0].mxu0
      %v12129 = vadd.f32 0.0, %v12128
      %v12130 = vpop.f32.mrb[0].mxu0
      %v12131 = vpop.f32.mrb[0].mxu0
      %v12132 = vadd.f32 0.0, %v12131
      %v12133 = vpop.f32.mrb[0].mxu0
      %12134 = vmatprep.mubr.bf16.mxu0 0
      %12135 = vmatmul.mubr.bf16.gmra.mrb[0].mxu0 %v11992
      %v12136 = vpop.f32.mrb[0].mxu0
      %v12137 = vadd.f32 0.0, %v12136
      %v12138 = vpop.f32.mrb[0].mxu0
      %v12139 = vpop.f32.mrb[0].mxu0
      %v12140 = vadd.f32 0.0, %v12139
      %v12141 = vpop.f32.mrb[0].mxu0
      %12142 = vmatprep.mubr.bf16.mxu0 0
      %12143 = vmatmul.mubr.bf16.gmra.mrb[0].mxu0 %v11995
      %v12144 = vpop.f32.mrb[0].mxu0
      %v12145 = vadd.f32 0.0, %v12144
      %v12146 = vpop.f32.mrb[0].mxu0
      %v12147 = vpop.f32.mrb[0].mxu0
      %v12148 = vadd.f32 0.0, %v12147
      %v12149 = vpop.f32.mrb[0].mxu0
      %12150 = vmatprep.mubr.bf16.mxu0 0
      %12151 = vmatmul.mubr.bf16.gmra.mrb[0].mxu0 %v11998
      %v12152 = vpop.f32.mrb[0].mxu0
      %v12153 = vadd.f32 0.0, %v12152
      %v12154 = vpop.f32.mrb[0].mxu0
      %v12155 = vpop.f32.mrb[0].mxu0
      %v12156 = vadd.f32 0.0, %v12155
      %v12157 = vpop.f32.mrb[0].mxu0
      %12158 = vmatprep.mubr.bf16.mxu0 0
      %12159 = vmatmul.mubr.bf16.gmra.mrb[0].mxu0 %v12001
      %v12160 = vpop.f32.mrb[0].mxu0
      %v12161 = vadd.f32 0.0, %v12160
      %v12162 = vpop.f32.mrb[0].mxu0
      %v12163 = vpop.f32.mrb[0].mxu0
      %v12164 = vadd.f32 0.0, %v12163
      %v12165 = vpop.f32.mrb[0].mxu0
      %12166 = vdwg.mxu0
      %v12176 = vunpack.c.l.b16 %v8278
      %v12177 = vunpack.c.l.b16 %v8279
      %v12178 = vunpack.c.l.b16 %v8280
      %v12179 = vunpack.c.l.b16 %v8281
      %v12180 = vunpack.c.l.b16 %v8282
      %v12181 = vunpack.c.l.b16 %v8283
      %v12182 = vunpack.c.l.b16 %v8284
      %v12183 = vunpack.c.l.b16 %v8285
      %v12184 = vunpack.c.l.b16 %v8286
      %v12185 = vpack.c.b16 %v12177, %v12176
      %v12186 = vpack.c.b16 %v12179, %v12178
      %v12187 = vpack.c.b16 %v12181, %v12180
      %v12188 = vpack.c.b16 %v12183, %v12182
      %v12189 = vpack.c.b16 %v12184, %v12184
      %v12195 = vsel %vm7785, %v8262, 0
      %v12198 = vsel %vm7785, %v8263, 0
      %v12201 = vsel %vm7785, %v8264, 0
      %v12204 = vsel %vm7785, %v8265, 0
      %v12207 = vsel %vm7785, %v8266, 0
      %v12210 = vsel %vm7785, %v8267, 0
      %v12213 = vsel %vm7785, %v8268, 0
      %v12216 = vsel %vm7785, %v8269, 0
      %v12219 = vsel %vm7785, %v8270, 0
      %v12222 = vsel %vm7785, %v8271, 0
      %v12225 = vsel %vm7785, %v8272, 0
      %v12228 = vsel %vm7785, %v8273, 0
      %v12231 = vsel %vm7785, %v8274, 0
      %v12234 = vsel %vm7785, %v8275, 0
      %v12237 = vsel %vm7785, %v8276, 0
      %v12240 = vsel %vm7785, %v8277, 0
      %v12243 = vsel %vm7834, %v12189, 0
      %12245 = vmatprep.subr.bf16.mxu0 0
      %12246 = vmatpush1.bf16.msra.mxu0 %v12185
      %12247 = vmatprep.subr.bf16.mxu0 0
      %12248 = vmatpush1.bf16.msra.mxu0 %v12186
      %12249 = vmatprep.subr.bf16.mxu0 0
      %12250 = vmatpush1.bf16.msra.mxu0 %v12187
      %12251 = vmatprep.subr.bf16.mxu0 0
      %12252 = vmatpush1.bf16.msra.mxu0 %v12188
      %12253 = vmatprep.subr.bf16.mxu0 0
      %12254 = vmatpush1.bf16.msra.mxu0 %v12243
      %12255 = vmatprep.subr.bf16.mxu0 0
      %12256 = vmatpush1.bf16.msra.mxu0 0
      %12257 = vmatprep.subr.bf16.mxu0 0
      %12258 = vmatpush1.bf16.msra.mxu0 0
      %12259 = vmatprep.subr.bf16.mxu0 0
      %12260 = vmatpush1.bf16.msra.mxu0 0
      %12261 = vmatprep.subr.bf16.mxu0 0
      %12262 = vmatpush1.bf16.msra.mxu0 0
      %12263 = vmatprep.subr.bf16.mxu0 0
      %12264 = vmatpush1.bf16.msra.mxu0 0
      %12265 = vmatprep.subr.bf16.mxu0 0
      %12266 = vmatpush1.bf16.msra.mxu0 0
      %12267 = vmatprep.subr.bf16.mxu0 0
      %12268 = vmatpush1.bf16.msra.mxu0 0
      %12269 = vmatprep.subr.bf16.mxu0 0
      %12270 = vmatpush1.bf16.msra.mxu0 0
      %12271 = vmatprep.subr.bf16.mxu0 0
      %12272 = vmatpush1.bf16.msra.mxu0 0
      %12273 = vmatprep.subr.bf16.mxu0 0
      %12274 = vmatpush1.bf16.msra.mxu0 0
      %12275 = vmatprep.subr.bf16.mxu0 0
      %12276 = vmatpush1.bf16.msra.mxu0 0
      %12277 = vmatprep.mubr.bf16.mxu0 0
      %12278 = vmatmul.mubr.bf16.gmra.mrb[0].mxu0 %v12195
      %v12279 = vpop.f32.mrb[0].mxu0
      %v12280 = vadd.f32 %v12041, %v12279
      %v12281 = vpop.f32.mrb[0].mxu0
      %v12282 = vpop.f32.mrb[0].mxu0
      %v12283 = vadd.f32 %v12044, %v12282
      %v12284 = vpop.f32.mrb[0].mxu0
      %12285 = vmatprep.mubr.bf16.mxu0 0
      %12286 = vmatmul.mubr.bf16.gmra.mrb[0].mxu0 %v12198
      %v12287 = vpop.f32.mrb[0].mxu0
      %v12288 = vadd.f32 %v12049, %v12287
      %v12289 = vpop.f32.mrb[0].mxu0
      %v12290 = vpop.f32.mrb[0].mxu0
      %v12291 = vadd.f32 %v12052, %v12290
      %v12292 = vpop.f32.mrb[0].mxu0
      %12293 = vmatprep.mubr.bf16.mxu0 0
      %12294 = vmatmul.mubr.bf16.gmra.mrb[0].mxu0 %v12201
      %v12295 = vpop.f32.mrb[0].mxu0
      %v12296 = vadd.f32 %v12057, %v12295
      %v12297 = vpop.f32.mrb[0].mxu0
      %v12298 = vpop.f32.mrb[0].mxu0
      %v12299 = vadd.f32 %v12060, %v12298
      %v12300 = vpop.f32.mrb[0].mxu0
      %12301 = vmatprep.mubr.bf16.mxu0 0
      %12302 = vmatmul.mubr.bf16.gmra.mrb[0].mxu0 %v12204
      %v12303 = vpop.f32.mrb[0].mxu0
      %v12304 = vadd.f32 %v12065, %v12303
      %v12305 = vpop.f32.mrb[0].mxu0
      %v12306 = vpop.f32.mrb[0].mxu0
      %v12307 = vadd.f32 %v12068, %v12306
      %v12308 = vpop.f32.mrb[0].mxu0
      %12309 = vmatprep.mubr.bf16.mxu0 0
      %12310 = vmatmul.mubr.bf16.gmra.mrb[0].mxu0 %v12207
      %v12311 = vpop.f32.mrb[0].mxu0
      %v12312 = vadd.f32 %v12073, %v12311
      %v12313 = vpop.f32.mrb[0].mxu0
      %v12314 = vpop.f32.mrb[0].mxu0
      %v12315 = vadd.f32 %v12076, %v12314
      %v12316 = vpop.f32.mrb[0].mxu0
      %12317 = vmatprep.mubr.bf16.mxu0 0
      %12318 = vmatmul.mubr.bf16.gmra.mrb[0].mxu0 %v12210
      %v12319 = vpop.f32.mrb[0].mxu0
      %v12320 = vadd.f32 %v12081, %v12319
      %v12321 = vpop.f32.mrb[0].mxu0
      %v12322 = vpop.f32.mrb[0].mxu0
      %v12323 = vadd.f32 %v12084, %v12322
      %v12324 = vpop.f32.mrb[0].mxu0
      %12325 = vmatprep.mubr.bf16.mxu0 0
      %12326 = vmatmul.mubr.bf16.gmra.mrb[0].mxu0 %v12213
      %v12327 = vpop.f32.mrb[0].mxu0
      %v12328 = vadd.f32 %v12089, %v12327
      %v12329 = vpop.f32.mrb[0].mxu0
      %v12330 = vpop.f32.mrb[0].mxu0
      %v12331 = vadd.f32 %v12092, %v12330
      %v12332 = vpop.f32.mrb[0].mxu0
      %12333 = vmatprep.mubr.bf16.mxu0 0
      %12334 = vmatmul.mubr.bf16.gmra.mrb[0].mxu0 %v12216
      %v12335 = vpop.f32.mrb[0].mxu0
      %v12336 = vadd.f32 %v12097, %v12335
      %v12337 = vpop.f32.mrb[0].mxu0
      %v12338 = vpop.f32.mrb[0].mxu0
      %v12339 = vadd.f32 %v12100, %v12338
      %v12340 = vpop.f32.mrb[0].mxu0
      %12341 = vmatprep.mubr.bf16.mxu0 0
      %12342 = vmatmul.mubr.bf16.gmra.mrb[0].mxu0 %v12219
      %v12343 = vpop.f32.mrb[0].mxu0
      %v12344 = vadd.f32 %v12105, %v12343
      %v12345 = vpop.f32.mrb[0].mxu0
      %v12346 = vpop.f32.mrb[0].mxu0
      %v12347 = vadd.f32 %v12108, %v12346
      %v12348 = vpop.f32.mrb[0].mxu0
      %12349 = vmatprep.mubr.bf16.mxu0 0
      %12350 = vmatmul.mubr.bf16.gmra.mrb[0].mxu0 %v12222
      %v12351 = vpop.f32.mrb[0].mxu0
      %v12352 = vadd.f32 %v12113, %v12351
      %v12353 = vpop.f32.mrb[0].mxu0
      %v12354 = vpop.f32.mrb[0].mxu0
      %v12355 = vadd.f32 %v12116, %v12354
      %v12356 = vpop.f32.mrb[0].mxu0
      %12357 = vmatprep.mubr.bf16.mxu0 0
      %12358 = vmatmul.mubr.bf16.gmra.mrb[0].mxu0 %v12225
      %v12359 = vpop.f32.mrb[0].mxu0
      %v12360 = vadd.f32 %v12121, %v12359
      %v12361 = vpop.f32.mrb[0].mxu0
      %v12362 = vpop.f32.mrb[0].mxu0
      %v12363 = vadd.f32 %v12124, %v12362
      %v12364 = vpop.f32.mrb[0].mxu0
      %12365 = vmatprep.mubr.bf16.mxu0 0
      %12366 = vmatmul.mubr.bf16.gmra.mrb[0].mxu0 %v12228
      %v12367 = vpop.f32.mrb[0].mxu0
      %v12368 = vadd.f32 %v12129, %v12367
      %v12369 = vpop.f32.mrb[0].mxu0
      %v12370 = vpop.f32.mrb[0].mxu0
      %v12371 = vadd.f32 %v12132, %v12370
      %v12372 = vpop.f32.mrb[0].mxu0
      %12373 = vmatprep.mubr.bf16.mxu0 0
      %12374 = vmatmul.mubr.bf16.gmra.mrb[0].mxu0 %v12231
      %v12375 = vpop.f32.mrb[0].mxu0
      %v12376 = vadd.f32 %v12137, %v12375
      %v12377 = vpop.f32.mrb[0].mxu0
      %v12378 = vpop.f32.mrb[0].mxu0
      %v12379 = vadd.f32 %v12140, %v12378
      %v12380 = vpop.f32.mrb[0].mxu0
      %12381 = vmatprep.mubr.bf16.mxu0 0
      %12382 = vmatmul.mubr.bf16.gmra.mrb[0].mxu0 %v12234
      %v12383 = vpop.f32.mrb[0].mxu0
      %v12384 = vadd.f32 %v12145, %v12383
      %v12385 = vpop.f32.mrb[0].mxu0
      %v12386 = vpop.f32.mrb[0].mxu0
      %v12387 = vadd.f32 %v12148, %v12386
      %v12388 = vpop.f32.mrb[0].mxu0
      %12389 = vmatprep.mubr.bf16.mxu0 0
      %12390 = vmatmul.mubr.bf16.gmra.mrb[0].mxu0 %v12237
      %v12391 = vpop.f32.mrb[0].mxu0
      %v12392 = vadd.f32 %v12153, %v12391
      %v12393 = vpop.f32.mrb[0].mxu0
      %v12394 = vpop.f32.mrb[0].mxu0
      %v12395 = vadd.f32 %v12156, %v12394
      %v12396 = vpop.f32.mrb[0].mxu0
      %12397 = vmatprep.mubr.bf16.mxu0 0
      %12398 = vmatmul.mubr.bf16.gmra.mrb[0].mxu0 %v12240
      %v12399 = vpop.f32.mrb[0].mxu0
      %v12400 = vadd.f32 %v12161, %v12399
      %v12401 = vpop.f32.mrb[0].mxu0
      %v12402 = vpop.f32.mrb[0].mxu0
      %v12403 = vadd.f32 %v12164, %v12402
      %v12404 = vpop.f32.mrb[0].mxu0
      %12405 = vdwg.mxu0
      %v12406 = vmax.f32 %v12280, 0.0
      %v12407 = vmax.f32 %v12283, 0.0
      %v12408 = vmax.f32 %v12288, 0.0
      %v12409 = vmax.f32 %v12291, 0.0
      %v12410 = vmax.f32 %v12296, 0.0
      %v12411 = vmax.f32 %v12299, 0.0
      %v12412 = vmax.f32 %v12304, 0.0
      %v12413 = vmax.f32 %v12307, 0.0
      %v12414 = vmax.f32 %v12312, 0.0
      %v12415 = vmax.f32 %v12315, 0.0
      %v12416 = vmax.f32 %v12320, 0.0
      %v12417 = vmax.f32 %v12323, 0.0
      %v12418 = vmax.f32 %v12328, 0.0
      %v12419 = vmax.f32 %v12331, 0.0
      %v12420 = vmax.f32 %v12336, 0.0
      %v12421 = vmax.f32 %v12339, 0.0
      %v12422 = vmax.f32 %v12344, 0.0
      %v12423 = vmax.f32 %v12347, 0.0
      %v12424 = vmax.f32 %v12352, 0.0
      %v12425 = vmax.f32 %v12355, 0.0
      %v12426 = vmax.f32 %v12360, 0.0
      %v12427 = vmax.f32 %v12363, 0.0
      %v12428 = vmax.f32 %v12368, 0.0
      %v12429 = vmax.f32 %v12371, 0.0
      %v12430 = vmax.f32 %v12376, 0.0
      %v12431 = vmax.f32 %v12379, 0.0
      %v12432 = vmax.f32 %v12384, 0.0
      %v12433 = vmax.f32 %v12387, 0.0
      %v12434 = vmax.f32 %v12392, 0.0
      %v12435 = vmax.f32 %v12395, 0.0
      %v12436 = vmax.f32 %v12400, 0.0
      %v12437 = vmax.f32 %v12403, 0.0
      %v12438 = vpack.c.bf16 %v12407, %v12406
      %v12439 = vpack.c.bf16 %v12409, %v12408
      %v12440 = vpack.c.bf16 %v12411, %v12410
      %v12441 = vpack.c.bf16 %v12413, %v12412
      %v12442 = vpack.c.bf16 %v12415, %v12414
      %v12443 = vpack.c.bf16 %v12417, %v12416
      %v12444 = vpack.c.bf16 %v12419, %v12418
      %v12445 = vpack.c.bf16 %v12421, %v12420
      %v12446 = vpack.c.bf16 %v12423, %v12422
      %v12447 = vpack.c.bf16 %v12425, %v12424
      %v12448 = vpack.c.bf16 %v12427, %v12426
      %v12449 = vpack.c.bf16 %v12429, %v12428
      %v12450 = vpack.c.bf16 %v12431, %v12430
      %v12451 = vpack.c.bf16 %v12433, %v12432
      %v12452 = vpack.c.bf16 %v12435, %v12434
      %v12453 = vpack.c.bf16 %v12437, %v12436
      %v12454 = vld [vmem:[%s6] sm:$0x1]
      %v12456 = vsel %vm8048, %v12438, 0
      %v12459 = vsel %vm8048, %v12439, 0
      %v12462 = vsel %vm8048, %v12440, 0
      %v12465 = vsel %vm8048, %v12441, 0
      %v12468 = vsel %vm8048, %v12442, 0
      %v12471 = vsel %vm8048, %v12443, 0
      %v12474 = vsel %vm8048, %v12444, 0
      %v12477 = vsel %vm8048, %v12445, 0
      %v12480 = vsel %vm8048, %v12446, 0
      %v12483 = vsel %vm8048, %v12447, 0
      %v12486 = vsel %vm8048, %v12448, 0
      %v12489 = vsel %vm8048, %v12449, 0
      %v12492 = vsel %vm8048, %v12450, 0
      %v12495 = vsel %vm8048, %v12451, 0
      %v12498 = vsel %vm8048, %v12452, 0
      %v12501 = vsel %vm8048, %v12453, 0
      %v12504 = vsel %vm8097, %v12454, 0
      %12506 = vmatprep.subr.bf16.mxu0 0
      %12507 = vmatpush1.bf16.msra.mxu0 %v12504
      %12508 = vmatprep.subr.bf16.mxu0 0
      %12509 = vmatpush1.bf16.msra.mxu0 0
      %12510 = vmatprep.subr.bf16.mxu0 0
      %12511 = vmatpush1.bf16.msra.mxu0 0
      %12512 = vmatprep.subr.bf16.mxu0 0
      %12513 = vmatpush1.bf16.msra.mxu0 0
      %12514 = vmatprep.subr.bf16.mxu0 0
      %12515 = vmatpush1.bf16.msra.mxu0 0
      %12516 = vmatprep.subr.bf16.mxu0 0
      %12517 = vmatpush1.bf16.msra.mxu0 0
      %12518 = vmatprep.subr.bf16.mxu0 0
      %12519 = vmatpush1.bf16.msra.mxu0 0
      %12520 = vmatprep.subr.bf16.mxu0 0
      %12521 = vmatpush1.bf16.msra.mxu0 0
      %12522 = vmatprep.subr.bf16.mxu0 0
      %12523 = vmatpush1.bf16.msra.mxu0 0
      %12524 = vmatprep.subr.bf16.mxu0 0
      %12525 = vmatpush1.bf16.msra.mxu0 0
      %12526 = vmatprep.subr.bf16.mxu0 0
      %12527 = vmatpush1.bf16.msra.mxu0 0
      %12528 = vmatprep.subr.bf16.mxu0 0
      %12529 = vmatpush1.bf16.msra.mxu0 0
      %12530 = vmatprep.subr.bf16.mxu0 0
      %12531 = vmatpush1.bf16.msra.mxu0 0
      %12532 = vmatprep.subr.bf16.mxu0 0
      %12533 = vmatpush1.bf16.msra.mxu0 0
      %12534 = vmatprep.subr.bf16.mxu0 0
      %12535 = vmatpush1.bf16.msra.mxu0 0
      %12536 = vmatprep.subr.bf16.mxu0 0
      %12537 = vmatpush1.bf16.msra.mxu0 0
      %12538 = vmatprep.mubr.bf16.mxu0 0
      %12539 = vmatmul.mubr.bf16.gmra.mrb[0].mxu0 %v12456
      %v12540 = vpop.f32.mrb[0].mxu0
      %v12541 = vadd.f32 0.0, %v12540
      %v12542 = vpop.f32.mrb[0].mxu0
      %v12543 = vpop.f32.mrb[0].mxu0
      %v12544 = vadd.f32 0.0, %v12543
      %v12545 = vpop.f32.mrb[0].mxu0
      %12546 = vmatprep.mubr.bf16.mxu0 0
      %12547 = vmatmul.mubr.bf16.gmra.mrb[0].mxu0 %v12459
      %v12548 = vpop.f32.mrb[0].mxu0
      %v12549 = vadd.f32 0.0, %v12548
      %v12550 = vpop.f32.mrb[0].mxu0
      %v12551 = vpop.f32.mrb[0].mxu0
      %v12552 = vadd.f32 0.0, %v12551
      %v12553 = vpop.f32.mrb[0].mxu0
      %12554 = vmatprep.mubr.bf16.mxu0 0
      %12555 = vmatmul.mubr.bf16.gmra.mrb[0].mxu0 %v12462
      %v12556 = vpop.f32.mrb[0].mxu0
      %v12557 = vadd.f32 0.0, %v12556
      %v12558 = vpop.f32.mrb[0].mxu0
      %v12559 = vpop.f32.mrb[0].mxu0
      %v12560 = vadd.f32 0.0, %v12559
      %v12561 = vpop.f32.mrb[0].mxu0
      %12562 = vmatprep.mubr.bf16.mxu0 0
      %12563 = vmatmul.mubr.bf16.gmra.mrb[0].mxu0 %v12465
      %v12564 = vpop.f32.mrb[0].mxu0
      %v12565 = vadd.f32 0.0, %v12564
      %v12566 = vpop.f32.mrb[0].mxu0
      %v12567 = vpop.f32.mrb[0].mxu0
      %v12568 = vadd.f32 0.0, %v12567
      %v12569 = vpop.f32.mrb[0].mxu0
      %12570 = vmatprep.mubr.bf16.mxu0 0
      %12571 = vmatmul.mubr.bf16.gmra.mrb[0].mxu0 %v12468
      %v12572 = vpop.f32.mrb[0].mxu0
      %v12573 = vadd.f32 0.0, %v12572
      %v12574 = vpop.f32.mrb[0].mxu0
      %v12575 = vpop.f32.mrb[0].mxu0
      %v12576 = vadd.f32 0.0, %v12575
      %v12577 = vpop.f32.mrb[0].mxu0
      %12578 = vmatprep.mubr.bf16.mxu0 0
      %12579 = vmatmul.mubr.bf16.gmra.mrb[0].mxu0 %v12471
      %v12580 = vpop.f32.mrb[0].mxu0
      %v12581 = vadd.f32 0.0, %v12580
      %v12582 = vpop.f32.mrb[0].mxu0
      %v12583 = vpop.f32.mrb[0].mxu0
      %v12584 = vadd.f32 0.0, %v12583
      %v12585 = vpop.f32.mrb[0].mxu0
      %12586 = vmatprep.mubr.bf16.mxu0 0
      %12587 = vmatmul.mubr.bf16.gmra.mrb[0].mxu0 %v12474
      %v12588 = vpop.f32.mrb[0].mxu0
      %v12589 = vadd.f32 0.0, %v12588
      %v12590 = vpop.f32.mrb[0].mxu0
      %v12591 = vpop.f32.mrb[0].mxu0
      %v12592 = vadd.f32 0.0, %v12591
      %v12593 = vpop.f32.mrb[0].mxu0
      %12594 = vmatprep.mubr.bf16.mxu0 0
      %12595 = vmatmul.mubr.bf16.gmra.mrb[0].mxu0 %v12477
      %v12596 = vpop.f32.mrb[0].mxu0
      %v12597 = vadd.f32 0.0, %v12596
      %v12598 = vpop.f32.mrb[0].mxu0
      %v12599 = vpop.f32.mrb[0].mxu0
      %v12600 = vadd.f32 0.0, %v12599
      %v12601 = vpop.f32.mrb[0].mxu0
      %12602 = vmatprep.mubr.bf16.mxu0 0
      %12603 = vmatmul.mubr.bf16.gmra.mrb[0].mxu0 %v12480
      %v12604 = vpop.f32.mrb[0].mxu0
      %v12605 = vadd.f32 0.0, %v12604
      %v12606 = vpop.f32.mrb[0].mxu0
      %v12607 = vpop.f32.mrb[0].mxu0
      %v12608 = vadd.f32 0.0, %v12607
      %v12609 = vpop.f32.mrb[0].mxu0
      %12610 = vmatprep.mubr.bf16.mxu0 0
      %12611 = vmatmul.mubr.bf16.gmra.mrb[0].mxu0 %v12483
      %v12612 = vpop.f32.mrb[0].mxu0
      %v12613 = vadd.f32 0.0, %v12612
      %v12614 = vpop.f32.mrb[0].mxu0
      %v12615 = vpop.f32.mrb[0].mxu0
      %v12616 = vadd.f32 0.0, %v12615
      %v12617 = vpop.f32.mrb[0].mxu0
      %12618 = vmatprep.mubr.bf16.mxu0 0
      %12619 = vmatmul.mubr.bf16.gmra.mrb[0].mxu0 %v12486
      %v12620 = vpop.f32.mrb[0].mxu0
      %v12621 = vadd.f32 0.0, %v12620
      %v12622 = vpop.f32.mrb[0].mxu0
      %v12623 = vpop.f32.mrb[0].mxu0
      %v12624 = vadd.f32 0.0, %v12623
      %v12625 = vpop.f32.mrb[0].mxu0
      %12626 = vmatprep.mubr.bf16.mxu0 0
      %12627 = vmatmul.mubr.bf16.gmra.mrb[0].mxu0 %v12489
      %v12628 = vpop.f32.mrb[0].mxu0
      %v12629 = vadd.f32 0.0, %v12628
      %v12630 = vpop.f32.mrb[0].mxu0
      %v12631 = vpop.f32.mrb[0].mxu0
      %v12632 = vadd.f32 0.0, %v12631
      %v12633 = vpop.f32.mrb[0].mxu0
      %12634 = vmatprep.mubr.bf16.mxu0 0
      %12635 = vmatmul.mubr.bf16.gmra.mrb[0].mxu0 %v12492
      %v12636 = vpop.f32.mrb[0].mxu0
      %v12637 = vadd.f32 0.0, %v12636
      %v12638 = vpop.f32.mrb[0].mxu0
      %v12639 = vpop.f32.mrb[0].mxu0
      %v12640 = vadd.f32 0.0, %v12639
      %v12641 = vpop.f32.mrb[0].mxu0
      %12642 = vmatprep.mubr.bf16.mxu0 0
      %12643 = vmatmul.mubr.bf16.gmra.mrb[0].mxu0 %v12495
      %v12644 = vpop.f32.mrb[0].mxu0
      %v12645 = vadd.f32 0.0, %v12644
      %v12646 = vpop.f32.mrb[0].mxu0
      %v12647 = vpop.f32.mrb[0].mxu0
      %v12648 = vadd.f32 0.0, %v12647
      %v12649 = vpop.f32.mrb[0].mxu0
      %12650 = vmatprep.mubr.bf16.mxu0 0
      %12651 = vmatmul.mubr.bf16.gmra.mrb[0].mxu0 %v12498
      %v12652 = vpop.f32.mrb[0].mxu0
      %v12653 = vadd.f32 0.0, %v12652
      %v12654 = vpop.f32.mrb[0].mxu0
      %v12655 = vpop.f32.mrb[0].mxu0
      %v12656 = vadd.f32 0.0, %v12655
      %v12657 = vpop.f32.mrb[0].mxu0
      %12658 = vmatprep.mubr.bf16.mxu0 0
      %12659 = vmatmul.mubr.bf16.gmra.mrb[0].mxu0 %v12501
      %v12660 = vpop.f32.mrb[0].mxu0
      %v12661 = vadd.f32 0.0, %v12660
      %v12662 = vpop.f32.mrb[0].mxu0
      %v12663 = vpop.f32.mrb[0].mxu0
      %v12664 = vadd.f32 0.0, %v12663
      %v12665 = vpop.f32.mrb[0].mxu0
      %12666 = vdwg.mxu0
      %v12667 = vsub.f32 0.0, %v12541
      %v12668 = vsub.f32 0.0, %v12544
      %v12669 = vsub.f32 0.0, %v12549
      %v12670 = vsub.f32 0.0, %v12552
      %v12671 = vsub.f32 0.0, %v12557
      %v12672 = vsub.f32 0.0, %v12560
      %v12673 = vsub.f32 0.0, %v12565
      %v12674 = vsub.f32 0.0, %v12568
      %v12675 = vsub.f32 0.0, %v12573
      %v12676 = vsub.f32 0.0, %v12576
      %v12677 = vsub.f32 0.0, %v12581
      %v12678 = vsub.f32 0.0, %v12584
      %v12679 = vsub.f32 0.0, %v12589
      %v12680 = vsub.f32 0.0, %v12592
      %v12681 = vsub.f32 0.0, %v12597
      %v12682 = vsub.f32 0.0, %v12600
      %v12683 = vsub.f32 0.0, %v12605
      %v12684 = vsub.f32 0.0, %v12608
      %v12685 = vsub.f32 0.0, %v12613
      %v12686 = vsub.f32 0.0, %v12616
      %v12687 = vsub.f32 0.0, %v12621
      %v12688 = vsub.f32 0.0, %v12624
      %v12689 = vsub.f32 0.0, %v12629
      %v12690 = vsub.f32 0.0, %v12632
      %v12691 = vsub.f32 0.0, %v12637
      %v12692 = vsub.f32 0.0, %v12640
      %v12693 = vsub.f32 0.0, %v12645
      %v12694 = vsub.f32 0.0, %v12648
      %v12695 = vsub.f32 0.0, %v12653
      %v12696 = vsub.f32 0.0, %v12656
      %v12697 = vsub.f32 0.0, %v12661
      %v12698 = vsub.f32 0.0, %v12664
      %v12699 = vmul.f32 %v12667, 1.442695
      %v12700 = vpow.pop %v12699
      %v12701 = vmul.f32 %v12668, 1.442695
      %v12702 = vpow.pop %v12701
      %v12703 = vmul.f32 %v12669, 1.442695
      %v12704 = vpow.pop %v12703
      %v12705 = vmul.f32 %v12670, 1.442695
      %v12706 = vpow.pop %v12705
      %v12707 = vmul.f32 %v12671, 1.442695
      %v12708 = vpow.pop %v12707
      %v12709 = vmul.f32 %v12672, 1.442695
      %v12710 = vpow.pop %v12709
      %v12711 = vmul.f32 %v12673, 1.442695
      %v12712 = vpow.pop %v12711
      %v12713 = vmul.f32 %v12674, 1.442695
      %v12714 = vpow.pop %v12713
      %v12715 = vmul.f32 %v12675, 1.442695
      %v12716 = vpow.pop %v12715
      %v12717 = vmul.f32 %v12676, 1.442695
      %v12718 = vpow.pop %v12717
      %v12719 = vmul.f32 %v12677, 1.442695
      %v12720 = vpow.pop %v12719
      %v12721 = vmul.f32 %v12678, 1.442695
      %v12722 = vpow.pop %v12721
      %v12723 = vmul.f32 %v12679, 1.442695
      %v12724 = vpow.pop %v12723
      %v12725 = vmul.f32 %v12680, 1.442695
      %v12726 = vpow.pop %v12725
      %v12727 = vmul.f32 %v12681, 1.442695
      %v12728 = vpow.pop %v12727
      %v12729 = vmul.f32 %v12682, 1.442695
      %v12730 = vpow.pop %v12729
      %v12731 = vmul.f32 %v12683, 1.442695
      %v12732 = vpow.pop %v12731
      %v12733 = vmul.f32 %v12684, 1.442695
      %v12734 = vpow.pop %v12733
      %v12735 = vmul.f32 %v12685, 1.442695
      %v12736 = vpow.pop %v12735
      %v12737 = vmul.f32 %v12686, 1.442695
      %v12738 = vpow.pop %v12737
      %v12739 = vmul.f32 %v12687, 1.442695
      %v12740 = vpow.pop %v12739
      %v12741 = vmul.f32 %v12688, 1.442695
      %v12742 = vpow.pop %v12741
      %v12743 = vmul.f32 %v12689, 1.442695
      %v12744 = vpow.pop %v12743
      %v12745 = vmul.f32 %v12690, 1.442695
      %v12746 = vpow.pop %v12745
      %v12747 = vmul.f32 %v12691, 1.442695
      %v12748 = vpow.pop %v12747
      %v12749 = vmul.f32 %v12692, 1.442695
      %v12750 = vpow.pop %v12749
      %v12751 = vmul.f32 %v12693, 1.442695
      %v12752 = vpow.pop %v12751
      %v12753 = vmul.f32 %v12694, 1.442695
      %v12754 = vpow.pop %v12753
      %v12755 = vmul.f32 %v12695, 1.442695
      %v12756 = vpow.pop %v12755
      %v12757 = vmul.f32 %v12696, 1.442695
      %v12758 = vpow.pop %v12757
      %v12759 = vmul.f32 %v12697, 1.442695
      %v12760 = vpow.pop %v12759
      %v12761 = vmul.f32 %v12698, 1.442695
      %v12762 = vpow.pop %v12761
      %v12763 = vadd.f32 %v12700, 1.0
      %v12764 = vadd.f32 %v12702, 1.0
      %v12765 = vadd.f32 %v12704, 1.0
      %v12766 = vadd.f32 %v12706, 1.0
      %v12767 = vadd.f32 %v12708, 1.0
      %v12768 = vadd.f32 %v12710, 1.0
      %v12769 = vadd.f32 %v12712, 1.0
      %v12770 = vadd.f32 %v12714, 1.0
      %v12771 = vadd.f32 %v12716, 1.0
      %v12772 = vadd.f32 %v12718, 1.0
      %v12773 = vadd.f32 %v12720, 1.0
      %v12774 = vadd.f32 %v12722, 1.0
      %v12775 = vadd.f32 %v12724, 1.0
      %v12776 = vadd.f32 %v12726, 1.0
      %v12777 = vadd.f32 %v12728, 1.0
      %v12778 = vadd.f32 %v12730, 1.0
      %v12779 = vadd.f32 %v12732, 1.0
      %v12780 = vadd.f32 %v12734, 1.0
      %v12781 = vadd.f32 %v12736, 1.0
      %v12782 = vadd.f32 %v12738, 1.0
      %v12783 = vadd.f32 %v12740, 1.0
      %v12784 = vadd.f32 %v12742, 1.0
      %v12785 = vadd.f32 %v12744, 1.0
      %v12786 = vadd.f32 %v12746, 1.0
      %v12787 = vadd.f32 %v12748, 1.0
      %v12788 = vadd.f32 %v12750, 1.0
      %v12789 = vadd.f32 %v12752, 1.0
      %v12790 = vadd.f32 %v12754, 1.0
      %v12791 = vadd.f32 %v12756, 1.0
      %v12792 = vadd.f32 %v12758, 1.0
      %v12793 = vadd.f32 %v12760, 1.0
      %v12794 = vadd.f32 %v12762, 1.0
      %v12795 = vrcp.pop %v12763
      %v12796 = vrcp.pop %v12764
      %v12797 = vrcp.pop %v12765
      %v12798 = vrcp.pop %v12766
      %v12799 = vrcp.pop %v12767
      %v12800 = vrcp.pop %v12768
      %v12801 = vrcp.pop %v12769
      %v12802 = vrcp.pop %v12770
      %v12803 = vrcp.pop %v12771
      %v12804 = vrcp.pop %v12772
      %v12805 = vrcp.pop %v12773
      %v12806 = vrcp.pop %v12774
      %v12807 = vrcp.pop %v12775
      %v12808 = vrcp.pop %v12776
      %v12809 = vrcp.pop %v12777
      %v12810 = vrcp.pop %v12778
      %v12811 = vrcp.pop %v12779
      %v12812 = vrcp.pop %v12780
      %v12813 = vrcp.pop %v12781
      %v12814 = vrcp.pop %v12782
      %v12815 = vrcp.pop %v12783
      %v12816 = vrcp.pop %v12784
      %v12817 = vrcp.pop %v12785
      %v12818 = vrcp.pop %v12786
      %v12819 = vrcp.pop %v12787
      %v12820 = vrcp.pop %v12788
      %v12821 = vrcp.pop %v12789
      %v12822 = vrcp.pop %v12790
      %v12823 = vrcp.pop %v12791
      %v12824 = vrcp.pop %v12792
      %v12825 = vrcp.pop %v12793
      %v12826 = vrcp.pop %v12794
      %v12827 = vld [vmem:[%s288] sm:$0xff]
      %v12828 = vld [vmem:[%s288 + $0x8] sm:$0xff]
      %v12829 = vld [vmem:[%s288 + $0x10] sm:$0xff]
      %v12830 = vld [vmem:[%s288 + $0x18] sm:$0xff]
      %v12831 = vld [vmem:[%s288 + $0x20] sm:$0xff]
      %v12832 = vld [vmem:[%s288 + $0x28] sm:$0xff]
      %v12833 = vld [vmem:[%s288 + $0x30] sm:$0xff]
      %v12834 = vld [vmem:[%s288 + $0x38] sm:$0xff]
      %v12835 = vld [vmem:[%s288 + $0x40] sm:$0xff]
      %v12836 = vld [vmem:[%s288 + $0x48] sm:$0xff]
      %v12837 = vld [vmem:[%s288 + $0x50] sm:$0xff]
      %v12838 = vld [vmem:[%s288 + $0x58] sm:$0xff]
      %v12839 = vld [vmem:[%s288 + $0x60] sm:$0xff]
      %v12840 = vld [vmem:[%s288 + $0x68] sm:$0xff]
      %v12841 = vld [vmem:[%s288 + $0x70] sm:$0xff]
      %v12842 = vld [vmem:[%s288 + $0x78] sm:$0xff]
      %v12843 = vld [vmem:[%s288 + $0x80] sm:$0xff]
      %v12844 = vld [vmem:[%s288 + $0x88] sm:$0xff]
      %v12845 = vld [vmem:[%s288 + $0x90] sm:$0xff]
      %v12846 = vld [vmem:[%s288 + $0x98] sm:$0xff]
      %v12847 = vld [vmem:[%s288 + $0xa0] sm:$0xff]
      %v12848 = vld [vmem:[%s288 + $0xa8] sm:$0xff]
      %v12849 = vld [vmem:[%s288 + $0xb0] sm:$0xff]
      %v12850 = vld [vmem:[%s288 + $0xb8] sm:$0xff]
      %v12851 = vld [vmem:[%s288 + $0xc0] sm:$0xff]
      %v12852 = vld [vmem:[%s288 + $0xc8] sm:$0xff]
      %v12853 = vld [vmem:[%s288 + $0xd0] sm:$0xff]
      %v12854 = vld [vmem:[%s288 + $0xd8] sm:$0xff]
      %v12855 = vld [vmem:[%s288 + $0xe0] sm:$0xff]
      %v12856 = vld [vmem:[%s288 + $0xe8] sm:$0xff]
      %v12857 = vld [vmem:[%s288 + $0xf0] sm:$0xff]
      %v12858 = vld [vmem:[%s288 + $0xf8] sm:$0xff]
      %v12859 = vmul.f32 %v12795, %v8136
      %v12860 = vmul.f32 %v12796, %v8139
      %v12861 = vmul.f32 %v12797, %v8144
      %v12862 = vmul.f32 %v12798, %v8147
      %v12863 = vmul.f32 %v12799, %v8152
      %v12864 = vmul.f32 %v12800, %v8155
      %v12865 = vmul.f32 %v12801, %v8160
      %v12866 = vmul.f32 %v12802, %v8163
      %v12867 = vmul.f32 %v12803, %v8168
      %v12868 = vmul.f32 %v12804, %v8171
      %v12869 = vmul.f32 %v12805, %v8176
      %v12870 = vmul.f32 %v12806, %v8179
      %v12871 = vmul.f32 %v12807, %v8184
      %v12872 = vmul.f32 %v12808, %v8187
      %v12873 = vmul.f32 %v12809, %v8192
      %v12874 = vmul.f32 %v12810, %v8195
      %v12875 = vmul.f32 %v12811, %v8200
      %v12876 = vmul.f32 %v12812, %v8203
      %v12877 = vmul.f32 %v12813, %v8208
      %v12878 = vmul.f32 %v12814, %v8211
      %v12879 = vmul.f32 %v12815, %v8216
      %v12880 = vmul.f32 %v12816, %v8219
      %v12881 = vmul.f32 %v12817, %v8224
      %v12882 = vmul.f32 %v12818, %v8227
      %v12883 = vmul.f32 %v12819, %v8232
      %v12884 = vmul.f32 %v12820, %v8235
      %v12885 = vmul.f32 %v12821, %v8240
      %v12886 = vmul.f32 %v12822, %v8243
      %v12887 = vmul.f32 %v12823, %v8248
      %v12888 = vmul.f32 %v12824, %v8251
      %v12889 = vmul.f32 %v12825, %v8256
      %v12890 = vmul.f32 %v12826, %v8259
      %v12891 = vadd.f32 %v12859, %v12827
      %v12892 = vadd.f32 %v12860, %v12828
      %v12893 = vadd.f32 %v12861, %v12829
      %v12894 = vadd.f32 %v12862, %v12830
      %v12895 = vadd.f32 %v12863, %v12831
      %v12896 = vadd.f32 %v12864, %v12832
      %v12897 = vadd.f32 %v12865, %v12833
      %v12898 = vadd.f32 %v12866, %v12834
      %v12899 = vadd.f32 %v12867, %v12835
      %v12900 = vadd.f32 %v12868, %v12836
      %v12901 = vadd.f32 %v12869, %v12837
      %v12902 = vadd.f32 %v12870, %v12838
      %v12903 = vadd.f32 %v12871, %v12839
      %v12904 = vadd.f32 %v12872, %v12840
      %v12905 = vadd.f32 %v12873, %v12841
      %v12906 = vadd.f32 %v12874, %v12842
      %v12907 = vadd.f32 %v12875, %v12843
      %v12908 = vadd.f32 %v12876, %v12844
      %v12909 = vadd.f32 %v12877, %v12845
      %v12910 = vadd.f32 %v12878, %v12846
      %v12911 = vadd.f32 %v12879, %v12847
      %v12912 = vadd.f32 %v12880, %v12848
      %v12913 = vadd.f32 %v12881, %v12849
      %v12914 = vadd.f32 %v12882, %v12850
      %v12915 = vadd.f32 %v12883, %v12851
      %v12916 = vadd.f32 %v12884, %v12852
      %v12917 = vadd.f32 %v12885, %v12853
      %v12918 = vadd.f32 %v12886, %v12854
      %v12919 = vadd.f32 %v12887, %v12855
      %v12920 = vadd.f32 %v12888, %v12856
      %v12921 = vadd.f32 %v12889, %v12857
      %v12922 = vadd.f32 %v12890, %v12858
      %12923 = vst.msk [vmem:[%s298] sm:$0xff] %vm1668, %v12891
      %12924 = vst.msk [vmem:[%s298 + $0x8] sm:$0xff] %vm1668, %v12892
      %12925 = vst.msk [vmem:[%s298 + $0x10] sm:$0xff] %vm1668, %v12893
      %12926 = vst.msk [vmem:[%s298 + $0x18] sm:$0xff] %vm1668, %v12894
      %12927 = vst.msk [vmem:[%s298 + $0x20] sm:$0xff] %vm1668, %v12895
      %12928 = vst.msk [vmem:[%s298 + $0x28] sm:$0xff] %vm1668, %v12896
      %12929 = vst.msk [vmem:[%s298 + $0x30] sm:$0xff] %vm1668, %v12897
      %12930 = vst.msk [vmem:[%s298 + $0x38] sm:$0xff] %vm1668, %v12898
      %12931 = vst.msk [vmem:[%s298 + $0x40] sm:$0xff] %vm1668, %v12899
      %12932 = vst.msk [vmem:[%s298 + $0x48] sm:$0xff] %vm1668, %v12900
      %12933 = vst.msk [vmem:[%s298 + $0x50] sm:$0xff] %vm1668, %v12901
      %12934 = vst.msk [vmem:[%s298 + $0x58] sm:$0xff] %vm1668, %v12902
      %12935 = vst.msk [vmem:[%s298 + $0x60] sm:$0xff] %vm1668, %v12903
      %12936 = vst.msk [vmem:[%s298 + $0x68] sm:$0xff] %vm1668, %v12904
      %12937 = vst.msk [vmem:[%s298 + $0x70] sm:$0xff] %vm1668, %v12905
      %12938 = vst.msk [vmem:[%s298 + $0x78] sm:$0xff] %vm1668, %v12906
      %12939 = vst.msk [vmem:[%s298 + $0x80] sm:$0xff] %vm1668, %v12907
      %12940 = vst.msk [vmem:[%s298 + $0x88] sm:$0xff] %vm1668, %v12908
      %12941 = vst.msk [vmem:[%s298 + $0x90] sm:$0xff] %vm1668, %v12909
      %12942 = vst.msk [vmem:[%s298 + $0x98] sm:$0xff] %vm1668, %v12910
      %12943 = vst.msk [vmem:[%s298 + $0xa0] sm:$0xff] %vm1668, %v12911
      %12944 = vst.msk [vmem:[%s298 + $0xa8] sm:$0xff] %vm1668, %v12912
      %12945 = vst.msk [vmem:[%s298 + $0xb0] sm:$0xff] %vm1668, %v12913
      %12946 = vst.msk [vmem:[%s298 + $0xb8] sm:$0xff] %vm1668, %v12914
      %12947 = vst.msk [vmem:[%s298 + $0xc0] sm:$0xff] %vm1668, %v12915
      %12948 = vst.msk [vmem:[%s298 + $0xc8] sm:$0xff] %vm1668, %v12916
      %12949 = vst.msk [vmem:[%s298 + $0xd0] sm:$0xff] %vm1668, %v12917
      %12950 = vst.msk [vmem:[%s298 + $0xd8] sm:$0xff] %vm1668, %v12918
      %12951 = vst.msk [vmem:[%s298 + $0xe0] sm:$0xff] %vm1668, %v12919
      %12952 = vst.msk [vmem:[%s298 + $0xe8] sm:$0xff] %vm1668, %v12920
      %12953 = vst.msk [vmem:[%s298 + $0xf0] sm:$0xff] %vm1668, %v12921
      %12954 = vst.msk [vmem:[%s298 + $0xf8] sm:$0xff] %vm1668, %v12922
      %p12955 = scmp.lt.s32.totalorder %s18, 1
      %s12956 = scalar_select %p12955, %s18, 1
      %s12957 = smul.addr %s12956, 32
      %s12958 = smul.addr %s12957, 8
      %s12959 = scalar_lea.vmem %s7, %s12958
      // Predicated region
      $region49: #{tpu_custom_call.1} parent=47 // pred_check
        %p12960 = pneg %p193
      $region50: #{tpu_custom_call.1} parent=47 // pred_check_branch
        %12962 = sbr.rel (%p12960) target = $region52
      $region51: #{tpu_custom_call.1} parent=47 // pred_region
        _
      $region52: #{tpu_custom_call.1} parent=47 // pred_fallthru
        _
    $region48: #{tpu_custom_call.1} parent=5 // pred_fallthru
      _
    %p12963 = scmp.le.s32.totalorder 2, %s13
    // Predicated region
    $region53: #{tpu_custom_call.1} parent=5 // pred_check
      %p12964 = pneg %p12963
    $region54: #{tpu_custom_call.1} parent=5 // pred_check_branch
      %12966 = sbr.rel (%p12964) target = $region56
    $region55: #{tpu_custom_call.1} parent=5 // pred_region
      %s12967 = ssub.s32 %s13, 2
      // Predicated region
      $region57: #{tpu_custom_call.1} parent=55 // pred_check
        %p12968 = pneg %p199
      $region58: #{tpu_custom_call.1} parent=55 // pred_check_branch
        %12970 = sbr.rel (%p12968) target = $region60
      $region59: #{tpu_custom_call.1} parent=55 // pred_region
        %p12971 = scmp.lt.s32.totalorder %s19, 1
        %s12972 = scalar_select %p12971, %s19, 1
        %s12973 = smul.addr %s12972, 32
        %s12974 = smul.addr %s12973, 8
        %s12975 = scalar_lea.vmem %s7, %s12974
      $region60: #{tpu_custom_call.1} parent=55 // pred_fallthru
        _
    $region56: #{tpu_custom_call.1} parent=5 // pred_fallthru
      _
  $region6: #{tpu_custom_call.1} parent=0 // loop_footer
    %s17 = sadd.s32 1, %s13
  $region7: #{tpu_custom_call.1} parent=0 // loop_footer_branch
    %12 = sbr.rel target = $region3
  $region8: #{tpu_custom_call.1} parent=0 // loop_exit
    _

</llo_original>
